<compile_context>
chip_gen: v5e
topology: v5e:2x2
jax: 0.10.0
libtpu: 0.0.40
codegen_flags: <defaults>
</compile_context>

<pallas_src>
import functools

import jax
import jax.numpy as jnp
from jax import lax
from jax.experimental import pallas as pl
from jax.experimental.pallas import tpu as pltpu


def _round_up(x, m):
    return ((x + m - 1) // m) * m


def _row_validity_mask(n_rows, base, limit):
    """(n_rows, 1, 1) f32 mask: 1.0 where 0 <= base + row < limit, else 0.0."""
    r = lax.broadcasted_iota(jnp.int32, (n_rows, 1, 1), 0) + base
    return ((r >= 0) & (r < limit)).astype(jnp.float32)


def _store_kw_packed(dst_ref, act, w_data):
    """Store activation `act` (rows, >=w_data, C) into a kw-packed slab.

    dst_ref (rows, w_cols, 3*C) bf16, with channel block kw*C + c holding
    act[:, x + kw - 1, c] (zero outside [0, w_data)).  The next conv's LHS for a
    given kh is then simply dst_ref[kh:kh+n, :, :] with K = 3*C (aligned read).
    """
    rows, w_cols, c3 = dst_ref.shape
    c = c3 // 3
    a = act[:, :w_data, :].astype(dst_ref.dtype)

    # Zero only the SAME-padding / width-pad columns the tap stores don't cover.
    dst_ref[:, 0:1, 0:c] = jnp.zeros((rows, 1, c), dst_ref.dtype)           # in[x-1] @ x=0
    dst_ref[:, w_data - 1:w_cols, 2 * c:3 * c] = jnp.zeros(
        (rows, w_cols - w_data + 1, c), dst_ref.dtype)                      # in[x+1] @ x=W-1 (+pad)
    if w_cols > w_data:
        dst_ref[:, w_data:w_cols, 0:2 * c] = jnp.zeros(
            (rows, w_cols - w_data, 2 * c), dst_ref.dtype)                  # alignment pad cols

    dst_ref[:, 1:w_data, 0:c] = a[:, 0:w_data - 1, :]                       # kw=0 : in[x-1]
    dst_ref[:, 0:w_data, c:2 * c] = a                                       # kw=1 : in[x]
    dst_ref[:, 0:w_data - 1, 2 * c:3 * c] = a[:, 1:w_data, :]               # kw=2 : in[x+1]


# ------------------------------ fused strip kernel ---------------------------

def _shallow_strip_kernel(x_ref, w1a_ref, b1a_ref, w1b_ref, b1b_ref,
                          w2a_ref, b2a_ref, w2b_ref, b2b_ref,
                          o_ref, a1_ref, a2_ref, a3_ref, *, h, w, ts):
    """One (batch, row-strip) grid step of the ShallowNet forward.

    x_ref : (1, 1, 2*ts+12, w+2) f32   raw 1-channel input strip incl. halo+col pad
    w1a   : (16, 64) bf16              flattened conv1a weights (K padded 9->16)
    w1b/w2a/w2b: (3, 3*Cin, Cout) bf16 kw-packed conv weights
    b*    : (1, Cout) f32
    o_ref : (1, ts, w/2, 128) f32
    a1/a2/a3: bf16 VMEM slabs holding kw-packed intermediates (persist per-core,
              but every byte read is rewritten or re-zeroed each strip, so the
              grid may be executed in any order / split across cores).
    """
    h2, w2 = h // 2, w // 2
    q0 = pl.program_id(1) * ts               # first output (H/2-res) row of this strip

    def conv_packed(src_ref, n_rows_out, w_ref, b_ref):
        """3x3 conv from a kw-packed slab: 3 matmuls with K = 3*Cin, f32 acc."""
        w_cols = src_ref.shape[1]
        k, cout = w_ref.shape[1], w_ref.shape[2]
        m = n_rows_out * w_cols
        acc = jnp.zeros((m, cout), jnp.float32)
        for kh in range(3):
            lhs = src_ref[kh:kh + n_rows_out, :, :].reshape(m, k)
            acc = acc + jnp.dot(lhs, w_ref[kh], preferred_element_type=jnp.float32)
        act = jnp.maximum(acc + b_ref[...], 0.0)          # bias + ReLU in f32
        return act.reshape(n_rows_out, w_cols, cout)

    # ---- conv1a (1 -> 64): in-kernel im2col, one K=16 matmul ----
    n1a = 2 * ts + 10                                     # output rows incl. recompute halo
    x = x_ref[0, 0]                                       # (2*ts+12, w+2) f32
    taps = [x[kh:kh + n1a, kw:kw + w] for kh in range(3) for kw in range(3)]
    taps += [jnp.zeros_like(taps[0])] * 7                 # pad K 9 -> 16 (matches w1a)
    xcol = jnp.stack(taps, axis=-1).astype(jnp.bfloat16)  # (n1a, w, 16)
    acc = jnp.dot(xcol.reshape(n1a * w, 16), w1a_ref[...],
                  preferred_element_type=jnp.float32)
    act1a = jnp.maximum(acc + b1a_ref[...], 0.0).reshape(n1a, w, 64)
    # zero out-of-image halo rows (SAME padding must be zero, not conv(0)+bias)
    act1a = act1a * _row_validity_mask(n1a, 2 * q0 - 5, h)
    _store_kw_packed(a1_ref, act1a, w)

    # ---- conv1b (64 -> 64, K=192) with fused 2x2 max-pool epilogue ----
    n1b = 2 * ts + 8
    act1b = conv_packed(a1_ref, n1b, w1b_ref, b1b_ref)    # (n1b, wa, 64) f32
    r = act1b[:, 0:w, :].reshape(ts + 4, 2, w2, 2, 64)
    pooled = jnp.maximum(jnp.maximum(r[:, 0, :, 0, :], r[:, 0, :, 1, :]),
                         jnp.maximum(r[:, 1, :, 0, :], r[:, 1, :, 1, :]))
    pooled = pooled * _row_validity_mask(ts + 4, q0 - 2, h2)
    _store_kw_packed(a2_ref, pooled, w2)

    # ---- conv2a (64 -> 128, K=192) ----
    act2a = conv_packed(a2_ref, ts + 2, w2a_ref, b2a_ref)  # (ts+2, wa2, 128)
    act2a = act2a * _row_validity_mask(ts + 2, q0 - 1, h2)
    _store_kw_packed(a3_ref, act2a, w2)

    # ---- conv2b (128 -> 128, K=384) ----
    act2b = conv_packed(a3_ref, ts, w2b_ref, b2b_ref)      # (ts, wa2, 128)
    o_ref[...] = act2b[:, :w2, :].reshape(o_ref.shape).astype(o_ref.dtype)


# ------------------------------ JAX wrapper ----------------------------------

def _vmem_limit_bytes(ts, w, w2, rows_in):
    wa, wa2 = _round_up(w, 16), _round_up(w2, 16)
    lane = lambda c: _round_up(c, 128)
    slabs = ((2 * ts + 10) * wa * lane(192)
             + (ts + 4) * wa2 * lane(192)
             + (ts + 2) * wa2 * lane(384)) * 2                       # bf16 slabs
    blocks = 2 * (_round_up(rows_in, 8) * lane(w + 2) * 4
                  + ts * _round_up(w2, 8) * 128 * 4)                  # double-buffered in/out
    # allowance for f32 conv accumulators / im2col values kept live in VMEM
    values = ((2 * ts + 10) * w * (64 + 16)
              + (2 * ts + 8) * wa * 64
              + (ts + 4) * wa2 * 192
              + (ts + 2) * wa2 * 256
              + ts * wa2 * 128) * 4
    est = int(1.5 * (slabs + blocks + values))
    return max(32 * 1024 * 1024, min(est, 100 * 1024 * 1024))


def shallow_net_forward(im_data_nchw, params, *, strip_rows=None):
    """im_data_nchw: (N, C, H, W) f32 -> (N, 128, H//2, W//2) f32."""
    n, _, h, w = im_data_nchw.shape
    assert h % 2 == 0 and w % 2 == 0, "even spatial dims expected (MaxPool2d(2))"
    h2, w2 = h // 2, w // 2

    if strip_rows is None:
        # largest divisor of H/2 that is <= 16 output rows per strip
        strip_rows = max(d for d in range(1, min(h2, 16) + 1) if h2 % d == 0)
    ts = int(strip_rows)
    assert h2 % ts == 0, "strip_rows must divide H//2"
    n_strips = h2 // ts

    wa, wa2 = _round_up(w, 16), _round_up(w2, 16)
    rows_in = 2 * ts + 12                                   # input rows incl. recompute halo

    # --- input strips (single channel, f32) with recompute halos -------------
    # padded row g+6 <-> image row g ; padded col c+1 <-> image col c
    x = im_data_nchw[:, 0, :, :].astype(jnp.float32)
    xp = jnp.pad(x, ((0, 0), (6, 6), (1, 1)))
    strips = [lax.dynamic_slice_in_dim(xp, 2 * s * ts, rows_in, axis=1)
              for s in range(n_strips)]
    x_strips = jnp.stack(strips, axis=1)                    # (N, n_strips, rows_in, W+2)

    # --- weights: kw taps packed along the contraction axis ------------------
    w1a = jnp.pad(params["w1a"].reshape(9, 64), ((0, 7), (0, 0))).astype(jnp.bfloat16)
    w1b = params["w1b"].reshape(3, 3 * 64, 64).astype(jnp.bfloat16)
    w2a = params["w2a"].reshape(3, 3 * 64, 128).astype(jnp.bfloat16)
    w2b = params["w2b"].reshape(3, 3 * 128, 128).astype(jnp.bfloat16)
    b1a = params["b1a"].reshape(1, 64).astype(jnp.float32)
    b1b = params["b1b"].reshape(1, 64).astype(jnp.float32)
    b2a = params["b2a"].reshape(1, 128).astype(jnp.float32)
    b2b = params["b2b"].reshape(1, 128).astype(jnp.float32)

    kernel = functools.partial(_shallow_strip_kernel, h=h, w=w, ts=ts)

    out_nhwc = pl.pallas_call(
        kernel,
        out_shape=jax.ShapeDtypeStruct((n, h2, w2, 128), jnp.float32),
        grid=(n, n_strips),
        in_specs=[
            pl.BlockSpec((1, 1, rows_in, w + 2), lambda i, s: (i, s, 0, 0)),
            pl.BlockSpec((16, 64), lambda i, s: (0, 0)),
            pl.BlockSpec((1, 64), lambda i, s: (0, 0)),
            pl.BlockSpec((3, 192, 64), lambda i, s: (0, 0, 0)),
            pl.BlockSpec((1, 64), lambda i, s: (0, 0)),
            pl.BlockSpec((3, 192, 128), lambda i, s: (0, 0, 0)),
            pl.BlockSpec((1, 128), lambda i, s: (0, 0)),
            pl.BlockSpec((3, 384, 128), lambda i, s: (0, 0, 0)),
            pl.BlockSpec((1, 128), lambda i, s: (0, 0)),
        ],
        out_specs=pl.BlockSpec((1, ts, w2, 128), lambda i, s: (i, s, 0, 0)),
        scratch_shapes=[
            pltpu.VMEM((2 * ts + 10, wa, 192), jnp.bfloat16),   # kw-packed conv1a output
            pltpu.VMEM((ts + 4, wa2, 192), jnp.bfloat16),       # kw-packed pooled conv1b
            pltpu.VMEM((ts + 2, wa2, 384), jnp.bfloat16),       # kw-packed conv2a output
        ],
        compiler_params=pltpu.CompilerParams(
            dimension_semantics=("parallel", "parallel"),
            vmem_limit_bytes=_vmem_limit_bytes(ts, w, w2, rows_in)),
    )(x_strips, w1a, b1a, w1b, b1b, w2a, b2a, w2b, b2b)

    return jnp.transpose(out_nhwc, (0, 3, 1, 2))             # NHWC -> NCHW (module parity)


# --------------------------- reference (pure JAX) ----------------------------

def _ref_conv3x3_relu(x, w, b):
    y = lax.conv_general_dilated(
        x, w, window_strides=(1, 1), padding="SAME",
        dimension_numbers=("NHWC", "HWIO", "NHWC"))
    return jnp.maximum(y + b.reshape(1, 1, 1, -1), 0.0)


def _ref_maxpool2(x):
    return lax.reduce_window(x, -jnp.inf, lax.max,
                             (1, 2, 2, 1), (1, 2, 2, 1), "VALID")


def _ref_forward(im_data_nchw, p):
    x = jnp.transpose(im_data_nchw[:, :1, :, :], (0, 2, 3, 1))
    x = _ref_conv3x3_relu(x, p["w1a"], p["b1a"])
    x = _ref_conv3x3_relu(x, p["w1b"], p["b1b"])
    x = _ref_maxpool2(x)
    x = _ref_conv3x3_relu(x, p["w2a"], p["b2a"])
    x = _ref_conv3x3_relu(x, p["w2b"], p["b2b"])
    return jnp.transpose(x, (0, 3, 1, 2))


# ---------------------------------- main -------------------------------------

def _init_params(key):
    ks = jax.random.split(key, 4)

    def conv_init(k, cin, cout):
        fan_in = 3 * 3 * cin
        w = jax.random.normal(k, (3, 3, cin, cout), jnp.float32) * (fan_in ** -0.5)
        b = jnp.full((cout,), 0.01, jnp.float32)
        return w, b

    w1a, b1a = conv_init(ks[0], 1, 64)
    w1b, b1b = conv_init(ks[1], 64, 64)
    w2a, b2a = conv_init(ks[2], 64, 128)
    w2b, b2b = conv_init(ks[3], 128, 128)
    return dict(w1a=w1a, b1a=b1a, w1b=w1b, b1b=b1b,
                w2a=w2a, b2a=b2a, w2b=w2b, b2b=b2b)


if __name__ == "__main__":
    key = jax.random.PRNGKey(0)
    k_x, k_p = jax.random.split(key)

    # Small NCHW input consistent with the module (only channel 0 is used).
    im_data = jax.random.normal(k_x, (2, 4, 16, 16), jnp.float32)
    params = _init_params(k_p)

    # strip_rows=4 -> 2 row-strips per image: exercises the halo recompute,
    # the boundary-row masking, and the (batch, strip) parallel grid.
    fwd = jax.jit(functools.partial(shallow_net_forward, strip_rows=4))
    out = jax.block_until_ready(fwd(im_data, params))
    assert out.shape == (2, 128, 8, 8), out.shape

    ref = jax.block_until_ready(_ref_forward(im_data, params))
    # bf16 MXU operands + bf16 VMEM intermediates -> loosened tolerance vs f32 ref.
    max_err = float(jnp.max(jnp.abs(out - ref)))
    assert jnp.allclose(out, ref, rtol=5e-2, atol=5e-2), max_err

    print("KERNEL_OK")
</pallas_src>

<mosaic_0001>
module attributes {stable_mosaic.version = 11 : i64} {
  func.func @_shallow_strip_kernel(%arg0: i32, %arg1: i32, %arg2: memref<1x1x20x18xf32, #tpu.memory_space<vmem>>, %arg3: memref<16x64xbf16, #tpu.memory_space<vmem>>, %arg4: memref<1x64xf32, #tpu.memory_space<vmem>>, %arg5: memref<3x192x64xbf16, #tpu.memory_space<vmem>>, %arg6: memref<1x64xf32, #tpu.memory_space<vmem>>, %arg7: memref<3x192x128xbf16, #tpu.memory_space<vmem>>, %arg8: memref<1x128xf32, #tpu.memory_space<vmem>>, %arg9: memref<3x384x128xbf16, #tpu.memory_space<vmem>>, %arg10: memref<1x128xf32, #tpu.memory_space<vmem>>, %arg11: memref<1x4x8x128xf32, #tpu.memory_space<vmem>>, %arg12: memref<18x16x192xbf16, #tpu.memory_space<vmem>>, %arg13: memref<8x16x192xbf16, #tpu.memory_space<vmem>>, %arg14: memref<6x16x384xbf16, #tpu.memory_space<vmem>>) attributes {dimension_semantics = [#tpu.dimension_semantics<parallel>, #tpu.dimension_semantics<parallel>], iteration_bounds = array<i64: 2, 2>, scalar_prefetch = 0 : i64, scratch_operands = 3 : i64, tpu.core_type = #tpu.core_type<tc>, window_params = [{transform_indices = @transform_0, window_bounds = array<i64: 1, 1, 20, 18>}, {pipeline_mode = #tpu.pipeline_mode<synchronous>, transform_indices = @transform_1, window_bounds = array<i64: 16, 64>}, {pipeline_mode = #tpu.pipeline_mode<synchronous>, transform_indices = @transform_2, window_bounds = array<i64: 1, 64>}, {pipeline_mode = #tpu.pipeline_mode<synchronous>, transform_indices = @transform_3, window_bounds = array<i64: 3, 192, 64>}, {pipeline_mode = #tpu.pipeline_mode<synchronous>, transform_indices = @transform_4, window_bounds = array<i64: 1, 64>}, {pipeline_mode = #tpu.pipeline_mode<synchronous>, transform_indices = @transform_5, window_bounds = array<i64: 3, 192, 128>}, {pipeline_mode = #tpu.pipeline_mode<synchronous>, transform_indices = @transform_6, window_bounds = array<i64: 1, 128>}, {pipeline_mode = #tpu.pipeline_mode<synchronous>, transform_indices = @transform_7, window_bounds = array<i64: 3, 384, 128>}, {pipeline_mode = #tpu.pipeline_mode<synchronous>, transform_indices = @transform_8, window_bounds = array<i64: 1, 128>}, {transform_indices = @transform_9, window_bounds = array<i64: 1, 4, 8, 128>}]} {
    %c4_i32 = arith.constant 4 : i32
    %0 = arith.muli %arg1, %c4_i32 : i32
    %c0 = arith.constant 0 : index
    %c0_0 = arith.constant 0 : index
    %c0_1 = arith.constant 0 : index
    %c0_2 = arith.constant 0 : index
    %1 = vector.load %arg2[%c0, %c0_0, %c0_1, %c0_2] : memref<1x1x20x18xf32, #tpu.memory_space<vmem>>, vector<1x1x20x18xf32>
    %2 = vector.shape_cast %1 : vector<1x1x20x18xf32> to vector<20x18xf32>
    %3 = vector.extract_strided_slice %2 {offsets = [0, 0], sizes = [18, 16], strides = [1, 1]} : vector<20x18xf32> to vector<18x16xf32>
    %4 = vector.extract_strided_slice %2 {offsets = [0, 1], sizes = [18, 16], strides = [1, 1]} : vector<20x18xf32> to vector<18x16xf32>
    %5 = vector.extract_strided_slice %2 {offsets = [0, 2], sizes = [18, 16], strides = [1, 1]} : vector<20x18xf32> to vector<18x16xf32>
    %6 = vector.extract_strided_slice %2 {offsets = [1, 0], sizes = [18, 16], strides = [1, 1]} : vector<20x18xf32> to vector<18x16xf32>
    %7 = vector.extract_strided_slice %2 {offsets = [1, 1], sizes = [18, 16], strides = [1, 1]} : vector<20x18xf32> to vector<18x16xf32>
    %8 = vector.extract_strided_slice %2 {offsets = [1, 2], sizes = [18, 16], strides = [1, 1]} : vector<20x18xf32> to vector<18x16xf32>
    %9 = vector.extract_strided_slice %2 {offsets = [2, 0], sizes = [18, 16], strides = [1, 1]} : vector<20x18xf32> to vector<18x16xf32>
    %10 = vector.extract_strided_slice %2 {offsets = [2, 1], sizes = [18, 16], strides = [1, 1]} : vector<20x18xf32> to vector<18x16xf32>
    %11 = vector.extract_strided_slice %2 {offsets = [2, 2], sizes = [18, 16], strides = [1, 1]} : vector<20x18xf32> to vector<18x16xf32>
    %cst = arith.constant 0.000000e+00 : f32
    %12 = vector.broadcast %cst : f32 to vector<18x16xf32>
    %13 = vector.shape_cast %3 : vector<18x16xf32> to vector<18x16x1xf32>
    %14 = vector.shape_cast %4 : vector<18x16xf32> to vector<18x16x1xf32>
    %15 = vector.shape_cast %5 : vector<18x16xf32> to vector<18x16x1xf32>
    %16 = vector.shape_cast %6 : vector<18x16xf32> to vector<18x16x1xf32>
    %17 = vector.shape_cast %7 : vector<18x16xf32> to vector<18x16x1xf32>
    %18 = vector.shape_cast %8 : vector<18x16xf32> to vector<18x16x1xf32>
    %19 = vector.shape_cast %9 : vector<18x16xf32> to vector<18x16x1xf32>
    %20 = vector.shape_cast %10 : vector<18x16xf32> to vector<18x16x1xf32>
    %21 = vector.shape_cast %11 : vector<18x16xf32> to vector<18x16x1xf32>
    %22 = vector.shape_cast %12 : vector<18x16xf32> to vector<18x16x1xf32>
    %23 = vector.shape_cast %12 : vector<18x16xf32> to vector<18x16x1xf32>
    %24 = vector.shape_cast %12 : vector<18x16xf32> to vector<18x16x1xf32>
    %25 = vector.shape_cast %12 : vector<18x16xf32> to vector<18x16x1xf32>
    %26 = vector.shape_cast %12 : vector<18x16xf32> to vector<18x16x1xf32>
    %27 = vector.shape_cast %12 : vector<18x16xf32> to vector<18x16x1xf32>
    %28 = vector.shape_cast %12 : vector<18x16xf32> to vector<18x16x1xf32>
    %29 = tpu.concatenate %13, %14, %15, %16, %17, %18, %19, %20, %21, %22, %23, %24, %25, %26, %27, %28 in 2 : vector<18x16x1xf32>, vector<18x16x1xf32>, vector<18x16x1xf32>, vector<18x16x1xf32>, vector<18x16x1xf32>, vector<18x16x1xf32>, vector<18x16x1xf32>, vector<18x16x1xf32>, vector<18x16x1xf32>, vector<18x16x1xf32>, vector<18x16x1xf32>, vector<18x16x1xf32>, vector<18x16x1xf32>, vector<18x16x1xf32>, vector<18x16x1xf32>, vector<18x16x1xf32> -> vector<18x16x16xf32>
    %30 = arith.truncf %29 : vector<18x16x16xf32> to vector<18x16x16xbf16>
    %31 = vector.shape_cast %30 : vector<18x16x16xbf16> to vector<288x16xbf16>
    %c0_3 = arith.constant 0 : index
    %c0_4 = arith.constant 0 : index
    %32 = vector.load %arg3[%c0_3, %c0_4] : memref<16x64xbf16, #tpu.memory_space<vmem>>, vector<16x64xbf16>
    %cst_5 = arith.constant dense<0.000000e+00> : vector<288x64xf32>
    %33 = tpu.matmul %31, %32, %cst_5 {dimension_numbers = #tpu.dot_dimension_numbers<[1], [0], [0], [1], [0, 0, 1, 1], [], []>} : vector<288x16xbf16>, vector<16x64xbf16>, vector<288x64xf32> -> vector<288x64xf32>
    %c0_6 = arith.constant 0 : index
    %c0_7 = arith.constant 0 : index
    %34 = vector.load %arg4[%c0_6, %c0_7] : memref<1x64xf32, #tpu.memory_space<vmem>>, vector<1x64xf32>
    %35 = vector.broadcast %34 : vector<1x64xf32> to vector<288x64xf32>
    %36 = arith.addf %33, %35 : vector<288x64xf32>
    %cst_8 = arith.constant 0.000000e+00 : f32
    %37 = vector.broadcast %cst_8 : f32 to vector<288x64xf32>
    %38 = arith.maximumf %36, %37 : vector<288x64xf32>
    %39 = vector.shape_cast %38 : vector<288x64xf32> to vector<18x16x64xf32>
    %c2_i32 = arith.constant 2 : i32
    %40 = arith.muli %c2_i32, %0 : i32
    %c5_i32 = arith.constant 5 : i32
    %41 = arith.subi %40, %c5_i32 : i32
    %42 = tpu.iota {dimensions = array<i32: 0>} : vector<18x1x1xi32>
    %43 = vector.broadcast %41 : i32 to vector<18x1x1xi32>
    %44 = arith.addi %42, %43 : vector<18x1x1xi32>
    %c0_i32 = arith.constant 0 : i32
    %45 = vector.broadcast %c0_i32 : i32 to vector<18x1x1xi32>
    %46 = arith.cmpi sge, %44, %45 : vector<18x1x1xi32>
    %c16_i32 = arith.constant 16 : i32
    %47 = vector.broadcast %c16_i32 : i32 to vector<18x1x1xi32>
    %48 = arith.cmpi slt, %44, %47 : vector<18x1x1xi32>
    %49 = arith.andi %46, %48 : vector<18x1x1xi1>
    %50 = arith.extui %49 : vector<18x1x1xi1> to vector<18x1x1xi32>
    %51 = arith.sitofp %50 : vector<18x1x1xi32> to vector<18x1x1xf32>
    %52 = vector.broadcast %51 : vector<18x1x1xf32> to vector<18x16x64xf32>
    %53 = arith.mulf %39, %52 : vector<18x16x64xf32>
    %54 = arith.truncf %53 : vector<18x16x64xf32> to vector<18x16x64xbf16>
    %cst_9 = arith.constant 0.000000e+00 : bf16
    %55 = vector.broadcast %cst_9 : bf16 to vector<18x1x64xbf16>
    %c0_10 = arith.constant 0 : index
    %c0_11 = arith.constant 0 : index
    %c0_12 = arith.constant 0 : index
    %56 = vector.load %arg12[%c0_10, %c0_11, %c0_12] : memref<18x16x192xbf16, #tpu.memory_space<vmem>>, vector<18x1x64xbf16>
    tpu.vector_store %arg12[%c0_10, %c0_11, %c0_12], %55 {strides = array<i32>} : memref<18x16x192xbf16, #tpu.memory_space<vmem>>, vector<18x1x64xbf16>,
    %cst_13 = arith.constant 0.000000e+00 : bf16
    %57 = vector.broadcast %cst_13 : bf16 to vector<18x1x64xbf16>
    %c0_14 = arith.constant 0 : index
    %c15 = arith.constant 15 : index
    %c128 = arith.constant 128 : index
    %58 = vector.load %arg12[%c0_14, %c15, %c128] : memref<18x16x192xbf16, #tpu.memory_space<vmem>>, vector<18x1x64xbf16>
    tpu.vector_store %arg12[%c0_14, %c15, %c128], %57 {strides = array<i32>} : memref<18x16x192xbf16, #tpu.memory_space<vmem>>, vector<18x1x64xbf16>,
    %59 = vector.extract_strided_slice %54 {offsets = [0, 0, 0], sizes = [18, 15, 64], strides = [1, 1, 1]} : vector<18x16x64xbf16> to vector<18x15x64xbf16>
    %c0_15 = arith.constant 0 : index
    %c1 = arith.constant 1 : index
    %c0_16 = arith.constant 0 : index
    %60 = vector.load %arg12[%c0_15, %c1, %c0_16] : memref<18x16x192xbf16, #tpu.memory_space<vmem>>, vector<18x15x64xbf16>
    tpu.vector_store %arg12[%c0_15, %c1, %c0_16], %59 {strides = array<i32>} : memref<18x16x192xbf16, #tpu.memory_space<vmem>>, vector<18x15x64xbf16>,
    %c0_17 = arith.constant 0 : index
    %c0_18 = arith.constant 0 : index
    %c64 = arith.constant 64 : index
    %61 = vector.load %arg12[%c0_17, %c0_18, %c64] : memref<18x16x192xbf16, #tpu.memory_space<vmem>>, vector<18x16x64xbf16>
    tpu.vector_store %arg12[%c0_17, %c0_18, %c64], %54 {strides = array<i32>} : memref<18x16x192xbf16, #tpu.memory_space<vmem>>, vector<18x16x64xbf16>,
    %62 = vector.extract_strided_slice %54 {offsets = [0, 1, 0], sizes = [18, 15, 64], strides = [1, 1, 1]} : vector<18x16x64xbf16> to vector<18x15x64xbf16>
    %c0_19 = arith.constant 0 : index
    %c0_20 = arith.constant 0 : index
    %c128_21 = arith.constant 128 : index
    %63 = vector.load %arg12[%c0_19, %c0_20, %c128_21] : memref<18x16x192xbf16, #tpu.memory_space<vmem>>, vector<18x15x64xbf16>
    tpu.vector_store %arg12[%c0_19, %c0_20, %c128_21], %62 {strides = array<i32>} : memref<18x16x192xbf16, #tpu.memory_space<vmem>>, vector<18x15x64xbf16>,
    %cst_22 = arith.constant 0.000000e+00 : f32
    %64 = vector.broadcast %cst_22 : f32 to vector<256x64xf32>
    %c0_23 = arith.constant 0 : index
    %c0_24 = arith.constant 0 : index
    %c0_25 = arith.constant 0 : index
    %65 = vector.load %arg12[%c0_23, %c0_24, %c0_25] : memref<18x16x192xbf16, #tpu.memory_space<vmem>>, vector<16x16x192xbf16>
    %66 = vector.shape_cast %65 : vector<16x16x192xbf16> to vector<256x192xbf16>
    %c0_26 = arith.constant 0 : index
    %c0_27 = arith.constant 0 : index
    %c0_28 = arith.constant 0 : index
    %67 = vector.load %arg5[%c0_26, %c0_27, %c0_28] : memref<3x192x64xbf16, #tpu.memory_space<vmem>>, vector<1x192x64xbf16>
    %68 = vector.shape_cast %67 : vector<1x192x64xbf16> to vector<192x64xbf16>
    %cst_29 = arith.constant dense<0.000000e+00> : vector<256x64xf32>
    %69 = tpu.matmul %66, %68, %cst_29 {dimension_numbers = #tpu.dot_dimension_numbers<[1], [0], [0], [1], [0, 0, 1, 1], [], []>} : vector<256x192xbf16>, vector<192x64xbf16>, vector<256x64xf32> -> vector<256x64xf32>
    %70 = arith.addf %64, %69 : vector<256x64xf32>
    %c1_30 = arith.constant 1 : index
    %c0_31 = arith.constant 0 : index
    %c0_32 = arith.constant 0 : index
    %71 = vector.load %arg12[%c1_30, %c0_31, %c0_32] : memref<18x16x192xbf16, #tpu.memory_space<vmem>>, vector<16x16x192xbf16>
    %72 = vector.shape_cast %71 : vector<16x16x192xbf16> to vector<256x192xbf16>
    %c1_33 = arith.constant 1 : index
    %c0_34 = arith.constant 0 : index
    %c0_35 = arith.constant 0 : index
    %73 = vector.load %arg5[%c1_33, %c0_34, %c0_35] : memref<3x192x64xbf16, #tpu.memory_space<vmem>>, vector<1x192x64xbf16>
    %74 = vector.shape_cast %73 : vector<1x192x64xbf16> to vector<192x64xbf16>
    %cst_36 = arith.constant dense<0.000000e+00> : vector<256x64xf32>
    %75 = tpu.matmul %72, %74, %cst_36 {dimension_numbers = #tpu.dot_dimension_numbers<[1], [0], [0], [1], [0, 0, 1, 1], [], []>} : vector<256x192xbf16>, vector<192x64xbf16>, vector<256x64xf32> -> vector<256x64xf32>
    %76 = arith.addf %70, %75 : vector<256x64xf32>
    %c2 = arith.constant 2 : index
    %c0_37 = arith.constant 0 : index
    %c0_38 = arith.constant 0 : index
    %77 = vector.load %arg12[%c2, %c0_37, %c0_38] : memref<18x16x192xbf16, #tpu.memory_space<vmem>>, vector<16x16x192xbf16>
    %78 = vector.shape_cast %77 : vector<16x16x192xbf16> to vector<256x192xbf16>
    %c2_39 = arith.constant 2 : index
    %c0_40 = arith.constant 0 : index
    %c0_41 = arith.constant 0 : index
    %79 = vector.load %arg5[%c2_39, %c0_40, %c0_41] : memref<3x192x64xbf16, #tpu.memory_space<vmem>>, vector<1x192x64xbf16>
    %80 = vector.shape_cast %79 : vector<1x192x64xbf16> to vector<192x64xbf16>
    %cst_42 = arith.constant dense<0.000000e+00> : vector<256x64xf32>
    %81 = tpu.matmul %78, %80, %cst_42 {dimension_numbers = #tpu.dot_dimension_numbers<[1], [0], [0], [1], [0, 0, 1, 1], [], []>} : vector<256x192xbf16>, vector<192x64xbf16>, vector<256x64xf32> -> vector<256x64xf32>
    %82 = arith.addf %76, %81 : vector<256x64xf32>
    %c0_43 = arith.constant 0 : index
    %c0_44 = arith.constant 0 : index
    %83 = vector.load %arg6[%c0_43, %c0_44] : memref<1x64xf32, #tpu.memory_space<vmem>>, vector<1x64xf32>
    %84 = vector.broadcast %83 : vector<1x64xf32> to vector<256x64xf32>
    %85 = arith.addf %82, %84 : vector<256x64xf32>
    %cst_45 = arith.constant 0.000000e+00 : f32
    %86 = vector.broadcast %cst_45 : f32 to vector<256x64xf32>
    %87 = arith.maximumf %85, %86 : vector<256x64xf32>
    %88 = vector.shape_cast %87 : vector<256x64xf32> to vector<16x16x64xf32>
    %89 = vector.shape_cast %88 : vector<16x16x64xf32> to vector<8x2x8x2x64xf32>
    %90 = vector.extract_strided_slice %89 {offsets = [0, 0, 0, 0, 0], sizes = [8, 1, 8, 1, 64], strides = [1, 1, 1, 1, 1]} : vector<8x2x8x2x64xf32> to vector<8x1x8x1x64xf32>
    %91 = vector.shape_cast %90 : vector<8x1x8x1x64xf32> to vector<8x8x64xf32>
    %92 = vector.extract_strided_slice %89 {offsets = [0, 0, 0, 1, 0], sizes = [8, 1, 8, 1, 64], strides = [1, 1, 1, 1, 1]} : vector<8x2x8x2x64xf32> to vector<8x1x8x1x64xf32>
    %93 = vector.shape_cast %92 : vector<8x1x8x1x64xf32> to vector<8x8x64xf32>
    %94 = arith.maximumf %91, %93 : vector<8x8x64xf32>
    %95 = vector.extract_strided_slice %89 {offsets = [0, 1, 0, 0, 0], sizes = [8, 1, 8, 1, 64], strides = [1, 1, 1, 1, 1]} : vector<8x2x8x2x64xf32> to vector<8x1x8x1x64xf32>
    %96 = vector.shape_cast %95 : vector<8x1x8x1x64xf32> to vector<8x8x64xf32>
    %97 = vector.extract_strided_slice %89 {offsets = [0, 1, 0, 1, 0], sizes = [8, 1, 8, 1, 64], strides = [1, 1, 1, 1, 1]} : vector<8x2x8x2x64xf32> to vector<8x1x8x1x64xf32>
    %98 = vector.shape_cast %97 : vector<8x1x8x1x64xf32> to vector<8x8x64xf32>
    %99 = arith.maximumf %96, %98 : vector<8x8x64xf32>
    %100 = arith.maximumf %94, %99 : vector<8x8x64xf32>
    %c2_i32_46 = arith.constant 2 : i32
    %101 = arith.subi %0, %c2_i32_46 : i32
    %102 = tpu.iota {dimensions = array<i32: 0>} : vector<8x1x1xi32>
    %103 = vector.broadcast %101 : i32 to vector<8x1x1xi32>
    %104 = arith.addi %102, %103 : vector<8x1x1xi32>
    %c0_i32_47 = arith.constant 0 : i32
    %105 = vector.broadcast %c0_i32_47 : i32 to vector<8x1x1xi32>
    %106 = arith.cmpi sge, %104, %105 : vector<8x1x1xi32>
    %c8_i32 = arith.constant 8 : i32
    %107 = vector.broadcast %c8_i32 : i32 to vector<8x1x1xi32>
    %108 = arith.cmpi slt, %104, %107 : vector<8x1x1xi32>
    %109 = arith.andi %106, %108 : vector<8x1x1xi1>
    %110 = arith.extui %109 : vector<8x1x1xi1> to vector<8x1x1xi32>
    %111 = arith.sitofp %110 : vector<8x1x1xi32> to vector<8x1x1xf32>
    %112 = vector.broadcast %111 : vector<8x1x1xf32> to vector<8x8x64xf32>
    %113 = arith.mulf %100, %112 : vector<8x8x64xf32>
    %114 = arith.truncf %113 : vector<8x8x64xf32> to vector<8x8x64xbf16>
    %cst_48 = arith.constant 0.000000e+00 : bf16
    %115 = vector.broadcast %cst_48 : bf16 to vector<8x1x64xbf16>
    %c0_49 = arith.constant 0 : index
    %c0_50 = arith.constant 0 : index
    %c0_51 = arith.constant 0 : index
    %116 = vector.load %arg13[%c0_49, %c0_50, %c0_51] : memref<8x16x192xbf16, #tpu.memory_space<vmem>>, vector<8x1x64xbf16>
    tpu.vector_store %arg13[%c0_49, %c0_50, %c0_51], %115 {strides = array<i32>} : memref<8x16x192xbf16, #tpu.memory_space<vmem>>, vector<8x1x64xbf16>,
    %cst_52 = arith.constant 0.000000e+00 : bf16
    %117 = vector.broadcast %cst_52 : bf16 to vector<8x9x64xbf16>
    %c0_53 = arith.constant 0 : index
    %c7 = arith.constant 7 : index
    %c128_54 = arith.constant 128 : index
    %118 = vector.load %arg13[%c0_53, %c7, %c128_54] : memref<8x16x192xbf16, #tpu.memory_space<vmem>>, vector<8x9x64xbf16>
    tpu.vector_store %arg13[%c0_53, %c7, %c128_54], %117 {strides = array<i32>} : memref<8x16x192xbf16, #tpu.memory_space<vmem>>, vector<8x9x64xbf16>,
    %cst_55 = arith.constant 0.000000e+00 : bf16
    %119 = vector.broadcast %cst_55 : bf16 to vector<8x8x128xbf16>
    %c0_56 = arith.constant 0 : index
    %c8 = arith.constant 8 : index
    %c0_57 = arith.constant 0 : index
    %120 = vector.load %arg13[%c0_56, %c8, %c0_57] : memref<8x16x192xbf16, #tpu.memory_space<vmem>>, vector<8x8x128xbf16>
    tpu.vector_store %arg13[%c0_56, %c8, %c0_57], %119 {strides = array<i32>} : memref<8x16x192xbf16, #tpu.memory_space<vmem>>, vector<8x8x128xbf16>,
    %121 = vector.extract_strided_slice %114 {offsets = [0, 0, 0], sizes = [8, 7, 64], strides = [1, 1, 1]} : vector<8x8x64xbf16> to vector<8x7x64xbf16>
    %c0_58 = arith.constant 0 : index
    %c1_59 = arith.constant 1 : index
    %c0_60 = arith.constant 0 : index
    %122 = vector.load %arg13[%c0_58, %c1_59, %c0_60] : memref<8x16x192xbf16, #tpu.memory_space<vmem>>, vector<8x7x64xbf16>
    tpu.vector_store %arg13[%c0_58, %c1_59, %c0_60], %121 {strides = array<i32>} : memref<8x16x192xbf16, #tpu.memory_space<vmem>>, vector<8x7x64xbf16>,
    %c0_61 = arith.constant 0 : index
    %c0_62 = arith.constant 0 : index
    %c64_63 = arith.constant 64 : index
    %123 = vector.load %arg13[%c0_61, %c0_62, %c64_63] : memref<8x16x192xbf16, #tpu.memory_space<vmem>>, vector<8x8x64xbf16>
    tpu.vector_store %arg13[%c0_61, %c0_62, %c64_63], %114 {strides = array<i32>} : memref<8x16x192xbf16, #tpu.memory_space<vmem>>, vector<8x8x64xbf16>,
    %124 = vector.extract_strided_slice %114 {offsets = [0, 1, 0], sizes = [8, 7, 64], strides = [1, 1, 1]} : vector<8x8x64xbf16> to vector<8x7x64xbf16>
    %c0_64 = arith.constant 0 : index
    %c0_65 = arith.constant 0 : index
    %c128_66 = arith.constant 128 : index
    %125 = vector.load %arg13[%c0_64, %c0_65, %c128_66] : memref<8x16x192xbf16, #tpu.memory_space<vmem>>, vector<8x7x64xbf16>
    tpu.vector_store %arg13[%c0_64, %c0_65, %c128_66], %124 {strides = array<i32>} : memref<8x16x192xbf16, #tpu.memory_space<vmem>>, vector<8x7x64xbf16>,
    %cst_67 = arith.constant 0.000000e+00 : f32
    %126 = vector.broadcast %cst_67 : f32 to vector<96x128xf32>
    %c0_68 = arith.constant 0 : index
    %c0_69 = arith.constant 0 : index
    %c0_70 = arith.constant 0 : index
    %127 = vector.load %arg13[%c0_68, %c0_69, %c0_70] : memref<8x16x192xbf16, #tpu.memory_space<vmem>>, vector<6x16x192xbf16>
    %128 = vector.shape_cast %127 : vector<6x16x192xbf16> to vector<96x192xbf16>
    %c0_71 = arith.constant 0 : index
    %c0_72 = arith.constant 0 : index
    %c0_73 = arith.constant 0 : index
    %129 = vector.load %arg7[%c0_71, %c0_72, %c0_73] : memref<3x192x128xbf16, #tpu.memory_space<vmem>>, vector<1x192x128xbf16>
    %130 = vector.shape_cast %129 : vector<1x192x128xbf16> to vector<192x128xbf16>
    %cst_74 = arith.constant dense<0.000000e+00> : vector<96x128xf32>
    %131 = tpu.matmul %128, %130, %cst_74 {dimension_numbers = #tpu.dot_dimension_numbers<[1], [0], [0], [1], [0, 0, 1, 1], [], []>} : vector<96x192xbf16>, vector<192x128xbf16>, vector<96x128xf32> -> vector<96x128xf32>
    %132 = arith.addf %126, %131 : vector<96x128xf32>
    %c1_75 = arith.constant 1 : index
    %c0_76 = arith.constant 0 : index
    %c0_77 = arith.constant 0 : index
    %133 = vector.load %arg13[%c1_75, %c0_76, %c0_77] : memref<8x16x192xbf16, #tpu.memory_space<vmem>>, vector<6x16x192xbf16>
    %134 = vector.shape_cast %133 : vector<6x16x192xbf16> to vector<96x192xbf16>
    %c1_78 = arith.constant 1 : index
    %c0_79 = arith.constant 0 : index
    %c0_80 = arith.constant 0 : index
    %135 = vector.load %arg7[%c1_78, %c0_79, %c0_80] : memref<3x192x128xbf16, #tpu.memory_space<vmem>>, vector<1x192x128xbf16>
    %136 = vector.shape_cast %135 : vector<1x192x128xbf16> to vector<192x128xbf16>
    %cst_81 = arith.constant dense<0.000000e+00> : vector<96x128xf32>
    %137 = tpu.matmul %134, %136, %cst_81 {dimension_numbers = #tpu.dot_dimension_numbers<[1], [0], [0], [1], [0, 0, 1, 1], [], []>} : vector<96x192xbf16>, vector<192x128xbf16>, vector<96x128xf32> -> vector<96x128xf32>
    %138 = arith.addf %132, %137 : vector<96x128xf32>
    %c2_82 = arith.constant 2 : index
    %c0_83 = arith.constant 0 : index
    %c0_84 = arith.constant 0 : index
    %139 = vector.load %arg13[%c2_82, %c0_83, %c0_84] : memref<8x16x192xbf16, #tpu.memory_space<vmem>>, vector<6x16x192xbf16>
    %140 = vector.shape_cast %139 : vector<6x16x192xbf16> to vector<96x192xbf16>
    %c2_85 = arith.constant 2 : index
    %c0_86 = arith.constant 0 : index
    %c0_87 = arith.constant 0 : index
    %141 = vector.load %arg7[%c2_85, %c0_86, %c0_87] : memref<3x192x128xbf16, #tpu.memory_space<vmem>>, vector<1x192x128xbf16>
    %142 = vector.shape_cast %141 : vector<1x192x128xbf16> to vector<192x128xbf16>
    %cst_88 = arith.constant dense<0.000000e+00> : vector<96x128xf32>
    %143 = tpu.matmul %140, %142, %cst_88 {dimension_numbers = #tpu.dot_dimension_numbers<[1], [0], [0], [1], [0, 0, 1, 1], [], []>} : vector<96x192xbf16>, vector<192x128xbf16>, vector<96x128xf32> -> vector<96x128xf32>
    %144 = arith.addf %138, %143 : vector<96x128xf32>
    %c0_89 = arith.constant 0 : index
    %c0_90 = arith.constant 0 : index
    %145 = vector.load %arg8[%c0_89, %c0_90] : memref<1x128xf32, #tpu.memory_space<vmem>>, vector<1x128xf32>
    %146 = vector.broadcast %145 : vector<1x128xf32> to vector<96x128xf32>
    %147 = arith.addf %144, %146 : vector<96x128xf32>
    %cst_91 = arith.constant 0.000000e+00 : f32
    %148 = vector.broadcast %cst_91 : f32 to vector<96x128xf32>
    %149 = arith.maximumf %147, %148 : vector<96x128xf32>
    %150 = vector.shape_cast %149 : vector<96x128xf32> to vector<6x16x128xf32>
    %c1_i32 = arith.constant 1 : i32
    %151 = arith.subi %0, %c1_i32 : i32
    %152 = tpu.iota {dimensions = array<i32: 0>} : vector<6x1x1xi32>
    %153 = vector.broadcast %151 : i32 to vector<6x1x1xi32>
    %154 = arith.addi %152, %153 : vector<6x1x1xi32>
    %c0_i32_92 = arith.constant 0 : i32
    %155 = vector.broadcast %c0_i32_92 : i32 to vector<6x1x1xi32>
    %156 = arith.cmpi sge, %154, %155 : vector<6x1x1xi32>
    %c8_i32_93 = arith.constant 8 : i32
    %157 = vector.broadcast %c8_i32_93 : i32 to vector<6x1x1xi32>
    %158 = arith.cmpi slt, %154, %157 : vector<6x1x1xi32>
    %159 = arith.andi %156, %158 : vector<6x1x1xi1>
    %160 = arith.extui %159 : vector<6x1x1xi1> to vector<6x1x1xi32>
    %161 = arith.sitofp %160 : vector<6x1x1xi32> to vector<6x1x1xf32>
    %162 = vector.broadcast %161 : vector<6x1x1xf32> to vector<6x16x128xf32>
    %163 = arith.mulf %150, %162 : vector<6x16x128xf32>
    %164 = vector.extract_strided_slice %163 {offsets = [0, 0, 0], sizes = [6, 8, 128], strides = [1, 1, 1]} : vector<6x16x128xf32> to vector<6x8x128xf32>
    %165 = arith.truncf %164 : vector<6x8x128xf32> to vector<6x8x128xbf16>
    %cst_94 = arith.constant 0.000000e+00 : bf16
    %166 = vector.broadcast %cst_94 : bf16 to vector<6x1x128xbf16>
    %c0_95 = arith.constant 0 : index
    %c0_96 = arith.constant 0 : index
    %c0_97 = arith.constant 0 : index
    %167 = vector.load %arg14[%c0_95, %c0_96, %c0_97] : memref<6x16x384xbf16, #tpu.memory_space<vmem>>, vector<6x1x128xbf16>
    tpu.vector_store %arg14[%c0_95, %c0_96, %c0_97], %166 {strides = array<i32>} : memref<6x16x384xbf16, #tpu.memory_space<vmem>>, vector<6x1x128xbf16>,
    %cst_98 = arith.constant 0.000000e+00 : bf16
    %168 = vector.broadcast %cst_98 : bf16 to vector<6x9x128xbf16>
    %c0_99 = arith.constant 0 : index
    %c7_100 = arith.constant 7 : index
    %c256 = arith.constant 256 : index
    %169 = vector.load %arg14[%c0_99, %c7_100, %c256] : memref<6x16x384xbf16, #tpu.memory_space<vmem>>, vector<6x9x128xbf16>
    tpu.vector_store %arg14[%c0_99, %c7_100, %c256], %168 {strides = array<i32>} : memref<6x16x384xbf16, #tpu.memory_space<vmem>>, vector<6x9x128xbf16>,
    %cst_101 = arith.constant 0.000000e+00 : bf16
    %170 = vector.broadcast %cst_101 : bf16 to vector<6x8x256xbf16>
    %c0_102 = arith.constant 0 : index
    %c8_103 = arith.constant 8 : index
    %c0_104 = arith.constant 0 : index
    %171 = vector.load %arg14[%c0_102, %c8_103, %c0_104] : memref<6x16x384xbf16, #tpu.memory_space<vmem>>, vector<6x8x256xbf16>
    tpu.vector_store %arg14[%c0_102, %c8_103, %c0_104], %170 {strides = array<i32>} : memref<6x16x384xbf16, #tpu.memory_space<vmem>>, vector<6x8x256xbf16>,
    %172 = vector.extract_strided_slice %165 {offsets = [0, 0, 0], sizes = [6, 7, 128], strides = [1, 1, 1]} : vector<6x8x128xbf16> to vector<6x7x128xbf16>
    %c0_105 = arith.constant 0 : index
    %c1_106 = arith.constant 1 : index
    %c0_107 = arith.constant 0 : index
    %173 = vector.load %arg14[%c0_105, %c1_106, %c0_107] : memref<6x16x384xbf16, #tpu.memory_space<vmem>>, vector<6x7x128xbf16>
    tpu.vector_store %arg14[%c0_105, %c1_106, %c0_107], %172 {strides = array<i32>} : memref<6x16x384xbf16, #tpu.memory_space<vmem>>, vector<6x7x128xbf16>,
    %c0_108 = arith.constant 0 : index
    %c0_109 = arith.constant 0 : index
    %c128_110 = arith.constant 128 : index
    %174 = vector.load %arg14[%c0_108, %c0_109, %c128_110] : memref<6x16x384xbf16, #tpu.memory_space<vmem>>, vector<6x8x128xbf16>
    tpu.vector_store %arg14[%c0_108, %c0_109, %c128_110], %165 {strides = array<i32>} : memref<6x16x384xbf16, #tpu.memory_space<vmem>>, vector<6x8x128xbf16>,
    %175 = vector.extract_strided_slice %165 {offsets = [0, 1, 0], sizes = [6, 7, 128], strides = [1, 1, 1]} : vector<6x8x128xbf16> to vector<6x7x128xbf16>
    %c0_111 = arith.constant 0 : index
    %c0_112 = arith.constant 0 : index
    %c256_113 = arith.constant 256 : index
    %176 = vector.load %arg14[%c0_111, %c0_112, %c256_113] : memref<6x16x384xbf16, #tpu.memory_space<vmem>>, vector<6x7x128xbf16>
    tpu.vector_store %arg14[%c0_111, %c0_112, %c256_113], %175 {strides = array<i32>} : memref<6x16x384xbf16, #tpu.memory_space<vmem>>, vector<6x7x128xbf16>,
    %cst_114 = arith.constant 0.000000e+00 : f32
    %177 = vector.broadcast %cst_114 : f32 to vector<64x128xf32>
    %c0_115 = arith.constant 0 : index
    %c0_116 = arith.constant 0 : index
    %c0_117 = arith.constant 0 : index
    %178 = vector.load %arg14[%c0_115, %c0_116, %c0_117] : memref<6x16x384xbf16, #tpu.memory_space<vmem>>, vector<4x16x384xbf16>
    %179 = vector.shape_cast %178 : vector<4x16x384xbf16> to vector<64x384xbf16>
    %c0_118 = arith.constant 0 : index
    %c0_119 = arith.constant 0 : index
    %c0_120 = arith.constant 0 : index
    %180 = vector.load %arg9[%c0_118, %c0_119, %c0_120] : memref<3x384x128xbf16, #tpu.memory_space<vmem>>, vector<1x384x128xbf16>
    %181 = vector.shape_cast %180 : vector<1x384x128xbf16> to vector<384x128xbf16>
    %cst_121 = arith.constant dense<0.000000e+00> : vector<64x128xf32>
    %182 = tpu.matmul %179, %181, %cst_121 {dimension_numbers = #tpu.dot_dimension_numbers<[1], [0], [0], [1], [0, 0, 1, 1], [], []>} : vector<64x384xbf16>, vector<384x128xbf16>, vector<64x128xf32> -> vector<64x128xf32>
    %183 = arith.addf %177, %182 : vector<64x128xf32>
    %c1_122 = arith.constant 1 : index
    %c0_123 = arith.constant 0 : index
    %c0_124 = arith.constant 0 : index
    %184 = vector.load %arg14[%c1_122, %c0_123, %c0_124] : memref<6x16x384xbf16, #tpu.memory_space<vmem>>, vector<4x16x384xbf16>
    %185 = vector.shape_cast %184 : vector<4x16x384xbf16> to vector<64x384xbf16>
    %c1_125 = arith.constant 1 : index
    %c0_126 = arith.constant 0 : index
    %c0_127 = arith.constant 0 : index
    %186 = vector.load %arg9[%c1_125, %c0_126, %c0_127] : memref<3x384x128xbf16, #tpu.memory_space<vmem>>, vector<1x384x128xbf16>
    %187 = vector.shape_cast %186 : vector<1x384x128xbf16> to vector<384x128xbf16>
    %cst_128 = arith.constant dense<0.000000e+00> : vector<64x128xf32>
    %188 = tpu.matmul %185, %187, %cst_128 {dimension_numbers = #tpu.dot_dimension_numbers<[1], [0], [0], [1], [0, 0, 1, 1], [], []>} : vector<64x384xbf16>, vector<384x128xbf16>, vector<64x128xf32> -> vector<64x128xf32>
    %189 = arith.addf %183, %188 : vector<64x128xf32>
    %c2_129 = arith.constant 2 : index
    %c0_130 = arith.constant 0 : index
    %c0_131 = arith.constant 0 : index
    %190 = vector.load %arg14[%c2_129, %c0_130, %c0_131] : memref<6x16x384xbf16, #tpu.memory_space<vmem>>, vector<4x16x384xbf16>
    %191 = vector.shape_cast %190 : vector<4x16x384xbf16> to vector<64x384xbf16>
    %c2_132 = arith.constant 2 : index
    %c0_133 = arith.constant 0 : index
    %c0_134 = arith.constant 0 : index
    %192 = vector.load %arg9[%c2_132, %c0_133, %c0_134] : memref<3x384x128xbf16, #tpu.memory_space<vmem>>, vector<1x384x128xbf16>
    %193 = vector.shape_cast %192 : vector<1x384x128xbf16> to vector<384x128xbf16>
    %cst_135 = arith.constant dense<0.000000e+00> : vector<64x128xf32>
    %194 = tpu.matmul %191, %193, %cst_135 {dimension_numbers = #tpu.dot_dimension_numbers<[1], [0], [0], [1], [0, 0, 1, 1], [], []>} : vector<64x384xbf16>, vector<384x128xbf16>, vector<64x128xf32> -> vector<64x128xf32>
    %195 = arith.addf %189, %194 : vector<64x128xf32>
    %c0_136 = arith.constant 0 : index
    %c0_137 = arith.constant 0 : index
    %196 = vector.load %arg10[%c0_136, %c0_137] : memref<1x128xf32, #tpu.memory_space<vmem>>, vector<1x128xf32>
    %197 = vector.broadcast %196 : vector<1x128xf32> to vector<64x128xf32>
    %198 = arith.addf %195, %197 : vector<64x128xf32>
    %cst_138 = arith.constant 0.000000e+00 : f32
    %199 = vector.broadcast %cst_138 : f32 to vector<64x128xf32>
    %200 = arith.maximumf %198, %199 : vector<64x128xf32>
    %201 = vector.shape_cast %200 : vector<64x128xf32> to vector<4x16x128xf32>
    %202 = vector.extract_strided_slice %201 {offsets = [0, 0, 0], sizes = [4, 8, 128], strides = [1, 1, 1]} : vector<4x16x128xf32> to vector<4x8x128xf32>
    %203 = vector.shape_cast %202 : vector<4x8x128xf32> to vector<1x4x8x128xf32>
    %c0_139 = arith.constant 0 : index
    %c0_140 = arith.constant 0 : index
    %c0_141 = arith.constant 0 : index
    %c0_142 = arith.constant 0 : index
    %204 = vector.load %arg11[%c0_139, %c0_140, %c0_141, %c0_142] : memref<1x4x8x128xf32, #tpu.memory_space<vmem>>, vector<1x4x8x128xf32>
    tpu.vector_store %arg11[%c0_139, %c0_140, %c0_141, %c0_142], %203 {strides = array<i32>} : memref<1x4x8x128xf32, #tpu.memory_space<vmem>>, vector<1x4x8x128xf32>,
    return
  }
  func.func @transform_0(%arg0: i32, %arg1: i32) -> (i32, i32, i32, i32) {
    %c0_i32 = arith.constant 0 : i32
    %c0_i32_0 = arith.constant 0 : i32
    %c0_i32_1 = arith.constant 0 : i32
    return %arg0, %arg1, %c0_i32, %c0_i32_0 : i32, i32, i32, i32
  }
  func.func @transform_1(%arg0: i32, %arg1: i32) -> (i32, i32) {
    %c0_i32 = arith.constant 0 : i32
    %c0_i32_0 = arith.constant 0 : i32
    %c0_i32_1 = arith.constant 0 : i32
    return %c0_i32, %c0_i32_0 : i32, i32
  }
  func.func @transform_2(%arg0: i32, %arg1: i32) -> (i32, i32) {
    %c0_i32 = arith.constant 0 : i32
    %c0_i32_0 = arith.constant 0 : i32
    %c0_i32_1 = arith.constant 0 : i32
    return %c0_i32, %c0_i32_0 : i32, i32
  }
  func.func @transform_3(%arg0: i32, %arg1: i32) -> (i32, i32, i32) {
    %c0_i32 = arith.constant 0 : i32
    %c0_i32_0 = arith.constant 0 : i32
    %c0_i32_1 = arith.constant 0 : i32
    %c0_i32_2 = arith.constant 0 : i32
    return %c0_i32, %c0_i32_0, %c0_i32_1 : i32, i32, i32
  }
  func.func @transform_4(%arg0: i32, %arg1: i32) -> (i32, i32) {
    %c0_i32 = arith.constant 0 : i32
    %c0_i32_0 = arith.constant 0 : i32
    %c0_i32_1 = arith.constant 0 : i32
    return %c0_i32, %c0_i32_0 : i32, i32
  }
  func.func @transform_5(%arg0: i32, %arg1: i32) -> (i32, i32, i32) {
    %c0_i32 = arith.constant 0 : i32
    %c0_i32_0 = arith.constant 0 : i32
    %c0_i32_1 = arith.constant 0 : i32
    %c0_i32_2 = arith.constant 0 : i32
    return %c0_i32, %c0_i32_0, %c0_i32_1 : i32, i32, i32
  }
  func.func @transform_6(%arg0: i32, %arg1: i32) -> (i32, i32) {
    %c0_i32 = arith.constant 0 : i32
    %c0_i32_0 = arith.constant 0 : i32
    %c0_i32_1 = arith.constant 0 : i32
    return %c0_i32, %c0_i32_0 : i32, i32
  }
  func.func @transform_7(%arg0: i32, %arg1: i32) -> (i32, i32, i32) {
    %c0_i32 = arith.constant 0 : i32
    %c0_i32_0 = arith.constant 0 : i32
    %c0_i32_1 = arith.constant 0 : i32
    %c0_i32_2 = arith.constant 0 : i32
    return %c0_i32, %c0_i32_0, %c0_i32_1 : i32, i32, i32
  }
  func.func @transform_8(%arg0: i32, %arg1: i32) -> (i32, i32) {
    %c0_i32 = arith.constant 0 : i32
    %c0_i32_0 = arith.constant 0 : i32
    %c0_i32_1 = arith.constant 0 : i32
    return %c0_i32, %c0_i32_0 : i32, i32
  }
  func.func @transform_9(%arg0: i32, %arg1: i32) -> (i32, i32, i32, i32) {
    %c0_i32 = arith.constant 0 : i32
    %c0_i32_0 = arith.constant 0 : i32
    %c0_i32_1 = arith.constant 0 : i32
    return %arg0, %arg1, %c0_i32, %c0_i32_0 : i32, i32, i32, i32
  }
}

</mosaic_0001>

<llo_original>
// kernel: shallow_net_forward.1
$region0: #{shallow_net_forward.1}
  #allocation0 [shape = 'u32[]', space=smem, size = 0x4, offset = 0x4, fixed_abs, tag = 'smem constant byte address 0x4 - core index']
  #allocation1 [shape = 'u32[72,128]{1,0:T(1,128)}', space=vmem, size = 0x9000, scoped, tag = 'internal scratch']
  #allocation2 [shape = 'bf16[18,16,192]{2,1,0:T(8,128)(2,1)}', space=vmem, size = 0x24000, scoped, tag = 'scratch operand']
  #allocation3 [shape = 'bf16[8,16,192]{2,1,0:T(8,128)(2,1)}', space=vmem, size = 0x10000, scoped, tag = 'scratch operand']
  #allocation4 [shape = 'bf16[6,16,384]{2,1,0:T(8,128)(2,1)}', space=vmem, size = 0x12000, scoped, tag = 'scratch operand']
  %s0 = inlined_call_operand.vmem [shape: f32[2,2,20,18], index: 0, kind: input, shape index: {}]
  %s1 = inlined_call_operand.vmem [shape: bf16[16,64], index: 1, kind: input, shape index: {}]
  %s2 = inlined_call_operand.vmem [shape: f32[1,64], index: 2, kind: input, shape index: {}]
  %s3 = inlined_call_operand.vmem [shape: bf16[3,192,64], index: 3, kind: input, shape index: {}]
  %s4 = inlined_call_operand.vmem [shape: f32[1,64], index: 4, kind: input, shape index: {}]
  %s5 = inlined_call_operand.vmem [shape: bf16[3,192,128], index: 5, kind: input, shape index: {}]
  %s6 = inlined_call_operand.vmem [shape: f32[1,128], index: 6, kind: input, shape index: {}]
  %s7 = inlined_call_operand.vmem [shape: bf16[3,384,128], index: 7, kind: input, shape index: {}]
  %s8 = inlined_call_operand.vmem [shape: f32[1,128], index: 8, kind: input, shape index: {}]
  %s9 = inlined_call_operand.hbm [shape: f32[2,8,8,128], index: 9, kind: output, shape index: {}]
  %s10 = sld [smem:[#allocation0]]
  $region69: #{shallow_net_forward.1} parent=0
    _
  %s12 = ssub.s32 1, %s10
  %s13 = scalar_select 0, %s12, %s10
  $region1: #{shallow_net_forward.1} parent=0
    #allocation5 [shape = 'u8[32768]{0}', space=vmem, size = 0x8000, scoped, tag = 'output window, operand 0']
    #allocation6 [shape = 's32[2]{0}', space=sflag, size = 0x8, scoped, tag = 'scoped memory for shallow_net_forward.1']
    %14 = vsyncpa [#allocation6], 0
    %s15 = scalar_lea.sflag [#allocation6], 1
    %16 = vsyncpa %s15, 0
    loop: start=0, step=1, limit=6
    $region2: #{shallow_net_forward.1} parent=1 // loop_pre_header
      _
    $region3: #{shallow_net_forward.1} parent=1 // loop_header
      %s18 = sphi 0, %s22
      %p19 = scmp.ge.s32.totalorder %s18, 6
      %s25 = sphi 0, %s37
      %s26 = sphi 0, %s33
      %s27 = sphi 0, %s25
      %s28 = sphi 0, %s26
      %s29 = sphi 0, %s27
      %s30 = sphi 0, %s28
      %s42 = sphi 0, %s44
      %s45 = sphi 0, %s42
      %s46 = sphi 0, %s45
      %s62 = sphi 0, %s46
      %s66 = sphi 0, %s66
      %s68 = sphi 0, %s66
      %s69 = sphi 0, %s68
      %s83 = sphi 0, %s69
      %s87 = sphi 0, %s87
      %s89 = sphi 0, %s87
      %s90 = sphi 0, %s89
      %s104 = sphi 0, %s90
      %s108 = sphi 0, %s108
      %s110 = sphi 0, %s108
      %s111 = sphi 0, %s110
      %s125 = sphi 0, %s111
      %s129 = sphi 0, %s129
      %s131 = sphi 0, %s129
      %s132 = sphi 0, %s131
      %s146 = sphi 0, %s132
      %s150 = sphi 0, %s150
      %s152 = sphi 0, %s150
      %s153 = sphi 0, %s152
      %s167 = sphi 0, %s153
      %s171 = sphi 0, %s171
      %s173 = sphi 0, %s171
      %s174 = sphi 0, %s173
      %s188 = sphi 0, %s174
      %s192 = sphi 0, %s192
      %s194 = sphi 0, %s192
      %s195 = sphi 0, %s194
      %s209 = sphi 0, %s195
      %s213 = sphi 0, %s213
      %s215 = sphi 0, %s213
      %s216 = sphi 0, %s215
      %s230 = sphi 0, %s216
      %s238 = sphi 0, %s240
      %s241 = sphi 0, %s238
      %s242 = sphi 0, %s241
      %s258 = sphi 0, %s242
    $region4: #{shallow_net_forward.1} parent=1 // loop_header_branch
      %21 = sbr.rel (%p19) target = $region8
    $region5: #{shallow_net_forward.1} parent=1 // loop_body
      %s23 = ssub.s32 %s18, 1
      %s24 = ssub.s32 %s18, 2
      %s31 = sadd.s32 1, %s26
      %p32 = scmp.ge.s32.totalorder %s31, 2
      %s33 = scalar_select %p32, 0, %s31
      %s34 = sadd.s32 1, %s25
      %s35 = scalar_select %p32, %s34, %s25
      %p36 = scmp.ge.s32.totalorder %s35, 2
      %s37 = scalar_select %p36, 0, %s35
      %s38 = ssub.s32 %s25, %s37
      %s39 = ssub.s32 %s26, %s33
      %s40 = sor.u32 %s38, %s39
      %p41 = scmp.eq.s32.totalorder %s40, 0
      %s43 = sadd.s32 %s42, 1
      %s44 = scalar_select %p41, %s42, %s43
      %p47 = pneg %p41
      %p48 = scmp.eq.s32.totalorder %s18, 3
      %p49 = por %p47, %p48
      %p50 = scmp.ne.s32.totalorder %s42, %s45
      %p51 = scmp.eq.s32.totalorder %s18, 0
      %p52 = por %p50, %p51
      %p53 = scmp.ne.s32.totalorder %s42, %s45
      %p54 = scmp.eq.s32.totalorder %s23, 3
      %p55 = por %p53, %p54
      %p56 = scmp.ne.s32.totalorder %s45, %s46
      %p57 = scmp.eq.s32.totalorder %s23, 0
      %p58 = por %p56, %p57
      %p59 = scmp.ne.s32.totalorder %s45, %s46
      %p60 = scmp.eq.s32.totalorder %s24, 3
      %p61 = por %p59, %p60
      %p63 = scmp.ne.s32.totalorder %s46, %s62
      %p64 = scmp.eq.s32.totalorder %s24, 0
      %p65 = por %p63, %p64
      %s67 = sadd.s32 %s66, 1
      %p70 = scmp.eq.s32.totalorder %s18, 3
      %p71 = scmp.ne.s32.totalorder %s66, %s68
      %p72 = scmp.eq.s32.totalorder %s18, 0
      %p73 = por %p71, %p72
      %p74 = scmp.ne.s32.totalorder %s66, %s68
      %p75 = scmp.eq.s32.totalorder %s23, 3
      %p76 = por %p74, %p75
      %p77 = scmp.ne.s32.totalorder %s68, %s69
      %p78 = scmp.eq.s32.totalorder %s23, 0
      %p79 = por %p77, %p78
      %p80 = scmp.ne.s32.totalorder %s68, %s69
      %p81 = scmp.eq.s32.totalorder %s24, 3
      %p82 = por %p80, %p81
      %p84 = scmp.ne.s32.totalorder %s69, %s83
      %p85 = scmp.eq.s32.totalorder %s24, 0
      %p86 = por %p84, %p85
      %s88 = sadd.s32 %s87, 1
      %p91 = scmp.eq.s32.totalorder %s18, 3
      %p92 = scmp.ne.s32.totalorder %s87, %s89
      %p93 = scmp.eq.s32.totalorder %s18, 0
      %p94 = por %p92, %p93
      %p95 = scmp.ne.s32.totalorder %s87, %s89
      %p96 = scmp.eq.s32.totalorder %s23, 3
      %p97 = por %p95, %p96
      %p98 = scmp.ne.s32.totalorder %s89, %s90
      %p99 = scmp.eq.s32.totalorder %s23, 0
      %p100 = por %p98, %p99
      %p101 = scmp.ne.s32.totalorder %s89, %s90
      %p102 = scmp.eq.s32.totalorder %s24, 3
      %p103 = por %p101, %p102
      %p105 = scmp.ne.s32.totalorder %s90, %s104
      %p106 = scmp.eq.s32.totalorder %s24, 0
      %p107 = por %p105, %p106
      %s109 = sadd.s32 %s108, 1
      %p112 = scmp.eq.s32.totalorder %s18, 3
      %p113 = scmp.ne.s32.totalorder %s108, %s110
      %p114 = scmp.eq.s32.totalorder %s18, 0
      %p115 = por %p113, %p114
      %p116 = scmp.ne.s32.totalorder %s108, %s110
      %p117 = scmp.eq.s32.totalorder %s23, 3
      %p118 = por %p116, %p117
      %p119 = scmp.ne.s32.totalorder %s110, %s111
      %p120 = scmp.eq.s32.totalorder %s23, 0
      %p121 = por %p119, %p120
      %p122 = scmp.ne.s32.totalorder %s110, %s111
      %p123 = scmp.eq.s32.totalorder %s24, 3
      %p124 = por %p122, %p123
      %p126 = scmp.ne.s32.totalorder %s111, %s125
      %p127 = scmp.eq.s32.totalorder %s24, 0
      %p128 = por %p126, %p127
      %s130 = sadd.s32 %s129, 1
      %p133 = scmp.eq.s32.totalorder %s18, 3
      %p134 = scmp.ne.s32.totalorder %s129, %s131
      %p135 = scmp.eq.s32.totalorder %s18, 0
      %p136 = por %p134, %p135
      %p137 = scmp.ne.s32.totalorder %s129, %s131
      %p138 = scmp.eq.s32.totalorder %s23, 3
      %p139 = por %p137, %p138
      %p140 = scmp.ne.s32.totalorder %s131, %s132
      %p141 = scmp.eq.s32.totalorder %s23, 0
      %p142 = por %p140, %p141
      %p143 = scmp.ne.s32.totalorder %s131, %s132
      %p144 = scmp.eq.s32.totalorder %s24, 3
      %p145 = por %p143, %p144
      %p147 = scmp.ne.s32.totalorder %s132, %s146
      %p148 = scmp.eq.s32.totalorder %s24, 0
      %p149 = por %p147, %p148
      %s151 = sadd.s32 %s150, 1
      %p154 = scmp.eq.s32.totalorder %s18, 3
      %p155 = scmp.ne.s32.totalorder %s150, %s152
      %p156 = scmp.eq.s32.totalorder %s18, 0
      %p157 = por %p155, %p156
      %p158 = scmp.ne.s32.totalorder %s150, %s152
      %p159 = scmp.eq.s32.totalorder %s23, 3
      %p160 = por %p158, %p159
      %p161 = scmp.ne.s32.totalorder %s152, %s153
      %p162 = scmp.eq.s32.totalorder %s23, 0
      %p163 = por %p161, %p162
      %p164 = scmp.ne.s32.totalorder %s152, %s153
      %p165 = scmp.eq.s32.totalorder %s24, 3
      %p166 = por %p164, %p165
      %p168 = scmp.ne.s32.totalorder %s153, %s167
      %p169 = scmp.eq.s32.totalorder %s24, 0
      %p170 = por %p168, %p169
      %s172 = sadd.s32 %s171, 1
      %p175 = scmp.eq.s32.totalorder %s18, 3
      %p176 = scmp.ne.s32.totalorder %s171, %s173
      %p177 = scmp.eq.s32.totalorder %s18, 0
      %p178 = por %p176, %p177
      %p179 = scmp.ne.s32.totalorder %s171, %s173
      %p180 = scmp.eq.s32.totalorder %s23, 3
      %p181 = por %p179, %p180
      %p182 = scmp.ne.s32.totalorder %s173, %s174
      %p183 = scmp.eq.s32.totalorder %s23, 0
      %p184 = por %p182, %p183
      %p185 = scmp.ne.s32.totalorder %s173, %s174
      %p186 = scmp.eq.s32.totalorder %s24, 3
      %p187 = por %p185, %p186
      %p189 = scmp.ne.s32.totalorder %s174, %s188
      %p190 = scmp.eq.s32.totalorder %s24, 0
      %p191 = por %p189, %p190
      %s193 = sadd.s32 %s192, 1
      %p196 = scmp.eq.s32.totalorder %s18, 3
      %p197 = scmp.ne.s32.totalorder %s192, %s194
      %p198 = scmp.eq.s32.totalorder %s18, 0
      %p199 = por %p197, %p198
      %p200 = scmp.ne.s32.totalorder %s192, %s194
      %p201 = scmp.eq.s32.totalorder %s23, 3
      %p202 = por %p200, %p201
      %p203 = scmp.ne.s32.totalorder %s194, %s195
      %p204 = scmp.eq.s32.totalorder %s23, 0
      %p205 = por %p203, %p204
      %p206 = scmp.ne.s32.totalorder %s194, %s195
      %p207 = scmp.eq.s32.totalorder %s24, 3
      %p208 = por %p206, %p207
      %p210 = scmp.ne.s32.totalorder %s195, %s209
      %p211 = scmp.eq.s32.totalorder %s24, 0
      %p212 = por %p210, %p211
      %s214 = sadd.s32 %s213, 1
      %p217 = scmp.eq.s32.totalorder %s18, 3
      %p218 = scmp.ne.s32.totalorder %s213, %s215
      %p219 = scmp.eq.s32.totalorder %s18, 0
      %p220 = por %p218, %p219
      %p221 = scmp.ne.s32.totalorder %s213, %s215
      %p222 = scmp.eq.s32.totalorder %s23, 3
      %p223 = por %p221, %p222
      %p224 = scmp.ne.s32.totalorder %s215, %s216
      %p225 = scmp.eq.s32.totalorder %s23, 0
      %p226 = por %p224, %p225
      %p227 = scmp.ne.s32.totalorder %s215, %s216
      %p228 = scmp.eq.s32.totalorder %s24, 3
      %p229 = por %p227, %p228
      %p231 = scmp.ne.s32.totalorder %s216, %s230
      %p232 = scmp.eq.s32.totalorder %s24, 0
      %p233 = por %p231, %p232
      %s234 = ssub.s32 %s25, %s37
      %s235 = ssub.s32 %s26, %s33
      %s236 = sor.u32 %s234, %s235
      %p237 = scmp.eq.s32.totalorder %s236, 0
      %s239 = sadd.s32 %s238, 1
      %s240 = scalar_select %p237, %s238, %s239
      %p243 = pneg %p237
      %p244 = scmp.eq.s32.totalorder %s18, 3
      %p245 = por %p243, %p244
      %p246 = scmp.ne.s32.totalorder %s238, %s241
      %p247 = scmp.eq.s32.totalorder %s18, 0
      %p248 = por %p246, %p247
      %p249 = scmp.ne.s32.totalorder %s238, %s241
      %p250 = scmp.eq.s32.totalorder %s23, 3
      %p251 = por %p249, %p250
      %p252 = scmp.ne.s32.totalorder %s241, %s242
      %p253 = scmp.eq.s32.totalorder %s23, 0
      %p254 = por %p252, %p253
      %p255 = scmp.ne.s32.totalorder %s241, %s242
      %p256 = scmp.eq.s32.totalorder %s24, 3
      %p257 = por %p255, %p256
      %p259 = scmp.ne.s32.totalorder %s242, %s258
      %p260 = scmp.eq.s32.totalorder %s24, 0
      %p261 = por %p259, %p260
      %p262 = scmp.le.s32.totalorder 1, %s18
      %p263 = scmp.lt.s32.totalorder %s18, 5
      %p264 = pnand %p262, %p263
      %p265 = pneg %p264
      // Predicated region
      $region9: #{shallow_net_forward.1} parent=5 // pred_check
        _
      $region10: #{shallow_net_forward.1} parent=5 // pred_check_branch
        %267 = sbr.rel (%p264) target = $region12
      $region11: #{shallow_net_forward.1} parent=5 // pred_region
        %s268 = ssub.s32 %s18, 1
        // Predicated region
        $region13: #{shallow_net_forward.1} parent=11 // pred_check
          %p269 = pneg %p79
        $region14: #{shallow_net_forward.1} parent=11 // pred_check_branch
          %271 = sbr.rel (%p269) target = $region16
        $region15: #{shallow_net_forward.1} parent=11 // pred_region
          _
        $region16: #{shallow_net_forward.1} parent=11 // pred_fallthru
          _
        // Predicated region
        $region17: #{shallow_net_forward.1} parent=11 // pred_check
          %p272 = pneg %p100
        $region18: #{shallow_net_forward.1} parent=11 // pred_check_branch
          %274 = sbr.rel (%p272) target = $region20
        $region19: #{shallow_net_forward.1} parent=11 // pred_region
          _
        $region20: #{shallow_net_forward.1} parent=11 // pred_fallthru
          _
        // Predicated region
        $region21: #{shallow_net_forward.1} parent=11 // pred_check
          %p275 = pneg %p121
        $region22: #{shallow_net_forward.1} parent=11 // pred_check_branch
          %277 = sbr.rel (%p275) target = $region24
        $region23: #{shallow_net_forward.1} parent=11 // pred_region
          _
        $region24: #{shallow_net_forward.1} parent=11 // pred_fallthru
          _
        // Predicated region
        $region25: #{shallow_net_forward.1} parent=11 // pred_check
          %p278 = pneg %p142
        $region26: #{shallow_net_forward.1} parent=11 // pred_check_branch
          %280 = sbr.rel (%p278) target = $region28
        $region27: #{shallow_net_forward.1} parent=11 // pred_region
          _
        $region28: #{shallow_net_forward.1} parent=11 // pred_fallthru
          _
        // Predicated region
        $region29: #{shallow_net_forward.1} parent=11 // pred_check
          %p281 = pneg %p163
        $region30: #{shallow_net_forward.1} parent=11 // pred_check_branch
          %283 = sbr.rel (%p281) target = $region32
        $region31: #{shallow_net_forward.1} parent=11 // pred_region
          _
        $region32: #{shallow_net_forward.1} parent=11 // pred_fallthru
          _
        // Predicated region
        $region33: #{shallow_net_forward.1} parent=11 // pred_check
          %p284 = pneg %p184
        $region34: #{shallow_net_forward.1} parent=11 // pred_check_branch
          %286 = sbr.rel (%p284) target = $region36
        $region35: #{shallow_net_forward.1} parent=11 // pred_region
          _
        $region36: #{shallow_net_forward.1} parent=11 // pred_fallthru
          _
        // Predicated region
        $region37: #{shallow_net_forward.1} parent=11 // pred_check
          %p287 = pneg %p205
        $region38: #{shallow_net_forward.1} parent=11 // pred_check_branch
          %289 = sbr.rel (%p287) target = $region40
        $region39: #{shallow_net_forward.1} parent=11 // pred_region
          _
        $region40: #{shallow_net_forward.1} parent=11 // pred_fallthru
          _
        // Predicated region
        $region41: #{shallow_net_forward.1} parent=11 // pred_check
          %p290 = pneg %p226
        $region42: #{shallow_net_forward.1} parent=11 // pred_check_branch
          %292 = sbr.rel (%p290) target = $region44
        $region43: #{shallow_net_forward.1} parent=11 // pred_region
          _
        $region44: #{shallow_net_forward.1} parent=11 // pred_fallthru
          _
      $region12: #{shallow_net_forward.1} parent=5 // pred_fallthru
        _
      %p293 = scmp.lt.s32.totalorder %s18, 4
      // Predicated region
      $region45: #{shallow_net_forward.1} parent=5 // pred_check
        %p294 = pneg %p293
      $region46: #{shallow_net_forward.1} parent=5 // pred_check_branch
        %296 = sbr.rel (%p294) target = $region48
      $region47: #{shallow_net_forward.1} parent=5 // pred_region
        // Predicated region
        $region49: #{shallow_net_forward.1} parent=47 // pred_check
          %p297 = pneg %p52
        $region50: #{shallow_net_forward.1} parent=47 // pred_check_branch
          %299 = sbr.rel (%p297) target = $region52
        $region51: #{shallow_net_forward.1} parent=47 // pred_region
          %p300 = scmp.lt.s32.totalorder %s25, 1
          %s301 = scalar_select %p300, %s25, 1
          %p302 = scmp.lt.s32.totalorder %s26, 1
          %s303 = scalar_select %p302, %s26, 1
          %s304 = smul.addr %s303, 3
          %s305 = smul.addr %s301, 6
          %s306 = sadd.s32 %s304, %s305
          %s307 = smul.addr %s306, 8
          %s308 = scalar_lea.vmem %s0, %s307
        $region52: #{shallow_net_forward.1} parent=47 // pred_fallthru
          _
      $region48: #{shallow_net_forward.1} parent=5 // pred_fallthru
        _
      %p309 = scmp.le.s32.totalorder 1, %s18
      %p310 = scmp.lt.s32.totalorder %s18, 5
      %p311 = pnand %p309, %p310
      %p312 = pneg %p311
      // Predicated region
      $region53: #{shallow_net_forward.1} parent=5 // pred_check
        _
      $region54: #{shallow_net_forward.1} parent=5 // pred_check_branch
        %314 = sbr.rel (%p311) target = $region56
      $region55: #{shallow_net_forward.1} parent=5 // pred_region
        %s315 = ssub.s32 %s18, 1
        %p316 = scmp.lt.s32.totalorder %s27, 1
        %s317 = scalar_select %p316, %s27, 1
        %p318 = scmp.lt.s32.totalorder %s28, 1
        %s319 = scalar_select %p318, %s28, 1
        %s320 = smul.addr %s319, 3
        %s321 = smul.addr %s317, 6
        %s322 = sadd.s32 %s320, %s321
        %s323 = smul.addr %s322, 8
        %s324 = scalar_lea.vmem %s0, %s323
        %p325 = pneg %p58
        %p326 = pneg %p55
        %p327 = pneg %p79
        %p328 = pneg %p76
        %p329 = pneg %p100
        %p330 = pneg %p97
        %p331 = pneg %p121
        %p332 = pneg %p118
        %p333 = pneg %p142
        %p334 = pneg %p139
        %p335 = pneg %p163
        %p336 = pneg %p160
        %p337 = pneg %p184
        %p338 = pneg %p181
        %p339 = pneg %p205
        %p340 = pneg %p202
        %p341 = pneg %p226
        %p342 = pneg %p223
        %p343 = pneg %p254
        %p344 = pneg %p251
        %s345 = sand.u32 %s241, 1
        %s346 = scalar_lea.sflag [#allocation6], %s345
        %s347 = sand.u32 %s241, 1
        %s348 = smul.addr %s347, 32
        %s349 = scalar_lea.vmem [#allocation5], %s348
        %p350 = scmp.lt.s32.totalorder %s27, 1
        %s351 = scalar_select %p350, %s27, 1
        %p352 = scmp.lt.s32.totalorder %s28, 1
        %s353 = scalar_select %p352, %s28, 1
        %s354 = smul.addr %s353, 3
        %s355 = smul.addr %s351, 6
        %s356 = sadd.s32 %s354, %s355
        %s357 = smul.addr %s356, 8
        %s358 = scalar_lea.vmem %s0, %s357
        %s359 = smul.u32 4, %s28
        %s361 = smul.u32 %s28, 4
        %v362 = vld [vmem:[%s358] sm:$0xff]
        %v363 = vld [vmem:[%s358 + $0x8] sm:$0xff]
        %v364 = vld [vmem:[%s358 + $0x10] sm:$0xf]
        %v365 = vperm.slane %v362, 0
        %v366 = vlaneseq
        %v367 = vshrl.u32 %v366, 7
        %369 = vset.pattern.permute.xlu0 %v367
        %370 = vperm.xlu0 %369, %v365
        %v371 = vpop.permute.xlu0 %370
        %v372 = vlaneseq
        %v373 = vshrl.u32 %v372, 7
        %v374 = vadd.s32 %v373, 8
        %375 = vset.pattern.permute.xlu0 %v374
        %376 = vperm.xlu0 %375, %v365
        %v377 = vpop.permute.xlu0 %376
        %v378 = vperm.slane %v362, 1
        %v379 = vlaneseq
        %v380 = vshrl.u32 %v379, 7
        %382 = vset.pattern.permute.xlu0 %v380
        %383 = vperm.xlu0 %382, %v378
        %v384 = vpop.permute.xlu0 %383
        %v385 = vlaneseq
        %v386 = vshrl.u32 %v385, 7
        %v387 = vadd.s32 %v386, 8
        %388 = vset.pattern.permute.xlu0 %v387
        %389 = vperm.xlu0 %388, %v378
        %v390 = vpop.permute.xlu0 %389
        %v391 = vperm.slane %v362, 2
        %v392 = vlaneseq
        %v393 = vshrl.u32 %v392, 7
        %395 = vset.pattern.permute.xlu0 %v393
        %396 = vperm.xlu0 %395, %v391
        %v397 = vpop.permute.xlu0 %396
        %v398 = vlaneseq
        %v399 = vshrl.u32 %v398, 7
        %v400 = vadd.s32 %v399, 8
        %401 = vset.pattern.permute.xlu0 %v400
        %402 = vperm.xlu0 %401, %v391
        %v403 = vpop.permute.xlu0 %402
        %v404 = vperm.slane %v362, 3
        %v405 = vlaneseq
        %v406 = vshrl.u32 %v405, 7
        %408 = vset.pattern.permute.xlu0 %v406
        %409 = vperm.xlu0 %408, %v404
        %v410 = vpop.permute.xlu0 %409
        %v411 = vlaneseq
        %v412 = vshrl.u32 %v411, 7
        %v413 = vadd.s32 %v412, 8
        %414 = vset.pattern.permute.xlu0 %v413
        %415 = vperm.xlu0 %414, %v404
        %v416 = vpop.permute.xlu0 %415
        %v417 = vperm.slane %v362, 4
        %v418 = vlaneseq
        %v419 = vshrl.u32 %v418, 7
        %421 = vset.pattern.permute.xlu0 %v419
        %422 = vperm.xlu0 %421, %v417
        %v423 = vpop.permute.xlu0 %422
        %v424 = vlaneseq
        %v425 = vshrl.u32 %v424, 7
        %v426 = vadd.s32 %v425, 8
        %427 = vset.pattern.permute.xlu0 %v426
        %428 = vperm.xlu0 %427, %v417
        %v429 = vpop.permute.xlu0 %428
        %v430 = vperm.slane %v362, 5
        %v431 = vlaneseq
        %v432 = vshrl.u32 %v431, 7
        %434 = vset.pattern.permute.xlu0 %v432
        %435 = vperm.xlu0 %434, %v430
        %v436 = vpop.permute.xlu0 %435
        %v437 = vlaneseq
        %v438 = vshrl.u32 %v437, 7
        %v439 = vadd.s32 %v438, 8
        %440 = vset.pattern.permute.xlu0 %v439
        %441 = vperm.xlu0 %440, %v430
        %v442 = vpop.permute.xlu0 %441
        %v443 = vperm.slane %v362, 6
        %v444 = vlaneseq
        %v445 = vshrl.u32 %v444, 7
        %447 = vset.pattern.permute.xlu0 %v445
        %448 = vperm.xlu0 %447, %v443
        %v449 = vpop.permute.xlu0 %448
        %v450 = vlaneseq
        %v451 = vshrl.u32 %v450, 7
        %v452 = vadd.s32 %v451, 8
        %453 = vset.pattern.permute.xlu0 %v452
        %454 = vperm.xlu0 %453, %v443
        %v455 = vpop.permute.xlu0 %454
        %v456 = vperm.slane %v362, 7
        %v457 = vlaneseq
        %v458 = vshrl.u32 %v457, 7
        %460 = vset.pattern.permute.xlu0 %v458
        %461 = vperm.xlu0 %460, %v456
        %v462 = vpop.permute.xlu0 %461
        %v463 = vlaneseq
        %v464 = vshrl.u32 %v463, 7
        %v465 = vadd.s32 %v464, 8
        %466 = vset.pattern.permute.xlu0 %v465
        %467 = vperm.xlu0 %466, %v456
        %v468 = vpop.permute.xlu0 %467
        %v469 = vperm.slane %v363, 0
        %v470 = vlaneseq
        %v471 = vshrl.u32 %v470, 7
        %473 = vset.pattern.permute.xlu0 %v471
        %474 = vperm.xlu0 %473, %v469
        %v475 = vpop.permute.xlu0 %474
        %v476 = vlaneseq
        %v477 = vshrl.u32 %v476, 7
        %v478 = vadd.s32 %v477, 8
        %479 = vset.pattern.permute.xlu0 %v478
        %480 = vperm.xlu0 %479, %v469
        %v481 = vpop.permute.xlu0 %480
        %v482 = vperm.slane %v363, 1
        %v483 = vlaneseq
        %v484 = vshrl.u32 %v483, 7
        %486 = vset.pattern.permute.xlu0 %v484
        %487 = vperm.xlu0 %486, %v482
        %v488 = vpop.permute.xlu0 %487
        %v489 = vlaneseq
        %v490 = vshrl.u32 %v489, 7
        %v491 = vadd.s32 %v490, 8
        %492 = vset.pattern.permute.xlu0 %v491
        %493 = vperm.xlu0 %492, %v482
        %v494 = vpop.permute.xlu0 %493
        %v495 = vperm.slane %v363, 2
        %v496 = vlaneseq
        %v497 = vshrl.u32 %v496, 7
        %499 = vset.pattern.permute.xlu0 %v497
        %500 = vperm.xlu0 %499, %v495
        %v501 = vpop.permute.xlu0 %500
        %v502 = vlaneseq
        %v503 = vshrl.u32 %v502, 7
        %v504 = vadd.s32 %v503, 8
        %505 = vset.pattern.permute.xlu0 %v504
        %506 = vperm.xlu0 %505, %v495
        %v507 = vpop.permute.xlu0 %506
        %v508 = vperm.slane %v363, 3
        %v509 = vlaneseq
        %v510 = vshrl.u32 %v509, 7
        %512 = vset.pattern.permute.xlu0 %v510
        %513 = vperm.xlu0 %512, %v508
        %v514 = vpop.permute.xlu0 %513
        %v515 = vlaneseq
        %v516 = vshrl.u32 %v515, 7
        %v517 = vadd.s32 %v516, 8
        %518 = vset.pattern.permute.xlu0 %v517
        %519 = vperm.xlu0 %518, %v508
        %v520 = vpop.permute.xlu0 %519
        %v521 = vperm.slane %v363, 4
        %v522 = vlaneseq
        %v523 = vshrl.u32 %v522, 7
        %525 = vset.pattern.permute.xlu0 %v523
        %526 = vperm.xlu0 %525, %v521
        %v527 = vpop.permute.xlu0 %526
        %v528 = vlaneseq
        %v529 = vshrl.u32 %v528, 7
        %v530 = vadd.s32 %v529, 8
        %531 = vset.pattern.permute.xlu0 %v530
        %532 = vperm.xlu0 %531, %v521
        %v533 = vpop.permute.xlu0 %532
        %v534 = vperm.slane %v363, 5
        %v535 = vlaneseq
        %v536 = vshrl.u32 %v535, 7
        %538 = vset.pattern.permute.xlu0 %v536
        %539 = vperm.xlu0 %538, %v534
        %v540 = vpop.permute.xlu0 %539
        %v541 = vlaneseq
        %v542 = vshrl.u32 %v541, 7
        %v543 = vadd.s32 %v542, 8
        %544 = vset.pattern.permute.xlu0 %v543
        %545 = vperm.xlu0 %544, %v534
        %v546 = vpop.permute.xlu0 %545
        %v547 = vperm.slane %v363, 6
        %v548 = vlaneseq
        %v549 = vshrl.u32 %v548, 7
        %551 = vset.pattern.permute.xlu0 %v549
        %552 = vperm.xlu0 %551, %v547
        %v553 = vpop.permute.xlu0 %552
        %v554 = vlaneseq
        %v555 = vshrl.u32 %v554, 7
        %v556 = vadd.s32 %v555, 8
        %557 = vset.pattern.permute.xlu0 %v556
        %558 = vperm.xlu0 %557, %v547
        %v559 = vpop.permute.xlu0 %558
        %v560 = vperm.slane %v363, 7
        %v561 = vlaneseq
        %v562 = vshrl.u32 %v561, 7
        %564 = vset.pattern.permute.xlu0 %v562
        %565 = vperm.xlu0 %564, %v560
        %v566 = vpop.permute.xlu0 %565
        %v567 = vlaneseq
        %v568 = vshrl.u32 %v567, 7
        %v569 = vadd.s32 %v568, 8
        %570 = vset.pattern.permute.xlu0 %v569
        %571 = vperm.xlu0 %570, %v560
        %v572 = vpop.permute.xlu0 %571
        %v573 = vperm.slane %v364, 0
        %v574 = vlaneseq
        %v575 = vshrl.u32 %v574, 7
        %577 = vset.pattern.permute.xlu0 %v575
        %578 = vperm.xlu0 %577, %v573
        %v579 = vpop.permute.xlu0 %578
        %v580 = vlaneseq
        %v581 = vshrl.u32 %v580, 7
        %v582 = vadd.s32 %v581, 8
        %583 = vset.pattern.permute.xlu0 %v582
        %584 = vperm.xlu0 %583, %v573
        %v585 = vpop.permute.xlu0 %584
        %v586 = vperm.slane %v364, 1
        %v587 = vlaneseq
        %v588 = vshrl.u32 %v587, 7
        %590 = vset.pattern.permute.xlu0 %v588
        %591 = vperm.xlu0 %590, %v586
        %v592 = vpop.permute.xlu0 %591
        %v593 = vlaneseq
        %v594 = vshrl.u32 %v593, 7
        %v595 = vadd.s32 %v594, 8
        %596 = vset.pattern.permute.xlu0 %v595
        %597 = vperm.xlu0 %596, %v586
        %v598 = vpop.permute.xlu0 %597
        %v599 = vlaneseq
        %v600 = vshrl.u32 %v599, 7
        %v601 = vadd.s32 %v600, 1
        %602 = vset.pattern.permute.xlu0 %v601
        %603 = vperm.xlu0 %602, %v365
        %v604 = vpop.permute.xlu0 %603
        %v605 = vlaneseq
        %v606 = vshrl.u32 %v605, 7
        %v607 = vadd.s32 %v606, 9
        %608 = vset.pattern.permute.xlu0 %v607
        %609 = vperm.xlu0 %608, %v365
        %v610 = vpop.permute.xlu0 %609
        %v611 = vlaneseq
        %v612 = vshrl.u32 %v611, 7
        %v613 = vadd.s32 %v612, 1
        %614 = vset.pattern.permute.xlu0 %v613
        %615 = vperm.xlu0 %614, %v378
        %v616 = vpop.permute.xlu0 %615
        %v617 = vlaneseq
        %v618 = vshrl.u32 %v617, 7
        %v619 = vadd.s32 %v618, 9
        %620 = vset.pattern.permute.xlu0 %v619
        %621 = vperm.xlu0 %620, %v378
        %v622 = vpop.permute.xlu0 %621
        %v623 = vlaneseq
        %v624 = vshrl.u32 %v623, 7
        %v625 = vadd.s32 %v624, 1
        %626 = vset.pattern.permute.xlu0 %v625
        %627 = vperm.xlu0 %626, %v391
        %v628 = vpop.permute.xlu0 %627
        %v629 = vlaneseq
        %v630 = vshrl.u32 %v629, 7
        %v631 = vadd.s32 %v630, 9
        %632 = vset.pattern.permute.xlu0 %v631
        %633 = vperm.xlu0 %632, %v391
        %v634 = vpop.permute.xlu0 %633
        %v635 = vlaneseq
        %v636 = vshrl.u32 %v635, 7
        %v637 = vadd.s32 %v636, 1
        %638 = vset.pattern.permute.xlu0 %v637
        %639 = vperm.xlu0 %638, %v404
        %v640 = vpop.permute.xlu0 %639
        %v641 = vlaneseq
        %v642 = vshrl.u32 %v641, 7
        %v643 = vadd.s32 %v642, 9
        %644 = vset.pattern.permute.xlu0 %v643
        %645 = vperm.xlu0 %644, %v404
        %v646 = vpop.permute.xlu0 %645
        %v647 = vlaneseq
        %v648 = vshrl.u32 %v647, 7
        %v649 = vadd.s32 %v648, 1
        %650 = vset.pattern.permute.xlu0 %v649
        %651 = vperm.xlu0 %650, %v417
        %v652 = vpop.permute.xlu0 %651
        %v653 = vlaneseq
        %v654 = vshrl.u32 %v653, 7
        %v655 = vadd.s32 %v654, 9
        %656 = vset.pattern.permute.xlu0 %v655
        %657 = vperm.xlu0 %656, %v417
        %v658 = vpop.permute.xlu0 %657
        %v659 = vlaneseq
        %v660 = vshrl.u32 %v659, 7
        %v661 = vadd.s32 %v660, 1
        %662 = vset.pattern.permute.xlu0 %v661
        %663 = vperm.xlu0 %662, %v430
        %v664 = vpop.permute.xlu0 %663
        %v665 = vlaneseq
        %v666 = vshrl.u32 %v665, 7
        %v667 = vadd.s32 %v666, 9
        %668 = vset.pattern.permute.xlu0 %v667
        %669 = vperm.xlu0 %668, %v430
        %v670 = vpop.permute.xlu0 %669
        %v671 = vlaneseq
        %v672 = vshrl.u32 %v671, 7
        %v673 = vadd.s32 %v672, 1
        %674 = vset.pattern.permute.xlu0 %v673
        %675 = vperm.xlu0 %674, %v443
        %v676 = vpop.permute.xlu0 %675
        %v677 = vlaneseq
        %v678 = vshrl.u32 %v677, 7
        %v679 = vadd.s32 %v678, 9
        %680 = vset.pattern.permute.xlu0 %v679
        %681 = vperm.xlu0 %680, %v443
        %v682 = vpop.permute.xlu0 %681
        %v683 = vlaneseq
        %v684 = vshrl.u32 %v683, 7
        %v685 = vadd.s32 %v684, 1
        %686 = vset.pattern.permute.xlu0 %v685
        %687 = vperm.xlu0 %686, %v456
        %v688 = vpop.permute.xlu0 %687
        %v689 = vlaneseq
        %v690 = vshrl.u32 %v689, 7
        %v691 = vadd.s32 %v690, 9
        %692 = vset.pattern.permute.xlu0 %v691
        %693 = vperm.xlu0 %692, %v456
        %v694 = vpop.permute.xlu0 %693
        %v695 = vlaneseq
        %v696 = vshrl.u32 %v695, 7
        %v697 = vadd.s32 %v696, 1
        %698 = vset.pattern.permute.xlu0 %v697
        %699 = vperm.xlu0 %698, %v469
        %v700 = vpop.permute.xlu0 %699
        %v701 = vlaneseq
        %v702 = vshrl.u32 %v701, 7
        %v703 = vadd.s32 %v702, 9
        %704 = vset.pattern.permute.xlu0 %v703
        %705 = vperm.xlu0 %704, %v469
        %v706 = vpop.permute.xlu0 %705
        %v707 = vlaneseq
        %v708 = vshrl.u32 %v707, 7
        %v709 = vadd.s32 %v708, 1
        %710 = vset.pattern.permute.xlu0 %v709
        %711 = vperm.xlu0 %710, %v482
        %v712 = vpop.permute.xlu0 %711
        %v713 = vlaneseq
        %v714 = vshrl.u32 %v713, 7
        %v715 = vadd.s32 %v714, 9
        %716 = vset.pattern.permute.xlu0 %v715
        %717 = vperm.xlu0 %716, %v482
        %v718 = vpop.permute.xlu0 %717
        %v719 = vlaneseq
        %v720 = vshrl.u32 %v719, 7
        %v721 = vadd.s32 %v720, 1
        %722 = vset.pattern.permute.xlu0 %v721
        %723 = vperm.xlu0 %722, %v495
        %v724 = vpop.permute.xlu0 %723
        %v725 = vlaneseq
        %v726 = vshrl.u32 %v725, 7
        %v727 = vadd.s32 %v726, 9
        %728 = vset.pattern.permute.xlu0 %v727
        %729 = vperm.xlu0 %728, %v495
        %v730 = vpop.permute.xlu0 %729
        %v731 = vlaneseq
        %v732 = vshrl.u32 %v731, 7
        %v733 = vadd.s32 %v732, 1
        %734 = vset.pattern.permute.xlu0 %v733
        %735 = vperm.xlu0 %734, %v508
        %v736 = vpop.permute.xlu0 %735
        %v737 = vlaneseq
        %v738 = vshrl.u32 %v737, 7
        %v739 = vadd.s32 %v738, 9
        %740 = vset.pattern.permute.xlu0 %v739
        %741 = vperm.xlu0 %740, %v508
        %v742 = vpop.permute.xlu0 %741
        %v743 = vlaneseq
        %v744 = vshrl.u32 %v743, 7
        %v745 = vadd.s32 %v744, 1
        %746 = vset.pattern.permute.xlu0 %v745
        %747 = vperm.xlu0 %746, %v521
        %v748 = vpop.permute.xlu0 %747
        %v749 = vlaneseq
        %v750 = vshrl.u32 %v749, 7
        %v751 = vadd.s32 %v750, 9
        %752 = vset.pattern.permute.xlu0 %v751
        %753 = vperm.xlu0 %752, %v521
        %v754 = vpop.permute.xlu0 %753
        %v755 = vlaneseq
        %v756 = vshrl.u32 %v755, 7
        %v757 = vadd.s32 %v756, 1
        %758 = vset.pattern.permute.xlu0 %v757
        %759 = vperm.xlu0 %758, %v534
        %v760 = vpop.permute.xlu0 %759
        %v761 = vlaneseq
        %v762 = vshrl.u32 %v761, 7
        %v763 = vadd.s32 %v762, 9
        %764 = vset.pattern.permute.xlu0 %v763
        %765 = vperm.xlu0 %764, %v534
        %v766 = vpop.permute.xlu0 %765
        %v767 = vlaneseq
        %v768 = vshrl.u32 %v767, 7
        %v769 = vadd.s32 %v768, 1
        %770 = vset.pattern.permute.xlu0 %v769
        %771 = vperm.xlu0 %770, %v547
        %v772 = vpop.permute.xlu0 %771
        %v773 = vlaneseq
        %v774 = vshrl.u32 %v773, 7
        %v775 = vadd.s32 %v774, 9
        %776 = vset.pattern.permute.xlu0 %v775
        %777 = vperm.xlu0 %776, %v547
        %v778 = vpop.permute.xlu0 %777
        %v779 = vlaneseq
        %v780 = vshrl.u32 %v779, 7
        %v781 = vadd.s32 %v780, 1
        %782 = vset.pattern.permute.xlu0 %v781
        %783 = vperm.xlu0 %782, %v560
        %v784 = vpop.permute.xlu0 %783
        %v785 = vlaneseq
        %v786 = vshrl.u32 %v785, 7
        %v787 = vadd.s32 %v786, 9
        %788 = vset.pattern.permute.xlu0 %v787
        %789 = vperm.xlu0 %788, %v560
        %v790 = vpop.permute.xlu0 %789
        %v791 = vlaneseq
        %v792 = vshrl.u32 %v791, 7
        %v793 = vadd.s32 %v792, 1
        %794 = vset.pattern.permute.xlu0 %v793
        %795 = vperm.xlu0 %794, %v573
        %v796 = vpop.permute.xlu0 %795
        %v797 = vlaneseq
        %v798 = vshrl.u32 %v797, 7
        %v799 = vadd.s32 %v798, 9
        %800 = vset.pattern.permute.xlu0 %v799
        %801 = vperm.xlu0 %800, %v573
        %v802 = vpop.permute.xlu0 %801
        %v803 = vlaneseq
        %v804 = vshrl.u32 %v803, 7
        %v805 = vadd.s32 %v804, 1
        %806 = vset.pattern.permute.xlu0 %v805
        %807 = vperm.xlu0 %806, %v586
        %v808 = vpop.permute.xlu0 %807
        %v809 = vlaneseq
        %v810 = vshrl.u32 %v809, 7
        %v811 = vadd.s32 %v810, 9
        %812 = vset.pattern.permute.xlu0 %v811
        %813 = vperm.xlu0 %812, %v586
        %v814 = vpop.permute.xlu0 %813
        %v815 = vlaneseq
        %v816 = vshrl.u32 %v815, 7
        %v817 = vadd.s32 %v816, 2
        %818 = vset.pattern.permute.xlu0 %v817
        %819 = vperm.xlu0 %818, %v365
        %v820 = vpop.permute.xlu0 %819
        %v821 = vlaneseq
        %v822 = vshrl.u32 %v821, 7
        %v823 = vadd.s32 %v822, 10
        %824 = vset.pattern.permute.xlu0 %v823
        %825 = vperm.xlu0 %824, %v365
        %v826 = vpop.permute.xlu0 %825
        %v827 = vlaneseq
        %v828 = vshrl.u32 %v827, 7
        %v829 = vadd.s32 %v828, 2
        %830 = vset.pattern.permute.xlu0 %v829
        %831 = vperm.xlu0 %830, %v378
        %v832 = vpop.permute.xlu0 %831
        %v833 = vlaneseq
        %v834 = vshrl.u32 %v833, 7
        %v835 = vadd.s32 %v834, 10
        %836 = vset.pattern.permute.xlu0 %v835
        %837 = vperm.xlu0 %836, %v378
        %v838 = vpop.permute.xlu0 %837
        %v839 = vlaneseq
        %v840 = vshrl.u32 %v839, 7
        %v841 = vadd.s32 %v840, 2
        %842 = vset.pattern.permute.xlu0 %v841
        %843 = vperm.xlu0 %842, %v391
        %v844 = vpop.permute.xlu0 %843
        %v845 = vlaneseq
        %v846 = vshrl.u32 %v845, 7
        %v847 = vadd.s32 %v846, 10
        %848 = vset.pattern.permute.xlu0 %v847
        %849 = vperm.xlu0 %848, %v391
        %v850 = vpop.permute.xlu0 %849
        %v851 = vlaneseq
        %v852 = vshrl.u32 %v851, 7
        %v853 = vadd.s32 %v852, 2
        %854 = vset.pattern.permute.xlu0 %v853
        %855 = vperm.xlu0 %854, %v404
        %v856 = vpop.permute.xlu0 %855
        %v857 = vlaneseq
        %v858 = vshrl.u32 %v857, 7
        %v859 = vadd.s32 %v858, 10
        %860 = vset.pattern.permute.xlu0 %v859
        %861 = vperm.xlu0 %860, %v404
        %v862 = vpop.permute.xlu0 %861
        %v863 = vlaneseq
        %v864 = vshrl.u32 %v863, 7
        %v865 = vadd.s32 %v864, 2
        %866 = vset.pattern.permute.xlu0 %v865
        %867 = vperm.xlu0 %866, %v417
        %v868 = vpop.permute.xlu0 %867
        %v869 = vlaneseq
        %v870 = vshrl.u32 %v869, 7
        %v871 = vadd.s32 %v870, 10
        %872 = vset.pattern.permute.xlu0 %v871
        %873 = vperm.xlu0 %872, %v417
        %v874 = vpop.permute.xlu0 %873
        %v875 = vlaneseq
        %v876 = vshrl.u32 %v875, 7
        %v877 = vadd.s32 %v876, 2
        %878 = vset.pattern.permute.xlu0 %v877
        %879 = vperm.xlu0 %878, %v430
        %v880 = vpop.permute.xlu0 %879
        %v881 = vlaneseq
        %v882 = vshrl.u32 %v881, 7
        %v883 = vadd.s32 %v882, 10
        %884 = vset.pattern.permute.xlu0 %v883
        %885 = vperm.xlu0 %884, %v430
        %v886 = vpop.permute.xlu0 %885
        %v887 = vlaneseq
        %v888 = vshrl.u32 %v887, 7
        %v889 = vadd.s32 %v888, 2
        %890 = vset.pattern.permute.xlu0 %v889
        %891 = vperm.xlu0 %890, %v443
        %v892 = vpop.permute.xlu0 %891
        %v893 = vlaneseq
        %v894 = vshrl.u32 %v893, 7
        %v895 = vadd.s32 %v894, 10
        %896 = vset.pattern.permute.xlu0 %v895
        %897 = vperm.xlu0 %896, %v443
        %v898 = vpop.permute.xlu0 %897
        %v899 = vlaneseq
        %v900 = vshrl.u32 %v899, 7
        %v901 = vadd.s32 %v900, 2
        %902 = vset.pattern.permute.xlu0 %v901
        %903 = vperm.xlu0 %902, %v456
        %v904 = vpop.permute.xlu0 %903
        %v905 = vlaneseq
        %v906 = vshrl.u32 %v905, 7
        %v907 = vadd.s32 %v906, 10
        %908 = vset.pattern.permute.xlu0 %v907
        %909 = vperm.xlu0 %908, %v456
        %v910 = vpop.permute.xlu0 %909
        %v911 = vlaneseq
        %v912 = vshrl.u32 %v911, 7
        %v913 = vadd.s32 %v912, 2
        %914 = vset.pattern.permute.xlu0 %v913
        %915 = vperm.xlu0 %914, %v469
        %v916 = vpop.permute.xlu0 %915
        %v917 = vlaneseq
        %v918 = vshrl.u32 %v917, 7
        %v919 = vadd.s32 %v918, 10
        %920 = vset.pattern.permute.xlu0 %v919
        %921 = vperm.xlu0 %920, %v469
        %v922 = vpop.permute.xlu0 %921
        %v923 = vlaneseq
        %v924 = vshrl.u32 %v923, 7
        %v925 = vadd.s32 %v924, 2
        %926 = vset.pattern.permute.xlu0 %v925
        %927 = vperm.xlu0 %926, %v482
        %v928 = vpop.permute.xlu0 %927
        %v929 = vlaneseq
        %v930 = vshrl.u32 %v929, 7
        %v931 = vadd.s32 %v930, 10
        %932 = vset.pattern.permute.xlu0 %v931
        %933 = vperm.xlu0 %932, %v482
        %v934 = vpop.permute.xlu0 %933
        %v935 = vlaneseq
        %v936 = vshrl.u32 %v935, 7
        %v937 = vadd.s32 %v936, 2
        %938 = vset.pattern.permute.xlu0 %v937
        %939 = vperm.xlu0 %938, %v495
        %v940 = vpop.permute.xlu0 %939
        %v941 = vlaneseq
        %v942 = vshrl.u32 %v941, 7
        %v943 = vadd.s32 %v942, 10
        %944 = vset.pattern.permute.xlu0 %v943
        %945 = vperm.xlu0 %944, %v495
        %v946 = vpop.permute.xlu0 %945
        %v947 = vlaneseq
        %v948 = vshrl.u32 %v947, 7
        %v949 = vadd.s32 %v948, 2
        %950 = vset.pattern.permute.xlu0 %v949
        %951 = vperm.xlu0 %950, %v508
        %v952 = vpop.permute.xlu0 %951
        %v953 = vlaneseq
        %v954 = vshrl.u32 %v953, 7
        %v955 = vadd.s32 %v954, 10
        %956 = vset.pattern.permute.xlu0 %v955
        %957 = vperm.xlu0 %956, %v508
        %v958 = vpop.permute.xlu0 %957
        %v959 = vlaneseq
        %v960 = vshrl.u32 %v959, 7
        %v961 = vadd.s32 %v960, 2
        %962 = vset.pattern.permute.xlu0 %v961
        %963 = vperm.xlu0 %962, %v521
        %v964 = vpop.permute.xlu0 %963
        %v965 = vlaneseq
        %v966 = vshrl.u32 %v965, 7
        %v967 = vadd.s32 %v966, 10
        %968 = vset.pattern.permute.xlu0 %v967
        %969 = vperm.xlu0 %968, %v521
        %v970 = vpop.permute.xlu0 %969
        %v971 = vlaneseq
        %v972 = vshrl.u32 %v971, 7
        %v973 = vadd.s32 %v972, 2
        %974 = vset.pattern.permute.xlu0 %v973
        %975 = vperm.xlu0 %974, %v534
        %v976 = vpop.permute.xlu0 %975
        %v977 = vlaneseq
        %v978 = vshrl.u32 %v977, 7
        %v979 = vadd.s32 %v978, 10
        %980 = vset.pattern.permute.xlu0 %v979
        %981 = vperm.xlu0 %980, %v534
        %v982 = vpop.permute.xlu0 %981
        %v983 = vlaneseq
        %v984 = vshrl.u32 %v983, 7
        %v985 = vadd.s32 %v984, 2
        %986 = vset.pattern.permute.xlu0 %v985
        %987 = vperm.xlu0 %986, %v547
        %v988 = vpop.permute.xlu0 %987
        %v989 = vlaneseq
        %v990 = vshrl.u32 %v989, 7
        %v991 = vadd.s32 %v990, 10
        %992 = vset.pattern.permute.xlu0 %v991
        %993 = vperm.xlu0 %992, %v547
        %v994 = vpop.permute.xlu0 %993
        %v995 = vlaneseq
        %v996 = vshrl.u32 %v995, 7
        %v997 = vadd.s32 %v996, 2
        %998 = vset.pattern.permute.xlu0 %v997
        %999 = vperm.xlu0 %998, %v560
        %v1000 = vpop.permute.xlu0 %999
        %v1001 = vlaneseq
        %v1002 = vshrl.u32 %v1001, 7
        %v1003 = vadd.s32 %v1002, 10
        %1004 = vset.pattern.permute.xlu0 %v1003
        %1005 = vperm.xlu0 %1004, %v560
        %v1006 = vpop.permute.xlu0 %1005
        %v1007 = vlaneseq
        %v1008 = vshrl.u32 %v1007, 7
        %v1009 = vadd.s32 %v1008, 2
        %1010 = vset.pattern.permute.xlu0 %v1009
        %1011 = vperm.xlu0 %1010, %v573
        %v1012 = vpop.permute.xlu0 %1011
        %v1013 = vlaneseq
        %v1014 = vshrl.u32 %v1013, 7
        %v1015 = vadd.s32 %v1014, 10
        %1016 = vset.pattern.permute.xlu0 %v1015
        %1017 = vperm.xlu0 %1016, %v573
        %v1018 = vpop.permute.xlu0 %1017
        %v1019 = vlaneseq
        %v1020 = vshrl.u32 %v1019, 7
        %v1021 = vadd.s32 %v1020, 2
        %1022 = vset.pattern.permute.xlu0 %v1021
        %1023 = vperm.xlu0 %1022, %v586
        %v1024 = vpop.permute.xlu0 %1023
        %v1025 = vlaneseq
        %v1026 = vshrl.u32 %v1025, 7
        %v1027 = vadd.s32 %v1026, 10
        %1028 = vset.pattern.permute.xlu0 %v1027
        %1029 = vperm.xlu0 %1028, %v586
        %v1030 = vpop.permute.xlu0 %1029
        %v1031 = vperm.slane %v364, 2
        %v1032 = vlaneseq
        %v1033 = vshrl.u32 %v1032, 7
        %1035 = vset.pattern.permute.xlu0 %v1033
        %1036 = vperm.xlu0 %1035, %v1031
        %v1037 = vpop.permute.xlu0 %1036
        %v1038 = vlaneseq
        %v1039 = vshrl.u32 %v1038, 7
        %v1040 = vadd.s32 %v1039, 8
        %1041 = vset.pattern.permute.xlu0 %v1040
        %1042 = vperm.xlu0 %1041, %v1031
        %v1043 = vpop.permute.xlu0 %1042
        %v1044 = vlaneseq
        %v1045 = vshrl.u32 %v1044, 7
        %v1046 = vadd.s32 %v1045, 1
        %1047 = vset.pattern.permute.xlu0 %v1046
        %1048 = vperm.xlu0 %1047, %v1031
        %v1049 = vpop.permute.xlu0 %1048
        %v1050 = vlaneseq
        %v1051 = vshrl.u32 %v1050, 7
        %v1052 = vadd.s32 %v1051, 9
        %1053 = vset.pattern.permute.xlu0 %v1052
        %1054 = vperm.xlu0 %1053, %v1031
        %v1055 = vpop.permute.xlu0 %1054
        %v1056 = vlaneseq
        %v1057 = vshrl.u32 %v1056, 7
        %v1058 = vadd.s32 %v1057, 2
        %1059 = vset.pattern.permute.xlu0 %v1058
        %1060 = vperm.xlu0 %1059, %v1031
        %v1061 = vpop.permute.xlu0 %1060
        %v1062 = vlaneseq
        %v1063 = vshrl.u32 %v1062, 7
        %v1064 = vadd.s32 %v1063, 10
        %1065 = vset.pattern.permute.xlu0 %v1064
        %1066 = vperm.xlu0 %1065, %v1031
        %v1067 = vpop.permute.xlu0 %1066
        %v1068 = vperm.slane %v364, 3
        %v1069 = vlaneseq
        %v1070 = vshrl.u32 %v1069, 7
        %1072 = vset.pattern.permute.xlu0 %v1070
        %1073 = vperm.xlu0 %1072, %v1068
        %v1074 = vpop.permute.xlu0 %1073
        %v1075 = vlaneseq
        %v1076 = vshrl.u32 %v1075, 7
        %v1077 = vadd.s32 %v1076, 8
        %1078 = vset.pattern.permute.xlu0 %v1077
        %1079 = vperm.xlu0 %1078, %v1068
        %v1080 = vpop.permute.xlu0 %1079
        %v1081 = vlaneseq
        %v1082 = vshrl.u32 %v1081, 7
        %v1083 = vadd.s32 %v1082, 1
        %1084 = vset.pattern.permute.xlu0 %v1083
        %1085 = vperm.xlu0 %1084, %v1068
        %v1086 = vpop.permute.xlu0 %1085
        %v1087 = vlaneseq
        %v1088 = vshrl.u32 %v1087, 7
        %v1089 = vadd.s32 %v1088, 9
        %1090 = vset.pattern.permute.xlu0 %v1089
        %1091 = vperm.xlu0 %1090, %v1068
        %v1092 = vpop.permute.xlu0 %1091
        %v1093 = vlaneseq
        %v1094 = vshrl.u32 %v1093, 7
        %v1095 = vadd.s32 %v1094, 2
        %1096 = vset.pattern.permute.xlu0 %v1095
        %1097 = vperm.xlu0 %1096, %v1068
        %v1098 = vpop.permute.xlu0 %1097
        %v1099 = vlaneseq
        %v1100 = vshrl.u32 %v1099, 7
        %v1101 = vadd.s32 %v1100, 10
        %1102 = vset.pattern.permute.xlu0 %v1101
        %1103 = vperm.xlu0 %1102, %v1068
        %v1104 = vpop.permute.xlu0 %1103
        %vm1105 = vcmask 7168
        %v1106 = vsel %vm1105, %v371, %v604
        %v1107 = vsel %vm1105, %v377, %v610
        %v1108 = vsel %vm1105, %v384, %v616
        %v1109 = vsel %vm1105, %v390, %v622
        %v1110 = vsel %vm1105, %v397, %v628
        %v1111 = vsel %vm1105, %v403, %v634
        %v1112 = vsel %vm1105, %v410, %v640
        %v1113 = vsel %vm1105, %v416, %v646
        %v1114 = vsel %vm1105, %v423, %v652
        %v1115 = vsel %vm1105, %v429, %v658
        %v1116 = vsel %vm1105, %v436, %v664
        %v1117 = vsel %vm1105, %v442, %v670
        %v1118 = vsel %vm1105, %v449, %v676
        %v1119 = vsel %vm1105, %v455, %v682
        %v1120 = vsel %vm1105, %v462, %v688
        %v1121 = vsel %vm1105, %v468, %v694
        %v1122 = vsel %vm1105, %v475, %v700
        %v1123 = vsel %vm1105, %v481, %v706
        %v1124 = vsel %vm1105, %v488, %v712
        %v1125 = vsel %vm1105, %v494, %v718
        %v1126 = vsel %vm1105, %v501, %v724
        %v1127 = vsel %vm1105, %v507, %v730
        %v1128 = vsel %vm1105, %v514, %v736
        %v1129 = vsel %vm1105, %v520, %v742
        %v1130 = vsel %vm1105, %v527, %v748
        %v1131 = vsel %vm1105, %v533, %v754
        %v1132 = vsel %vm1105, %v540, %v760
        %v1133 = vsel %vm1105, %v546, %v766
        %v1134 = vsel %vm1105, %v553, %v772
        %v1135 = vsel %vm1105, %v559, %v778
        %v1136 = vsel %vm1105, %v566, %v784
        %v1137 = vsel %vm1105, %v572, %v790
        %v1138 = vsel %vm1105, %v579, %v796
        %v1139 = vsel %vm1105, %v585, %v802
        %v1140 = vsel %vm1105, %v592, %v808
        %v1141 = vsel %vm1105, %v598, %v814
        %vm1142 = vcmask 15360
        %v1143 = vsel %vm1142, %v1106, %v820
        %v1144 = vsel %vm1142, %v1107, %v826
        %v1145 = vsel %vm1142, %v1108, %v832
        %v1146 = vsel %vm1142, %v1109, %v838
        %v1147 = vsel %vm1142, %v1110, %v844
        %v1148 = vsel %vm1142, %v1111, %v850
        %v1149 = vsel %vm1142, %v1112, %v856
        %v1150 = vsel %vm1142, %v1113, %v862
        %v1151 = vsel %vm1142, %v1114, %v868
        %v1152 = vsel %vm1142, %v1115, %v874
        %v1153 = vsel %vm1142, %v1116, %v880
        %v1154 = vsel %vm1142, %v1117, %v886
        %v1155 = vsel %vm1142, %v1118, %v892
        %v1156 = vsel %vm1142, %v1119, %v898
        %v1157 = vsel %vm1142, %v1120, %v904
        %v1158 = vsel %vm1142, %v1121, %v910
        %v1159 = vsel %vm1142, %v1122, %v916
        %v1160 = vsel %vm1142, %v1123, %v922
        %v1161 = vsel %vm1142, %v1124, %v928
        %v1162 = vsel %vm1142, %v1125, %v934
        %v1163 = vsel %vm1142, %v1126, %v940
        %v1164 = vsel %vm1142, %v1127, %v946
        %v1165 = vsel %vm1142, %v1128, %v952
        %v1166 = vsel %vm1142, %v1129, %v958
        %v1167 = vsel %vm1142, %v1130, %v964
        %v1168 = vsel %vm1142, %v1131, %v970
        %v1169 = vsel %vm1142, %v1132, %v976
        %v1170 = vsel %vm1142, %v1133, %v982
        %v1171 = vsel %vm1142, %v1134, %v988
        %v1172 = vsel %vm1142, %v1135, %v994
        %v1173 = vsel %vm1142, %v1136, %v1000
        %v1174 = vsel %vm1142, %v1137, %v1006
        %v1175 = vsel %vm1142, %v1138, %v1012
        %v1176 = vsel %vm1142, %v1139, %v1018
        %v1177 = vsel %vm1142, %v1140, %v1024
        %v1178 = vsel %vm1142, %v1141, %v1030
        %vm1179 = vcmask 23552
        %v1180 = vsel %vm1179, %v1143, %v384
        %v1181 = vsel %vm1179, %v1144, %v390
        %v1182 = vsel %vm1179, %v1145, %v397
        %v1183 = vsel %vm1179, %v1146, %v403
        %v1184 = vsel %vm1179, %v1147, %v410
        %v1185 = vsel %vm1179, %v1148, %v416
        %v1186 = vsel %vm1179, %v1149, %v423
        %v1187 = vsel %vm1179, %v1150, %v429
        %v1188 = vsel %vm1179, %v1151, %v436
        %v1189 = vsel %vm1179, %v1152, %v442
        %v1190 = vsel %vm1179, %v1153, %v449
        %v1191 = vsel %vm1179, %v1154, %v455
        %v1192 = vsel %vm1179, %v1155, %v462
        %v1193 = vsel %vm1179, %v1156, %v468
        %v1194 = vsel %vm1179, %v1157, %v475
        %v1195 = vsel %vm1179, %v1158, %v481
        %v1196 = vsel %vm1179, %v1159, %v488
        %v1197 = vsel %vm1179, %v1160, %v494
        %v1198 = vsel %vm1179, %v1161, %v501
        %v1199 = vsel %vm1179, %v1162, %v507
        %v1200 = vsel %vm1179, %v1163, %v514
        %v1201 = vsel %vm1179, %v1164, %v520
        %v1202 = vsel %vm1179, %v1165, %v527
        %v1203 = vsel %vm1179, %v1166, %v533
        %v1204 = vsel %vm1179, %v1167, %v540
        %v1205 = vsel %vm1179, %v1168, %v546
        %v1206 = vsel %vm1179, %v1169, %v553
        %v1207 = vsel %vm1179, %v1170, %v559
        %v1208 = vsel %vm1179, %v1171, %v566
        %v1209 = vsel %vm1179, %v1172, %v572
        %v1210 = vsel %vm1179, %v1173, %v579
        %v1211 = vsel %vm1179, %v1174, %v585
        %v1212 = vsel %vm1179, %v1175, %v592
        %v1213 = vsel %vm1179, %v1176, %v598
        %v1214 = vsel %vm1179, %v1177, %v1037
        %v1215 = vsel %vm1179, %v1178, %v1043
        %vm1216 = vcmask 31744
        %v1217 = vsel %vm1216, %v1180, %v616
        %v1218 = vsel %vm1216, %v1181, %v622
        %v1219 = vsel %vm1216, %v1182, %v628
        %v1220 = vsel %vm1216, %v1183, %v634
        %v1221 = vsel %vm1216, %v1184, %v640
        %v1222 = vsel %vm1216, %v1185, %v646
        %v1223 = vsel %vm1216, %v1186, %v652
        %v1224 = vsel %vm1216, %v1187, %v658
        %v1225 = vsel %vm1216, %v1188, %v664
        %v1226 = vsel %vm1216, %v1189, %v670
        %v1227 = vsel %vm1216, %v1190, %v676
        %v1228 = vsel %vm1216, %v1191, %v682
        %v1229 = vsel %vm1216, %v1192, %v688
        %v1230 = vsel %vm1216, %v1193, %v694
        %v1231 = vsel %vm1216, %v1194, %v700
        %v1232 = vsel %vm1216, %v1195, %v706
        %v1233 = vsel %vm1216, %v1196, %v712
        %v1234 = vsel %vm1216, %v1197, %v718
        %v1235 = vsel %vm1216, %v1198, %v724
        %v1236 = vsel %vm1216, %v1199, %v730
        %v1237 = vsel %vm1216, %v1200, %v736
        %v1238 = vsel %vm1216, %v1201, %v742
        %v1239 = vsel %vm1216, %v1202, %v748
        %v1240 = vsel %vm1216, %v1203, %v754
        %v1241 = vsel %vm1216, %v1204, %v760
        %v1242 = vsel %vm1216, %v1205, %v766
        %v1243 = vsel %vm1216, %v1206, %v772
        %v1244 = vsel %vm1216, %v1207, %v778
        %v1245 = vsel %vm1216, %v1208, %v784
        %v1246 = vsel %vm1216, %v1209, %v790
        %v1247 = vsel %vm1216, %v1210, %v796
        %v1248 = vsel %vm1216, %v1211, %v802
        %v1249 = vsel %vm1216, %v1212, %v808
        %v1250 = vsel %vm1216, %v1213, %v814
        %v1251 = vsel %vm1216, %v1214, %v1049
        %v1252 = vsel %vm1216, %v1215, %v1055
        %vm1253 = vcmask 39936
        %v1254 = vsel %vm1253, %v1217, %v832
        %v1255 = vsel %vm1253, %v1218, %v838
        %v1256 = vsel %vm1253, %v1219, %v844
        %v1257 = vsel %vm1253, %v1220, %v850
        %v1258 = vsel %vm1253, %v1221, %v856
        %v1259 = vsel %vm1253, %v1222, %v862
        %v1260 = vsel %vm1253, %v1223, %v868
        %v1261 = vsel %vm1253, %v1224, %v874
        %v1262 = vsel %vm1253, %v1225, %v880
        %v1263 = vsel %vm1253, %v1226, %v886
        %v1264 = vsel %vm1253, %v1227, %v892
        %v1265 = vsel %vm1253, %v1228, %v898
        %v1266 = vsel %vm1253, %v1229, %v904
        %v1267 = vsel %vm1253, %v1230, %v910
        %v1268 = vsel %vm1253, %v1231, %v916
        %v1269 = vsel %vm1253, %v1232, %v922
        %v1270 = vsel %vm1253, %v1233, %v928
        %v1271 = vsel %vm1253, %v1234, %v934
        %v1272 = vsel %vm1253, %v1235, %v940
        %v1273 = vsel %vm1253, %v1236, %v946
        %v1274 = vsel %vm1253, %v1237, %v952
        %v1275 = vsel %vm1253, %v1238, %v958
        %v1276 = vsel %vm1253, %v1239, %v964
        %v1277 = vsel %vm1253, %v1240, %v970
        %v1278 = vsel %vm1253, %v1241, %v976
        %v1279 = vsel %vm1253, %v1242, %v982
        %v1280 = vsel %vm1253, %v1243, %v988
        %v1281 = vsel %vm1253, %v1244, %v994
        %v1282 = vsel %vm1253, %v1245, %v1000
        %v1283 = vsel %vm1253, %v1246, %v1006
        %v1284 = vsel %vm1253, %v1247, %v1012
        %v1285 = vsel %vm1253, %v1248, %v1018
        %v1286 = vsel %vm1253, %v1249, %v1024
        %v1287 = vsel %vm1253, %v1250, %v1030
        %v1288 = vsel %vm1253, %v1251, %v1061
        %v1289 = vsel %vm1253, %v1252, %v1067
        %vm1290 = vcmask 48128
        %v1291 = vsel %vm1290, %v1254, %v397
        %v1292 = vsel %vm1290, %v1255, %v403
        %v1293 = vsel %vm1290, %v1256, %v410
        %v1294 = vsel %vm1290, %v1257, %v416
        %v1295 = vsel %vm1290, %v1258, %v423
        %v1296 = vsel %vm1290, %v1259, %v429
        %v1297 = vsel %vm1290, %v1260, %v436
        %v1298 = vsel %vm1290, %v1261, %v442
        %v1299 = vsel %vm1290, %v1262, %v449
        %v1300 = vsel %vm1290, %v1263, %v455
        %v1301 = vsel %vm1290, %v1264, %v462
        %v1302 = vsel %vm1290, %v1265, %v468
        %v1303 = vsel %vm1290, %v1266, %v475
        %v1304 = vsel %vm1290, %v1267, %v481
        %v1305 = vsel %vm1290, %v1268, %v488
        %v1306 = vsel %vm1290, %v1269, %v494
        %v1307 = vsel %vm1290, %v1270, %v501
        %v1308 = vsel %vm1290, %v1271, %v507
        %v1309 = vsel %vm1290, %v1272, %v514
        %v1310 = vsel %vm1290, %v1273, %v520
        %v1311 = vsel %vm1290, %v1274, %v527
        %v1312 = vsel %vm1290, %v1275, %v533
        %v1313 = vsel %vm1290, %v1276, %v540
        %v1314 = vsel %vm1290, %v1277, %v546
        %v1315 = vsel %vm1290, %v1278, %v553
        %v1316 = vsel %vm1290, %v1279, %v559
        %v1317 = vsel %vm1290, %v1280, %v566
        %v1318 = vsel %vm1290, %v1281, %v572
        %v1319 = vsel %vm1290, %v1282, %v579
        %v1320 = vsel %vm1290, %v1283, %v585
        %v1321 = vsel %vm1290, %v1284, %v592
        %v1322 = vsel %vm1290, %v1285, %v598
        %v1323 = vsel %vm1290, %v1286, %v1037
        %v1324 = vsel %vm1290, %v1287, %v1043
        %v1325 = vsel %vm1290, %v1288, %v1074
        %v1326 = vsel %vm1290, %v1289, %v1080
        %vm1327 = vcmask 56320
        %v1328 = vsel %vm1327, %v1291, %v628
        %v1329 = vsel %vm1327, %v1292, %v634
        %v1330 = vsel %vm1327, %v1293, %v640
        %v1331 = vsel %vm1327, %v1294, %v646
        %v1332 = vsel %vm1327, %v1295, %v652
        %v1333 = vsel %vm1327, %v1296, %v658
        %v1334 = vsel %vm1327, %v1297, %v664
        %v1335 = vsel %vm1327, %v1298, %v670
        %v1336 = vsel %vm1327, %v1299, %v676
        %v1337 = vsel %vm1327, %v1300, %v682
        %v1338 = vsel %vm1327, %v1301, %v688
        %v1339 = vsel %vm1327, %v1302, %v694
        %v1340 = vsel %vm1327, %v1303, %v700
        %v1341 = vsel %vm1327, %v1304, %v706
        %v1342 = vsel %vm1327, %v1305, %v712
        %v1343 = vsel %vm1327, %v1306, %v718
        %v1344 = vsel %vm1327, %v1307, %v724
        %v1345 = vsel %vm1327, %v1308, %v730
        %v1346 = vsel %vm1327, %v1309, %v736
        %v1347 = vsel %vm1327, %v1310, %v742
        %v1348 = vsel %vm1327, %v1311, %v748
        %v1349 = vsel %vm1327, %v1312, %v754
        %v1350 = vsel %vm1327, %v1313, %v760
        %v1351 = vsel %vm1327, %v1314, %v766
        %v1352 = vsel %vm1327, %v1315, %v772
        %v1353 = vsel %vm1327, %v1316, %v778
        %v1354 = vsel %vm1327, %v1317, %v784
        %v1355 = vsel %vm1327, %v1318, %v790
        %v1356 = vsel %vm1327, %v1319, %v796
        %v1357 = vsel %vm1327, %v1320, %v802
        %v1358 = vsel %vm1327, %v1321, %v808
        %v1359 = vsel %vm1327, %v1322, %v814
        %v1360 = vsel %vm1327, %v1323, %v1049
        %v1361 = vsel %vm1327, %v1324, %v1055
        %v1362 = vsel %vm1327, %v1325, %v1086
        %v1363 = vsel %vm1327, %v1326, %v1092
        %vm1364 = vcmask 64512
        %v1365 = vsel %vm1364, %v1328, %v844
        %v1366 = vsel %vm1364, %v1329, %v850
        %v1367 = vsel %vm1364, %v1330, %v856
        %v1368 = vsel %vm1364, %v1331, %v862
        %v1369 = vsel %vm1364, %v1332, %v868
        %v1370 = vsel %vm1364, %v1333, %v874
        %v1371 = vsel %vm1364, %v1334, %v880
        %v1372 = vsel %vm1364, %v1335, %v886
        %v1373 = vsel %vm1364, %v1336, %v892
        %v1374 = vsel %vm1364, %v1337, %v898
        %v1375 = vsel %vm1364, %v1338, %v904
        %v1376 = vsel %vm1364, %v1339, %v910
        %v1377 = vsel %vm1364, %v1340, %v916
        %v1378 = vsel %vm1364, %v1341, %v922
        %v1379 = vsel %vm1364, %v1342, %v928
        %v1380 = vsel %vm1364, %v1343, %v934
        %v1381 = vsel %vm1364, %v1344, %v940
        %v1382 = vsel %vm1364, %v1345, %v946
        %v1383 = vsel %vm1364, %v1346, %v952
        %v1384 = vsel %vm1364, %v1347, %v958
        %v1385 = vsel %vm1364, %v1348, %v964
        %v1386 = vsel %vm1364, %v1349, %v970
        %v1387 = vsel %vm1364, %v1350, %v976
        %v1388 = vsel %vm1364, %v1351, %v982
        %v1389 = vsel %vm1364, %v1352, %v988
        %v1390 = vsel %vm1364, %v1353, %v994
        %v1391 = vsel %vm1364, %v1354, %v1000
        %v1392 = vsel %vm1364, %v1355, %v1006
        %v1393 = vsel %vm1364, %v1356, %v1012
        %v1394 = vsel %vm1364, %v1357, %v1018
        %v1395 = vsel %vm1364, %v1358, %v1024
        %v1396 = vsel %vm1364, %v1359, %v1030
        %v1397 = vsel %vm1364, %v1360, %v1061
        %v1398 = vsel %vm1364, %v1361, %v1067
        %v1399 = vsel %vm1364, %v1362, %v1098
        %v1400 = vsel %vm1364, %v1363, %v1104
        %vm1401 = vcmask 72704
        %v1402 = vsel %vm1401, %v1365, 0.0
        %v1403 = vsel %vm1401, %v1366, 0.0
        %v1404 = vsel %vm1401, %v1367, 0.0
        %v1405 = vsel %vm1401, %v1368, 0.0
        %v1406 = vsel %vm1401, %v1369, 0.0
        %v1407 = vsel %vm1401, %v1370, 0.0
        %v1408 = vsel %vm1401, %v1371, 0.0
        %v1409 = vsel %vm1401, %v1372, 0.0
        %v1410 = vsel %vm1401, %v1373, 0.0
        %v1411 = vsel %vm1401, %v1374, 0.0
        %v1412 = vsel %vm1401, %v1375, 0.0
        %v1413 = vsel %vm1401, %v1376, 0.0
        %v1414 = vsel %vm1401, %v1377, 0.0
        %v1415 = vsel %vm1401, %v1378, 0.0
        %v1416 = vsel %vm1401, %v1379, 0.0
        %v1417 = vsel %vm1401, %v1380, 0.0
        %v1418 = vsel %vm1401, %v1381, 0.0
        %v1419 = vsel %vm1401, %v1382, 0.0
        %v1420 = vsel %vm1401, %v1383, 0.0
        %v1421 = vsel %vm1401, %v1384, 0.0
        %v1422 = vsel %vm1401, %v1385, 0.0
        %v1423 = vsel %vm1401, %v1386, 0.0
        %v1424 = vsel %vm1401, %v1387, 0.0
        %v1425 = vsel %vm1401, %v1388, 0.0
        %v1426 = vsel %vm1401, %v1389, 0.0
        %v1427 = vsel %vm1401, %v1390, 0.0
        %v1428 = vsel %vm1401, %v1391, 0.0
        %v1429 = vsel %vm1401, %v1392, 0.0
        %v1430 = vsel %vm1401, %v1393, 0.0
        %v1431 = vsel %vm1401, %v1394, 0.0
        %v1432 = vsel %vm1401, %v1395, 0.0
        %v1433 = vsel %vm1401, %v1396, 0.0
        %v1434 = vsel %vm1401, %v1397, 0.0
        %v1435 = vsel %vm1401, %v1398, 0.0
        %v1436 = vsel %vm1401, %v1399, 0.0
        %v1437 = vsel %vm1401, %v1400, 0.0
        %vm1438 = vcmask 80896
        %v1439 = vsel %vm1438, %v1402, 0.0
        %v1440 = vsel %vm1438, %v1403, 0.0
        %v1441 = vsel %vm1438, %v1404, 0.0
        %v1442 = vsel %vm1438, %v1405, 0.0
        %v1443 = vsel %vm1438, %v1406, 0.0
        %v1444 = vsel %vm1438, %v1407, 0.0
        %v1445 = vsel %vm1438, %v1408, 0.0
        %v1446 = vsel %vm1438, %v1409, 0.0
        %v1447 = vsel %vm1438, %v1410, 0.0
        %v1448 = vsel %vm1438, %v1411, 0.0
        %v1449 = vsel %vm1438, %v1412, 0.0
        %v1450 = vsel %vm1438, %v1413, 0.0
        %v1451 = vsel %vm1438, %v1414, 0.0
        %v1452 = vsel %vm1438, %v1415, 0.0
        %v1453 = vsel %vm1438, %v1416, 0.0
        %v1454 = vsel %vm1438, %v1417, 0.0
        %v1455 = vsel %vm1438, %v1418, 0.0
        %v1456 = vsel %vm1438, %v1419, 0.0
        %v1457 = vsel %vm1438, %v1420, 0.0
        %v1458 = vsel %vm1438, %v1421, 0.0
        %v1459 = vsel %vm1438, %v1422, 0.0
        %v1460 = vsel %vm1438, %v1423, 0.0
        %v1461 = vsel %vm1438, %v1424, 0.0
        %v1462 = vsel %vm1438, %v1425, 0.0
        %v1463 = vsel %vm1438, %v1426, 0.0
        %v1464 = vsel %vm1438, %v1427, 0.0
        %v1465 = vsel %vm1438, %v1428, 0.0
        %v1466 = vsel %vm1438, %v1429, 0.0
        %v1467 = vsel %vm1438, %v1430, 0.0
        %v1468 = vsel %vm1438, %v1431, 0.0
        %v1469 = vsel %vm1438, %v1432, 0.0
        %v1470 = vsel %vm1438, %v1433, 0.0
        %v1471 = vsel %vm1438, %v1434, 0.0
        %v1472 = vsel %vm1438, %v1435, 0.0
        %v1473 = vsel %vm1438, %v1436, 0.0
        %v1474 = vsel %vm1438, %v1437, 0.0
        %vm1475 = vcmask 89088
        %v1476 = vsel %vm1475, %v1439, 0.0
        %v1477 = vsel %vm1475, %v1440, 0.0
        %v1478 = vsel %vm1475, %v1441, 0.0
        %v1479 = vsel %vm1475, %v1442, 0.0
        %v1480 = vsel %vm1475, %v1443, 0.0
        %v1481 = vsel %vm1475, %v1444, 0.0
        %v1482 = vsel %vm1475, %v1445, 0.0
        %v1483 = vsel %vm1475, %v1446, 0.0
        %v1484 = vsel %vm1475, %v1447, 0.0
        %v1485 = vsel %vm1475, %v1448, 0.0
        %v1486 = vsel %vm1475, %v1449, 0.0
        %v1487 = vsel %vm1475, %v1450, 0.0
        %v1488 = vsel %vm1475, %v1451, 0.0
        %v1489 = vsel %vm1475, %v1452, 0.0
        %v1490 = vsel %vm1475, %v1453, 0.0
        %v1491 = vsel %vm1475, %v1454, 0.0
        %v1492 = vsel %vm1475, %v1455, 0.0
        %v1493 = vsel %vm1475, %v1456, 0.0
        %v1494 = vsel %vm1475, %v1457, 0.0
        %v1495 = vsel %vm1475, %v1458, 0.0
        %v1496 = vsel %vm1475, %v1459, 0.0
        %v1497 = vsel %vm1475, %v1460, 0.0
        %v1498 = vsel %vm1475, %v1461, 0.0
        %v1499 = vsel %vm1475, %v1462, 0.0
        %v1500 = vsel %vm1475, %v1463, 0.0
        %v1501 = vsel %vm1475, %v1464, 0.0
        %v1502 = vsel %vm1475, %v1465, 0.0
        %v1503 = vsel %vm1475, %v1466, 0.0
        %v1504 = vsel %vm1475, %v1467, 0.0
        %v1505 = vsel %vm1475, %v1468, 0.0
        %v1506 = vsel %vm1475, %v1469, 0.0
        %v1507 = vsel %vm1475, %v1470, 0.0
        %v1508 = vsel %vm1475, %v1471, 0.0
        %v1509 = vsel %vm1475, %v1472, 0.0
        %v1510 = vsel %vm1475, %v1473, 0.0
        %v1511 = vsel %vm1475, %v1474, 0.0
        %vm1512 = vcmask 97280
        %v1513 = vsel %vm1512, %v1476, 0.0
        %v1514 = vsel %vm1512, %v1477, 0.0
        %v1515 = vsel %vm1512, %v1478, 0.0
        %v1516 = vsel %vm1512, %v1479, 0.0
        %v1517 = vsel %vm1512, %v1480, 0.0
        %v1518 = vsel %vm1512, %v1481, 0.0
        %v1519 = vsel %vm1512, %v1482, 0.0
        %v1520 = vsel %vm1512, %v1483, 0.0
        %v1521 = vsel %vm1512, %v1484, 0.0
        %v1522 = vsel %vm1512, %v1485, 0.0
        %v1523 = vsel %vm1512, %v1486, 0.0
        %v1524 = vsel %vm1512, %v1487, 0.0
        %v1525 = vsel %vm1512, %v1488, 0.0
        %v1526 = vsel %vm1512, %v1489, 0.0
        %v1527 = vsel %vm1512, %v1490, 0.0
        %v1528 = vsel %vm1512, %v1491, 0.0
        %v1529 = vsel %vm1512, %v1492, 0.0
        %v1530 = vsel %vm1512, %v1493, 0.0
        %v1531 = vsel %vm1512, %v1494, 0.0
        %v1532 = vsel %vm1512, %v1495, 0.0
        %v1533 = vsel %vm1512, %v1496, 0.0
        %v1534 = vsel %vm1512, %v1497, 0.0
        %v1535 = vsel %vm1512, %v1498, 0.0
        %v1536 = vsel %vm1512, %v1499, 0.0
        %v1537 = vsel %vm1512, %v1500, 0.0
        %v1538 = vsel %vm1512, %v1501, 0.0
        %v1539 = vsel %vm1512, %v1502, 0.0
        %v1540 = vsel %vm1512, %v1503, 0.0
        %v1541 = vsel %vm1512, %v1504, 0.0
        %v1542 = vsel %vm1512, %v1505, 0.0
        %v1543 = vsel %vm1512, %v1506, 0.0
        %v1544 = vsel %vm1512, %v1507, 0.0
        %v1545 = vsel %vm1512, %v1508, 0.0
        %v1546 = vsel %vm1512, %v1509, 0.0
        %v1547 = vsel %vm1512, %v1510, 0.0
        %v1548 = vsel %vm1512, %v1511, 0.0
        %vm1549 = vcmask 105472
        %v1550 = vsel %vm1549, %v1513, 0.0
        %v1551 = vsel %vm1549, %v1514, 0.0
        %v1552 = vsel %vm1549, %v1515, 0.0
        %v1553 = vsel %vm1549, %v1516, 0.0
        %v1554 = vsel %vm1549, %v1517, 0.0
        %v1555 = vsel %vm1549, %v1518, 0.0
        %v1556 = vsel %vm1549, %v1519, 0.0
        %v1557 = vsel %vm1549, %v1520, 0.0
        %v1558 = vsel %vm1549, %v1521, 0.0
        %v1559 = vsel %vm1549, %v1522, 0.0
        %v1560 = vsel %vm1549, %v1523, 0.0
        %v1561 = vsel %vm1549, %v1524, 0.0
        %v1562 = vsel %vm1549, %v1525, 0.0
        %v1563 = vsel %vm1549, %v1526, 0.0
        %v1564 = vsel %vm1549, %v1527, 0.0
        %v1565 = vsel %vm1549, %v1528, 0.0
        %v1566 = vsel %vm1549, %v1529, 0.0
        %v1567 = vsel %vm1549, %v1530, 0.0
        %v1568 = vsel %vm1549, %v1531, 0.0
        %v1569 = vsel %vm1549, %v1532, 0.0
        %v1570 = vsel %vm1549, %v1533, 0.0
        %v1571 = vsel %vm1549, %v1534, 0.0
        %v1572 = vsel %vm1549, %v1535, 0.0
        %v1573 = vsel %vm1549, %v1536, 0.0
        %v1574 = vsel %vm1549, %v1537, 0.0
        %v1575 = vsel %vm1549, %v1538, 0.0
        %v1576 = vsel %vm1549, %v1539, 0.0
        %v1577 = vsel %vm1549, %v1540, 0.0
        %v1578 = vsel %vm1549, %v1541, 0.0
        %v1579 = vsel %vm1549, %v1542, 0.0
        %v1580 = vsel %vm1549, %v1543, 0.0
        %v1581 = vsel %vm1549, %v1544, 0.0
        %v1582 = vsel %vm1549, %v1545, 0.0
        %v1583 = vsel %vm1549, %v1546, 0.0
        %v1584 = vsel %vm1549, %v1547, 0.0
        %v1585 = vsel %vm1549, %v1548, 0.0
        %vm1586 = vcmask 113664
        %v1587 = vsel %vm1586, %v1550, 0.0
        %v1588 = vsel %vm1586, %v1551, 0.0
        %v1589 = vsel %vm1586, %v1552, 0.0
        %v1590 = vsel %vm1586, %v1553, 0.0
        %v1591 = vsel %vm1586, %v1554, 0.0
        %v1592 = vsel %vm1586, %v1555, 0.0
        %v1593 = vsel %vm1586, %v1556, 0.0
        %v1594 = vsel %vm1586, %v1557, 0.0
        %v1595 = vsel %vm1586, %v1558, 0.0
        %v1596 = vsel %vm1586, %v1559, 0.0
        %v1597 = vsel %vm1586, %v1560, 0.0
        %v1598 = vsel %vm1586, %v1561, 0.0
        %v1599 = vsel %vm1586, %v1562, 0.0
        %v1600 = vsel %vm1586, %v1563, 0.0
        %v1601 = vsel %vm1586, %v1564, 0.0
        %v1602 = vsel %vm1586, %v1565, 0.0
        %v1603 = vsel %vm1586, %v1566, 0.0
        %v1604 = vsel %vm1586, %v1567, 0.0
        %v1605 = vsel %vm1586, %v1568, 0.0
        %v1606 = vsel %vm1586, %v1569, 0.0
        %v1607 = vsel %vm1586, %v1570, 0.0
        %v1608 = vsel %vm1586, %v1571, 0.0
        %v1609 = vsel %vm1586, %v1572, 0.0
        %v1610 = vsel %vm1586, %v1573, 0.0
        %v1611 = vsel %vm1586, %v1574, 0.0
        %v1612 = vsel %vm1586, %v1575, 0.0
        %v1613 = vsel %vm1586, %v1576, 0.0
        %v1614 = vsel %vm1586, %v1577, 0.0
        %v1615 = vsel %vm1586, %v1578, 0.0
        %v1616 = vsel %vm1586, %v1579, 0.0
        %v1617 = vsel %vm1586, %v1580, 0.0
        %v1618 = vsel %vm1586, %v1581, 0.0
        %v1619 = vsel %vm1586, %v1582, 0.0
        %v1620 = vsel %vm1586, %v1583, 0.0
        %v1621 = vsel %vm1586, %v1584, 0.0
        %v1622 = vsel %vm1586, %v1585, 0.0
        %vm1623 = vcmask 121856
        %v1624 = vsel %vm1623, %v1587, 0.0
        %v1625 = vsel %vm1623, %v1588, 0.0
        %v1626 = vsel %vm1623, %v1589, 0.0
        %v1627 = vsel %vm1623, %v1590, 0.0
        %v1628 = vsel %vm1623, %v1591, 0.0
        %v1629 = vsel %vm1623, %v1592, 0.0
        %v1630 = vsel %vm1623, %v1593, 0.0
        %v1631 = vsel %vm1623, %v1594, 0.0
        %v1632 = vsel %vm1623, %v1595, 0.0
        %v1633 = vsel %vm1623, %v1596, 0.0
        %v1634 = vsel %vm1623, %v1597, 0.0
        %v1635 = vsel %vm1623, %v1598, 0.0
        %v1636 = vsel %vm1623, %v1599, 0.0
        %v1637 = vsel %vm1623, %v1600, 0.0
        %v1638 = vsel %vm1623, %v1601, 0.0
        %v1639 = vsel %vm1623, %v1602, 0.0
        %v1640 = vsel %vm1623, %v1603, 0.0
        %v1641 = vsel %vm1623, %v1604, 0.0
        %v1642 = vsel %vm1623, %v1605, 0.0
        %v1643 = vsel %vm1623, %v1606, 0.0
        %v1644 = vsel %vm1623, %v1607, 0.0
        %v1645 = vsel %vm1623, %v1608, 0.0
        %v1646 = vsel %vm1623, %v1609, 0.0
        %v1647 = vsel %vm1623, %v1610, 0.0
        %v1648 = vsel %vm1623, %v1611, 0.0
        %v1649 = vsel %vm1623, %v1612, 0.0
        %v1650 = vsel %vm1623, %v1613, 0.0
        %v1651 = vsel %vm1623, %v1614, 0.0
        %v1652 = vsel %vm1623, %v1615, 0.0
        %v1653 = vsel %vm1623, %v1616, 0.0
        %v1654 = vsel %vm1623, %v1617, 0.0
        %v1655 = vsel %vm1623, %v1618, 0.0
        %v1656 = vsel %vm1623, %v1619, 0.0
        %v1657 = vsel %vm1623, %v1620, 0.0
        %v1658 = vsel %vm1623, %v1621, 0.0
        %v1659 = vsel %vm1623, %v1622, 0.0
        %v1660 = vpack.c.bf16 %v1624, %v1624
        %v1661 = vpack.c.bf16 %v1625, %v1625
        %v1662 = vpack.c.bf16 %v1626, %v1626
        %v1663 = vpack.c.bf16 %v1627, %v1627
        %v1664 = vpack.c.bf16 %v1628, %v1628
        %v1665 = vpack.c.bf16 %v1629, %v1629
        %v1666 = vpack.c.bf16 %v1630, %v1630
        %v1667 = vpack.c.bf16 %v1631, %v1631
        %v1668 = vpack.c.bf16 %v1632, %v1632
        %v1669 = vpack.c.bf16 %v1633, %v1633
        %v1670 = vpack.c.bf16 %v1634, %v1634
        %v1671 = vpack.c.bf16 %v1635, %v1635
        %v1672 = vpack.c.bf16 %v1636, %v1636
        %v1673 = vpack.c.bf16 %v1637, %v1637
        %v1674 = vpack.c.bf16 %v1638, %v1638
        %v1675 = vpack.c.bf16 %v1639, %v1639
        %v1676 = vpack.c.bf16 %v1640, %v1640
        %v1677 = vpack.c.bf16 %v1641, %v1641
        %v1678 = vpack.c.bf16 %v1642, %v1642
        %v1679 = vpack.c.bf16 %v1643, %v1643
        %v1680 = vpack.c.bf16 %v1644, %v1644
        %v1681 = vpack.c.bf16 %v1645, %v1645
        %v1682 = vpack.c.bf16 %v1646, %v1646
        %v1683 = vpack.c.bf16 %v1647, %v1647
        %v1684 = vpack.c.bf16 %v1648, %v1648
        %v1685 = vpack.c.bf16 %v1649, %v1649
        %v1686 = vpack.c.bf16 %v1650, %v1650
        %v1687 = vpack.c.bf16 %v1651, %v1651
        %v1688 = vpack.c.bf16 %v1652, %v1652
        %v1689 = vpack.c.bf16 %v1653, %v1653
        %v1690 = vpack.c.bf16 %v1654, %v1654
        %v1691 = vpack.c.bf16 %v1655, %v1655
        %v1692 = vpack.c.bf16 %v1656, %v1656
        %v1693 = vpack.c.bf16 %v1657, %v1657
        %v1694 = vpack.c.bf16 %v1658, %v1658
        %v1695 = vpack.c.bf16 %v1659, %v1659
        %v1696 = vld [vmem:[%s1] sm:$0xf]
        %v1697 = vld [vmem:[%s1 + $0x4] sm:$0xf]
        %v1698 = vld [vmem:[%s2] sm:$0x1]
        %v1700 = vperm.slane %v1698, 0
        %v1738 = vunpack.c.l.b16 %v1660
        %v1739 = vunpack.c.l.b16 %v1661
        %v1740 = vunpack.c.l.b16 %v1662
        %v1741 = vunpack.c.l.b16 %v1663
        %v1742 = vunpack.c.l.b16 %v1664
        %v1743 = vunpack.c.l.b16 %v1665
        %v1744 = vunpack.c.l.b16 %v1666
        %v1745 = vunpack.c.l.b16 %v1667
        %v1746 = vunpack.c.l.b16 %v1668
        %v1747 = vunpack.c.l.b16 %v1669
        %v1748 = vunpack.c.l.b16 %v1670
        %v1749 = vunpack.c.l.b16 %v1671
        %v1750 = vunpack.c.l.b16 %v1672
        %v1751 = vunpack.c.l.b16 %v1673
        %v1752 = vunpack.c.l.b16 %v1674
        %v1753 = vunpack.c.l.b16 %v1675
        %v1754 = vunpack.c.l.b16 %v1676
        %v1755 = vunpack.c.l.b16 %v1677
        %v1756 = vunpack.c.l.b16 %v1678
        %v1757 = vunpack.c.l.b16 %v1679
        %v1758 = vunpack.c.l.b16 %v1680
        %v1759 = vunpack.c.l.b16 %v1681
        %v1760 = vunpack.c.l.b16 %v1682
        %v1761 = vunpack.c.l.b16 %v1683
        %v1762 = vunpack.c.l.b16 %v1684
        %v1763 = vunpack.c.l.b16 %v1685
        %v1764 = vunpack.c.l.b16 %v1686
        %v1765 = vunpack.c.l.b16 %v1687
        %v1766 = vunpack.c.l.b16 %v1688
        %v1767 = vunpack.c.l.b16 %v1689
        %v1768 = vunpack.c.l.b16 %v1690
        %v1769 = vunpack.c.l.b16 %v1691
        %v1770 = vunpack.c.l.b16 %v1692
        %v1771 = vunpack.c.l.b16 %v1693
        %v1772 = vunpack.c.l.b16 %v1694
        %v1773 = vunpack.c.l.b16 %v1695
        %v1774 = vpack.c.b16 %v1739, %v1738
        %v1775 = vpack.c.b16 %v1741, %v1740
        %v1776 = vpack.c.b16 %v1743, %v1742
        %v1777 = vpack.c.b16 %v1745, %v1744
        %v1778 = vpack.c.b16 %v1747, %v1746
        %v1779 = vpack.c.b16 %v1749, %v1748
        %v1780 = vpack.c.b16 %v1751, %v1750
        %v1781 = vpack.c.b16 %v1753, %v1752
        %v1782 = vpack.c.b16 %v1755, %v1754
        %v1783 = vpack.c.b16 %v1757, %v1756
        %v1784 = vpack.c.b16 %v1759, %v1758
        %v1785 = vpack.c.b16 %v1761, %v1760
        %v1786 = vpack.c.b16 %v1763, %v1762
        %v1787 = vpack.c.b16 %v1765, %v1764
        %v1788 = vpack.c.b16 %v1767, %v1766
        %v1789 = vpack.c.b16 %v1769, %v1768
        %v1790 = vpack.c.b16 %v1771, %v1770
        %v1791 = vpack.c.b16 %v1773, %v1772
        %v1794 = vunpack.c.l.b16 %v1696
        %v1795 = vunpack.c.l.b16 %v1697
        %v1796 = vpack.c.b16 %v1795, %v1794
        %vm1798 = vcmask 130048
        %v1800 = vsel %vm1798, %v1774, 0
        %v1803 = vsel %vm1798, %v1775, 0
        %v1806 = vsel %vm1798, %v1776, 0
        %v1809 = vsel %vm1798, %v1777, 0
        %v1812 = vsel %vm1798, %v1778, 0
        %v1815 = vsel %vm1798, %v1779, 0
        %v1818 = vsel %vm1798, %v1780, 0
        %v1821 = vsel %vm1798, %v1781, 0
        %v1824 = vsel %vm1798, %v1782, 0
        %v1827 = vsel %vm1798, %v1783, 0
        %v1830 = vsel %vm1798, %v1784, 0
        %v1833 = vsel %vm1798, %v1785, 0
        %v1836 = vsel %vm1798, %v1786, 0
        %v1839 = vsel %vm1798, %v1787, 0
        %v1842 = vsel %vm1798, %v1788, 0
        %v1845 = vsel %vm1798, %v1789, 0
        %v1848 = vsel %vm1798, %v1790, 0
        %v1851 = vsel %vm1798, %v1791, 0
        %1853 = vmatpush.bf16.msra.mxu0 0
        %1854 = vmatpush.bf16.msra.mxu0 0
        %1855 = vmatpush.bf16.msra.mxu0 0
        %1856 = vmatpush.bf16.msra.mxu0 0
        %1857 = vmatpush.bf16.msra.mxu0 0
        %1858 = vmatpush.bf16.msra.mxu0 0
        %1859 = vmatpush.bf16.msra.mxu0 0
        %1860 = vmatpush.bf16.msra.mxu0 %v1796
        %1861 = vmatmul.bf16.gmra.mxu0 %v1800
        %v1862 = vpop.f32.mrf.mxu0
        %v1863 = vadd.f32 %v1700, %v1862
        %v1864 = vpop.f32.mrf.mxu0
        %v1865 = vadd.f32 %v1700, %v1864
        %1866 = vmatmul.bf16.gmra.mxu0 %v1803
        %v1867 = vpop.f32.mrf.mxu0
        %v1868 = vadd.f32 %v1700, %v1867
        %v1869 = vpop.f32.mrf.mxu0
        %v1870 = vadd.f32 %v1700, %v1869
        %1871 = vmatmul.bf16.gmra.mxu0 %v1806
        %v1872 = vpop.f32.mrf.mxu0
        %v1873 = vadd.f32 %v1700, %v1872
        %v1874 = vpop.f32.mrf.mxu0
        %v1875 = vadd.f32 %v1700, %v1874
        %1876 = vmatmul.bf16.gmra.mxu0 %v1809
        %v1877 = vpop.f32.mrf.mxu0
        %v1878 = vadd.f32 %v1700, %v1877
        %v1879 = vpop.f32.mrf.mxu0
        %v1880 = vadd.f32 %v1700, %v1879
        %1881 = vmatmul.bf16.gmra.mxu0 %v1812
        %v1882 = vpop.f32.mrf.mxu0
        %v1883 = vadd.f32 %v1700, %v1882
        %v1884 = vpop.f32.mrf.mxu0
        %v1885 = vadd.f32 %v1700, %v1884
        %1886 = vmatmul.bf16.gmra.mxu0 %v1815
        %v1887 = vpop.f32.mrf.mxu0
        %v1888 = vadd.f32 %v1700, %v1887
        %v1889 = vpop.f32.mrf.mxu0
        %v1890 = vadd.f32 %v1700, %v1889
        %1891 = vmatmul.bf16.gmra.mxu0 %v1818
        %v1892 = vpop.f32.mrf.mxu0
        %v1893 = vadd.f32 %v1700, %v1892
        %v1894 = vpop.f32.mrf.mxu0
        %v1895 = vadd.f32 %v1700, %v1894
        %1896 = vmatmul.bf16.gmra.mxu0 %v1821
        %v1897 = vpop.f32.mrf.mxu0
        %v1898 = vadd.f32 %v1700, %v1897
        %v1899 = vpop.f32.mrf.mxu0
        %v1900 = vadd.f32 %v1700, %v1899
        %1901 = vmatmul.bf16.gmra.mxu0 %v1824
        %v1902 = vpop.f32.mrf.mxu0
        %v1903 = vadd.f32 %v1700, %v1902
        %v1904 = vpop.f32.mrf.mxu0
        %v1905 = vadd.f32 %v1700, %v1904
        %1906 = vmatmul.bf16.gmra.mxu0 %v1827
        %v1907 = vpop.f32.mrf.mxu0
        %v1908 = vadd.f32 %v1700, %v1907
        %v1909 = vpop.f32.mrf.mxu0
        %v1910 = vadd.f32 %v1700, %v1909
        %1911 = vmatmul.bf16.gmra.mxu0 %v1830
        %v1912 = vpop.f32.mrf.mxu0
        %v1913 = vadd.f32 %v1700, %v1912
        %v1914 = vpop.f32.mrf.mxu0
        %v1915 = vadd.f32 %v1700, %v1914
        %1916 = vmatmul.bf16.gmra.mxu0 %v1833
        %v1917 = vpop.f32.mrf.mxu0
        %v1918 = vadd.f32 %v1700, %v1917
        %v1919 = vpop.f32.mrf.mxu0
        %v1920 = vadd.f32 %v1700, %v1919
        %1921 = vmatmul.bf16.gmra.mxu0 %v1836
        %v1922 = vpop.f32.mrf.mxu0
        %v1923 = vadd.f32 %v1700, %v1922
        %v1924 = vpop.f32.mrf.mxu0
        %v1925 = vadd.f32 %v1700, %v1924
        %1926 = vmatmul.bf16.gmra.mxu0 %v1839
        %v1927 = vpop.f32.mrf.mxu0
        %v1928 = vadd.f32 %v1700, %v1927
        %v1929 = vpop.f32.mrf.mxu0
        %v1930 = vadd.f32 %v1700, %v1929
        %1931 = vmatmul.bf16.gmra.mxu0 %v1842
        %v1932 = vpop.f32.mrf.mxu0
        %v1933 = vadd.f32 %v1700, %v1932
        %v1934 = vpop.f32.mrf.mxu0
        %v1935 = vadd.f32 %v1700, %v1934
        %1936 = vmatmul.bf16.gmra.mxu0 %v1845
        %v1937 = vpop.f32.mrf.mxu0
        %v1938 = vadd.f32 %v1700, %v1937
        %v1939 = vpop.f32.mrf.mxu0
        %v1940 = vadd.f32 %v1700, %v1939
        %1941 = vmatmul.bf16.gmra.mxu0 %v1848
        %v1942 = vpop.f32.mrf.mxu0
        %v1943 = vadd.f32 %v1700, %v1942
        %v1944 = vpop.f32.mrf.mxu0
        %v1945 = vadd.f32 %v1700, %v1944
        %1946 = vmatmul.bf16.gmra.mxu0 %v1851
        %v1947 = vpop.f32.mrf.mxu0
        %v1948 = vadd.f32 %v1700, %v1947
        %v1949 = vpop.f32.mrf.mxu0
        %v1950 = vadd.f32 %v1700, %v1949
        %1951 = vdwg.mxu0
        %v1952 = vmax.f32 %v1863, 0.0
        %v1953 = vmax.f32 %v1865, 0.0
        %v1954 = vmax.f32 %v1868, 0.0
        %v1955 = vmax.f32 %v1870, 0.0
        %v1956 = vmax.f32 %v1873, 0.0
        %v1957 = vmax.f32 %v1875, 0.0
        %v1958 = vmax.f32 %v1878, 0.0
        %v1959 = vmax.f32 %v1880, 0.0
        %v1960 = vmax.f32 %v1883, 0.0
        %v1961 = vmax.f32 %v1885, 0.0
        %v1962 = vmax.f32 %v1888, 0.0
        %v1963 = vmax.f32 %v1890, 0.0
        %v1964 = vmax.f32 %v1893, 0.0
        %v1965 = vmax.f32 %v1895, 0.0
        %v1966 = vmax.f32 %v1898, 0.0
        %v1967 = vmax.f32 %v1900, 0.0
        %v1968 = vmax.f32 %v1903, 0.0
        %v1969 = vmax.f32 %v1905, 0.0
        %v1970 = vmax.f32 %v1908, 0.0
        %v1971 = vmax.f32 %v1910, 0.0
        %v1972 = vmax.f32 %v1913, 0.0
        %v1973 = vmax.f32 %v1915, 0.0
        %v1974 = vmax.f32 %v1918, 0.0
        %v1975 = vmax.f32 %v1920, 0.0
        %v1976 = vmax.f32 %v1923, 0.0
        %v1977 = vmax.f32 %v1925, 0.0
        %v1978 = vmax.f32 %v1928, 0.0
        %v1979 = vmax.f32 %v1930, 0.0
        %v1980 = vmax.f32 %v1933, 0.0
        %v1981 = vmax.f32 %v1935, 0.0
        %v1982 = vmax.f32 %v1938, 0.0
        %v1983 = vmax.f32 %v1940, 0.0
        %v1984 = vmax.f32 %v1943, 0.0
        %v1985 = vmax.f32 %v1945, 0.0
        %v1986 = vmax.f32 %v1948, 0.0
        %v1987 = vmax.f32 %v1950, 0.0
        %s1988 = smul.u32 %s28, 8
        %s1989 = ssub.s32 %s1988, 5
        %v1990 = vstv %s1989
        %v1991 = vadd.s32 %v1990, 1
        %v1992 = vadd.s32 %v1990, 2
        %v1993 = vadd.s32 %v1990, 3
        %v1994 = vadd.s32 %v1990, 4
        %v1995 = vadd.s32 %v1990, 5
        %v1996 = vadd.s32 %v1990, 6
        %v1997 = vadd.s32 %v1990, 7
        %v1998 = vadd.s32 %v1990, 8
        %v1999 = vadd.s32 %v1990, 9
        %v2000 = vadd.s32 %v1990, 10
        %v2001 = vadd.s32 %v1990, 11
        %v2002 = vadd.s32 %v1990, 12
        %v2003 = vadd.s32 %v1990, 13
        %v2004 = vadd.s32 %v1990, 14
        %v2005 = vadd.s32 %v1990, 15
        %v2006 = vadd.s32 %v1990, 16
        %v2007 = vadd.s32 %v1990, 17
        %vm2008 = vcmp.ge.s32.totalorder %v1990, 0
        %vm2009 = vcmp.ge.s32.totalorder %v1991, 0
        %vm2010 = vcmp.ge.s32.totalorder %v1992, 0
        %vm2011 = vcmp.ge.s32.totalorder %v1993, 0
        %vm2012 = vcmp.ge.s32.totalorder %v1994, 0
        %vm2013 = vcmp.ge.s32.totalorder %v1995, 0
        %vm2014 = vcmp.ge.s32.totalorder %v1996, 0
        %vm2015 = vcmp.ge.s32.totalorder %v1997, 0
        %vm2016 = vcmp.ge.s32.totalorder %v1998, 0
        %vm2017 = vcmp.ge.s32.totalorder %v1999, 0
        %vm2018 = vcmp.ge.s32.totalorder %v2000, 0
        %vm2019 = vcmp.ge.s32.totalorder %v2001, 0
        %vm2020 = vcmp.ge.s32.totalorder %v2002, 0
        %vm2021 = vcmp.ge.s32.totalorder %v2003, 0
        %vm2022 = vcmp.ge.s32.totalorder %v2004, 0
        %vm2023 = vcmp.ge.s32.totalorder %v2005, 0
        %vm2024 = vcmp.ge.s32.totalorder %v2006, 0
        %vm2025 = vcmp.ge.s32.totalorder %v2007, 0
        %vm2026 = vcmp.lt.s32.totalorder %v1990, 16
        %vm2027 = vcmp.lt.s32.totalorder %v1991, 16
        %vm2028 = vcmp.lt.s32.totalorder %v1992, 16
        %vm2029 = vcmp.lt.s32.totalorder %v1993, 16
        %vm2030 = vcmp.lt.s32.totalorder %v1994, 16
        %vm2031 = vcmp.lt.s32.totalorder %v1995, 16
        %vm2032 = vcmp.lt.s32.totalorder %v1996, 16
        %vm2033 = vcmp.lt.s32.totalorder %v1997, 16
        %vm2034 = vcmp.lt.s32.totalorder %v1998, 16
        %vm2035 = vcmp.lt.s32.totalorder %v1999, 16
        %vm2036 = vcmp.lt.s32.totalorder %v2000, 16
        %vm2037 = vcmp.lt.s32.totalorder %v2001, 16
        %vm2038 = vcmp.lt.s32.totalorder %v2002, 16
        %vm2039 = vcmp.lt.s32.totalorder %v2003, 16
        %vm2040 = vcmp.lt.s32.totalorder %v2004, 16
        %vm2041 = vcmp.lt.s32.totalorder %v2005, 16
        %vm2042 = vcmp.lt.s32.totalorder %v2006, 16
        %vm2043 = vcmp.lt.s32.totalorder %v2007, 16
        %vm2044 = vmand %vm2008, %vm2026
        %vm2045 = vmand %vm2009, %vm2027
        %vm2046 = vmand %vm2010, %vm2028
        %vm2047 = vmand %vm2011, %vm2029
        %vm2048 = vmand %vm2012, %vm2030
        %vm2049 = vmand %vm2013, %vm2031
        %vm2050 = vmand %vm2014, %vm2032
        %vm2051 = vmand %vm2015, %vm2033
        %vm2052 = vmand %vm2016, %vm2034
        %vm2053 = vmand %vm2017, %vm2035
        %vm2054 = vmand %vm2018, %vm2036
        %vm2055 = vmand %vm2019, %vm2037
        %vm2056 = vmand %vm2020, %vm2038
        %vm2057 = vmand %vm2021, %vm2039
        %vm2058 = vmand %vm2022, %vm2040
        %vm2059 = vmand %vm2023, %vm2041
        %vm2060 = vmand %vm2024, %vm2042
        %vm2061 = vmand %vm2025, %vm2043
        %v2062 = vsel %vm2044, 1, 0
        %v2063 = vsel %vm2045, 1, 0
        %v2064 = vsel %vm2046, 1, 0
        %v2065 = vsel %vm2047, 1, 0
        %v2066 = vsel %vm2048, 1, 0
        %v2067 = vsel %vm2049, 1, 0
        %v2068 = vsel %vm2050, 1, 0
        %v2069 = vsel %vm2051, 1, 0
        %v2070 = vsel %vm2052, 1, 0
        %v2071 = vsel %vm2053, 1, 0
        %v2072 = vsel %vm2054, 1, 0
        %v2073 = vsel %vm2055, 1, 0
        %v2074 = vsel %vm2056, 1, 0
        %v2075 = vsel %vm2057, 1, 0
        %v2076 = vsel %vm2058, 1, 0
        %v2077 = vsel %vm2059, 1, 0
        %v2078 = vsel %vm2060, 1, 0
        %v2079 = vsel %vm2061, 1, 0
        %v2080 = vcvt.s32.f32 %v2062
        %v2081 = vcvt.s32.f32 %v2063
        %v2082 = vcvt.s32.f32 %v2064
        %v2083 = vcvt.s32.f32 %v2065
        %v2084 = vcvt.s32.f32 %v2066
        %v2085 = vcvt.s32.f32 %v2067
        %v2086 = vcvt.s32.f32 %v2068
        %v2087 = vcvt.s32.f32 %v2069
        %v2088 = vcvt.s32.f32 %v2070
        %v2089 = vcvt.s32.f32 %v2071
        %v2090 = vcvt.s32.f32 %v2072
        %v2091 = vcvt.s32.f32 %v2073
        %v2092 = vcvt.s32.f32 %v2074
        %v2093 = vcvt.s32.f32 %v2075
        %v2094 = vcvt.s32.f32 %v2076
        %v2095 = vcvt.s32.f32 %v2077
        %v2096 = vcvt.s32.f32 %v2078
        %v2097 = vcvt.s32.f32 %v2079
        %v2098 = vmul.f32 %v1952, %v2080
        %v2099 = vmul.f32 %v1953, %v2080
        %v2100 = vmul.f32 %v1954, %v2081
        %v2101 = vmul.f32 %v1955, %v2081
        %v2102 = vmul.f32 %v1956, %v2082
        %v2103 = vmul.f32 %v1957, %v2082
        %v2104 = vmul.f32 %v1958, %v2083
        %v2105 = vmul.f32 %v1959, %v2083
        %v2106 = vmul.f32 %v1960, %v2084
        %v2107 = vmul.f32 %v1961, %v2084
        %v2108 = vmul.f32 %v1962, %v2085
        %v2109 = vmul.f32 %v1963, %v2085
        %v2110 = vmul.f32 %v1964, %v2086
        %v2111 = vmul.f32 %v1965, %v2086
        %v2112 = vmul.f32 %v1966, %v2087
        %v2113 = vmul.f32 %v1967, %v2087
        %v2114 = vmul.f32 %v1968, %v2088
        %v2115 = vmul.f32 %v1969, %v2088
        %v2116 = vmul.f32 %v1970, %v2089
        %v2117 = vmul.f32 %v1971, %v2089
        %v2118 = vmul.f32 %v1972, %v2090
        %v2119 = vmul.f32 %v1973, %v2090
        %v2120 = vmul.f32 %v1974, %v2091
        %v2121 = vmul.f32 %v1975, %v2091
        %v2122 = vmul.f32 %v1976, %v2092
        %v2123 = vmul.f32 %v1977, %v2092
        %v2124 = vmul.f32 %v1978, %v2093
        %v2125 = vmul.f32 %v1979, %v2093
        %v2126 = vmul.f32 %v1980, %v2094
        %v2127 = vmul.f32 %v1981, %v2094
        %v2128 = vmul.f32 %v1982, %v2095
        %v2129 = vmul.f32 %v1983, %v2095
        %v2130 = vmul.f32 %v1984, %v2096
        %v2131 = vmul.f32 %v1985, %v2096
        %v2132 = vmul.f32 %v1986, %v2097
        %v2133 = vmul.f32 %v1987, %v2097
        %v2134 = vpack.c.bf16 %v2098, %v2098
        %v2135 = vpack.c.bf16 %v2099, %v2099
        %v2136 = vpack.c.bf16 %v2100, %v2100
        %v2137 = vpack.c.bf16 %v2101, %v2101
        %v2138 = vpack.c.bf16 %v2102, %v2102
        %v2139 = vpack.c.bf16 %v2103, %v2103
        %v2140 = vpack.c.bf16 %v2104, %v2104
        %v2141 = vpack.c.bf16 %v2105, %v2105
        %v2142 = vpack.c.bf16 %v2106, %v2106
        %v2143 = vpack.c.bf16 %v2107, %v2107
        %v2144 = vpack.c.bf16 %v2108, %v2108
        %v2145 = vpack.c.bf16 %v2109, %v2109
        %v2146 = vpack.c.bf16 %v2110, %v2110
        %v2147 = vpack.c.bf16 %v2111, %v2111
        %v2148 = vpack.c.bf16 %v2112, %v2112
        %v2149 = vpack.c.bf16 %v2113, %v2113
        %v2150 = vpack.c.bf16 %v2114, %v2114
        %v2151 = vpack.c.bf16 %v2115, %v2115
        %v2152 = vpack.c.bf16 %v2116, %v2116
        %v2153 = vpack.c.bf16 %v2117, %v2117
        %v2154 = vpack.c.bf16 %v2118, %v2118
        %v2155 = vpack.c.bf16 %v2119, %v2119
        %v2156 = vpack.c.bf16 %v2120, %v2120
        %v2157 = vpack.c.bf16 %v2121, %v2121
        %v2158 = vpack.c.bf16 %v2122, %v2122
        %v2159 = vpack.c.bf16 %v2123, %v2123
        %v2160 = vpack.c.bf16 %v2124, %v2124
        %v2161 = vpack.c.bf16 %v2125, %v2125
        %v2162 = vpack.c.bf16 %v2126, %v2126
        %v2163 = vpack.c.bf16 %v2127, %v2127
        %v2164 = vpack.c.bf16 %v2128, %v2128
        %v2165 = vpack.c.bf16 %v2129, %v2129
        %v2166 = vpack.c.bf16 %v2130, %v2130
        %v2167 = vpack.c.bf16 %v2131, %v2131
        %v2168 = vpack.c.bf16 %v2132, %v2132
        %v2169 = vpack.c.bf16 %v2133, %v2133
        %vm2170 = vcmask 516096
        %vm2171 = vsmask.f32 256
        %vm2172 = vmand %vm2170, %vm2171
        %v2173 = vld [vmem:[#allocation2] sm:$0x1]
        %v2174 = vsel %vm2172, 0, %v2173
        %2175 = vst [vmem:[#allocation2] sm:$0x1] %v2174
        %v2176 = vld [vmem:[#allocation2 + $0x10] sm:$0x1]
        %v2177 = vsel %vm2172, 0, %v2176
        %2178 = vst [vmem:[#allocation2 + $0x10] sm:$0x1] %v2177
        %v2179 = vld [vmem:[#allocation2 + $0x20] sm:$0x1]
        %v2180 = vsel %vm2172, 0, %v2179
        %2181 = vst [vmem:[#allocation2 + $0x20] sm:$0x1] %v2180
        %v2182 = vld [vmem:[#allocation2 + $0x30] sm:$0x1]
        %v2183 = vsel %vm2172, 0, %v2182
        %2184 = vst [vmem:[#allocation2 + $0x30] sm:$0x1] %v2183
        %v2185 = vld [vmem:[#allocation2 + $0x40] sm:$0x1]
        %v2186 = vsel %vm2172, 0, %v2185
        %2187 = vst [vmem:[#allocation2 + $0x40] sm:$0x1] %v2186
        %v2188 = vld [vmem:[#allocation2 + $0x50] sm:$0x1]
        %v2189 = vsel %vm2172, 0, %v2188
        %2190 = vst [vmem:[#allocation2 + $0x50] sm:$0x1] %v2189
        %v2191 = vld [vmem:[#allocation2 + $0x60] sm:$0x1]
        %v2192 = vsel %vm2172, 0, %v2191
        %2193 = vst [vmem:[#allocation2 + $0x60] sm:$0x1] %v2192
        %v2194 = vld [vmem:[#allocation2 + $0x70] sm:$0x1]
        %v2195 = vsel %vm2172, 0, %v2194
        %2196 = vst [vmem:[#allocation2 + $0x70] sm:$0x1] %v2195
        %v2197 = vld [vmem:[#allocation2 + $0x80] sm:$0x1]
        %v2198 = vsel %vm2172, 0, %v2197
        %2199 = vst [vmem:[#allocation2 + $0x80] sm:$0x1] %v2198
        %v2200 = vld [vmem:[#allocation2 + $0x90] sm:$0x1]
        %v2201 = vsel %vm2172, 0, %v2200
        %2202 = vst [vmem:[#allocation2 + $0x90] sm:$0x1] %v2201
        %v2203 = vld [vmem:[#allocation2 + $0xa0] sm:$0x1]
        %v2204 = vsel %vm2172, 0, %v2203
        %2205 = vst [vmem:[#allocation2 + $0xa0] sm:$0x1] %v2204
        %v2206 = vld [vmem:[#allocation2 + $0xb0] sm:$0x1]
        %v2207 = vsel %vm2172, 0, %v2206
        %2208 = vst [vmem:[#allocation2 + $0xb0] sm:$0x1] %v2207
        %v2209 = vld [vmem:[#allocation2 + $0xc0] sm:$0x1]
        %v2210 = vsel %vm2172, 0, %v2209
        %2211 = vst [vmem:[#allocation2 + $0xc0] sm:$0x1] %v2210
        %v2212 = vld [vmem:[#allocation2 + $0xd0] sm:$0x1]
        %v2213 = vsel %vm2172, 0, %v2212
        %2214 = vst [vmem:[#allocation2 + $0xd0] sm:$0x1] %v2213
        %v2215 = vld [vmem:[#allocation2 + $0xe0] sm:$0x1]
        %v2216 = vsel %vm2172, 0, %v2215
        %2217 = vst [vmem:[#allocation2 + $0xe0] sm:$0x1] %v2216
        %v2218 = vld [vmem:[#allocation2 + $0xf0] sm:$0x1]
        %v2219 = vsel %vm2172, 0, %v2218
        %2220 = vst [vmem:[#allocation2 + $0xf0] sm:$0x1] %v2219
        %v2221 = vld [vmem:[#allocation2 + $0x100] sm:$0x1]
        %v2222 = vsel %vm2172, 0, %v2221
        %2223 = vst [vmem:[#allocation2 + $0x100] sm:$0x1] %v2222
        %v2224 = vld [vmem:[#allocation2 + $0x110] sm:$0x1]
        %v2225 = vsel %vm2172, 0, %v2224
        %2226 = vst [vmem:[#allocation2 + $0x110] sm:$0x1] %v2225
        %vm2227 = vcmask 519171
        %vm2228 = vsmask.f32 7950
        %vm2229 = vmand %vm2227, %vm2228
        %v2230 = vld [vmem:[#allocation2 + $0xc] sm:$0x8]
        %v2231 = vsel %vm2229, 0, %v2230
        %2232 = vst [vmem:[#allocation2 + $0xc] sm:$0x8] %v2231
        %v2233 = vld [vmem:[#allocation2 + $0x1c] sm:$0x8]
        %v2234 = vsel %vm2229, 0, %v2233
        %2235 = vst [vmem:[#allocation2 + $0x1c] sm:$0x8] %v2234
        %v2236 = vld [vmem:[#allocation2 + $0x2c] sm:$0x8]
        %v2237 = vsel %vm2229, 0, %v2236
        %2238 = vst [vmem:[#allocation2 + $0x2c] sm:$0x8] %v2237
        %v2239 = vld [vmem:[#allocation2 + $0x3c] sm:$0x8]
        %v2240 = vsel %vm2229, 0, %v2239
        %2241 = vst [vmem:[#allocation2 + $0x3c] sm:$0x8] %v2240
        %v2242 = vld [vmem:[#allocation2 + $0x4c] sm:$0x8]
        %v2243 = vsel %vm2229, 0, %v2242
        %2244 = vst [vmem:[#allocation2 + $0x4c] sm:$0x8] %v2243
        %v2245 = vld [vmem:[#allocation2 + $0x5c] sm:$0x8]
        %v2246 = vsel %vm2229, 0, %v2245
        %2247 = vst [vmem:[#allocation2 + $0x5c] sm:$0x8] %v2246
        %v2248 = vld [vmem:[#allocation2 + $0x6c] sm:$0x8]
        %v2249 = vsel %vm2229, 0, %v2248
        %2250 = vst [vmem:[#allocation2 + $0x6c] sm:$0x8] %v2249
        %v2251 = vld [vmem:[#allocation2 + $0x7c] sm:$0x8]
        %v2252 = vsel %vm2229, 0, %v2251
        %2253 = vst [vmem:[#allocation2 + $0x7c] sm:$0x8] %v2252
        %v2254 = vld [vmem:[#allocation2 + $0x8c] sm:$0x8]
        %v2255 = vsel %vm2229, 0, %v2254
        %2256 = vst [vmem:[#allocation2 + $0x8c] sm:$0x8] %v2255
        %v2257 = vld [vmem:[#allocation2 + $0x9c] sm:$0x8]
        %v2258 = vsel %vm2229, 0, %v2257
        %2259 = vst [vmem:[#allocation2 + $0x9c] sm:$0x8] %v2258
        %v2260 = vld [vmem:[#allocation2 + $0xac] sm:$0x8]
        %v2261 = vsel %vm2229, 0, %v2260
        %2262 = vst [vmem:[#allocation2 + $0xac] sm:$0x8] %v2261
        %v2263 = vld [vmem:[#allocation2 + $0xbc] sm:$0x8]
        %v2264 = vsel %vm2229, 0, %v2263
        %2265 = vst [vmem:[#allocation2 + $0xbc] sm:$0x8] %v2264
        %v2266 = vld [vmem:[#allocation2 + $0xcc] sm:$0x8]
        %v2267 = vsel %vm2229, 0, %v2266
        %2268 = vst [vmem:[#allocation2 + $0xcc] sm:$0x8] %v2267
        %v2269 = vld [vmem:[#allocation2 + $0xdc] sm:$0x8]
        %v2270 = vsel %vm2229, 0, %v2269
        %2271 = vst [vmem:[#allocation2 + $0xdc] sm:$0x8] %v2270
        %v2272 = vld [vmem:[#allocation2 + $0xec] sm:$0x8]
        %v2273 = vsel %vm2229, 0, %v2272
        %2274 = vst [vmem:[#allocation2 + $0xec] sm:$0x8] %v2273
        %v2275 = vld [vmem:[#allocation2 + $0xfc] sm:$0x8]
        %v2276 = vsel %vm2229, 0, %v2275
        %2277 = vst [vmem:[#allocation2 + $0xfc] sm:$0x8] %v2276
        %v2278 = vld [vmem:[#allocation2 + $0x10c] sm:$0x8]
        %v2279 = vsel %vm2229, 0, %v2278
        %2280 = vst [vmem:[#allocation2 + $0x10c] sm:$0x8] %v2279
        %v2281 = vld [vmem:[#allocation2 + $0x11c] sm:$0x8]
        %v2282 = vsel %vm2229, 0, %v2281
        %2283 = vst [vmem:[#allocation2 + $0x11c] sm:$0x8] %v2282
        %vm2284 = vsmask.f32 4368
        %vm2285 = vmor %vm2171, %vm2284
        %v2287 = vshrl.u32 %v2134, 16
        %v2289 = vrot.slane %v2287, 7
        %v2290 = vshll.u32 %v2134, 16
        %v2292 = vor.u32 %v2289, %v2290
        %v2293 = vrot.slane %v2289, 4
        %v2295 = vshrl.u32 %v2135, 16
        %v2297 = vrot.slane %v2295, 7
        %v2298 = vshll.u32 %v2135, 16
        %v2300 = vor.u32 %v2297, %v2298
        %v2301 = vsel %vm2285, %v2293, %v2300
        %v2303 = vshrl.u32 %v2136, 16
        %v2305 = vrot.slane %v2303, 7
        %v2306 = vshll.u32 %v2136, 16
        %v2308 = vor.u32 %v2305, %v2306
        %v2309 = vrot.slane %v2305, 4
        %v2311 = vshrl.u32 %v2137, 16
        %v2313 = vrot.slane %v2311, 7
        %v2314 = vshll.u32 %v2137, 16
        %v2316 = vor.u32 %v2313, %v2314
        %v2317 = vsel %vm2285, %v2309, %v2316
        %v2319 = vshrl.u32 %v2138, 16
        %v2321 = vrot.slane %v2319, 7
        %v2322 = vshll.u32 %v2138, 16
        %v2324 = vor.u32 %v2321, %v2322
        %v2325 = vrot.slane %v2321, 4
        %v2327 = vshrl.u32 %v2139, 16
        %v2329 = vrot.slane %v2327, 7
        %v2330 = vshll.u32 %v2139, 16
        %v2332 = vor.u32 %v2329, %v2330
        %v2333 = vsel %vm2285, %v2325, %v2332
        %v2335 = vshrl.u32 %v2140, 16
        %v2337 = vrot.slane %v2335, 7
        %v2338 = vshll.u32 %v2140, 16
        %v2340 = vor.u32 %v2337, %v2338
        %v2341 = vrot.slane %v2337, 4
        %v2343 = vshrl.u32 %v2141, 16
        %v2345 = vrot.slane %v2343, 7
        %v2346 = vshll.u32 %v2141, 16
        %v2348 = vor.u32 %v2345, %v2346
        %v2349 = vsel %vm2285, %v2341, %v2348
        %v2351 = vshrl.u32 %v2142, 16
        %v2353 = vrot.slane %v2351, 7
        %v2354 = vshll.u32 %v2142, 16
        %v2356 = vor.u32 %v2353, %v2354
        %v2357 = vrot.slane %v2353, 4
        %v2359 = vshrl.u32 %v2143, 16
        %v2361 = vrot.slane %v2359, 7
        %v2362 = vshll.u32 %v2143, 16
        %v2364 = vor.u32 %v2361, %v2362
        %v2365 = vsel %vm2285, %v2357, %v2364
        %v2367 = vshrl.u32 %v2144, 16
        %v2369 = vrot.slane %v2367, 7
        %v2370 = vshll.u32 %v2144, 16
        %v2372 = vor.u32 %v2369, %v2370
        %v2373 = vrot.slane %v2369, 4
        %v2375 = vshrl.u32 %v2145, 16
        %v2377 = vrot.slane %v2375, 7
        %v2378 = vshll.u32 %v2145, 16
        %v2380 = vor.u32 %v2377, %v2378
        %v2381 = vsel %vm2285, %v2373, %v2380
        %v2383 = vshrl.u32 %v2146, 16
        %v2385 = vrot.slane %v2383, 7
        %v2386 = vshll.u32 %v2146, 16
        %v2388 = vor.u32 %v2385, %v2386
        %v2389 = vrot.slane %v2385, 4
        %v2391 = vshrl.u32 %v2147, 16
        %v2393 = vrot.slane %v2391, 7
        %v2394 = vshll.u32 %v2147, 16
        %v2396 = vor.u32 %v2393, %v2394
        %v2397 = vsel %vm2285, %v2389, %v2396
        %v2399 = vshrl.u32 %v2148, 16
        %v2401 = vrot.slane %v2399, 7
        %v2402 = vshll.u32 %v2148, 16
        %v2404 = vor.u32 %v2401, %v2402
        %v2405 = vrot.slane %v2401, 4
        %v2407 = vshrl.u32 %v2149, 16
        %v2409 = vrot.slane %v2407, 7
        %v2410 = vshll.u32 %v2149, 16
        %v2412 = vor.u32 %v2409, %v2410
        %v2413 = vsel %vm2285, %v2405, %v2412
        %v2415 = vshrl.u32 %v2150, 16
        %v2417 = vrot.slane %v2415, 7
        %v2418 = vshll.u32 %v2150, 16
        %v2420 = vor.u32 %v2417, %v2418
        %v2421 = vrot.slane %v2417, 4
        %v2423 = vshrl.u32 %v2151, 16
        %v2425 = vrot.slane %v2423, 7
        %v2426 = vshll.u32 %v2151, 16
        %v2428 = vor.u32 %v2425, %v2426
        %v2429 = vsel %vm2285, %v2421, %v2428
        %v2431 = vshrl.u32 %v2152, 16
        %v2433 = vrot.slane %v2431, 7
        %v2434 = vshll.u32 %v2152, 16
        %v2436 = vor.u32 %v2433, %v2434
        %v2437 = vrot.slane %v2433, 4
        %v2439 = vshrl.u32 %v2153, 16
        %v2441 = vrot.slane %v2439, 7
        %v2442 = vshll.u32 %v2153, 16
        %v2444 = vor.u32 %v2441, %v2442
        %v2445 = vsel %vm2285, %v2437, %v2444
        %v2447 = vshrl.u32 %v2154, 16
        %v2449 = vrot.slane %v2447, 7
        %v2450 = vshll.u32 %v2154, 16
        %v2452 = vor.u32 %v2449, %v2450
        %v2453 = vrot.slane %v2449, 4
        %v2455 = vshrl.u32 %v2155, 16
        %v2457 = vrot.slane %v2455, 7
        %v2458 = vshll.u32 %v2155, 16
        %v2460 = vor.u32 %v2457, %v2458
        %v2461 = vsel %vm2285, %v2453, %v2460
        %v2463 = vshrl.u32 %v2156, 16
        %v2465 = vrot.slane %v2463, 7
        %v2466 = vshll.u32 %v2156, 16
        %v2468 = vor.u32 %v2465, %v2466
        %v2469 = vrot.slane %v2465, 4
        %v2471 = vshrl.u32 %v2157, 16
        %v2473 = vrot.slane %v2471, 7
        %v2474 = vshll.u32 %v2157, 16
        %v2476 = vor.u32 %v2473, %v2474
        %v2477 = vsel %vm2285, %v2469, %v2476
        %v2479 = vshrl.u32 %v2158, 16
        %v2481 = vrot.slane %v2479, 7
        %v2482 = vshll.u32 %v2158, 16
        %v2484 = vor.u32 %v2481, %v2482
        %v2485 = vrot.slane %v2481, 4
        %v2487 = vshrl.u32 %v2159, 16
        %v2489 = vrot.slane %v2487, 7
        %v2490 = vshll.u32 %v2159, 16
        %v2492 = vor.u32 %v2489, %v2490
        %v2493 = vsel %vm2285, %v2485, %v2492
        %v2495 = vshrl.u32 %v2160, 16
        %v2497 = vrot.slane %v2495, 7
        %v2498 = vshll.u32 %v2160, 16
        %v2500 = vor.u32 %v2497, %v2498
        %v2501 = vrot.slane %v2497, 4
        %v2503 = vshrl.u32 %v2161, 16
        %v2505 = vrot.slane %v2503, 7
        %v2506 = vshll.u32 %v2161, 16
        %v2508 = vor.u32 %v2505, %v2506
        %v2509 = vsel %vm2285, %v2501, %v2508
        %v2511 = vshrl.u32 %v2162, 16
        %v2513 = vrot.slane %v2511, 7
        %v2514 = vshll.u32 %v2162, 16
        %v2516 = vor.u32 %v2513, %v2514
        %v2517 = vrot.slane %v2513, 4
        %v2519 = vshrl.u32 %v2163, 16
        %v2521 = vrot.slane %v2519, 7
        %v2522 = vshll.u32 %v2163, 16
        %v2524 = vor.u32 %v2521, %v2522
        %v2525 = vsel %vm2285, %v2517, %v2524
        %v2527 = vshrl.u32 %v2164, 16
        %v2529 = vrot.slane %v2527, 7
        %v2530 = vshll.u32 %v2164, 16
        %v2532 = vor.u32 %v2529, %v2530
        %v2533 = vrot.slane %v2529, 4
        %v2535 = vshrl.u32 %v2165, 16
        %v2537 = vrot.slane %v2535, 7
        %v2538 = vshll.u32 %v2165, 16
        %v2540 = vor.u32 %v2537, %v2538
        %v2541 = vsel %vm2285, %v2533, %v2540
        %v2543 = vshrl.u32 %v2166, 16
        %v2545 = vrot.slane %v2543, 7
        %v2546 = vshll.u32 %v2166, 16
        %v2548 = vor.u32 %v2545, %v2546
        %v2549 = vrot.slane %v2545, 4
        %v2551 = vshrl.u32 %v2167, 16
        %v2553 = vrot.slane %v2551, 7
        %v2554 = vshll.u32 %v2167, 16
        %v2556 = vor.u32 %v2553, %v2554
        %v2557 = vsel %vm2285, %v2549, %v2556
        %v2559 = vshrl.u32 %v2168, 16
        %v2561 = vrot.slane %v2559, 7
        %v2562 = vshll.u32 %v2168, 16
        %v2564 = vor.u32 %v2561, %v2562
        %v2565 = vrot.slane %v2561, 4
        %v2567 = vshrl.u32 %v2169, 16
        %v2569 = vrot.slane %v2567, 7
        %v2570 = vshll.u32 %v2169, 16
        %v2572 = vor.u32 %v2569, %v2570
        %v2573 = vsel %vm2285, %v2565, %v2572
        %vm2610 = vcmask 519168
        %vm2611 = vsmask.f32 7938
        %vm2612 = vmand %vm2610, %vm2611
        %v2613 = vld [vmem:[#allocation2] sm:$0xf]
        %v2614 = vsel %vm2612, %v2292, %v2613
        %2615 = vst [vmem:[#allocation2] sm:$0xf] %v2614
        %vm2616 = vcmask 519168
        %2617 = vst.msk [vmem:[#allocation2 + $0x8] sm:$0xf] %vm2616, %v2301
        %v2618 = vld [vmem:[#allocation2 + $0x10] sm:$0xf]
        %v2619 = vsel %vm2612, %v2308, %v2618
        %2620 = vst [vmem:[#allocation2 + $0x10] sm:$0xf] %v2619
        %2621 = vst.msk [vmem:[#allocation2 + $0x18] sm:$0xf] %vm2616, %v2317
        %v2622 = vld [vmem:[#allocation2 + $0x20] sm:$0xf]
        %v2623 = vsel %vm2612, %v2324, %v2622
        %2624 = vst [vmem:[#allocation2 + $0x20] sm:$0xf] %v2623
        %2625 = vst.msk [vmem:[#allocation2 + $0x28] sm:$0xf] %vm2616, %v2333
        %v2626 = vld [vmem:[#allocation2 + $0x30] sm:$0xf]
        %v2627 = vsel %vm2612, %v2340, %v2626
        %2628 = vst [vmem:[#allocation2 + $0x30] sm:$0xf] %v2627
        %2629 = vst.msk [vmem:[#allocation2 + $0x38] sm:$0xf] %vm2616, %v2349
        %v2630 = vld [vmem:[#allocation2 + $0x40] sm:$0xf]
        %v2631 = vsel %vm2612, %v2356, %v2630
        %2632 = vst [vmem:[#allocation2 + $0x40] sm:$0xf] %v2631
        %2633 = vst.msk [vmem:[#allocation2 + $0x48] sm:$0xf] %vm2616, %v2365
        %v2634 = vld [vmem:[#allocation2 + $0x50] sm:$0xf]
        %v2635 = vsel %vm2612, %v2372, %v2634
        %2636 = vst [vmem:[#allocation2 + $0x50] sm:$0xf] %v2635
        %2637 = vst.msk [vmem:[#allocation2 + $0x58] sm:$0xf] %vm2616, %v2381
        %v2638 = vld [vmem:[#allocation2 + $0x60] sm:$0xf]
        %v2639 = vsel %vm2612, %v2388, %v2638
        %2640 = vst [vmem:[#allocation2 + $0x60] sm:$0xf] %v2639
        %2641 = vst.msk [vmem:[#allocation2 + $0x68] sm:$0xf] %vm2616, %v2397
        %v2642 = vld [vmem:[#allocation2 + $0x70] sm:$0xf]
        %v2643 = vsel %vm2612, %v2404, %v2642
        %2644 = vst [vmem:[#allocation2 + $0x70] sm:$0xf] %v2643
        %2645 = vst.msk [vmem:[#allocation2 + $0x78] sm:$0xf] %vm2616, %v2413
        %v2646 = vld [vmem:[#allocation2 + $0x80] sm:$0xf]
        %v2647 = vsel %vm2612, %v2420, %v2646
        %2648 = vst [vmem:[#allocation2 + $0x80] sm:$0xf] %v2647
        %2649 = vst.msk [vmem:[#allocation2 + $0x88] sm:$0xf] %vm2616, %v2429
        %v2650 = vld [vmem:[#allocation2 + $0x90] sm:$0xf]
        %v2651 = vsel %vm2612, %v2436, %v2650
        %2652 = vst [vmem:[#allocation2 + $0x90] sm:$0xf] %v2651
        %2653 = vst.msk [vmem:[#allocation2 + $0x98] sm:$0xf] %vm2616, %v2445
        %v2654 = vld [vmem:[#allocation2 + $0xa0] sm:$0xf]
        %v2655 = vsel %vm2612, %v2452, %v2654
        %2656 = vst [vmem:[#allocation2 + $0xa0] sm:$0xf] %v2655
        %2657 = vst.msk [vmem:[#allocation2 + $0xa8] sm:$0xf] %vm2616, %v2461
        %v2658 = vld [vmem:[#allocation2 + $0xb0] sm:$0xf]
        %v2659 = vsel %vm2612, %v2468, %v2658
        %2660 = vst [vmem:[#allocation2 + $0xb0] sm:$0xf] %v2659
        %2661 = vst.msk [vmem:[#allocation2 + $0xb8] sm:$0xf] %vm2616, %v2477
        %v2662 = vld [vmem:[#allocation2 + $0xc0] sm:$0xf]
        %v2663 = vsel %vm2612, %v2484, %v2662
        %2664 = vst [vmem:[#allocation2 + $0xc0] sm:$0xf] %v2663
        %2665 = vst.msk [vmem:[#allocation2 + $0xc8] sm:$0xf] %vm2616, %v2493
        %v2666 = vld [vmem:[#allocation2 + $0xd0] sm:$0xf]
        %v2667 = vsel %vm2612, %v2500, %v2666
        %2668 = vst [vmem:[#allocation2 + $0xd0] sm:$0xf] %v2667
        %2669 = vst.msk [vmem:[#allocation2 + $0xd8] sm:$0xf] %vm2616, %v2509
        %v2670 = vld [vmem:[#allocation2 + $0xe0] sm:$0xf]
        %v2671 = vsel %vm2612, %v2516, %v2670
        %2672 = vst [vmem:[#allocation2 + $0xe0] sm:$0xf] %v2671
        %2673 = vst.msk [vmem:[#allocation2 + $0xe8] sm:$0xf] %vm2616, %v2525
        %v2674 = vld [vmem:[#allocation2 + $0xf0] sm:$0xf]
        %v2675 = vsel %vm2612, %v2532, %v2674
        %2676 = vst [vmem:[#allocation2 + $0xf0] sm:$0xf] %v2675
        %2677 = vst.msk [vmem:[#allocation2 + $0xf8] sm:$0xf] %vm2616, %v2541
        %v2678 = vld [vmem:[#allocation2 + $0x100] sm:$0xf]
        %v2679 = vsel %vm2612, %v2548, %v2678
        %2680 = vst [vmem:[#allocation2 + $0x100] sm:$0xf] %v2679
        %2681 = vst.msk [vmem:[#allocation2 + $0x108] sm:$0xf] %vm2616, %v2557
        %v2682 = vld [vmem:[#allocation2 + $0x110] sm:$0xf]
        %v2683 = vsel %vm2612, %v2564, %v2682
        %2684 = vst [vmem:[#allocation2 + $0x110] sm:$0xf] %v2683
        %2685 = vst.msk [vmem:[#allocation2 + $0x118] sm:$0xf] %vm2616, %v2573
        %2722 = vrot.lane.b32.xlu0 %v2134, 64
        %v2723 = vpop.permute.xlu0 %2722
        %2724 = vrot.lane.b32.xlu0 %v2135, 64
        %v2725 = vpop.permute.xlu0 %2724
        %2726 = vrot.lane.b32.xlu0 %v2136, 64
        %v2727 = vpop.permute.xlu0 %2726
        %2728 = vrot.lane.b32.xlu0 %v2137, 64
        %v2729 = vpop.permute.xlu0 %2728
        %2730 = vrot.lane.b32.xlu0 %v2138, 64
        %v2731 = vpop.permute.xlu0 %2730
        %2732 = vrot.lane.b32.xlu0 %v2139, 64
        %v2733 = vpop.permute.xlu0 %2732
        %2734 = vrot.lane.b32.xlu0 %v2140, 64
        %v2735 = vpop.permute.xlu0 %2734
        %2736 = vrot.lane.b32.xlu0 %v2141, 64
        %v2737 = vpop.permute.xlu0 %2736
        %2738 = vrot.lane.b32.xlu0 %v2142, 64
        %v2739 = vpop.permute.xlu0 %2738
        %2740 = vrot.lane.b32.xlu0 %v2143, 64
        %v2741 = vpop.permute.xlu0 %2740
        %2742 = vrot.lane.b32.xlu0 %v2144, 64
        %v2743 = vpop.permute.xlu0 %2742
        %2744 = vrot.lane.b32.xlu0 %v2145, 64
        %v2745 = vpop.permute.xlu0 %2744
        %2746 = vrot.lane.b32.xlu0 %v2146, 64
        %v2747 = vpop.permute.xlu0 %2746
        %2748 = vrot.lane.b32.xlu0 %v2147, 64
        %v2749 = vpop.permute.xlu0 %2748
        %2750 = vrot.lane.b32.xlu0 %v2148, 64
        %v2751 = vpop.permute.xlu0 %2750
        %2752 = vrot.lane.b32.xlu0 %v2149, 64
        %v2753 = vpop.permute.xlu0 %2752
        %2754 = vrot.lane.b32.xlu0 %v2150, 64
        %v2755 = vpop.permute.xlu0 %2754
        %2756 = vrot.lane.b32.xlu0 %v2151, 64
        %v2757 = vpop.permute.xlu0 %2756
        %2758 = vrot.lane.b32.xlu0 %v2152, 64
        %v2759 = vpop.permute.xlu0 %2758
        %2760 = vrot.lane.b32.xlu0 %v2153, 64
        %v2761 = vpop.permute.xlu0 %2760
        %2762 = vrot.lane.b32.xlu0 %v2154, 64
        %v2763 = vpop.permute.xlu0 %2762
        %2764 = vrot.lane.b32.xlu0 %v2155, 64
        %v2765 = vpop.permute.xlu0 %2764
        %2766 = vrot.lane.b32.xlu0 %v2156, 64
        %v2767 = vpop.permute.xlu0 %2766
        %2768 = vrot.lane.b32.xlu0 %v2157, 64
        %v2769 = vpop.permute.xlu0 %2768
        %2770 = vrot.lane.b32.xlu0 %v2158, 64
        %v2771 = vpop.permute.xlu0 %2770
        %2772 = vrot.lane.b32.xlu0 %v2159, 64
        %v2773 = vpop.permute.xlu0 %2772
        %2774 = vrot.lane.b32.xlu0 %v2160, 64
        %v2775 = vpop.permute.xlu0 %2774
        %2776 = vrot.lane.b32.xlu0 %v2161, 64
        %v2777 = vpop.permute.xlu0 %2776
        %2778 = vrot.lane.b32.xlu0 %v2162, 64
        %v2779 = vpop.permute.xlu0 %2778
        %2780 = vrot.lane.b32.xlu0 %v2163, 64
        %v2781 = vpop.permute.xlu0 %2780
        %2782 = vrot.lane.b32.xlu0 %v2164, 64
        %v2783 = vpop.permute.xlu0 %2782
        %2784 = vrot.lane.b32.xlu0 %v2165, 64
        %v2785 = vpop.permute.xlu0 %2784
        %2786 = vrot.lane.b32.xlu0 %v2166, 64
        %v2787 = vpop.permute.xlu0 %2786
        %2788 = vrot.lane.b32.xlu0 %v2167, 64
        %v2789 = vpop.permute.xlu0 %2788
        %2790 = vrot.lane.b32.xlu0 %v2168, 64
        %v2791 = vpop.permute.xlu0 %2790
        %2792 = vrot.lane.b32.xlu0 %v2169, 64
        %v2793 = vpop.permute.xlu0 %2792
        %vm2830 = vcmask 1043968
        %2831 = vst.msk [vmem:[#allocation2] sm:$0xf] %vm2830, %v2723
        %2832 = vst.msk [vmem:[#allocation2 + $0x8] sm:$0xf] %vm2830, %v2725
        %2833 = vst.msk [vmem:[#allocation2 + $0x10] sm:$0xf] %vm2830, %v2727
        %2834 = vst.msk [vmem:[#allocation2 + $0x18] sm:$0xf] %vm2830, %v2729
        %2835 = vst.msk [vmem:[#allocation2 + $0x20] sm:$0xf] %vm2830, %v2731
        %2836 = vst.msk [vmem:[#allocation2 + $0x28] sm:$0xf] %vm2830, %v2733
        %2837 = vst.msk [vmem:[#allocation2 + $0x30] sm:$0xf] %vm2830, %v2735
        %2838 = vst.msk [vmem:[#allocation2 + $0x38] sm:$0xf] %vm2830, %v2737
        %2839 = vst.msk [vmem:[#allocation2 + $0x40] sm:$0xf] %vm2830, %v2739
        %2840 = vst.msk [vmem:[#allocation2 + $0x48] sm:$0xf] %vm2830, %v2741
        %2841 = vst.msk [vmem:[#allocation2 + $0x50] sm:$0xf] %vm2830, %v2743
        %2842 = vst.msk [vmem:[#allocation2 + $0x58] sm:$0xf] %vm2830, %v2745
        %2843 = vst.msk [vmem:[#allocation2 + $0x60] sm:$0xf] %vm2830, %v2747
        %2844 = vst.msk [vmem:[#allocation2 + $0x68] sm:$0xf] %vm2830, %v2749
        %2845 = vst.msk [vmem:[#allocation2 + $0x70] sm:$0xf] %vm2830, %v2751
        %2846 = vst.msk [vmem:[#allocation2 + $0x78] sm:$0xf] %vm2830, %v2753
        %2847 = vst.msk [vmem:[#allocation2 + $0x80] sm:$0xf] %vm2830, %v2755
        %2848 = vst.msk [vmem:[#allocation2 + $0x88] sm:$0xf] %vm2830, %v2757
        %2849 = vst.msk [vmem:[#allocation2 + $0x90] sm:$0xf] %vm2830, %v2759
        %2850 = vst.msk [vmem:[#allocation2 + $0x98] sm:$0xf] %vm2830, %v2761
        %2851 = vst.msk [vmem:[#allocation2 + $0xa0] sm:$0xf] %vm2830, %v2763
        %2852 = vst.msk [vmem:[#allocation2 + $0xa8] sm:$0xf] %vm2830, %v2765
        %2853 = vst.msk [vmem:[#allocation2 + $0xb0] sm:$0xf] %vm2830, %v2767
        %2854 = vst.msk [vmem:[#allocation2 + $0xb8] sm:$0xf] %vm2830, %v2769
        %2855 = vst.msk [vmem:[#allocation2 + $0xc0] sm:$0xf] %vm2830, %v2771
        %2856 = vst.msk [vmem:[#allocation2 + $0xc8] sm:$0xf] %vm2830, %v2773
        %2857 = vst.msk [vmem:[#allocation2 + $0xd0] sm:$0xf] %vm2830, %v2775
        %2858 = vst.msk [vmem:[#allocation2 + $0xd8] sm:$0xf] %vm2830, %v2777
        %2859 = vst.msk [vmem:[#allocation2 + $0xe0] sm:$0xf] %vm2830, %v2779
        %2860 = vst.msk [vmem:[#allocation2 + $0xe8] sm:$0xf] %vm2830, %v2781
        %2861 = vst.msk [vmem:[#allocation2 + $0xf0] sm:$0xf] %vm2830, %v2783
        %2862 = vst.msk [vmem:[#allocation2 + $0xf8] sm:$0xf] %vm2830, %v2785
        %2863 = vst.msk [vmem:[#allocation2 + $0x100] sm:$0xf] %vm2830, %v2787
        %2864 = vst.msk [vmem:[#allocation2 + $0x108] sm:$0xf] %vm2830, %v2789
        %2865 = vst.msk [vmem:[#allocation2 + $0x110] sm:$0xf] %vm2830, %v2791
        %2866 = vst.msk [vmem:[#allocation2 + $0x118] sm:$0xf] %vm2830, %v2793
        %vm2867 = vsmask.f32 3328
        %vm2868 = vsmask.f32 7440
        %vm2869 = vmor %vm2867, %vm2868
        %v2870 = vrot.slane %v2287, 4
        %v2871 = vrot.slane %v2290, 5
        %v2872 = vor.u32 %v2870, %v2871
        %v2873 = vrot.slane %v2872, 4
        %v2874 = vrot.slane %v2298, 5
        %v2875 = vsel %vm2869, %v2873, %v2874
        %v2876 = vrot.slane %v2295, 4
        %v2877 = vor.u32 %v2876, %v2874
        %v2878 = vrot.slane %v2877, 4
        %v2879 = vrot.slane %v2303, 4
        %v2880 = vrot.slane %v2306, 5
        %v2881 = vor.u32 %v2879, %v2880
        %v2882 = vrot.slane %v2881, 4
        %v2883 = vrot.slane %v2314, 5
        %v2884 = vsel %vm2869, %v2882, %v2883
        %v2885 = vrot.slane %v2311, 4
        %v2886 = vor.u32 %v2885, %v2883
        %v2887 = vrot.slane %v2886, 4
        %v2888 = vrot.slane %v2319, 4
        %v2889 = vrot.slane %v2322, 5
        %v2890 = vor.u32 %v2888, %v2889
        %v2891 = vrot.slane %v2890, 4
        %v2892 = vrot.slane %v2330, 5
        %v2893 = vsel %vm2869, %v2891, %v2892
        %v2894 = vrot.slane %v2327, 4
        %v2895 = vor.u32 %v2894, %v2892
        %v2896 = vrot.slane %v2895, 4
        %v2897 = vrot.slane %v2335, 4
        %v2898 = vrot.slane %v2338, 5
        %v2899 = vor.u32 %v2897, %v2898
        %v2900 = vrot.slane %v2899, 4
        %v2901 = vrot.slane %v2346, 5
        %v2902 = vsel %vm2869, %v2900, %v2901
        %v2903 = vrot.slane %v2343, 4
        %v2904 = vor.u32 %v2903, %v2901
        %v2905 = vrot.slane %v2904, 4
        %v2906 = vrot.slane %v2351, 4
        %v2907 = vrot.slane %v2354, 5
        %v2908 = vor.u32 %v2906, %v2907
        %v2909 = vrot.slane %v2908, 4
        %v2910 = vrot.slane %v2362, 5
        %v2911 = vsel %vm2869, %v2909, %v2910
        %v2912 = vrot.slane %v2359, 4
        %v2913 = vor.u32 %v2912, %v2910
        %v2914 = vrot.slane %v2913, 4
        %v2915 = vrot.slane %v2367, 4
        %v2916 = vrot.slane %v2370, 5
        %v2917 = vor.u32 %v2915, %v2916
        %v2918 = vrot.slane %v2917, 4
        %v2919 = vrot.slane %v2378, 5
        %v2920 = vsel %vm2869, %v2918, %v2919
        %v2921 = vrot.slane %v2375, 4
        %v2922 = vor.u32 %v2921, %v2919
        %v2923 = vrot.slane %v2922, 4
        %v2924 = vrot.slane %v2383, 4
        %v2925 = vrot.slane %v2386, 5
        %v2926 = vor.u32 %v2924, %v2925
        %v2927 = vrot.slane %v2926, 4
        %v2928 = vrot.slane %v2394, 5
        %v2929 = vsel %vm2869, %v2927, %v2928
        %v2930 = vrot.slane %v2391, 4
        %v2931 = vor.u32 %v2930, %v2928
        %v2932 = vrot.slane %v2931, 4
        %v2933 = vrot.slane %v2399, 4
        %v2934 = vrot.slane %v2402, 5
        %v2935 = vor.u32 %v2933, %v2934
        %v2936 = vrot.slane %v2935, 4
        %v2937 = vrot.slane %v2410, 5
        %v2938 = vsel %vm2869, %v2936, %v2937
        %v2939 = vrot.slane %v2407, 4
        %v2940 = vor.u32 %v2939, %v2937
        %v2941 = vrot.slane %v2940, 4
        %v2942 = vrot.slane %v2415, 4
        %v2943 = vrot.slane %v2418, 5
        %v2944 = vor.u32 %v2942, %v2943
        %v2945 = vrot.slane %v2944, 4
        %v2946 = vrot.slane %v2426, 5
        %v2947 = vsel %vm2869, %v2945, %v2946
        %v2948 = vrot.slane %v2423, 4
        %v2949 = vor.u32 %v2948, %v2946
        %v2950 = vrot.slane %v2949, 4
        %v2951 = vrot.slane %v2431, 4
        %v2952 = vrot.slane %v2434, 5
        %v2953 = vor.u32 %v2951, %v2952
        %v2954 = vrot.slane %v2953, 4
        %v2955 = vrot.slane %v2442, 5
        %v2956 = vsel %vm2869, %v2954, %v2955
        %v2957 = vrot.slane %v2439, 4
        %v2958 = vor.u32 %v2957, %v2955
        %v2959 = vrot.slane %v2958, 4
        %v2960 = vrot.slane %v2447, 4
        %v2961 = vrot.slane %v2450, 5
        %v2962 = vor.u32 %v2960, %v2961
        %v2963 = vrot.slane %v2962, 4
        %v2964 = vrot.slane %v2458, 5
        %v2965 = vsel %vm2869, %v2963, %v2964
        %v2966 = vrot.slane %v2455, 4
        %v2967 = vor.u32 %v2966, %v2964
        %v2968 = vrot.slane %v2967, 4
        %v2969 = vrot.slane %v2463, 4
        %v2970 = vrot.slane %v2466, 5
        %v2971 = vor.u32 %v2969, %v2970
        %v2972 = vrot.slane %v2971, 4
        %v2973 = vrot.slane %v2474, 5
        %v2974 = vsel %vm2869, %v2972, %v2973
        %v2975 = vrot.slane %v2471, 4
        %v2976 = vor.u32 %v2975, %v2973
        %v2977 = vrot.slane %v2976, 4
        %v2978 = vrot.slane %v2479, 4
        %v2979 = vrot.slane %v2482, 5
        %v2980 = vor.u32 %v2978, %v2979
        %v2981 = vrot.slane %v2980, 4
        %v2982 = vrot.slane %v2490, 5
        %v2983 = vsel %vm2869, %v2981, %v2982
        %v2984 = vrot.slane %v2487, 4
        %v2985 = vor.u32 %v2984, %v2982
        %v2986 = vrot.slane %v2985, 4
        %v2987 = vrot.slane %v2495, 4
        %v2988 = vrot.slane %v2498, 5
        %v2989 = vor.u32 %v2987, %v2988
        %v2990 = vrot.slane %v2989, 4
        %v2991 = vrot.slane %v2506, 5
        %v2992 = vsel %vm2869, %v2990, %v2991
        %v2993 = vrot.slane %v2503, 4
        %v2994 = vor.u32 %v2993, %v2991
        %v2995 = vrot.slane %v2994, 4
        %v2996 = vrot.slane %v2511, 4
        %v2997 = vrot.slane %v2514, 5
        %v2998 = vor.u32 %v2996, %v2997
        %v2999 = vrot.slane %v2998, 4
        %v3000 = vrot.slane %v2522, 5
        %v3001 = vsel %vm2869, %v2999, %v3000
        %v3002 = vrot.slane %v2519, 4
        %v3003 = vor.u32 %v3002, %v3000
        %v3004 = vrot.slane %v3003, 4
        %v3005 = vrot.slane %v2527, 4
        %v3006 = vrot.slane %v2530, 5
        %v3007 = vor.u32 %v3005, %v3006
        %v3008 = vrot.slane %v3007, 4
        %v3009 = vrot.slane %v2538, 5
        %v3010 = vsel %vm2869, %v3008, %v3009
        %v3011 = vrot.slane %v2535, 4
        %v3012 = vor.u32 %v3011, %v3009
        %v3013 = vrot.slane %v3012, 4
        %v3014 = vrot.slane %v2543, 4
        %v3015 = vrot.slane %v2546, 5
        %v3016 = vor.u32 %v3014, %v3015
        %v3017 = vrot.slane %v3016, 4
        %v3018 = vrot.slane %v2554, 5
        %v3019 = vsel %vm2869, %v3017, %v3018
        %v3020 = vrot.slane %v2551, 4
        %v3021 = vor.u32 %v3020, %v3018
        %v3022 = vrot.slane %v3021, 4
        %v3023 = vrot.slane %v2559, 4
        %v3024 = vrot.slane %v2562, 5
        %v3025 = vor.u32 %v3023, %v3024
        %v3026 = vrot.slane %v3025, 4
        %v3027 = vrot.slane %v2570, 5
        %v3028 = vsel %vm2869, %v3026, %v3027
        %v3029 = vrot.slane %v2567, 4
        %v3030 = vor.u32 %v3029, %v3027
        %v3031 = vrot.slane %v3030, 4
        %3068 = vst.msk [vmem:[#allocation2 + $0x4] sm:$0xf] %vm2616, %v2875
        %vm3069 = vmand %vm2610, %vm2867
        %v3070 = vld [vmem:[#allocation2 + $0xc] sm:$0xf]
        %v3071 = vsel %vm3069, %v2878, %v3070
        %3072 = vst [vmem:[#allocation2 + $0xc] sm:$0xf] %v3071
        %3073 = vst.msk [vmem:[#allocation2 + $0x14] sm:$0xf] %vm2616, %v2884
        %v3074 = vld [vmem:[#allocation2 + $0x1c] sm:$0xf]
        %v3075 = vsel %vm3069, %v2887, %v3074
        %3076 = vst [vmem:[#allocation2 + $0x1c] sm:$0xf] %v3075
        %3077 = vst.msk [vmem:[#allocation2 + $0x24] sm:$0xf] %vm2616, %v2893
        %v3078 = vld [vmem:[#allocation2 + $0x2c] sm:$0xf]
        %v3079 = vsel %vm3069, %v2896, %v3078
        %3080 = vst [vmem:[#allocation2 + $0x2c] sm:$0xf] %v3079
        %3081 = vst.msk [vmem:[#allocation2 + $0x34] sm:$0xf] %vm2616, %v2902
        %v3082 = vld [vmem:[#allocation2 + $0x3c] sm:$0xf]
        %v3083 = vsel %vm3069, %v2905, %v3082
        %3084 = vst [vmem:[#allocation2 + $0x3c] sm:$0xf] %v3083
        %3085 = vst.msk [vmem:[#allocation2 + $0x44] sm:$0xf] %vm2616, %v2911
        %v3086 = vld [vmem:[#allocation2 + $0x4c] sm:$0xf]
        %v3087 = vsel %vm3069, %v2914, %v3086
        %3088 = vst [vmem:[#allocation2 + $0x4c] sm:$0xf] %v3087
        %3089 = vst.msk [vmem:[#allocation2 + $0x54] sm:$0xf] %vm2616, %v2920
        %v3090 = vld [vmem:[#allocation2 + $0x5c] sm:$0xf]
        %v3091 = vsel %vm3069, %v2923, %v3090
        %3092 = vst [vmem:[#allocation2 + $0x5c] sm:$0xf] %v3091
        %3093 = vst.msk [vmem:[#allocation2 + $0x64] sm:$0xf] %vm2616, %v2929
        %v3094 = vld [vmem:[#allocation2 + $0x6c] sm:$0xf]
        %v3095 = vsel %vm3069, %v2932, %v3094
        %3096 = vst [vmem:[#allocation2 + $0x6c] sm:$0xf] %v3095
        %3097 = vst.msk [vmem:[#allocation2 + $0x74] sm:$0xf] %vm2616, %v2938
        %v3098 = vld [vmem:[#allocation2 + $0x7c] sm:$0xf]
        %v3099 = vsel %vm3069, %v2941, %v3098
        %3100 = vst [vmem:[#allocation2 + $0x7c] sm:$0xf] %v3099
        %3101 = vst.msk [vmem:[#allocation2 + $0x84] sm:$0xf] %vm2616, %v2947
        %v3102 = vld [vmem:[#allocation2 + $0x8c] sm:$0xf]
        %v3103 = vsel %vm3069, %v2950, %v3102
        %3104 = vst [vmem:[#allocation2 + $0x8c] sm:$0xf] %v3103
        %3105 = vst.msk [vmem:[#allocation2 + $0x94] sm:$0xf] %vm2616, %v2956
        %v3106 = vld [vmem:[#allocation2 + $0x9c] sm:$0xf]
        %v3107 = vsel %vm3069, %v2959, %v3106
        %3108 = vst [vmem:[#allocation2 + $0x9c] sm:$0xf] %v3107
        %3109 = vst.msk [vmem:[#allocation2 + $0xa4] sm:$0xf] %vm2616, %v2965
        %v3110 = vld [vmem:[#allocation2 + $0xac] sm:$0xf]
        %v3111 = vsel %vm3069, %v2968, %v3110
        %3112 = vst [vmem:[#allocation2 + $0xac] sm:$0xf] %v3111
        %3113 = vst.msk [vmem:[#allocation2 + $0xb4] sm:$0xf] %vm2616, %v2974
        %v3114 = vld [vmem:[#allocation2 + $0xbc] sm:$0xf]
        %v3115 = vsel %vm3069, %v2977, %v3114
        %3116 = vst [vmem:[#allocation2 + $0xbc] sm:$0xf] %v3115
        %3117 = vst.msk [vmem:[#allocation2 + $0xc4] sm:$0xf] %vm2616, %v2983
        %v3118 = vld [vmem:[#allocation2 + $0xcc] sm:$0xf]
        %v3119 = vsel %vm3069, %v2986, %v3118
        %3120 = vst [vmem:[#allocation2 + $0xcc] sm:$0xf] %v3119
        %3121 = vst.msk [vmem:[#allocation2 + $0xd4] sm:$0xf] %vm2616, %v2992
        %v3122 = vld [vmem:[#allocation2 + $0xdc] sm:$0xf]
        %v3123 = vsel %vm3069, %v2995, %v3122
        %3124 = vst [vmem:[#allocation2 + $0xdc] sm:$0xf] %v3123
        %3125 = vst.msk [vmem:[#allocation2 + $0xe4] sm:$0xf] %vm2616, %v3001
        %v3126 = vld [vmem:[#allocation2 + $0xec] sm:$0xf]
        %v3127 = vsel %vm3069, %v3004, %v3126
        %3128 = vst [vmem:[#allocation2 + $0xec] sm:$0xf] %v3127
        %3129 = vst.msk [vmem:[#allocation2 + $0xf4] sm:$0xf] %vm2616, %v3010
        %v3130 = vld [vmem:[#allocation2 + $0xfc] sm:$0xf]
        %v3131 = vsel %vm3069, %v3013, %v3130
        %3132 = vst [vmem:[#allocation2 + $0xfc] sm:$0xf] %v3131
        %3133 = vst.msk [vmem:[#allocation2 + $0x104] sm:$0xf] %vm2616, %v3019
        %v3134 = vld [vmem:[#allocation2 + $0x10c] sm:$0xf]
        %v3135 = vsel %vm3069, %v3022, %v3134
        %3136 = vst [vmem:[#allocation2 + $0x10c] sm:$0xf] %v3135
        %3137 = vst.msk [vmem:[#allocation2 + $0x114] sm:$0xf] %vm2616, %v3028
        %v3138 = vld [vmem:[#allocation2 + $0x11c] sm:$0xf]
        %v3139 = vsel %vm3069, %v3031, %v3138
        %3140 = vst [vmem:[#allocation2 + $0x11c] sm:$0xf] %v3139
        %v3141 = vld [vmem:[#allocation2] sm:$0xff]
        %v3142 = vld [vmem:[#allocation2 + $0x8] sm:$0xff]
        %v3143 = vld [vmem:[#allocation2 + $0x10] sm:$0xff]
        %v3144 = vld [vmem:[#allocation2 + $0x18] sm:$0xff]
        %v3145 = vld [vmem:[#allocation2 + $0x20] sm:$0xff]
        %v3146 = vld [vmem:[#allocation2 + $0x28] sm:$0xff]
        %v3147 = vld [vmem:[#allocation2 + $0x30] sm:$0xff]
        %v3148 = vld [vmem:[#allocation2 + $0x38] sm:$0xff]
        %v3149 = vld [vmem:[#allocation2 + $0x40] sm:$0xff]
        %v3150 = vld [vmem:[#allocation2 + $0x48] sm:$0xff]
        %v3151 = vld [vmem:[#allocation2 + $0x50] sm:$0xff]
        %v3152 = vld [vmem:[#allocation2 + $0x58] sm:$0xff]
        %v3153 = vld [vmem:[#allocation2 + $0x60] sm:$0xff]
        %v3154 = vld [vmem:[#allocation2 + $0x68] sm:$0xff]
        %v3155 = vld [vmem:[#allocation2 + $0x70] sm:$0xff]
        %v3156 = vld [vmem:[#allocation2 + $0x78] sm:$0xff]
        %v3157 = vld [vmem:[#allocation2 + $0x80] sm:$0xff]
        %v3158 = vld [vmem:[#allocation2 + $0x88] sm:$0xff]
        %v3159 = vld [vmem:[#allocation2 + $0x90] sm:$0xff]
        %v3160 = vld [vmem:[#allocation2 + $0x98] sm:$0xff]
        %v3161 = vld [vmem:[#allocation2 + $0xa0] sm:$0xff]
        %v3162 = vld [vmem:[#allocation2 + $0xa8] sm:$0xff]
        %v3163 = vld [vmem:[#allocation2 + $0xb0] sm:$0xff]
        %v3164 = vld [vmem:[#allocation2 + $0xb8] sm:$0xff]
        %v3165 = vld [vmem:[#allocation2 + $0xc0] sm:$0xff]
        %v3166 = vld [vmem:[#allocation2 + $0xc8] sm:$0xff]
        %v3167 = vld [vmem:[#allocation2 + $0xd0] sm:$0xff]
        %v3168 = vld [vmem:[#allocation2 + $0xd8] sm:$0xff]
        %v3169 = vld [vmem:[#allocation2 + $0xe0] sm:$0xff]
        %v3170 = vld [vmem:[#allocation2 + $0xe8] sm:$0xff]
        %v3171 = vld [vmem:[#allocation2 + $0xf0] sm:$0xff]
        %v3172 = vld [vmem:[#allocation2 + $0xf8] sm:$0xff]
        %v3173 = vld [vmem:[%s3] sm:$0xf]
        %v3174 = vld [vmem:[%s3 + $0x4] sm:$0xf]
        %v3175 = vld [vmem:[%s3 + $0x8] sm:$0xf]
        %v3176 = vld [vmem:[%s3 + $0xc] sm:$0xf]
        %v3177 = vld [vmem:[%s3 + $0x10] sm:$0xf]
        %v3178 = vld [vmem:[%s3 + $0x14] sm:$0xf]
        %v3179 = vld [vmem:[%s3 + $0x18] sm:$0xf]
        %v3180 = vld [vmem:[%s3 + $0x1c] sm:$0xf]
        %v3181 = vld [vmem:[%s3 + $0x20] sm:$0xf]
        %v3182 = vld [vmem:[%s3 + $0x24] sm:$0xf]
        %v3183 = vld [vmem:[%s3 + $0x28] sm:$0xf]
        %v3184 = vld [vmem:[%s3 + $0x2c] sm:$0xf]
        %v3185 = vld [vmem:[%s3 + $0x30] sm:$0xf]
        %v3186 = vld [vmem:[%s3 + $0x34] sm:$0xf]
        %v3187 = vld [vmem:[%s3 + $0x38] sm:$0xf]
        %v3188 = vld [vmem:[%s3 + $0x3c] sm:$0xf]
        %v3189 = vld [vmem:[%s3 + $0x40] sm:$0xf]
        %v3190 = vld [vmem:[%s3 + $0x44] sm:$0xf]
        %v3191 = vld [vmem:[%s3 + $0x48] sm:$0xf]
        %v3192 = vld [vmem:[%s3 + $0x4c] sm:$0xf]
        %v3193 = vld [vmem:[%s3 + $0x50] sm:$0xf]
        %v3194 = vld [vmem:[%s3 + $0x54] sm:$0xf]
        %v3195 = vld [vmem:[%s3 + $0x58] sm:$0xf]
        %v3196 = vld [vmem:[%s3 + $0x5c] sm:$0xf]
        %s3197 = scalar_lea.vmem [#allocation2], 16
        %v3198 = vld [vmem:[%s3197] sm:$0xff]
        %v3199 = vld [vmem:[%s3197 + $0x8] sm:$0xff]
        %v3200 = vld [vmem:[%s3197 + $0x10] sm:$0xff]
        %v3201 = vld [vmem:[%s3197 + $0x18] sm:$0xff]
        %v3202 = vld [vmem:[%s3197 + $0x20] sm:$0xff]
        %v3203 = vld [vmem:[%s3197 + $0x28] sm:$0xff]
        %v3204 = vld [vmem:[%s3197 + $0x30] sm:$0xff]
        %v3205 = vld [vmem:[%s3197 + $0x38] sm:$0xff]
        %v3206 = vld [vmem:[%s3197 + $0x40] sm:$0xff]
        %v3207 = vld [vmem:[%s3197 + $0x48] sm:$0xff]
        %v3208 = vld [vmem:[%s3197 + $0x50] sm:$0xff]
        %v3209 = vld [vmem:[%s3197 + $0x58] sm:$0xff]
        %v3210 = vld [vmem:[%s3197 + $0x60] sm:$0xff]
        %v3211 = vld [vmem:[%s3197 + $0x68] sm:$0xff]
        %v3212 = vld [vmem:[%s3197 + $0x70] sm:$0xff]
        %v3213 = vld [vmem:[%s3197 + $0x78] sm:$0xff]
        %v3214 = vld [vmem:[%s3197 + $0x80] sm:$0xff]
        %v3215 = vld [vmem:[%s3197 + $0x88] sm:$0xff]
        %v3216 = vld [vmem:[%s3197 + $0x90] sm:$0xff]
        %v3217 = vld [vmem:[%s3197 + $0x98] sm:$0xff]
        %v3218 = vld [vmem:[%s3197 + $0xa0] sm:$0xff]
        %v3219 = vld [vmem:[%s3197 + $0xa8] sm:$0xff]
        %v3220 = vld [vmem:[%s3197 + $0xb0] sm:$0xff]
        %v3221 = vld [vmem:[%s3197 + $0xb8] sm:$0xff]
        %v3222 = vld [vmem:[%s3197 + $0xc0] sm:$0xff]
        %v3223 = vld [vmem:[%s3197 + $0xc8] sm:$0xff]
        %v3224 = vld [vmem:[%s3197 + $0xd0] sm:$0xff]
        %v3225 = vld [vmem:[%s3197 + $0xd8] sm:$0xff]
        %v3226 = vld [vmem:[%s3197 + $0xe0] sm:$0xff]
        %v3227 = vld [vmem:[%s3197 + $0xe8] sm:$0xff]
        %v3228 = vld [vmem:[%s3197 + $0xf0] sm:$0xff]
        %v3229 = vld [vmem:[%s3197 + $0xf8] sm:$0xff]
        %s3230 = scalar_lea.vmem %s3, 96
        %v3231 = vld [vmem:[%s3230] sm:$0xf]
        %v3232 = vld [vmem:[%s3230 + $0x4] sm:$0xf]
        %v3233 = vld [vmem:[%s3230 + $0x8] sm:$0xf]
        %v3234 = vld [vmem:[%s3230 + $0xc] sm:$0xf]
        %v3235 = vld [vmem:[%s3230 + $0x10] sm:$0xf]
        %v3236 = vld [vmem:[%s3230 + $0x14] sm:$0xf]
        %v3237 = vld [vmem:[%s3230 + $0x18] sm:$0xf]
        %v3238 = vld [vmem:[%s3230 + $0x1c] sm:$0xf]
        %v3239 = vld [vmem:[%s3230 + $0x20] sm:$0xf]
        %v3240 = vld [vmem:[%s3230 + $0x24] sm:$0xf]
        %v3241 = vld [vmem:[%s3230 + $0x28] sm:$0xf]
        %v3242 = vld [vmem:[%s3230 + $0x2c] sm:$0xf]
        %v3243 = vld [vmem:[%s3230 + $0x30] sm:$0xf]
        %v3244 = vld [vmem:[%s3230 + $0x34] sm:$0xf]
        %v3245 = vld [vmem:[%s3230 + $0x38] sm:$0xf]
        %v3246 = vld [vmem:[%s3230 + $0x3c] sm:$0xf]
        %v3247 = vld [vmem:[%s3230 + $0x40] sm:$0xf]
        %v3248 = vld [vmem:[%s3230 + $0x44] sm:$0xf]
        %v3249 = vld [vmem:[%s3230 + $0x48] sm:$0xf]
        %v3250 = vld [vmem:[%s3230 + $0x4c] sm:$0xf]
        %v3251 = vld [vmem:[%s3230 + $0x50] sm:$0xf]
        %v3252 = vld [vmem:[%s3230 + $0x54] sm:$0xf]
        %v3253 = vld [vmem:[%s3230 + $0x58] sm:$0xf]
        %v3254 = vld [vmem:[%s3230 + $0x5c] sm:$0xf]
        %v3287 = vunpack.c.l.b16 %v3198
        %v3288 = vunpack.c.h.b16 %v3198
        %v3289 = vunpack.c.l.b16 %v3199
        %v3290 = vunpack.c.h.b16 %v3199
        %v3291 = vunpack.c.l.b16 %v3200
        %v3292 = vunpack.c.h.b16 %v3200
        %v3293 = vunpack.c.l.b16 %v3201
        %v3294 = vunpack.c.h.b16 %v3201
        %v3295 = vunpack.c.l.b16 %v3202
        %v3296 = vunpack.c.h.b16 %v3202
        %v3297 = vunpack.c.l.b16 %v3203
        %v3298 = vunpack.c.h.b16 %v3203
        %v3299 = vunpack.c.l.b16 %v3204
        %v3300 = vunpack.c.h.b16 %v3204
        %v3301 = vunpack.c.l.b16 %v3205
        %v3302 = vunpack.c.h.b16 %v3205
        %v3303 = vunpack.c.l.b16 %v3206
        %v3304 = vunpack.c.h.b16 %v3206
        %v3305 = vunpack.c.l.b16 %v3207
        %v3306 = vunpack.c.h.b16 %v3207
        %v3307 = vunpack.c.l.b16 %v3208
        %v3308 = vunpack.c.h.b16 %v3208
        %v3309 = vunpack.c.l.b16 %v3209
        %v3310 = vunpack.c.h.b16 %v3209
        %v3311 = vunpack.c.l.b16 %v3210
        %v3312 = vunpack.c.h.b16 %v3210
        %v3313 = vunpack.c.l.b16 %v3211
        %v3314 = vunpack.c.h.b16 %v3211
        %v3315 = vunpack.c.l.b16 %v3212
        %v3316 = vunpack.c.h.b16 %v3212
        %v3317 = vunpack.c.l.b16 %v3213
        %v3318 = vunpack.c.h.b16 %v3213
        %v3319 = vunpack.c.l.b16 %v3214
        %v3320 = vunpack.c.h.b16 %v3214
        %v3321 = vunpack.c.l.b16 %v3215
        %v3322 = vunpack.c.h.b16 %v3215
        %v3323 = vunpack.c.l.b16 %v3216
        %v3324 = vunpack.c.h.b16 %v3216
        %v3325 = vunpack.c.l.b16 %v3217
        %v3326 = vunpack.c.h.b16 %v3217
        %v3327 = vunpack.c.l.b16 %v3218
        %v3328 = vunpack.c.h.b16 %v3218
        %v3329 = vunpack.c.l.b16 %v3219
        %v3330 = vunpack.c.h.b16 %v3219
        %v3331 = vunpack.c.l.b16 %v3220
        %v3332 = vunpack.c.h.b16 %v3220
        %v3333 = vunpack.c.l.b16 %v3221
        %v3334 = vunpack.c.h.b16 %v3221
        %v3335 = vunpack.c.l.b16 %v3222
        %v3336 = vunpack.c.h.b16 %v3222
        %v3337 = vunpack.c.l.b16 %v3223
        %v3338 = vunpack.c.h.b16 %v3223
        %v3339 = vunpack.c.l.b16 %v3224
        %v3340 = vunpack.c.h.b16 %v3224
        %v3341 = vunpack.c.l.b16 %v3225
        %v3342 = vunpack.c.h.b16 %v3225
        %v3343 = vunpack.c.l.b16 %v3226
        %v3344 = vunpack.c.h.b16 %v3226
        %v3345 = vunpack.c.l.b16 %v3227
        %v3346 = vunpack.c.h.b16 %v3227
        %v3347 = vunpack.c.l.b16 %v3228
        %v3348 = vunpack.c.h.b16 %v3228
        %v3349 = vunpack.c.l.b16 %v3229
        %v3350 = vunpack.c.h.b16 %v3229
        %v3351 = vpack.c.b16 %v3289, %v3287
        %v3352 = vpack.c.b16 %v3290, %v3288
        %v3353 = vpack.c.b16 %v3293, %v3291
        %v3354 = vpack.c.b16 %v3294, %v3292
        %v3355 = vpack.c.b16 %v3297, %v3295
        %v3356 = vpack.c.b16 %v3298, %v3296
        %v3357 = vpack.c.b16 %v3301, %v3299
        %v3358 = vpack.c.b16 %v3302, %v3300
        %v3359 = vpack.c.b16 %v3305, %v3303
        %v3360 = vpack.c.b16 %v3306, %v3304
        %v3361 = vpack.c.b16 %v3309, %v3307
        %v3362 = vpack.c.b16 %v3310, %v3308
        %v3363 = vpack.c.b16 %v3313, %v3311
        %v3364 = vpack.c.b16 %v3314, %v3312
        %v3365 = vpack.c.b16 %v3317, %v3315
        %v3366 = vpack.c.b16 %v3318, %v3316
        %v3367 = vpack.c.b16 %v3321, %v3319
        %v3368 = vpack.c.b16 %v3322, %v3320
        %v3369 = vpack.c.b16 %v3325, %v3323
        %v3370 = vpack.c.b16 %v3326, %v3324
        %v3371 = vpack.c.b16 %v3329, %v3327
        %v3372 = vpack.c.b16 %v3330, %v3328
        %v3373 = vpack.c.b16 %v3333, %v3331
        %v3374 = vpack.c.b16 %v3334, %v3332
        %v3375 = vpack.c.b16 %v3337, %v3335
        %v3376 = vpack.c.b16 %v3338, %v3336
        %v3377 = vpack.c.b16 %v3341, %v3339
        %v3378 = vpack.c.b16 %v3342, %v3340
        %v3379 = vpack.c.b16 %v3345, %v3343
        %v3380 = vpack.c.b16 %v3346, %v3344
        %v3381 = vpack.c.b16 %v3349, %v3347
        %v3382 = vpack.c.b16 %v3350, %v3348
        %v3423 = vunpack.c.l.b16 %v3231
        %v3424 = vunpack.c.l.b16 %v3232
        %v3425 = vunpack.c.l.b16 %v3233
        %v3426 = vunpack.c.l.b16 %v3234
        %v3427 = vunpack.c.l.b16 %v3235
        %v3428 = vunpack.c.l.b16 %v3236
        %v3429 = vunpack.c.l.b16 %v3237
        %v3430 = vunpack.c.l.b16 %v3238
        %v3431 = vunpack.c.l.b16 %v3239
        %v3432 = vunpack.c.l.b16 %v3240
        %v3433 = vunpack.c.l.b16 %v3241
        %v3434 = vunpack.c.l.b16 %v3242
        %v3435 = vunpack.c.l.b16 %v3243
        %v3436 = vunpack.c.l.b16 %v3244
        %v3437 = vunpack.c.l.b16 %v3245
        %v3438 = vunpack.c.l.b16 %v3246
        %v3439 = vunpack.c.l.b16 %v3247
        %v3440 = vunpack.c.l.b16 %v3248
        %v3441 = vunpack.c.l.b16 %v3249
        %v3442 = vunpack.c.l.b16 %v3250
        %v3443 = vunpack.c.l.b16 %v3251
        %v3444 = vunpack.c.l.b16 %v3252
        %v3445 = vunpack.c.l.b16 %v3253
        %v3446 = vunpack.c.l.b16 %v3254
        %v3447 = vpack.c.b16 %v3424, %v3423
        %v3448 = vpack.c.b16 %v3426, %v3425
        %v3449 = vpack.c.b16 %v3428, %v3427
        %v3450 = vpack.c.b16 %v3430, %v3429
        %v3451 = vpack.c.b16 %v3432, %v3431
        %v3452 = vpack.c.b16 %v3434, %v3433
        %v3453 = vpack.c.b16 %v3436, %v3435
        %v3454 = vpack.c.b16 %v3438, %v3437
        %v3455 = vpack.c.b16 %v3440, %v3439
        %v3456 = vpack.c.b16 %v3442, %v3441
        %v3457 = vpack.c.b16 %v3444, %v3443
        %v3458 = vpack.c.b16 %v3446, %v3445
        %vm3471 = vcmask 523264
        %v3473 = vsel %vm3471, %v3352, 0
        %v3476 = vsel %vm3471, %v3354, 0
        %v3479 = vsel %vm3471, %v3356, 0
        %v3482 = vsel %vm3471, %v3358, 0
        %v3485 = vsel %vm3471, %v3360, 0
        %v3488 = vsel %vm3471, %v3362, 0
        %v3491 = vsel %vm3471, %v3364, 0
        %v3494 = vsel %vm3471, %v3366, 0
        %v3497 = vsel %vm3471, %v3368, 0
        %v3500 = vsel %vm3471, %v3370, 0
        %v3503 = vsel %vm3471, %v3372, 0
        %v3506 = vsel %vm3471, %v3374, 0
        %v3509 = vsel %vm3471, %v3376, 0
        %v3512 = vsel %vm3471, %v3378, 0
        %v3515 = vsel %vm3471, %v3380, 0
        %v3518 = vsel %vm3471, %v3382, 0
        %3520 = vmatpush.bf16.msra.mxu0 %v3454
        %3521 = vmatpush.bf16.msra.mxu0 %v3453
        %3522 = vmatpush.bf16.msra.mxu0 %v3452
        %3523 = vmatpush.bf16.msra.mxu0 %v3451
        %3524 = vmatpush.bf16.msra.mxu0 %v3450
        %3525 = vmatpush.bf16.msra.mxu0 %v3449
        %3526 = vmatpush.bf16.msra.mxu0 %v3448
        %3527 = vmatpush.bf16.msra.mxu0 %v3447
        %3528 = vmatmul.bf16.gmra.mxu0 %v3351
        %v3529 = vpop.f32.mrf.mxu0
        %v3530 = vadd.f32 0.0, %v3529
        %v3531 = vpop.f32.mrf.mxu0
        %v3532 = vadd.f32 0.0, %v3531
        %3533 = vmatmul.bf16.gmra.mxu0 %v3353
        %v3534 = vpop.f32.mrf.mxu0
        %v3535 = vadd.f32 0.0, %v3534
        %v3536 = vpop.f32.mrf.mxu0
        %v3537 = vadd.f32 0.0, %v3536
        %3538 = vmatmul.bf16.gmra.mxu0 %v3355
        %v3539 = vpop.f32.mrf.mxu0
        %v3540 = vadd.f32 0.0, %v3539
        %v3541 = vpop.f32.mrf.mxu0
        %v3542 = vadd.f32 0.0, %v3541
        %3543 = vmatmul.bf16.gmra.mxu0 %v3357
        %v3544 = vpop.f32.mrf.mxu0
        %v3545 = vadd.f32 0.0, %v3544
        %v3546 = vpop.f32.mrf.mxu0
        %v3547 = vadd.f32 0.0, %v3546
        %3548 = vmatmul.bf16.gmra.mxu0 %v3359
        %v3549 = vpop.f32.mrf.mxu0
        %v3550 = vadd.f32 0.0, %v3549
        %v3551 = vpop.f32.mrf.mxu0
        %v3552 = vadd.f32 0.0, %v3551
        %3553 = vmatmul.bf16.gmra.mxu0 %v3361
        %v3554 = vpop.f32.mrf.mxu0
        %v3555 = vadd.f32 0.0, %v3554
        %v3556 = vpop.f32.mrf.mxu0
        %v3557 = vadd.f32 0.0, %v3556
        %3558 = vmatmul.bf16.gmra.mxu0 %v3363
        %v3559 = vpop.f32.mrf.mxu0
        %v3560 = vadd.f32 0.0, %v3559
        %v3561 = vpop.f32.mrf.mxu0
        %v3562 = vadd.f32 0.0, %v3561
        %3563 = vmatmul.bf16.gmra.mxu0 %v3365
        %v3564 = vpop.f32.mrf.mxu0
        %v3565 = vadd.f32 0.0, %v3564
        %v3566 = vpop.f32.mrf.mxu0
        %v3567 = vadd.f32 0.0, %v3566
        %3568 = vmatmul.bf16.gmra.mxu0 %v3367
        %v3569 = vpop.f32.mrf.mxu0
        %v3570 = vadd.f32 0.0, %v3569
        %v3571 = vpop.f32.mrf.mxu0
        %v3572 = vadd.f32 0.0, %v3571
        %3573 = vmatmul.bf16.gmra.mxu0 %v3369
        %v3574 = vpop.f32.mrf.mxu0
        %v3575 = vadd.f32 0.0, %v3574
        %v3576 = vpop.f32.mrf.mxu0
        %v3577 = vadd.f32 0.0, %v3576
        %3578 = vmatmul.bf16.gmra.mxu0 %v3371
        %v3579 = vpop.f32.mrf.mxu0
        %v3580 = vadd.f32 0.0, %v3579
        %v3581 = vpop.f32.mrf.mxu0
        %v3582 = vadd.f32 0.0, %v3581
        %3583 = vmatmul.bf16.gmra.mxu0 %v3373
        %v3584 = vpop.f32.mrf.mxu0
        %v3585 = vadd.f32 0.0, %v3584
        %v3586 = vpop.f32.mrf.mxu0
        %v3587 = vadd.f32 0.0, %v3586
        %3588 = vmatmul.bf16.gmra.mxu0 %v3375
        %v3589 = vpop.f32.mrf.mxu0
        %v3590 = vadd.f32 0.0, %v3589
        %v3591 = vpop.f32.mrf.mxu0
        %v3592 = vadd.f32 0.0, %v3591
        %3593 = vmatmul.bf16.gmra.mxu0 %v3377
        %v3594 = vpop.f32.mrf.mxu0
        %v3595 = vadd.f32 0.0, %v3594
        %v3596 = vpop.f32.mrf.mxu0
        %v3597 = vadd.f32 0.0, %v3596
        %3598 = vmatmul.bf16.gmra.mxu0 %v3379
        %v3599 = vpop.f32.mrf.mxu0
        %v3600 = vadd.f32 0.0, %v3599
        %v3601 = vpop.f32.mrf.mxu0
        %v3602 = vadd.f32 0.0, %v3601
        %3603 = vmatmul.bf16.gmra.mxu0 %v3381
        %v3604 = vpop.f32.mrf.mxu0
        %v3605 = vadd.f32 0.0, %v3604
        %v3606 = vpop.f32.mrf.mxu0
        %v3607 = vadd.f32 0.0, %v3606
        %3608 = vdwg.mxu0
        %3609 = vmatpush.bf16.msra.mxu0 0
        %3610 = vmatpush.bf16.msra.mxu0 0
        %3611 = vmatpush.bf16.msra.mxu0 0
        %3612 = vmatpush.bf16.msra.mxu0 0
        %3613 = vmatpush.bf16.msra.mxu0 %v3458
        %3614 = vmatpush.bf16.msra.mxu0 %v3457
        %3615 = vmatpush.bf16.msra.mxu0 %v3456
        %3616 = vmatpush.bf16.msra.mxu0 %v3455
        %3617 = vmatmul.bf16.gmra.mxu0 %v3473
        %v3618 = vpop.f32.mrf.mxu0
        %v3619 = vadd.f32 %v3530, %v3618
        %v3620 = vpop.f32.mrf.mxu0
        %v3621 = vadd.f32 %v3532, %v3620
        %3622 = vmatmul.bf16.gmra.mxu0 %v3476
        %v3623 = vpop.f32.mrf.mxu0
        %v3624 = vadd.f32 %v3535, %v3623
        %v3625 = vpop.f32.mrf.mxu0
        %v3626 = vadd.f32 %v3537, %v3625
        %3627 = vmatmul.bf16.gmra.mxu0 %v3479
        %v3628 = vpop.f32.mrf.mxu0
        %v3629 = vadd.f32 %v3540, %v3628
        %v3630 = vpop.f32.mrf.mxu0
        %v3631 = vadd.f32 %v3542, %v3630
        %3632 = vmatmul.bf16.gmra.mxu0 %v3482
        %v3633 = vpop.f32.mrf.mxu0
        %v3634 = vadd.f32 %v3545, %v3633
        %v3635 = vpop.f32.mrf.mxu0
        %v3636 = vadd.f32 %v3547, %v3635
        %3637 = vmatmul.bf16.gmra.mxu0 %v3485
        %v3638 = vpop.f32.mrf.mxu0
        %v3639 = vadd.f32 %v3550, %v3638
        %v3640 = vpop.f32.mrf.mxu0
        %v3641 = vadd.f32 %v3552, %v3640
        %3642 = vmatmul.bf16.gmra.mxu0 %v3488
        %v3643 = vpop.f32.mrf.mxu0
        %v3644 = vadd.f32 %v3555, %v3643
        %v3645 = vpop.f32.mrf.mxu0
        %v3646 = vadd.f32 %v3557, %v3645
        %3647 = vmatmul.bf16.gmra.mxu0 %v3491
        %v3648 = vpop.f32.mrf.mxu0
        %v3649 = vadd.f32 %v3560, %v3648
        %v3650 = vpop.f32.mrf.mxu0
        %v3651 = vadd.f32 %v3562, %v3650
        %3652 = vmatmul.bf16.gmra.mxu0 %v3494
        %v3653 = vpop.f32.mrf.mxu0
        %v3654 = vadd.f32 %v3565, %v3653
        %v3655 = vpop.f32.mrf.mxu0
        %v3656 = vadd.f32 %v3567, %v3655
        %3657 = vmatmul.bf16.gmra.mxu0 %v3497
        %v3658 = vpop.f32.mrf.mxu0
        %v3659 = vadd.f32 %v3570, %v3658
        %v3660 = vpop.f32.mrf.mxu0
        %v3661 = vadd.f32 %v3572, %v3660
        %3662 = vmatmul.bf16.gmra.mxu0 %v3500
        %v3663 = vpop.f32.mrf.mxu0
        %v3664 = vadd.f32 %v3575, %v3663
        %v3665 = vpop.f32.mrf.mxu0
        %v3666 = vadd.f32 %v3577, %v3665
        %3667 = vmatmul.bf16.gmra.mxu0 %v3503
        %v3668 = vpop.f32.mrf.mxu0
        %v3669 = vadd.f32 %v3580, %v3668
        %v3670 = vpop.f32.mrf.mxu0
        %v3671 = vadd.f32 %v3582, %v3670
        %3672 = vmatmul.bf16.gmra.mxu0 %v3506
        %v3673 = vpop.f32.mrf.mxu0
        %v3674 = vadd.f32 %v3585, %v3673
        %v3675 = vpop.f32.mrf.mxu0
        %v3676 = vadd.f32 %v3587, %v3675
        %3677 = vmatmul.bf16.gmra.mxu0 %v3509
        %v3678 = vpop.f32.mrf.mxu0
        %v3679 = vadd.f32 %v3590, %v3678
        %v3680 = vpop.f32.mrf.mxu0
        %v3681 = vadd.f32 %v3592, %v3680
        %3682 = vmatmul.bf16.gmra.mxu0 %v3512
        %v3683 = vpop.f32.mrf.mxu0
        %v3684 = vadd.f32 %v3595, %v3683
        %v3685 = vpop.f32.mrf.mxu0
        %v3686 = vadd.f32 %v3597, %v3685
        %3687 = vmatmul.bf16.gmra.mxu0 %v3515
        %v3688 = vpop.f32.mrf.mxu0
        %v3689 = vadd.f32 %v3600, %v3688
        %v3690 = vpop.f32.mrf.mxu0
        %v3691 = vadd.f32 %v3602, %v3690
        %3692 = vmatmul.bf16.gmra.mxu0 %v3518
        %v3693 = vpop.f32.mrf.mxu0
        %v3694 = vadd.f32 %v3605, %v3693
        %v3695 = vpop.f32.mrf.mxu0
        %v3696 = vadd.f32 %v3607, %v3695
        %3697 = vdwg.mxu0
        %v3730 = vunpack.c.l.b16 %v3141
        %v3731 = vunpack.c.h.b16 %v3141
        %v3732 = vunpack.c.l.b16 %v3142
        %v3733 = vunpack.c.h.b16 %v3142
        %v3734 = vunpack.c.l.b16 %v3143
        %v3735 = vunpack.c.h.b16 %v3143
        %v3736 = vunpack.c.l.b16 %v3144
        %v3737 = vunpack.c.h.b16 %v3144
        %v3738 = vunpack.c.l.b16 %v3145
        %v3739 = vunpack.c.h.b16 %v3145
        %v3740 = vunpack.c.l.b16 %v3146
        %v3741 = vunpack.c.h.b16 %v3146
        %v3742 = vunpack.c.l.b16 %v3147
        %v3743 = vunpack.c.h.b16 %v3147
        %v3744 = vunpack.c.l.b16 %v3148
        %v3745 = vunpack.c.h.b16 %v3148
        %v3746 = vunpack.c.l.b16 %v3149
        %v3747 = vunpack.c.h.b16 %v3149
        %v3748 = vunpack.c.l.b16 %v3150
        %v3749 = vunpack.c.h.b16 %v3150
        %v3750 = vunpack.c.l.b16 %v3151
        %v3751 = vunpack.c.h.b16 %v3151
        %v3752 = vunpack.c.l.b16 %v3152
        %v3753 = vunpack.c.h.b16 %v3152
        %v3754 = vunpack.c.l.b16 %v3153
        %v3755 = vunpack.c.h.b16 %v3153
        %v3756 = vunpack.c.l.b16 %v3154
        %v3757 = vunpack.c.h.b16 %v3154
        %v3758 = vunpack.c.l.b16 %v3155
        %v3759 = vunpack.c.h.b16 %v3155
        %v3760 = vunpack.c.l.b16 %v3156
        %v3761 = vunpack.c.h.b16 %v3156
        %v3762 = vunpack.c.l.b16 %v3157
        %v3763 = vunpack.c.h.b16 %v3157
        %v3764 = vunpack.c.l.b16 %v3158
        %v3765 = vunpack.c.h.b16 %v3158
        %v3766 = vunpack.c.l.b16 %v3159
        %v3767 = vunpack.c.h.b16 %v3159
        %v3768 = vunpack.c.l.b16 %v3160
        %v3769 = vunpack.c.h.b16 %v3160
        %v3770 = vunpack.c.l.b16 %v3161
        %v3771 = vunpack.c.h.b16 %v3161
        %v3772 = vunpack.c.l.b16 %v3162
        %v3773 = vunpack.c.h.b16 %v3162
        %v3774 = vunpack.c.l.b16 %v3163
        %v3775 = vunpack.c.h.b16 %v3163
        %v3776 = vunpack.c.l.b16 %v3164
        %v3777 = vunpack.c.h.b16 %v3164
        %v3778 = vunpack.c.l.b16 %v3165
        %v3779 = vunpack.c.h.b16 %v3165
        %v3780 = vunpack.c.l.b16 %v3166
        %v3781 = vunpack.c.h.b16 %v3166
        %v3782 = vunpack.c.l.b16 %v3167
        %v3783 = vunpack.c.h.b16 %v3167
        %v3784 = vunpack.c.l.b16 %v3168
        %v3785 = vunpack.c.h.b16 %v3168
        %v3786 = vunpack.c.l.b16 %v3169
        %v3787 = vunpack.c.h.b16 %v3169
        %v3788 = vunpack.c.l.b16 %v3170
        %v3789 = vunpack.c.h.b16 %v3170
        %v3790 = vunpack.c.l.b16 %v3171
        %v3791 = vunpack.c.h.b16 %v3171
        %v3792 = vunpack.c.l.b16 %v3172
        %v3793 = vunpack.c.h.b16 %v3172
        %v3794 = vpack.c.b16 %v3732, %v3730
        %v3795 = vpack.c.b16 %v3733, %v3731
        %v3796 = vpack.c.b16 %v3736, %v3734
        %v3797 = vpack.c.b16 %v3737, %v3735
        %v3798 = vpack.c.b16 %v3740, %v3738
        %v3799 = vpack.c.b16 %v3741, %v3739
        %v3800 = vpack.c.b16 %v3744, %v3742
        %v3801 = vpack.c.b16 %v3745, %v3743
        %v3802 = vpack.c.b16 %v3748, %v3746
        %v3803 = vpack.c.b16 %v3749, %v3747
        %v3804 = vpack.c.b16 %v3752, %v3750
        %v3805 = vpack.c.b16 %v3753, %v3751
        %v3806 = vpack.c.b16 %v3756, %v3754
        %v3807 = vpack.c.b16 %v3757, %v3755
        %v3808 = vpack.c.b16 %v3760, %v3758
        %v3809 = vpack.c.b16 %v3761, %v3759
        %v3810 = vpack.c.b16 %v3764, %v3762
        %v3811 = vpack.c.b16 %v3765, %v3763
        %v3812 = vpack.c.b16 %v3768, %v3766
        %v3813 = vpack.c.b16 %v3769, %v3767
        %v3814 = vpack.c.b16 %v3772, %v3770
        %v3815 = vpack.c.b16 %v3773, %v3771
        %v3816 = vpack.c.b16 %v3776, %v3774
        %v3817 = vpack.c.b16 %v3777, %v3775
        %v3818 = vpack.c.b16 %v3780, %v3778
        %v3819 = vpack.c.b16 %v3781, %v3779
        %v3820 = vpack.c.b16 %v3784, %v3782
        %v3821 = vpack.c.b16 %v3785, %v3783
        %v3822 = vpack.c.b16 %v3788, %v3786
        %v3823 = vpack.c.b16 %v3789, %v3787
        %v3824 = vpack.c.b16 %v3792, %v3790
        %v3825 = vpack.c.b16 %v3793, %v3791
        %v3866 = vunpack.c.l.b16 %v3173
        %v3867 = vunpack.c.l.b16 %v3174
        %v3868 = vunpack.c.l.b16 %v3175
        %v3869 = vunpack.c.l.b16 %v3176
        %v3870 = vunpack.c.l.b16 %v3177
        %v3871 = vunpack.c.l.b16 %v3178
        %v3872 = vunpack.c.l.b16 %v3179
        %v3873 = vunpack.c.l.b16 %v3180
        %v3874 = vunpack.c.l.b16 %v3181
        %v3875 = vunpack.c.l.b16 %v3182
        %v3876 = vunpack.c.l.b16 %v3183
        %v3877 = vunpack.c.l.b16 %v3184
        %v3878 = vunpack.c.l.b16 %v3185
        %v3879 = vunpack.c.l.b16 %v3186
        %v3880 = vunpack.c.l.b16 %v3187
        %v3881 = vunpack.c.l.b16 %v3188
        %v3882 = vunpack.c.l.b16 %v3189
        %v3883 = vunpack.c.l.b16 %v3190
        %v3884 = vunpack.c.l.b16 %v3191
        %v3885 = vunpack.c.l.b16 %v3192
        %v3886 = vunpack.c.l.b16 %v3193
        %v3887 = vunpack.c.l.b16 %v3194
        %v3888 = vunpack.c.l.b16 %v3195
        %v3889 = vunpack.c.l.b16 %v3196
        %v3890 = vpack.c.b16 %v3867, %v3866
        %v3891 = vpack.c.b16 %v3869, %v3868
        %v3892 = vpack.c.b16 %v3871, %v3870
        %v3893 = vpack.c.b16 %v3873, %v3872
        %v3894 = vpack.c.b16 %v3875, %v3874
        %v3895 = vpack.c.b16 %v3877, %v3876
        %v3896 = vpack.c.b16 %v3879, %v3878
        %v3897 = vpack.c.b16 %v3881, %v3880
        %v3898 = vpack.c.b16 %v3883, %v3882
        %v3899 = vpack.c.b16 %v3885, %v3884
        %v3900 = vpack.c.b16 %v3887, %v3886
        %v3901 = vpack.c.b16 %v3889, %v3888
        %v3915 = vsel %vm3471, %v3795, 0
        %v3918 = vsel %vm3471, %v3797, 0
        %v3921 = vsel %vm3471, %v3799, 0
        %v3924 = vsel %vm3471, %v3801, 0
        %v3927 = vsel %vm3471, %v3803, 0
        %v3930 = vsel %vm3471, %v3805, 0
        %v3933 = vsel %vm3471, %v3807, 0
        %v3936 = vsel %vm3471, %v3809, 0
        %v3939 = vsel %vm3471, %v3811, 0
        %v3942 = vsel %vm3471, %v3813, 0
        %v3945 = vsel %vm3471, %v3815, 0
        %v3948 = vsel %vm3471, %v3817, 0
        %v3951 = vsel %vm3471, %v3819, 0
        %v3954 = vsel %vm3471, %v3821, 0
        %v3957 = vsel %vm3471, %v3823, 0
        %v3960 = vsel %vm3471, %v3825, 0
        %3962 = vmatpush.bf16.msra.mxu0 %v3897
        %3963 = vmatpush.bf16.msra.mxu0 %v3896
        %3964 = vmatpush.bf16.msra.mxu0 %v3895
        %3965 = vmatpush.bf16.msra.mxu0 %v3894
        %3966 = vmatpush.bf16.msra.mxu0 %v3893
        %3967 = vmatpush.bf16.msra.mxu0 %v3892
        %3968 = vmatpush.bf16.msra.mxu0 %v3891
        %3969 = vmatpush.bf16.msra.mxu0 %v3890
        %3970 = vmatmul.bf16.gmra.mxu0 %v3794
        %v3971 = vpop.f32.mrf.mxu0
        %v3972 = vadd.f32 %v3619, %v3971
        %v3973 = vpop.f32.mrf.mxu0
        %v3974 = vadd.f32 %v3621, %v3973
        %3975 = vmatmul.bf16.gmra.mxu0 %v3796
        %v3976 = vpop.f32.mrf.mxu0
        %v3977 = vadd.f32 %v3624, %v3976
        %v3978 = vpop.f32.mrf.mxu0
        %v3979 = vadd.f32 %v3626, %v3978
        %3980 = vmatmul.bf16.gmra.mxu0 %v3798
        %v3981 = vpop.f32.mrf.mxu0
        %v3982 = vadd.f32 %v3629, %v3981
        %v3983 = vpop.f32.mrf.mxu0
        %v3984 = vadd.f32 %v3631, %v3983
        %3985 = vmatmul.bf16.gmra.mxu0 %v3800
        %v3986 = vpop.f32.mrf.mxu0
        %v3987 = vadd.f32 %v3634, %v3986
        %v3988 = vpop.f32.mrf.mxu0
        %v3989 = vadd.f32 %v3636, %v3988
        %3990 = vmatmul.bf16.gmra.mxu0 %v3802
        %v3991 = vpop.f32.mrf.mxu0
        %v3992 = vadd.f32 %v3639, %v3991
        %v3993 = vpop.f32.mrf.mxu0
        %v3994 = vadd.f32 %v3641, %v3993
        %3995 = vmatmul.bf16.gmra.mxu0 %v3804
        %v3996 = vpop.f32.mrf.mxu0
        %v3997 = vadd.f32 %v3644, %v3996
        %v3998 = vpop.f32.mrf.mxu0
        %v3999 = vadd.f32 %v3646, %v3998
        %4000 = vmatmul.bf16.gmra.mxu0 %v3806
        %v4001 = vpop.f32.mrf.mxu0
        %v4002 = vadd.f32 %v3649, %v4001
        %v4003 = vpop.f32.mrf.mxu0
        %v4004 = vadd.f32 %v3651, %v4003
        %4005 = vmatmul.bf16.gmra.mxu0 %v3808
        %v4006 = vpop.f32.mrf.mxu0
        %v4007 = vadd.f32 %v3654, %v4006
        %v4008 = vpop.f32.mrf.mxu0
        %v4009 = vadd.f32 %v3656, %v4008
        %4010 = vmatmul.bf16.gmra.mxu0 %v3810
        %v4011 = vpop.f32.mrf.mxu0
        %v4012 = vadd.f32 %v3659, %v4011
        %v4013 = vpop.f32.mrf.mxu0
        %v4014 = vadd.f32 %v3661, %v4013
        %4015 = vmatmul.bf16.gmra.mxu0 %v3812
        %v4016 = vpop.f32.mrf.mxu0
        %v4017 = vadd.f32 %v3664, %v4016
        %v4018 = vpop.f32.mrf.mxu0
        %v4019 = vadd.f32 %v3666, %v4018
        %4020 = vmatmul.bf16.gmra.mxu0 %v3814
        %v4021 = vpop.f32.mrf.mxu0
        %v4022 = vadd.f32 %v3669, %v4021
        %v4023 = vpop.f32.mrf.mxu0
        %v4024 = vadd.f32 %v3671, %v4023
        %4025 = vmatmul.bf16.gmra.mxu0 %v3816
        %v4026 = vpop.f32.mrf.mxu0
        %v4027 = vadd.f32 %v3674, %v4026
        %v4028 = vpop.f32.mrf.mxu0
        %v4029 = vadd.f32 %v3676, %v4028
        %4030 = vmatmul.bf16.gmra.mxu0 %v3818
        %v4031 = vpop.f32.mrf.mxu0
        %v4032 = vadd.f32 %v3679, %v4031
        %v4033 = vpop.f32.mrf.mxu0
        %v4034 = vadd.f32 %v3681, %v4033
        %4035 = vmatmul.bf16.gmra.mxu0 %v3820
        %v4036 = vpop.f32.mrf.mxu0
        %v4037 = vadd.f32 %v3684, %v4036
        %v4038 = vpop.f32.mrf.mxu0
        %v4039 = vadd.f32 %v3686, %v4038
        %4040 = vmatmul.bf16.gmra.mxu0 %v3822
        %v4041 = vpop.f32.mrf.mxu0
        %v4042 = vadd.f32 %v3689, %v4041
        %v4043 = vpop.f32.mrf.mxu0
        %v4044 = vadd.f32 %v3691, %v4043
        %4045 = vmatmul.bf16.gmra.mxu0 %v3824
        %v4046 = vpop.f32.mrf.mxu0
        %v4047 = vadd.f32 %v3694, %v4046
        %v4048 = vpop.f32.mrf.mxu0
        %v4049 = vadd.f32 %v3696, %v4048
        %4050 = vdwg.mxu0
        %4051 = vmatpush.bf16.msra.mxu0 0
        %4052 = vmatpush.bf16.msra.mxu0 0
        %4053 = vmatpush.bf16.msra.mxu0 0
        %4054 = vmatpush.bf16.msra.mxu0 0
        %4055 = vmatpush.bf16.msra.mxu0 %v3901
        %4056 = vmatpush.bf16.msra.mxu0 %v3900
        %4057 = vmatpush.bf16.msra.mxu0 %v3899
        %4058 = vmatpush.bf16.msra.mxu0 %v3898
        %4059 = vmatmul.bf16.gmra.mxu0 %v3915
        %v4060 = vpop.f32.mrf.mxu0
        %v4061 = vadd.f32 %v3972, %v4060
        %v4062 = vpop.f32.mrf.mxu0
        %v4063 = vadd.f32 %v3974, %v4062
        %4064 = vmatmul.bf16.gmra.mxu0 %v3918
        %v4065 = vpop.f32.mrf.mxu0
        %v4066 = vadd.f32 %v3977, %v4065
        %v4067 = vpop.f32.mrf.mxu0
        %v4068 = vadd.f32 %v3979, %v4067
        %4069 = vmatmul.bf16.gmra.mxu0 %v3921
        %v4070 = vpop.f32.mrf.mxu0
        %v4071 = vadd.f32 %v3982, %v4070
        %v4072 = vpop.f32.mrf.mxu0
        %v4073 = vadd.f32 %v3984, %v4072
        %4074 = vmatmul.bf16.gmra.mxu0 %v3924
        %v4075 = vpop.f32.mrf.mxu0
        %v4076 = vadd.f32 %v3987, %v4075
        %v4077 = vpop.f32.mrf.mxu0
        %v4078 = vadd.f32 %v3989, %v4077
        %4079 = vmatmul.bf16.gmra.mxu0 %v3927
        %v4080 = vpop.f32.mrf.mxu0
        %v4081 = vadd.f32 %v3992, %v4080
        %v4082 = vpop.f32.mrf.mxu0
        %v4083 = vadd.f32 %v3994, %v4082
        %4084 = vmatmul.bf16.gmra.mxu0 %v3930
        %v4085 = vpop.f32.mrf.mxu0
        %v4086 = vadd.f32 %v3997, %v4085
        %v4087 = vpop.f32.mrf.mxu0
        %v4088 = vadd.f32 %v3999, %v4087
        %4089 = vmatmul.bf16.gmra.mxu0 %v3933
        %v4090 = vpop.f32.mrf.mxu0
        %v4091 = vadd.f32 %v4002, %v4090
        %v4092 = vpop.f32.mrf.mxu0
        %v4093 = vadd.f32 %v4004, %v4092
        %4094 = vmatmul.bf16.gmra.mxu0 %v3936
        %v4095 = vpop.f32.mrf.mxu0
        %v4096 = vadd.f32 %v4007, %v4095
        %v4097 = vpop.f32.mrf.mxu0
        %v4098 = vadd.f32 %v4009, %v4097
        %4099 = vmatmul.bf16.gmra.mxu0 %v3939
        %v4100 = vpop.f32.mrf.mxu0
        %v4101 = vadd.f32 %v4012, %v4100
        %v4102 = vpop.f32.mrf.mxu0
        %v4103 = vadd.f32 %v4014, %v4102
        %4104 = vmatmul.bf16.gmra.mxu0 %v3942
        %v4105 = vpop.f32.mrf.mxu0
        %v4106 = vadd.f32 %v4017, %v4105
        %v4107 = vpop.f32.mrf.mxu0
        %v4108 = vadd.f32 %v4019, %v4107
        %4109 = vmatmul.bf16.gmra.mxu0 %v3945
        %v4110 = vpop.f32.mrf.mxu0
        %v4111 = vadd.f32 %v4022, %v4110
        %v4112 = vpop.f32.mrf.mxu0
        %v4113 = vadd.f32 %v4024, %v4112
        %4114 = vmatmul.bf16.gmra.mxu0 %v3948
        %v4115 = vpop.f32.mrf.mxu0
        %v4116 = vadd.f32 %v4027, %v4115
        %v4117 = vpop.f32.mrf.mxu0
        %v4118 = vadd.f32 %v4029, %v4117
        %4119 = vmatmul.bf16.gmra.mxu0 %v3951
        %v4120 = vpop.f32.mrf.mxu0
        %v4121 = vadd.f32 %v4032, %v4120
        %v4122 = vpop.f32.mrf.mxu0
        %v4123 = vadd.f32 %v4034, %v4122
        %4124 = vmatmul.bf16.gmra.mxu0 %v3954
        %v4125 = vpop.f32.mrf.mxu0
        %v4126 = vadd.f32 %v4037, %v4125
        %v4127 = vpop.f32.mrf.mxu0
        %v4128 = vadd.f32 %v4039, %v4127
        %4129 = vmatmul.bf16.gmra.mxu0 %v3957
        %v4130 = vpop.f32.mrf.mxu0
        %v4131 = vadd.f32 %v4042, %v4130
        %v4132 = vpop.f32.mrf.mxu0
        %v4133 = vadd.f32 %v4044, %v4132
        %4134 = vmatmul.bf16.gmra.mxu0 %v3960
        %v4135 = vpop.f32.mrf.mxu0
        %v4136 = vadd.f32 %v4047, %v4135
        %v4137 = vpop.f32.mrf.mxu0
        %v4138 = vadd.f32 %v4049, %v4137
        %4139 = vdwg.mxu0
        %s4140 = scalar_lea.vmem [#allocation2], 32
        %v4141 = vld [vmem:[%s4140] sm:$0xff]
        %v4142 = vld [vmem:[%s4140 + $0x8] sm:$0xff]
        %v4143 = vld [vmem:[%s4140 + $0x10] sm:$0xff]
        %v4144 = vld [vmem:[%s4140 + $0x18] sm:$0xff]
        %v4145 = vld [vmem:[%s4140 + $0x20] sm:$0xff]
        %v4146 = vld [vmem:[%s4140 + $0x28] sm:$0xff]
        %v4147 = vld [vmem:[%s4140 + $0x30] sm:$0xff]
        %v4148 = vld [vmem:[%s4140 + $0x38] sm:$0xff]
        %v4149 = vld [vmem:[%s4140 + $0x40] sm:$0xff]
        %v4150 = vld [vmem:[%s4140 + $0x48] sm:$0xff]
        %v4151 = vld [vmem:[%s4140 + $0x50] sm:$0xff]
        %v4152 = vld [vmem:[%s4140 + $0x58] sm:$0xff]
        %v4153 = vld [vmem:[%s4140 + $0x60] sm:$0xff]
        %v4154 = vld [vmem:[%s4140 + $0x68] sm:$0xff]
        %v4155 = vld [vmem:[%s4140 + $0x70] sm:$0xff]
        %v4156 = vld [vmem:[%s4140 + $0x78] sm:$0xff]
        %v4157 = vld [vmem:[%s4140 + $0x80] sm:$0xff]
        %v4158 = vld [vmem:[%s4140 + $0x88] sm:$0xff]
        %v4159 = vld [vmem:[%s4140 + $0x90] sm:$0xff]
        %v4160 = vld [vmem:[%s4140 + $0x98] sm:$0xff]
        %v4161 = vld [vmem:[%s4140 + $0xa0] sm:$0xff]
        %v4162 = vld [vmem:[%s4140 + $0xa8] sm:$0xff]
        %v4163 = vld [vmem:[%s4140 + $0xb0] sm:$0xff]
        %v4164 = vld [vmem:[%s4140 + $0xb8] sm:$0xff]
        %v4165 = vld [vmem:[%s4140 + $0xc0] sm:$0xff]
        %v4166 = vld [vmem:[%s4140 + $0xc8] sm:$0xff]
        %v4167 = vld [vmem:[%s4140 + $0xd0] sm:$0xff]
        %v4168 = vld [vmem:[%s4140 + $0xd8] sm:$0xff]
        %v4169 = vld [vmem:[%s4140 + $0xe0] sm:$0xff]
        %v4170 = vld [vmem:[%s4140 + $0xe8] sm:$0xff]
        %v4171 = vld [vmem:[%s4140 + $0xf0] sm:$0xff]
        %v4172 = vld [vmem:[%s4140 + $0xf8] sm:$0xff]
        %s4173 = scalar_lea.vmem %s3, 192
        %v4174 = vld [vmem:[%s4173] sm:$0xf]
        %v4175 = vld [vmem:[%s4173 + $0x4] sm:$0xf]
        %v4176 = vld [vmem:[%s4173 + $0x8] sm:$0xf]
        %v4177 = vld [vmem:[%s4173 + $0xc] sm:$0xf]
        %v4178 = vld [vmem:[%s4173 + $0x10] sm:$0xf]
        %v4179 = vld [vmem:[%s4173 + $0x14] sm:$0xf]
        %v4180 = vld [vmem:[%s4173 + $0x18] sm:$0xf]
        %v4181 = vld [vmem:[%s4173 + $0x1c] sm:$0xf]
        %v4182 = vld [vmem:[%s4173 + $0x20] sm:$0xf]
        %v4183 = vld [vmem:[%s4173 + $0x24] sm:$0xf]
        %v4184 = vld [vmem:[%s4173 + $0x28] sm:$0xf]
        %v4185 = vld [vmem:[%s4173 + $0x2c] sm:$0xf]
        %v4186 = vld [vmem:[%s4173 + $0x30] sm:$0xf]
        %v4187 = vld [vmem:[%s4173 + $0x34] sm:$0xf]
        %v4188 = vld [vmem:[%s4173 + $0x38] sm:$0xf]
        %v4189 = vld [vmem:[%s4173 + $0x3c] sm:$0xf]
        %v4190 = vld [vmem:[%s4173 + $0x40] sm:$0xf]
        %v4191 = vld [vmem:[%s4173 + $0x44] sm:$0xf]
        %v4192 = vld [vmem:[%s4173 + $0x48] sm:$0xf]
        %v4193 = vld [vmem:[%s4173 + $0x4c] sm:$0xf]
        %v4194 = vld [vmem:[%s4173 + $0x50] sm:$0xf]
        %v4195 = vld [vmem:[%s4173 + $0x54] sm:$0xf]
        %v4196 = vld [vmem:[%s4173 + $0x58] sm:$0xf]
        %v4197 = vld [vmem:[%s4173 + $0x5c] sm:$0xf]
        %v4230 = vunpack.c.l.b16 %v4141
        %v4231 = vunpack.c.h.b16 %v4141
        %v4232 = vunpack.c.l.b16 %v4142
        %v4233 = vunpack.c.h.b16 %v4142
        %v4234 = vunpack.c.l.b16 %v4143
        %v4235 = vunpack.c.h.b16 %v4143
        %v4236 = vunpack.c.l.b16 %v4144
        %v4237 = vunpack.c.h.b16 %v4144
        %v4238 = vunpack.c.l.b16 %v4145
        %v4239 = vunpack.c.h.b16 %v4145
        %v4240 = vunpack.c.l.b16 %v4146
        %v4241 = vunpack.c.h.b16 %v4146
        %v4242 = vunpack.c.l.b16 %v4147
        %v4243 = vunpack.c.h.b16 %v4147
        %v4244 = vunpack.c.l.b16 %v4148
        %v4245 = vunpack.c.h.b16 %v4148
        %v4246 = vunpack.c.l.b16 %v4149
        %v4247 = vunpack.c.h.b16 %v4149
        %v4248 = vunpack.c.l.b16 %v4150
        %v4249 = vunpack.c.h.b16 %v4150
        %v4250 = vunpack.c.l.b16 %v4151
        %v4251 = vunpack.c.h.b16 %v4151
        %v4252 = vunpack.c.l.b16 %v4152
        %v4253 = vunpack.c.h.b16 %v4152
        %v4254 = vunpack.c.l.b16 %v4153
        %v4255 = vunpack.c.h.b16 %v4153
        %v4256 = vunpack.c.l.b16 %v4154
        %v4257 = vunpack.c.h.b16 %v4154
        %v4258 = vunpack.c.l.b16 %v4155
        %v4259 = vunpack.c.h.b16 %v4155
        %v4260 = vunpack.c.l.b16 %v4156
        %v4261 = vunpack.c.h.b16 %v4156
        %v4262 = vunpack.c.l.b16 %v4157
        %v4263 = vunpack.c.h.b16 %v4157
        %v4264 = vunpack.c.l.b16 %v4158
        %v4265 = vunpack.c.h.b16 %v4158
        %v4266 = vunpack.c.l.b16 %v4159
        %v4267 = vunpack.c.h.b16 %v4159
        %v4268 = vunpack.c.l.b16 %v4160
        %v4269 = vunpack.c.h.b16 %v4160
        %v4270 = vunpack.c.l.b16 %v4161
        %v4271 = vunpack.c.h.b16 %v4161
        %v4272 = vunpack.c.l.b16 %v4162
        %v4273 = vunpack.c.h.b16 %v4162
        %v4274 = vunpack.c.l.b16 %v4163
        %v4275 = vunpack.c.h.b16 %v4163
        %v4276 = vunpack.c.l.b16 %v4164
        %v4277 = vunpack.c.h.b16 %v4164
        %v4278 = vunpack.c.l.b16 %v4165
        %v4279 = vunpack.c.h.b16 %v4165
        %v4280 = vunpack.c.l.b16 %v4166
        %v4281 = vunpack.c.h.b16 %v4166
        %v4282 = vunpack.c.l.b16 %v4167
        %v4283 = vunpack.c.h.b16 %v4167
        %v4284 = vunpack.c.l.b16 %v4168
        %v4285 = vunpack.c.h.b16 %v4168
        %v4286 = vunpack.c.l.b16 %v4169
        %v4287 = vunpack.c.h.b16 %v4169
        %v4288 = vunpack.c.l.b16 %v4170
        %v4289 = vunpack.c.h.b16 %v4170
        %v4290 = vunpack.c.l.b16 %v4171
        %v4291 = vunpack.c.h.b16 %v4171
        %v4292 = vunpack.c.l.b16 %v4172
        %v4293 = vunpack.c.h.b16 %v4172
        %v4294 = vpack.c.b16 %v4232, %v4230
        %v4295 = vpack.c.b16 %v4233, %v4231
        %v4296 = vpack.c.b16 %v4236, %v4234
        %v4297 = vpack.c.b16 %v4237, %v4235
        %v4298 = vpack.c.b16 %v4240, %v4238
        %v4299 = vpack.c.b16 %v4241, %v4239
        %v4300 = vpack.c.b16 %v4244, %v4242
        %v4301 = vpack.c.b16 %v4245, %v4243
        %v4302 = vpack.c.b16 %v4248, %v4246
        %v4303 = vpack.c.b16 %v4249, %v4247
        %v4304 = vpack.c.b16 %v4252, %v4250
        %v4305 = vpack.c.b16 %v4253, %v4251
        %v4306 = vpack.c.b16 %v4256, %v4254
        %v4307 = vpack.c.b16 %v4257, %v4255
        %v4308 = vpack.c.b16 %v4260, %v4258
        %v4309 = vpack.c.b16 %v4261, %v4259
        %v4310 = vpack.c.b16 %v4264, %v4262
        %v4311 = vpack.c.b16 %v4265, %v4263
        %v4312 = vpack.c.b16 %v4268, %v4266
        %v4313 = vpack.c.b16 %v4269, %v4267
        %v4314 = vpack.c.b16 %v4272, %v4270
        %v4315 = vpack.c.b16 %v4273, %v4271
        %v4316 = vpack.c.b16 %v4276, %v4274
        %v4317 = vpack.c.b16 %v4277, %v4275
        %v4318 = vpack.c.b16 %v4280, %v4278
        %v4319 = vpack.c.b16 %v4281, %v4279
        %v4320 = vpack.c.b16 %v4284, %v4282
        %v4321 = vpack.c.b16 %v4285, %v4283
        %v4322 = vpack.c.b16 %v4288, %v4286
        %v4323 = vpack.c.b16 %v4289, %v4287
        %v4324 = vpack.c.b16 %v4292, %v4290
        %v4325 = vpack.c.b16 %v4293, %v4291
        %v4366 = vunpack.c.l.b16 %v4174
        %v4367 = vunpack.c.l.b16 %v4175
        %v4368 = vunpack.c.l.b16 %v4176
        %v4369 = vunpack.c.l.b16 %v4177
        %v4370 = vunpack.c.l.b16 %v4178
        %v4371 = vunpack.c.l.b16 %v4179
        %v4372 = vunpack.c.l.b16 %v4180
        %v4373 = vunpack.c.l.b16 %v4181
        %v4374 = vunpack.c.l.b16 %v4182
        %v4375 = vunpack.c.l.b16 %v4183
        %v4376 = vunpack.c.l.b16 %v4184
        %v4377 = vunpack.c.l.b16 %v4185
        %v4378 = vunpack.c.l.b16 %v4186
        %v4379 = vunpack.c.l.b16 %v4187
        %v4380 = vunpack.c.l.b16 %v4188
        %v4381 = vunpack.c.l.b16 %v4189
        %v4382 = vunpack.c.l.b16 %v4190
        %v4383 = vunpack.c.l.b16 %v4191
        %v4384 = vunpack.c.l.b16 %v4192
        %v4385 = vunpack.c.l.b16 %v4193
        %v4386 = vunpack.c.l.b16 %v4194
        %v4387 = vunpack.c.l.b16 %v4195
        %v4388 = vunpack.c.l.b16 %v4196
        %v4389 = vunpack.c.l.b16 %v4197
        %v4390 = vpack.c.b16 %v4367, %v4366
        %v4391 = vpack.c.b16 %v4369, %v4368
        %v4392 = vpack.c.b16 %v4371, %v4370
        %v4393 = vpack.c.b16 %v4373, %v4372
        %v4394 = vpack.c.b16 %v4375, %v4374
        %v4395 = vpack.c.b16 %v4377, %v4376
        %v4396 = vpack.c.b16 %v4379, %v4378
        %v4397 = vpack.c.b16 %v4381, %v4380
        %v4398 = vpack.c.b16 %v4383, %v4382
        %v4399 = vpack.c.b16 %v4385, %v4384
        %v4400 = vpack.c.b16 %v4387, %v4386
        %v4401 = vpack.c.b16 %v4389, %v4388
        %v4415 = vsel %vm3471, %v4295, 0
        %v4418 = vsel %vm3471, %v4297, 0
        %v4421 = vsel %vm3471, %v4299, 0
        %v4424 = vsel %vm3471, %v4301, 0
        %v4427 = vsel %vm3471, %v4303, 0
        %v4430 = vsel %vm3471, %v4305, 0
        %v4433 = vsel %vm3471, %v4307, 0
        %v4436 = vsel %vm3471, %v4309, 0
        %v4439 = vsel %vm3471, %v4311, 0
        %v4442 = vsel %vm3471, %v4313, 0
        %v4445 = vsel %vm3471, %v4315, 0
        %v4448 = vsel %vm3471, %v4317, 0
        %v4451 = vsel %vm3471, %v4319, 0
        %v4454 = vsel %vm3471, %v4321, 0
        %v4457 = vsel %vm3471, %v4323, 0
        %v4460 = vsel %vm3471, %v4325, 0
        %4462 = vmatpush.bf16.msra.mxu0 %v4397
        %4463 = vmatpush.bf16.msra.mxu0 %v4396
        %4464 = vmatpush.bf16.msra.mxu0 %v4395
        %4465 = vmatpush.bf16.msra.mxu0 %v4394
        %4466 = vmatpush.bf16.msra.mxu0 %v4393
        %4467 = vmatpush.bf16.msra.mxu0 %v4392
        %4468 = vmatpush.bf16.msra.mxu0 %v4391
        %4469 = vmatpush.bf16.msra.mxu0 %v4390
        %4470 = vmatmul.bf16.gmra.mxu0 %v4294
        %v4471 = vpop.f32.mrf.mxu0
        %v4472 = vadd.f32 0.0, %v4471
        %v4473 = vpop.f32.mrf.mxu0
        %v4474 = vadd.f32 0.0, %v4473
        %4475 = vmatmul.bf16.gmra.mxu0 %v4296
        %v4476 = vpop.f32.mrf.mxu0
        %v4477 = vadd.f32 0.0, %v4476
        %v4478 = vpop.f32.mrf.mxu0
        %v4479 = vadd.f32 0.0, %v4478
        %4480 = vmatmul.bf16.gmra.mxu0 %v4298
        %v4481 = vpop.f32.mrf.mxu0
        %v4482 = vadd.f32 0.0, %v4481
        %v4483 = vpop.f32.mrf.mxu0
        %v4484 = vadd.f32 0.0, %v4483
        %4485 = vmatmul.bf16.gmra.mxu0 %v4300
        %v4486 = vpop.f32.mrf.mxu0
        %v4487 = vadd.f32 0.0, %v4486
        %v4488 = vpop.f32.mrf.mxu0
        %v4489 = vadd.f32 0.0, %v4488
        %4490 = vmatmul.bf16.gmra.mxu0 %v4302
        %v4491 = vpop.f32.mrf.mxu0
        %v4492 = vadd.f32 0.0, %v4491
        %v4493 = vpop.f32.mrf.mxu0
        %v4494 = vadd.f32 0.0, %v4493
        %4495 = vmatmul.bf16.gmra.mxu0 %v4304
        %v4496 = vpop.f32.mrf.mxu0
        %v4497 = vadd.f32 0.0, %v4496
        %v4498 = vpop.f32.mrf.mxu0
        %v4499 = vadd.f32 0.0, %v4498
        %4500 = vmatmul.bf16.gmra.mxu0 %v4306
        %v4501 = vpop.f32.mrf.mxu0
        %v4502 = vadd.f32 0.0, %v4501
        %v4503 = vpop.f32.mrf.mxu0
        %v4504 = vadd.f32 0.0, %v4503
        %4505 = vmatmul.bf16.gmra.mxu0 %v4308
        %v4506 = vpop.f32.mrf.mxu0
        %v4507 = vadd.f32 0.0, %v4506
        %v4508 = vpop.f32.mrf.mxu0
        %v4509 = vadd.f32 0.0, %v4508
        %4510 = vmatmul.bf16.gmra.mxu0 %v4310
        %v4511 = vpop.f32.mrf.mxu0
        %v4512 = vadd.f32 0.0, %v4511
        %v4513 = vpop.f32.mrf.mxu0
        %v4514 = vadd.f32 0.0, %v4513
        %4515 = vmatmul.bf16.gmra.mxu0 %v4312
        %v4516 = vpop.f32.mrf.mxu0
        %v4517 = vadd.f32 0.0, %v4516
        %v4518 = vpop.f32.mrf.mxu0
        %v4519 = vadd.f32 0.0, %v4518
        %4520 = vmatmul.bf16.gmra.mxu0 %v4314
        %v4521 = vpop.f32.mrf.mxu0
        %v4522 = vadd.f32 0.0, %v4521
        %v4523 = vpop.f32.mrf.mxu0
        %v4524 = vadd.f32 0.0, %v4523
        %4525 = vmatmul.bf16.gmra.mxu0 %v4316
        %v4526 = vpop.f32.mrf.mxu0
        %v4527 = vadd.f32 0.0, %v4526
        %v4528 = vpop.f32.mrf.mxu0
        %v4529 = vadd.f32 0.0, %v4528
        %4530 = vmatmul.bf16.gmra.mxu0 %v4318
        %v4531 = vpop.f32.mrf.mxu0
        %v4532 = vadd.f32 0.0, %v4531
        %v4533 = vpop.f32.mrf.mxu0
        %v4534 = vadd.f32 0.0, %v4533
        %4535 = vmatmul.bf16.gmra.mxu0 %v4320
        %v4536 = vpop.f32.mrf.mxu0
        %v4537 = vadd.f32 0.0, %v4536
        %v4538 = vpop.f32.mrf.mxu0
        %v4539 = vadd.f32 0.0, %v4538
        %4540 = vmatmul.bf16.gmra.mxu0 %v4322
        %v4541 = vpop.f32.mrf.mxu0
        %v4542 = vadd.f32 0.0, %v4541
        %v4543 = vpop.f32.mrf.mxu0
        %v4544 = vadd.f32 0.0, %v4543
        %4545 = vmatmul.bf16.gmra.mxu0 %v4324
        %v4546 = vpop.f32.mrf.mxu0
        %v4547 = vadd.f32 0.0, %v4546
        %v4548 = vpop.f32.mrf.mxu0
        %v4549 = vadd.f32 0.0, %v4548
        %4550 = vdwg.mxu0
        %4551 = vmatpush.bf16.msra.mxu0 0
        %4552 = vmatpush.bf16.msra.mxu0 0
        %4553 = vmatpush.bf16.msra.mxu0 0
        %4554 = vmatpush.bf16.msra.mxu0 0
        %4555 = vmatpush.bf16.msra.mxu0 %v4401
        %4556 = vmatpush.bf16.msra.mxu0 %v4400
        %4557 = vmatpush.bf16.msra.mxu0 %v4399
        %4558 = vmatpush.bf16.msra.mxu0 %v4398
        %4559 = vmatmul.bf16.gmra.mxu0 %v4415
        %v4560 = vpop.f32.mrf.mxu0
        %v4561 = vadd.f32 %v4472, %v4560
        %v4562 = vpop.f32.mrf.mxu0
        %v4563 = vadd.f32 %v4474, %v4562
        %4564 = vmatmul.bf16.gmra.mxu0 %v4418
        %v4565 = vpop.f32.mrf.mxu0
        %v4566 = vadd.f32 %v4477, %v4565
        %v4567 = vpop.f32.mrf.mxu0
        %v4568 = vadd.f32 %v4479, %v4567
        %4569 = vmatmul.bf16.gmra.mxu0 %v4421
        %v4570 = vpop.f32.mrf.mxu0
        %v4571 = vadd.f32 %v4482, %v4570
        %v4572 = vpop.f32.mrf.mxu0
        %v4573 = vadd.f32 %v4484, %v4572
        %4574 = vmatmul.bf16.gmra.mxu0 %v4424
        %v4575 = vpop.f32.mrf.mxu0
        %v4576 = vadd.f32 %v4487, %v4575
        %v4577 = vpop.f32.mrf.mxu0
        %v4578 = vadd.f32 %v4489, %v4577
        %4579 = vmatmul.bf16.gmra.mxu0 %v4427
        %v4580 = vpop.f32.mrf.mxu0
        %v4581 = vadd.f32 %v4492, %v4580
        %v4582 = vpop.f32.mrf.mxu0
        %v4583 = vadd.f32 %v4494, %v4582
        %4584 = vmatmul.bf16.gmra.mxu0 %v4430
        %v4585 = vpop.f32.mrf.mxu0
        %v4586 = vadd.f32 %v4497, %v4585
        %v4587 = vpop.f32.mrf.mxu0
        %v4588 = vadd.f32 %v4499, %v4587
        %4589 = vmatmul.bf16.gmra.mxu0 %v4433
        %v4590 = vpop.f32.mrf.mxu0
        %v4591 = vadd.f32 %v4502, %v4590
        %v4592 = vpop.f32.mrf.mxu0
        %v4593 = vadd.f32 %v4504, %v4592
        %4594 = vmatmul.bf16.gmra.mxu0 %v4436
        %v4595 = vpop.f32.mrf.mxu0
        %v4596 = vadd.f32 %v4507, %v4595
        %v4597 = vpop.f32.mrf.mxu0
        %v4598 = vadd.f32 %v4509, %v4597
        %4599 = vmatmul.bf16.gmra.mxu0 %v4439
        %v4600 = vpop.f32.mrf.mxu0
        %v4601 = vadd.f32 %v4512, %v4600
        %v4602 = vpop.f32.mrf.mxu0
        %v4603 = vadd.f32 %v4514, %v4602
        %4604 = vmatmul.bf16.gmra.mxu0 %v4442
        %v4605 = vpop.f32.mrf.mxu0
        %v4606 = vadd.f32 %v4517, %v4605
        %v4607 = vpop.f32.mrf.mxu0
        %v4608 = vadd.f32 %v4519, %v4607
        %4609 = vmatmul.bf16.gmra.mxu0 %v4445
        %v4610 = vpop.f32.mrf.mxu0
        %v4611 = vadd.f32 %v4522, %v4610
        %v4612 = vpop.f32.mrf.mxu0
        %v4613 = vadd.f32 %v4524, %v4612
        %4614 = vmatmul.bf16.gmra.mxu0 %v4448
        %v4615 = vpop.f32.mrf.mxu0
        %v4616 = vadd.f32 %v4527, %v4615
        %v4617 = vpop.f32.mrf.mxu0
        %v4618 = vadd.f32 %v4529, %v4617
        %4619 = vmatmul.bf16.gmra.mxu0 %v4451
        %v4620 = vpop.f32.mrf.mxu0
        %v4621 = vadd.f32 %v4532, %v4620
        %v4622 = vpop.f32.mrf.mxu0
        %v4623 = vadd.f32 %v4534, %v4622
        %4624 = vmatmul.bf16.gmra.mxu0 %v4454
        %v4625 = vpop.f32.mrf.mxu0
        %v4626 = vadd.f32 %v4537, %v4625
        %v4627 = vpop.f32.mrf.mxu0
        %v4628 = vadd.f32 %v4539, %v4627
        %4629 = vmatmul.bf16.gmra.mxu0 %v4457
        %v4630 = vpop.f32.mrf.mxu0
        %v4631 = vadd.f32 %v4542, %v4630
        %v4632 = vpop.f32.mrf.mxu0
        %v4633 = vadd.f32 %v4544, %v4632
        %4634 = vmatmul.bf16.gmra.mxu0 %v4460
        %v4635 = vpop.f32.mrf.mxu0
        %v4636 = vadd.f32 %v4547, %v4635
        %v4637 = vpop.f32.mrf.mxu0
        %v4638 = vadd.f32 %v4549, %v4637
        %4639 = vdwg.mxu0
        %v4640 = vadd.f32 %v4061, %v4561
        %v4641 = vadd.f32 %v4063, %v4563
        %v4642 = vadd.f32 %v4066, %v4566
        %v4643 = vadd.f32 %v4068, %v4568
        %v4644 = vadd.f32 %v4071, %v4571
        %v4645 = vadd.f32 %v4073, %v4573
        %v4646 = vadd.f32 %v4076, %v4576
        %v4647 = vadd.f32 %v4078, %v4578
        %v4648 = vadd.f32 %v4081, %v4581
        %v4649 = vadd.f32 %v4083, %v4583
        %v4650 = vadd.f32 %v4086, %v4586
        %v4651 = vadd.f32 %v4088, %v4588
        %v4652 = vadd.f32 %v4091, %v4591
        %v4653 = vadd.f32 %v4093, %v4593
        %v4654 = vadd.f32 %v4096, %v4596
        %v4655 = vadd.f32 %v4098, %v4598
        %v4656 = vadd.f32 %v4101, %v4601
        %v4657 = vadd.f32 %v4103, %v4603
        %v4658 = vadd.f32 %v4106, %v4606
        %v4659 = vadd.f32 %v4108, %v4608
        %v4660 = vadd.f32 %v4111, %v4611
        %v4661 = vadd.f32 %v4113, %v4613
        %v4662 = vadd.f32 %v4116, %v4616
        %v4663 = vadd.f32 %v4118, %v4618
        %v4664 = vadd.f32 %v4121, %v4621
        %v4665 = vadd.f32 %v4123, %v4623
        %v4666 = vadd.f32 %v4126, %v4626
        %v4667 = vadd.f32 %v4128, %v4628
        %v4668 = vadd.f32 %v4131, %v4631
        %v4669 = vadd.f32 %v4133, %v4633
        %v4670 = vadd.f32 %v4136, %v4636
        %v4671 = vadd.f32 %v4138, %v4638
        %v4672 = vld [vmem:[%s4] sm:$0x1]
        %v4674 = vperm.slane %v4672, 0
        %v4676 = vadd.f32 %v4640, %v4674
        %v4677 = vadd.f32 %v4641, %v4674
        %v4678 = vadd.f32 %v4642, %v4674
        %v4679 = vadd.f32 %v4643, %v4674
        %v4680 = vadd.f32 %v4644, %v4674
        %v4681 = vadd.f32 %v4645, %v4674
        %v4682 = vadd.f32 %v4646, %v4674
        %v4683 = vadd.f32 %v4647, %v4674
        %v4684 = vadd.f32 %v4648, %v4674
        %v4685 = vadd.f32 %v4649, %v4674
        %v4686 = vadd.f32 %v4650, %v4674
        %v4687 = vadd.f32 %v4651, %v4674
        %v4688 = vadd.f32 %v4652, %v4674
        %v4689 = vadd.f32 %v4653, %v4674
        %v4690 = vadd.f32 %v4654, %v4674
        %v4691 = vadd.f32 %v4655, %v4674
        %v4692 = vadd.f32 %v4656, %v4674
        %v4693 = vadd.f32 %v4657, %v4674
        %v4694 = vadd.f32 %v4658, %v4674
        %v4695 = vadd.f32 %v4659, %v4674
        %v4696 = vadd.f32 %v4660, %v4674
        %v4697 = vadd.f32 %v4661, %v4674
        %v4698 = vadd.f32 %v4662, %v4674
        %v4699 = vadd.f32 %v4663, %v4674
        %v4700 = vadd.f32 %v4664, %v4674
        %v4701 = vadd.f32 %v4665, %v4674
        %v4702 = vadd.f32 %v4666, %v4674
        %v4703 = vadd.f32 %v4667, %v4674
        %v4704 = vadd.f32 %v4668, %v4674
        %v4705 = vadd.f32 %v4669, %v4674
        %v4706 = vadd.f32 %v4670, %v4674
        %v4707 = vadd.f32 %v4671, %v4674
        %v4708 = vmax.f32 %v4676, 0.0
        %v4709 = vmax.f32 %v4677, 0.0
        %v4710 = vmax.f32 %v4678, 0.0
        %v4711 = vmax.f32 %v4679, 0.0
        %v4712 = vmax.f32 %v4680, 0.0
        %v4713 = vmax.f32 %v4681, 0.0
        %v4714 = vmax.f32 %v4682, 0.0
        %v4715 = vmax.f32 %v4683, 0.0
        %v4716 = vmax.f32 %v4684, 0.0
        %v4717 = vmax.f32 %v4685, 0.0
        %v4718 = vmax.f32 %v4686, 0.0
        %v4719 = vmax.f32 %v4687, 0.0
        %v4720 = vmax.f32 %v4688, 0.0
        %v4721 = vmax.f32 %v4689, 0.0
        %v4722 = vmax.f32 %v4690, 0.0
        %v4723 = vmax.f32 %v4691, 0.0
        %v4724 = vmax.f32 %v4692, 0.0
        %v4725 = vmax.f32 %v4693, 0.0
        %v4726 = vmax.f32 %v4694, 0.0
        %v4727 = vmax.f32 %v4695, 0.0
        %v4728 = vmax.f32 %v4696, 0.0
        %v4729 = vmax.f32 %v4697, 0.0
        %v4730 = vmax.f32 %v4698, 0.0
        %v4731 = vmax.f32 %v4699, 0.0
        %v4732 = vmax.f32 %v4700, 0.0
        %v4733 = vmax.f32 %v4701, 0.0
        %v4734 = vmax.f32 %v4702, 0.0
        %v4735 = vmax.f32 %v4703, 0.0
        %v4736 = vmax.f32 %v4704, 0.0
        %v4737 = vmax.f32 %v4705, 0.0
        %v4738 = vmax.f32 %v4706, 0.0
        %v4739 = vmax.f32 %v4707, 0.0
        %v4772 = vrot.slane %v4708, 2
        %v4773 = vrot.slane %v4708, 4
        %v4774 = vrot.slane %v4708, 6
        %v4775 = vrot.slane %v4709, 2
        %v4776 = vrot.slane %v4709, 4
        %v4777 = vrot.slane %v4709, 6
        %v4778 = vrot.slane %v4710, 2
        %v4779 = vrot.slane %v4710, 4
        %v4780 = vrot.slane %v4710, 6
        %v4781 = vrot.slane %v4711, 2
        %v4782 = vrot.slane %v4711, 4
        %v4783 = vrot.slane %v4711, 6
        %v4784 = vrot.slane %v4712, 2
        %v4785 = vrot.slane %v4712, 4
        %v4786 = vrot.slane %v4712, 6
        %v4787 = vrot.slane %v4713, 2
        %v4788 = vrot.slane %v4713, 4
        %v4789 = vrot.slane %v4713, 6
        %v4790 = vrot.slane %v4714, 2
        %v4791 = vrot.slane %v4714, 4
        %v4792 = vrot.slane %v4714, 6
        %v4793 = vrot.slane %v4715, 2
        %v4794 = vrot.slane %v4715, 4
        %v4795 = vrot.slane %v4715, 6
        %v4796 = vrot.slane %v4716, 2
        %v4797 = vrot.slane %v4716, 4
        %v4798 = vrot.slane %v4716, 6
        %v4799 = vrot.slane %v4717, 2
        %v4800 = vrot.slane %v4717, 4
        %v4801 = vrot.slane %v4717, 6
        %v4802 = vrot.slane %v4718, 2
        %v4803 = vrot.slane %v4718, 4
        %v4804 = vrot.slane %v4718, 6
        %v4805 = vrot.slane %v4719, 2
        %v4806 = vrot.slane %v4719, 4
        %v4807 = vrot.slane %v4719, 6
        %v4808 = vrot.slane %v4720, 2
        %v4809 = vrot.slane %v4720, 4
        %v4810 = vrot.slane %v4720, 6
        %v4811 = vrot.slane %v4721, 2
        %v4812 = vrot.slane %v4721, 4
        %v4813 = vrot.slane %v4721, 6
        %v4814 = vrot.slane %v4722, 2
        %v4815 = vrot.slane %v4722, 4
        %v4816 = vrot.slane %v4722, 6
        %v4817 = vrot.slane %v4723, 2
        %v4818 = vrot.slane %v4723, 4
        %v4819 = vrot.slane %v4723, 6
        %v4820 = vrot.slane %v4724, 2
        %v4821 = vrot.slane %v4724, 4
        %v4822 = vrot.slane %v4724, 6
        %v4823 = vrot.slane %v4725, 2
        %v4824 = vrot.slane %v4725, 4
        %v4825 = vrot.slane %v4725, 6
        %v4826 = vrot.slane %v4726, 2
        %v4827 = vrot.slane %v4726, 4
        %v4828 = vrot.slane %v4726, 6
        %v4829 = vrot.slane %v4727, 2
        %v4830 = vrot.slane %v4727, 4
        %v4831 = vrot.slane %v4727, 6
        %v4832 = vrot.slane %v4728, 2
        %v4833 = vrot.slane %v4728, 4
        %v4834 = vrot.slane %v4728, 6
        %v4835 = vrot.slane %v4729, 2
        %v4836 = vrot.slane %v4729, 4
        %v4837 = vrot.slane %v4729, 6
        %v4838 = vrot.slane %v4730, 2
        %v4839 = vrot.slane %v4730, 4
        %v4840 = vrot.slane %v4730, 6
        %v4841 = vrot.slane %v4731, 2
        %v4842 = vrot.slane %v4731, 4
        %v4843 = vrot.slane %v4731, 6
        %v4844 = vrot.slane %v4732, 2
        %v4845 = vrot.slane %v4732, 4
        %v4846 = vrot.slane %v4732, 6
        %v4847 = vrot.slane %v4733, 2
        %v4848 = vrot.slane %v4733, 4
        %v4849 = vrot.slane %v4733, 6
        %v4850 = vrot.slane %v4734, 2
        %v4851 = vrot.slane %v4734, 4
        %v4852 = vrot.slane %v4734, 6
        %v4853 = vrot.slane %v4735, 2
        %v4854 = vrot.slane %v4735, 4
        %v4855 = vrot.slane %v4735, 6
        %v4856 = vrot.slane %v4736, 2
        %v4857 = vrot.slane %v4736, 4
        %v4858 = vrot.slane %v4736, 6
        %v4859 = vrot.slane %v4737, 2
        %v4860 = vrot.slane %v4737, 4
        %v4861 = vrot.slane %v4737, 6
        %v4862 = vrot.slane %v4738, 2
        %v4863 = vrot.slane %v4738, 4
        %v4864 = vrot.slane %v4738, 6
        %v4865 = vrot.slane %v4739, 2
        %v4866 = vrot.slane %v4739, 4
        %v4867 = vrot.slane %v4739, 6
        %v4964 = vrot.slane %v4708, 7
        %v4965 = vrot.slane %v4964, 2
        %v4966 = vrot.slane %v4772, 7
        %v4967 = vrot.slane %v4966, 2
        %v4968 = vrot.slane %v4773, 7
        %v4969 = vrot.slane %v4968, 2
        %v4970 = vrot.slane %v4774, 7
        %v4971 = vrot.slane %v4970, 2
        %v4972 = vrot.slane %v4709, 7
        %v4973 = vrot.slane %v4972, 2
        %v4974 = vrot.slane %v4775, 7
        %v4975 = vrot.slane %v4974, 2
        %v4976 = vrot.slane %v4776, 7
        %v4977 = vrot.slane %v4976, 2
        %v4978 = vrot.slane %v4777, 7
        %v4979 = vrot.slane %v4978, 2
        %v4980 = vrot.slane %v4712, 7
        %v4981 = vrot.slane %v4980, 2
        %v4982 = vrot.slane %v4784, 7
        %v4983 = vrot.slane %v4982, 2
        %v4984 = vrot.slane %v4785, 7
        %v4985 = vrot.slane %v4984, 2
        %v4986 = vrot.slane %v4786, 7
        %v4987 = vrot.slane %v4986, 2
        %v4988 = vrot.slane %v4713, 7
        %v4989 = vrot.slane %v4988, 2
        %v4990 = vrot.slane %v4787, 7
        %v4991 = vrot.slane %v4990, 2
        %v4992 = vrot.slane %v4788, 7
        %v4993 = vrot.slane %v4992, 2
        %v4994 = vrot.slane %v4789, 7
        %v4995 = vrot.slane %v4994, 2
        %v4996 = vrot.slane %v4716, 7
        %v4997 = vrot.slane %v4996, 2
        %v4998 = vrot.slane %v4796, 7
        %v4999 = vrot.slane %v4998, 2
        %v5000 = vrot.slane %v4797, 7
        %v5001 = vrot.slane %v5000, 2
        %v5002 = vrot.slane %v4798, 7
        %v5003 = vrot.slane %v5002, 2
        %v5004 = vrot.slane %v4717, 7
        %v5005 = vrot.slane %v5004, 2
        %v5006 = vrot.slane %v4799, 7
        %v5007 = vrot.slane %v5006, 2
        %v5008 = vrot.slane %v4800, 7
        %v5009 = vrot.slane %v5008, 2
        %v5010 = vrot.slane %v4801, 7
        %v5011 = vrot.slane %v5010, 2
        %v5012 = vrot.slane %v4720, 7
        %v5013 = vrot.slane %v5012, 2
        %v5014 = vrot.slane %v4808, 7
        %v5015 = vrot.slane %v5014, 2
        %v5016 = vrot.slane %v4809, 7
        %v5017 = vrot.slane %v5016, 2
        %v5018 = vrot.slane %v4810, 7
        %v5019 = vrot.slane %v5018, 2
        %v5020 = vrot.slane %v4721, 7
        %v5021 = vrot.slane %v5020, 2
        %v5022 = vrot.slane %v4811, 7
        %v5023 = vrot.slane %v5022, 2
        %v5024 = vrot.slane %v4812, 7
        %v5025 = vrot.slane %v5024, 2
        %v5026 = vrot.slane %v4813, 7
        %v5027 = vrot.slane %v5026, 2
        %v5028 = vrot.slane %v4724, 7
        %v5029 = vrot.slane %v5028, 2
        %v5030 = vrot.slane %v4820, 7
        %v5031 = vrot.slane %v5030, 2
        %v5032 = vrot.slane %v4821, 7
        %v5033 = vrot.slane %v5032, 2
        %v5034 = vrot.slane %v4822, 7
        %v5035 = vrot.slane %v5034, 2
        %v5036 = vrot.slane %v4725, 7
        %v5037 = vrot.slane %v5036, 2
        %v5038 = vrot.slane %v4823, 7
        %v5039 = vrot.slane %v5038, 2
        %v5040 = vrot.slane %v4824, 7
        %v5041 = vrot.slane %v5040, 2
        %v5042 = vrot.slane %v4825, 7
        %v5043 = vrot.slane %v5042, 2
        %v5044 = vrot.slane %v4728, 7
        %v5045 = vrot.slane %v5044, 2
        %v5046 = vrot.slane %v4832, 7
        %v5047 = vrot.slane %v5046, 2
        %v5048 = vrot.slane %v4833, 7
        %v5049 = vrot.slane %v5048, 2
        %v5050 = vrot.slane %v4834, 7
        %v5051 = vrot.slane %v5050, 2
        %v5052 = vrot.slane %v4729, 7
        %v5053 = vrot.slane %v5052, 2
        %v5054 = vrot.slane %v4835, 7
        %v5055 = vrot.slane %v5054, 2
        %v5056 = vrot.slane %v4836, 7
        %v5057 = vrot.slane %v5056, 2
        %v5058 = vrot.slane %v4837, 7
        %v5059 = vrot.slane %v5058, 2
        %v5060 = vrot.slane %v4732, 7
        %v5061 = vrot.slane %v5060, 2
        %v5062 = vrot.slane %v4844, 7
        %v5063 = vrot.slane %v5062, 2
        %v5064 = vrot.slane %v4845, 7
        %v5065 = vrot.slane %v5064, 2
        %v5066 = vrot.slane %v4846, 7
        %v5067 = vrot.slane %v5066, 2
        %v5068 = vrot.slane %v4733, 7
        %v5069 = vrot.slane %v5068, 2
        %v5070 = vrot.slane %v4847, 7
        %v5071 = vrot.slane %v5070, 2
        %v5072 = vrot.slane %v4848, 7
        %v5073 = vrot.slane %v5072, 2
        %v5074 = vrot.slane %v4849, 7
        %v5075 = vrot.slane %v5074, 2
        %v5076 = vrot.slane %v4736, 7
        %v5077 = vrot.slane %v5076, 2
        %v5078 = vrot.slane %v4856, 7
        %v5079 = vrot.slane %v5078, 2
        %v5080 = vrot.slane %v4857, 7
        %v5081 = vrot.slane %v5080, 2
        %v5082 = vrot.slane %v4858, 7
        %v5083 = vrot.slane %v5082, 2
        %v5084 = vrot.slane %v4737, 7
        %v5085 = vrot.slane %v5084, 2
        %v5086 = vrot.slane %v4859, 7
        %v5087 = vrot.slane %v5086, 2
        %v5088 = vrot.slane %v4860, 7
        %v5089 = vrot.slane %v5088, 2
        %v5090 = vrot.slane %v4861, 7
        %v5091 = vrot.slane %v5090, 2
        %v5156 = vmax.f32 %v4708, %v4965
        %v5157 = vmax.f32 %v4772, %v4967
        %v5158 = vmax.f32 %v4773, %v4969
        %v5159 = vmax.f32 %v4774, %v4971
        %v5160 = vmax.f32 %v4709, %v4973
        %v5161 = vmax.f32 %v4775, %v4975
        %v5162 = vmax.f32 %v4776, %v4977
        %v5163 = vmax.f32 %v4777, %v4979
        %v5164 = vmax.f32 %v4712, %v4981
        %v5165 = vmax.f32 %v4784, %v4983
        %v5166 = vmax.f32 %v4785, %v4985
        %v5167 = vmax.f32 %v4786, %v4987
        %v5168 = vmax.f32 %v4713, %v4989
        %v5169 = vmax.f32 %v4787, %v4991
        %v5170 = vmax.f32 %v4788, %v4993
        %v5171 = vmax.f32 %v4789, %v4995
        %v5172 = vmax.f32 %v4716, %v4997
        %v5173 = vmax.f32 %v4796, %v4999
        %v5174 = vmax.f32 %v4797, %v5001
        %v5175 = vmax.f32 %v4798, %v5003
        %v5176 = vmax.f32 %v4717, %v5005
        %v5177 = vmax.f32 %v4799, %v5007
        %v5178 = vmax.f32 %v4800, %v5009
        %v5179 = vmax.f32 %v4801, %v5011
        %v5180 = vmax.f32 %v4720, %v5013
        %v5181 = vmax.f32 %v4808, %v5015
        %v5182 = vmax.f32 %v4809, %v5017
        %v5183 = vmax.f32 %v4810, %v5019
        %v5184 = vmax.f32 %v4721, %v5021
        %v5185 = vmax.f32 %v4811, %v5023
        %v5186 = vmax.f32 %v4812, %v5025
        %v5187 = vmax.f32 %v4813, %v5027
        %v5188 = vmax.f32 %v4724, %v5029
        %v5189 = vmax.f32 %v4820, %v5031
        %v5190 = vmax.f32 %v4821, %v5033
        %v5191 = vmax.f32 %v4822, %v5035
        %v5192 = vmax.f32 %v4725, %v5037
        %v5193 = vmax.f32 %v4823, %v5039
        %v5194 = vmax.f32 %v4824, %v5041
        %v5195 = vmax.f32 %v4825, %v5043
        %v5196 = vmax.f32 %v4728, %v5045
        %v5197 = vmax.f32 %v4832, %v5047
        %v5198 = vmax.f32 %v4833, %v5049
        %v5199 = vmax.f32 %v4834, %v5051
        %v5200 = vmax.f32 %v4729, %v5053
        %v5201 = vmax.f32 %v4835, %v5055
        %v5202 = vmax.f32 %v4836, %v5057
        %v5203 = vmax.f32 %v4837, %v5059
        %v5204 = vmax.f32 %v4732, %v5061
        %v5205 = vmax.f32 %v4844, %v5063
        %v5206 = vmax.f32 %v4845, %v5065
        %v5207 = vmax.f32 %v4846, %v5067
        %v5208 = vmax.f32 %v4733, %v5069
        %v5209 = vmax.f32 %v4847, %v5071
        %v5210 = vmax.f32 %v4848, %v5073
        %v5211 = vmax.f32 %v4849, %v5075
        %v5212 = vmax.f32 %v4736, %v5077
        %v5213 = vmax.f32 %v4856, %v5079
        %v5214 = vmax.f32 %v4857, %v5081
        %v5215 = vmax.f32 %v4858, %v5083
        %v5216 = vmax.f32 %v4737, %v5085
        %v5217 = vmax.f32 %v4859, %v5087
        %v5218 = vmax.f32 %v4860, %v5089
        %v5219 = vmax.f32 %v4861, %v5091
        %v5220 = vrot.slane %v4710, 7
        %v5221 = vrot.slane %v5220, 2
        %v5222 = vrot.slane %v4778, 7
        %v5223 = vrot.slane %v5222, 2
        %v5224 = vrot.slane %v4779, 7
        %v5225 = vrot.slane %v5224, 2
        %v5226 = vrot.slane %v4780, 7
        %v5227 = vrot.slane %v5226, 2
        %v5228 = vrot.slane %v4711, 7
        %v5229 = vrot.slane %v5228, 2
        %v5230 = vrot.slane %v4781, 7
        %v5231 = vrot.slane %v5230, 2
        %v5232 = vrot.slane %v4782, 7
        %v5233 = vrot.slane %v5232, 2
        %v5234 = vrot.slane %v4783, 7
        %v5235 = vrot.slane %v5234, 2
        %v5236 = vrot.slane %v4714, 7
        %v5237 = vrot.slane %v5236, 2
        %v5238 = vrot.slane %v4790, 7
        %v5239 = vrot.slane %v5238, 2
        %v5240 = vrot.slane %v4791, 7
        %v5241 = vrot.slane %v5240, 2
        %v5242 = vrot.slane %v4792, 7
        %v5243 = vrot.slane %v5242, 2
        %v5244 = vrot.slane %v4715, 7
        %v5245 = vrot.slane %v5244, 2
        %v5246 = vrot.slane %v4793, 7
        %v5247 = vrot.slane %v5246, 2
        %v5248 = vrot.slane %v4794, 7
        %v5249 = vrot.slane %v5248, 2
        %v5250 = vrot.slane %v4795, 7
        %v5251 = vrot.slane %v5250, 2
        %v5252 = vrot.slane %v4718, 7
        %v5253 = vrot.slane %v5252, 2
        %v5254 = vrot.slane %v4802, 7
        %v5255 = vrot.slane %v5254, 2
        %v5256 = vrot.slane %v4803, 7
        %v5257 = vrot.slane %v5256, 2
        %v5258 = vrot.slane %v4804, 7
        %v5259 = vrot.slane %v5258, 2
        %v5260 = vrot.slane %v4719, 7
        %v5261 = vrot.slane %v5260, 2
        %v5262 = vrot.slane %v4805, 7
        %v5263 = vrot.slane %v5262, 2
        %v5264 = vrot.slane %v4806, 7
        %v5265 = vrot.slane %v5264, 2
        %v5266 = vrot.slane %v4807, 7
        %v5267 = vrot.slane %v5266, 2
        %v5268 = vrot.slane %v4722, 7
        %v5269 = vrot.slane %v5268, 2
        %v5270 = vrot.slane %v4814, 7
        %v5271 = vrot.slane %v5270, 2
        %v5272 = vrot.slane %v4815, 7
        %v5273 = vrot.slane %v5272, 2
        %v5274 = vrot.slane %v4816, 7
        %v5275 = vrot.slane %v5274, 2
        %v5276 = vrot.slane %v4723, 7
        %v5277 = vrot.slane %v5276, 2
        %v5278 = vrot.slane %v4817, 7
        %v5279 = vrot.slane %v5278, 2
        %v5280 = vrot.slane %v4818, 7
        %v5281 = vrot.slane %v5280, 2
        %v5282 = vrot.slane %v4819, 7
        %v5283 = vrot.slane %v5282, 2
        %v5284 = vrot.slane %v4726, 7
        %v5285 = vrot.slane %v5284, 2
        %v5286 = vrot.slane %v4826, 7
        %v5287 = vrot.slane %v5286, 2
        %v5288 = vrot.slane %v4827, 7
        %v5289 = vrot.slane %v5288, 2
        %v5290 = vrot.slane %v4828, 7
        %v5291 = vrot.slane %v5290, 2
        %v5292 = vrot.slane %v4727, 7
        %v5293 = vrot.slane %v5292, 2
        %v5294 = vrot.slane %v4829, 7
        %v5295 = vrot.slane %v5294, 2
        %v5296 = vrot.slane %v4830, 7
        %v5297 = vrot.slane %v5296, 2
        %v5298 = vrot.slane %v4831, 7
        %v5299 = vrot.slane %v5298, 2
        %v5300 = vrot.slane %v4730, 7
        %v5301 = vrot.slane %v5300, 2
        %v5302 = vrot.slane %v4838, 7
        %v5303 = vrot.slane %v5302, 2
        %v5304 = vrot.slane %v4839, 7
        %v5305 = vrot.slane %v5304, 2
        %v5306 = vrot.slane %v4840, 7
        %v5307 = vrot.slane %v5306, 2
        %v5308 = vrot.slane %v4731, 7
        %v5309 = vrot.slane %v5308, 2
        %v5310 = vrot.slane %v4841, 7
        %v5311 = vrot.slane %v5310, 2
        %v5312 = vrot.slane %v4842, 7
        %v5313 = vrot.slane %v5312, 2
        %v5314 = vrot.slane %v4843, 7
        %v5315 = vrot.slane %v5314, 2
        %v5316 = vrot.slane %v4734, 7
        %v5317 = vrot.slane %v5316, 2
        %v5318 = vrot.slane %v4850, 7
        %v5319 = vrot.slane %v5318, 2
        %v5320 = vrot.slane %v4851, 7
        %v5321 = vrot.slane %v5320, 2
        %v5322 = vrot.slane %v4852, 7
        %v5323 = vrot.slane %v5322, 2
        %v5324 = vrot.slane %v4735, 7
        %v5325 = vrot.slane %v5324, 2
        %v5326 = vrot.slane %v4853, 7
        %v5327 = vrot.slane %v5326, 2
        %v5328 = vrot.slane %v4854, 7
        %v5329 = vrot.slane %v5328, 2
        %v5330 = vrot.slane %v4855, 7
        %v5331 = vrot.slane %v5330, 2
        %v5332 = vrot.slane %v4738, 7
        %v5333 = vrot.slane %v5332, 2
        %v5334 = vrot.slane %v4862, 7
        %v5335 = vrot.slane %v5334, 2
        %v5336 = vrot.slane %v4863, 7
        %v5337 = vrot.slane %v5336, 2
        %v5338 = vrot.slane %v4864, 7
        %v5339 = vrot.slane %v5338, 2
        %v5340 = vrot.slane %v4739, 7
        %v5341 = vrot.slane %v5340, 2
        %v5342 = vrot.slane %v4865, 7
        %v5343 = vrot.slane %v5342, 2
        %v5344 = vrot.slane %v4866, 7
        %v5345 = vrot.slane %v5344, 2
        %v5346 = vrot.slane %v4867, 7
        %v5347 = vrot.slane %v5346, 2
        %v5412 = vmax.f32 %v4710, %v5221
        %v5413 = vmax.f32 %v4778, %v5223
        %v5414 = vmax.f32 %v4779, %v5225
        %v5415 = vmax.f32 %v4780, %v5227
        %v5416 = vmax.f32 %v4711, %v5229
        %v5417 = vmax.f32 %v4781, %v5231
        %v5418 = vmax.f32 %v4782, %v5233
        %v5419 = vmax.f32 %v4783, %v5235
        %v5420 = vmax.f32 %v4714, %v5237
        %v5421 = vmax.f32 %v4790, %v5239
        %v5422 = vmax.f32 %v4791, %v5241
        %v5423 = vmax.f32 %v4792, %v5243
        %v5424 = vmax.f32 %v4715, %v5245
        %v5425 = vmax.f32 %v4793, %v5247
        %v5426 = vmax.f32 %v4794, %v5249
        %v5427 = vmax.f32 %v4795, %v5251
        %v5428 = vmax.f32 %v4718, %v5253
        %v5429 = vmax.f32 %v4802, %v5255
        %v5430 = vmax.f32 %v4803, %v5257
        %v5431 = vmax.f32 %v4804, %v5259
        %v5432 = vmax.f32 %v4719, %v5261
        %v5433 = vmax.f32 %v4805, %v5263
        %v5434 = vmax.f32 %v4806, %v5265
        %v5435 = vmax.f32 %v4807, %v5267
        %v5436 = vmax.f32 %v4722, %v5269
        %v5437 = vmax.f32 %v4814, %v5271
        %v5438 = vmax.f32 %v4815, %v5273
        %v5439 = vmax.f32 %v4816, %v5275
        %v5440 = vmax.f32 %v4723, %v5277
        %v5441 = vmax.f32 %v4817, %v5279
        %v5442 = vmax.f32 %v4818, %v5281
        %v5443 = vmax.f32 %v4819, %v5283
        %v5444 = vmax.f32 %v4726, %v5285
        %v5445 = vmax.f32 %v4826, %v5287
        %v5446 = vmax.f32 %v4827, %v5289
        %v5447 = vmax.f32 %v4828, %v5291
        %v5448 = vmax.f32 %v4727, %v5293
        %v5449 = vmax.f32 %v4829, %v5295
        %v5450 = vmax.f32 %v4830, %v5297
        %v5451 = vmax.f32 %v4831, %v5299
        %v5452 = vmax.f32 %v4730, %v5301
        %v5453 = vmax.f32 %v4838, %v5303
        %v5454 = vmax.f32 %v4839, %v5305
        %v5455 = vmax.f32 %v4840, %v5307
        %v5456 = vmax.f32 %v4731, %v5309
        %v5457 = vmax.f32 %v4841, %v5311
        %v5458 = vmax.f32 %v4842, %v5313
        %v5459 = vmax.f32 %v4843, %v5315
        %v5460 = vmax.f32 %v4734, %v5317
        %v5461 = vmax.f32 %v4850, %v5319
        %v5462 = vmax.f32 %v4851, %v5321
        %v5463 = vmax.f32 %v4852, %v5323
        %v5464 = vmax.f32 %v4735, %v5325
        %v5465 = vmax.f32 %v4853, %v5327
        %v5466 = vmax.f32 %v4854, %v5329
        %v5467 = vmax.f32 %v4855, %v5331
        %v5468 = vmax.f32 %v4738, %v5333
        %v5469 = vmax.f32 %v4862, %v5335
        %v5470 = vmax.f32 %v4863, %v5337
        %v5471 = vmax.f32 %v4864, %v5339
        %v5472 = vmax.f32 %v4739, %v5341
        %v5473 = vmax.f32 %v4865, %v5343
        %v5474 = vmax.f32 %v4866, %v5345
        %v5475 = vmax.f32 %v4867, %v5347
        %v5476 = vmax.f32 %v5156, %v5412
        %v5477 = vmax.f32 %v5157, %v5413
        %v5478 = vmax.f32 %v5158, %v5414
        %v5479 = vmax.f32 %v5159, %v5415
        %v5480 = vmax.f32 %v5160, %v5416
        %v5481 = vmax.f32 %v5161, %v5417
        %v5482 = vmax.f32 %v5162, %v5418
        %v5483 = vmax.f32 %v5163, %v5419
        %v5484 = vmax.f32 %v5164, %v5420
        %v5485 = vmax.f32 %v5165, %v5421
        %v5486 = vmax.f32 %v5166, %v5422
        %v5487 = vmax.f32 %v5167, %v5423
        %v5488 = vmax.f32 %v5168, %v5424
        %v5489 = vmax.f32 %v5169, %v5425
        %v5490 = vmax.f32 %v5170, %v5426
        %v5491 = vmax.f32 %v5171, %v5427
        %v5492 = vmax.f32 %v5172, %v5428
        %v5493 = vmax.f32 %v5173, %v5429
        %v5494 = vmax.f32 %v5174, %v5430
        %v5495 = vmax.f32 %v5175, %v5431
        %v5496 = vmax.f32 %v5176, %v5432
        %v5497 = vmax.f32 %v5177, %v5433
        %v5498 = vmax.f32 %v5178, %v5434
        %v5499 = vmax.f32 %v5179, %v5435
        %v5500 = vmax.f32 %v5180, %v5436
        %v5501 = vmax.f32 %v5181, %v5437
        %v5502 = vmax.f32 %v5182, %v5438
        %v5503 = vmax.f32 %v5183, %v5439
        %v5504 = vmax.f32 %v5184, %v5440
        %v5505 = vmax.f32 %v5185, %v5441
        %v5506 = vmax.f32 %v5186, %v5442
        %v5507 = vmax.f32 %v5187, %v5443
        %v5508 = vmax.f32 %v5188, %v5444
        %v5509 = vmax.f32 %v5189, %v5445
        %v5510 = vmax.f32 %v5190, %v5446
        %v5511 = vmax.f32 %v5191, %v5447
        %v5512 = vmax.f32 %v5192, %v5448
        %v5513 = vmax.f32 %v5193, %v5449
        %v5514 = vmax.f32 %v5194, %v5450
        %v5515 = vmax.f32 %v5195, %v5451
        %v5516 = vmax.f32 %v5196, %v5452
        %v5517 = vmax.f32 %v5197, %v5453
        %v5518 = vmax.f32 %v5198, %v5454
        %v5519 = vmax.f32 %v5199, %v5455
        %v5520 = vmax.f32 %v5200, %v5456
        %v5521 = vmax.f32 %v5201, %v5457
        %v5522 = vmax.f32 %v5202, %v5458
        %v5523 = vmax.f32 %v5203, %v5459
        %v5524 = vmax.f32 %v5204, %v5460
        %v5525 = vmax.f32 %v5205, %v5461
        %v5526 = vmax.f32 %v5206, %v5462
        %v5527 = vmax.f32 %v5207, %v5463
        %v5528 = vmax.f32 %v5208, %v5464
        %v5529 = vmax.f32 %v5209, %v5465
        %v5530 = vmax.f32 %v5210, %v5466
        %v5531 = vmax.f32 %v5211, %v5467
        %v5532 = vmax.f32 %v5212, %v5468
        %v5533 = vmax.f32 %v5213, %v5469
        %v5534 = vmax.f32 %v5214, %v5470
        %v5535 = vmax.f32 %v5215, %v5471
        %v5536 = vmax.f32 %v5216, %v5472
        %v5537 = vmax.f32 %v5217, %v5473
        %v5538 = vmax.f32 %v5218, %v5474
        %v5539 = vmax.f32 %v5219, %v5475
        %s5540 = ssub.s32 %s361, 2
        %v5541 = vstv %s5540
        %v5542 = vadd.s32 %v5541, 1
        %v5543 = vadd.s32 %v5541, 2
        %v5544 = vadd.s32 %v5541, 3
        %v5545 = vadd.s32 %v5541, 4
        %v5546 = vadd.s32 %v5541, 5
        %v5547 = vadd.s32 %v5541, 6
        %v5548 = vadd.s32 %v5541, 7
        %vm5549 = vcmp.ge.s32.totalorder %v5541, 0
        %vm5550 = vcmp.ge.s32.totalorder %v5542, 0
        %vm5551 = vcmp.ge.s32.totalorder %v5543, 0
        %vm5552 = vcmp.ge.s32.totalorder %v5544, 0
        %vm5553 = vcmp.ge.s32.totalorder %v5545, 0
        %vm5554 = vcmp.ge.s32.totalorder %v5546, 0
        %vm5555 = vcmp.ge.s32.totalorder %v5547, 0
        %vm5556 = vcmp.ge.s32.totalorder %v5548, 0
        %vm5557 = vcmp.lt.s32.totalorder %v5541, 8
        %vm5558 = vcmp.lt.s32.totalorder %v5542, 8
        %vm5559 = vcmp.lt.s32.totalorder %v5543, 8
        %vm5560 = vcmp.lt.s32.totalorder %v5544, 8
        %vm5561 = vcmp.lt.s32.totalorder %v5545, 8
        %vm5562 = vcmp.lt.s32.totalorder %v5546, 8
        %vm5563 = vcmp.lt.s32.totalorder %v5547, 8
        %vm5564 = vcmp.lt.s32.totalorder %v5548, 8
        %vm5565 = vmand %vm5549, %vm5557
        %vm5566 = vmand %vm5550, %vm5558
        %vm5567 = vmand %vm5551, %vm5559
        %vm5568 = vmand %vm5552, %vm5560
        %vm5569 = vmand %vm5553, %vm5561
        %vm5570 = vmand %vm5554, %vm5562
        %vm5571 = vmand %vm5555, %vm5563
        %vm5572 = vmand %vm5556, %vm5564
        %v5573 = vsel %vm5565, 1, 0
        %v5574 = vsel %vm5566, 1, 0
        %v5575 = vsel %vm5567, 1, 0
        %v5576 = vsel %vm5568, 1, 0
        %v5577 = vsel %vm5569, 1, 0
        %v5578 = vsel %vm5570, 1, 0
        %v5579 = vsel %vm5571, 1, 0
        %v5580 = vsel %vm5572, 1, 0
        %v5581 = vcvt.s32.f32 %v5573
        %v5582 = vcvt.s32.f32 %v5574
        %v5583 = vcvt.s32.f32 %v5575
        %v5584 = vcvt.s32.f32 %v5576
        %v5585 = vcvt.s32.f32 %v5577
        %v5586 = vcvt.s32.f32 %v5578
        %v5587 = vcvt.s32.f32 %v5579
        %v5588 = vcvt.s32.f32 %v5580
        %v5589 = vmul.f32 %v5476, %v5581
        %v5590 = vmul.f32 %v5477, %v5581
        %v5591 = vmul.f32 %v5478, %v5581
        %v5592 = vmul.f32 %v5479, %v5581
        %v5593 = vmul.f32 %v5480, %v5581
        %v5594 = vmul.f32 %v5481, %v5581
        %v5595 = vmul.f32 %v5482, %v5581
        %v5596 = vmul.f32 %v5483, %v5581
        %v5597 = vmul.f32 %v5484, %v5582
        %v5598 = vmul.f32 %v5485, %v5582
        %v5599 = vmul.f32 %v5486, %v5582
        %v5600 = vmul.f32 %v5487, %v5582
        %v5601 = vmul.f32 %v5488, %v5582
        %v5602 = vmul.f32 %v5489, %v5582
        %v5603 = vmul.f32 %v5490, %v5582
        %v5604 = vmul.f32 %v5491, %v5582
        %v5605 = vmul.f32 %v5492, %v5583
        %v5606 = vmul.f32 %v5493, %v5583
        %v5607 = vmul.f32 %v5494, %v5583
        %v5608 = vmul.f32 %v5495, %v5583
        %v5609 = vmul.f32 %v5496, %v5583
        %v5610 = vmul.f32 %v5497, %v5583
        %v5611 = vmul.f32 %v5498, %v5583
        %v5612 = vmul.f32 %v5499, %v5583
        %v5613 = vmul.f32 %v5500, %v5584
        %v5614 = vmul.f32 %v5501, %v5584
        %v5615 = vmul.f32 %v5502, %v5584
        %v5616 = vmul.f32 %v5503, %v5584
        %v5617 = vmul.f32 %v5504, %v5584
        %v5618 = vmul.f32 %v5505, %v5584
        %v5619 = vmul.f32 %v5506, %v5584
        %v5620 = vmul.f32 %v5507, %v5584
        %v5621 = vmul.f32 %v5508, %v5585
        %v5622 = vmul.f32 %v5509, %v5585
        %v5623 = vmul.f32 %v5510, %v5585
        %v5624 = vmul.f32 %v5511, %v5585
        %v5625 = vmul.f32 %v5512, %v5585
        %v5626 = vmul.f32 %v5513, %v5585
        %v5627 = vmul.f32 %v5514, %v5585
        %v5628 = vmul.f32 %v5515, %v5585
        %v5629 = vmul.f32 %v5516, %v5586
        %v5630 = vmul.f32 %v5517, %v5586
        %v5631 = vmul.f32 %v5518, %v5586
        %v5632 = vmul.f32 %v5519, %v5586
        %v5633 = vmul.f32 %v5520, %v5586
        %v5634 = vmul.f32 %v5521, %v5586
        %v5635 = vmul.f32 %v5522, %v5586
        %v5636 = vmul.f32 %v5523, %v5586
        %v5637 = vmul.f32 %v5524, %v5587
        %v5638 = vmul.f32 %v5525, %v5587
        %v5639 = vmul.f32 %v5526, %v5587
        %v5640 = vmul.f32 %v5527, %v5587
        %v5641 = vmul.f32 %v5528, %v5587
        %v5642 = vmul.f32 %v5529, %v5587
        %v5643 = vmul.f32 %v5530, %v5587
        %v5644 = vmul.f32 %v5531, %v5587
        %v5645 = vmul.f32 %v5532, %v5588
        %v5646 = vmul.f32 %v5533, %v5588
        %v5647 = vmul.f32 %v5534, %v5588
        %v5648 = vmul.f32 %v5535, %v5588
        %v5649 = vmul.f32 %v5536, %v5588
        %v5650 = vmul.f32 %v5537, %v5588
        %v5651 = vmul.f32 %v5538, %v5588
        %v5652 = vmul.f32 %v5539, %v5588
        %v5653 = vpack.c.bf16 %v5589, %v5589
        %v5654 = vpack.c.bf16 %v5590, %v5590
        %v5655 = vpack.c.bf16 %v5591, %v5591
        %v5656 = vpack.c.bf16 %v5592, %v5592
        %v5657 = vpack.c.bf16 %v5593, %v5593
        %v5658 = vpack.c.bf16 %v5594, %v5594
        %v5659 = vpack.c.bf16 %v5595, %v5595
        %v5660 = vpack.c.bf16 %v5596, %v5596
        %v5661 = vpack.c.bf16 %v5597, %v5597
        %v5662 = vpack.c.bf16 %v5598, %v5598
        %v5663 = vpack.c.bf16 %v5599, %v5599
        %v5664 = vpack.c.bf16 %v5600, %v5600
        %v5665 = vpack.c.bf16 %v5601, %v5601
        %v5666 = vpack.c.bf16 %v5602, %v5602
        %v5667 = vpack.c.bf16 %v5603, %v5603
        %v5668 = vpack.c.bf16 %v5604, %v5604
        %v5669 = vpack.c.bf16 %v5605, %v5605
        %v5670 = vpack.c.bf16 %v5606, %v5606
        %v5671 = vpack.c.bf16 %v5607, %v5607
        %v5672 = vpack.c.bf16 %v5608, %v5608
        %v5673 = vpack.c.bf16 %v5609, %v5609
        %v5674 = vpack.c.bf16 %v5610, %v5610
        %v5675 = vpack.c.bf16 %v5611, %v5611
        %v5676 = vpack.c.bf16 %v5612, %v5612
        %v5677 = vpack.c.bf16 %v5613, %v5613
        %v5678 = vpack.c.bf16 %v5614, %v5614
        %v5679 = vpack.c.bf16 %v5615, %v5615
        %v5680 = vpack.c.bf16 %v5616, %v5616
        %v5681 = vpack.c.bf16 %v5617, %v5617
        %v5682 = vpack.c.bf16 %v5618, %v5618
        %v5683 = vpack.c.bf16 %v5619, %v5619
        %v5684 = vpack.c.bf16 %v5620, %v5620
        %v5685 = vpack.c.bf16 %v5621, %v5621
        %v5686 = vpack.c.bf16 %v5622, %v5622
        %v5687 = vpack.c.bf16 %v5623, %v5623
        %v5688 = vpack.c.bf16 %v5624, %v5624
        %v5689 = vpack.c.bf16 %v5625, %v5625
        %v5690 = vpack.c.bf16 %v5626, %v5626
        %v5691 = vpack.c.bf16 %v5627, %v5627
        %v5692 = vpack.c.bf16 %v5628, %v5628
        %v5693 = vpack.c.bf16 %v5629, %v5629
        %v5694 = vpack.c.bf16 %v5630, %v5630
        %v5695 = vpack.c.bf16 %v5631, %v5631
        %v5696 = vpack.c.bf16 %v5632, %v5632
        %v5697 = vpack.c.bf16 %v5633, %v5633
        %v5698 = vpack.c.bf16 %v5634, %v5634
        %v5699 = vpack.c.bf16 %v5635, %v5635
        %v5700 = vpack.c.bf16 %v5636, %v5636
        %v5701 = vpack.c.bf16 %v5637, %v5637
        %v5702 = vpack.c.bf16 %v5638, %v5638
        %v5703 = vpack.c.bf16 %v5639, %v5639
        %v5704 = vpack.c.bf16 %v5640, %v5640
        %v5705 = vpack.c.bf16 %v5641, %v5641
        %v5706 = vpack.c.bf16 %v5642, %v5642
        %v5707 = vpack.c.bf16 %v5643, %v5643
        %v5708 = vpack.c.bf16 %v5644, %v5644
        %v5709 = vpack.c.bf16 %v5645, %v5645
        %v5710 = vpack.c.bf16 %v5646, %v5646
        %v5711 = vpack.c.bf16 %v5647, %v5647
        %v5712 = vpack.c.bf16 %v5648, %v5648
        %v5713 = vpack.c.bf16 %v5649, %v5649
        %v5714 = vpack.c.bf16 %v5650, %v5650
        %v5715 = vpack.c.bf16 %v5651, %v5651
        %v5716 = vpack.c.bf16 %v5652, %v5652
        %v5717 = vld [vmem:[#allocation3] sm:$0x1]
        %v5718 = vsel %vm2172, 0, %v5717
        %5719 = vst [vmem:[#allocation3] sm:$0x1] %v5718
        %v5720 = vld [vmem:[#allocation3 + $0x10] sm:$0x1]
        %v5721 = vsel %vm2172, 0, %v5720
        %5722 = vst [vmem:[#allocation3 + $0x10] sm:$0x1] %v5721
        %v5723 = vld [vmem:[#allocation3 + $0x20] sm:$0x1]
        %v5724 = vsel %vm2172, 0, %v5723
        %5725 = vst [vmem:[#allocation3 + $0x20] sm:$0x1] %v5724
        %v5726 = vld [vmem:[#allocation3 + $0x30] sm:$0x1]
        %v5727 = vsel %vm2172, 0, %v5726
        %5728 = vst [vmem:[#allocation3 + $0x30] sm:$0x1] %v5727
        %v5729 = vld [vmem:[#allocation3 + $0x40] sm:$0x1]
        %v5730 = vsel %vm2172, 0, %v5729
        %5731 = vst [vmem:[#allocation3 + $0x40] sm:$0x1] %v5730
        %v5732 = vld [vmem:[#allocation3 + $0x50] sm:$0x1]
        %v5733 = vsel %vm2172, 0, %v5732
        %5734 = vst [vmem:[#allocation3 + $0x50] sm:$0x1] %v5733
        %v5735 = vld [vmem:[#allocation3 + $0x60] sm:$0x1]
        %v5736 = vsel %vm2172, 0, %v5735
        %5737 = vst [vmem:[#allocation3 + $0x60] sm:$0x1] %v5736
        %v5738 = vld [vmem:[#allocation3 + $0x70] sm:$0x1]
        %v5739 = vsel %vm2172, 0, %v5738
        %5740 = vst [vmem:[#allocation3 + $0x70] sm:$0x1] %v5739
        %v5741 = vld [vmem:[#allocation3 + $0x4] sm:$0x8]
        %v5742 = vsel %vm2229, 0, %v5741
        %5743 = vst [vmem:[#allocation3 + $0x4] sm:$0x8] %v5742
        %5744 = vst.msk [vmem:[#allocation3 + $0xc] sm:$0xf] %vm2616, 0
        %v5745 = vld [vmem:[#allocation3 + $0x14] sm:$0x8]
        %v5746 = vsel %vm2229, 0, %v5745
        %5747 = vst [vmem:[#allocation3 + $0x14] sm:$0x8] %v5746
        %5748 = vst.msk [vmem:[#allocation3 + $0x1c] sm:$0xf] %vm2616, 0
        %v5749 = vld [vmem:[#allocation3 + $0x24] sm:$0x8]
        %v5750 = vsel %vm2229, 0, %v5749
        %5751 = vst [vmem:[#allocation3 + $0x24] sm:$0x8] %v5750
        %5752 = vst.msk [vmem:[#allocation3 + $0x2c] sm:$0xf] %vm2616, 0
        %v5753 = vld [vmem:[#allocation3 + $0x34] sm:$0x8]
        %v5754 = vsel %vm2229, 0, %v5753
        %5755 = vst [vmem:[#allocation3 + $0x34] sm:$0x8] %v5754
        %5756 = vst.msk [vmem:[#allocation3 + $0x3c] sm:$0xf] %vm2616, 0
        %v5757 = vld [vmem:[#allocation3 + $0x44] sm:$0x8]
        %v5758 = vsel %vm2229, 0, %v5757
        %5759 = vst [vmem:[#allocation3 + $0x44] sm:$0x8] %v5758
        %5760 = vst.msk [vmem:[#allocation3 + $0x4c] sm:$0xf] %vm2616, 0
        %v5761 = vld [vmem:[#allocation3 + $0x54] sm:$0x8]
        %v5762 = vsel %vm2229, 0, %v5761
        %5763 = vst [vmem:[#allocation3 + $0x54] sm:$0x8] %v5762
        %5764 = vst.msk [vmem:[#allocation3 + $0x5c] sm:$0xf] %vm2616, 0
        %v5765 = vld [vmem:[#allocation3 + $0x64] sm:$0x8]
        %v5766 = vsel %vm2229, 0, %v5765
        %5767 = vst [vmem:[#allocation3 + $0x64] sm:$0x8] %v5766
        %5768 = vst.msk [vmem:[#allocation3 + $0x6c] sm:$0xf] %vm2616, 0
        %v5769 = vld [vmem:[#allocation3 + $0x74] sm:$0x8]
        %v5770 = vsel %vm2229, 0, %v5769
        %5771 = vst [vmem:[#allocation3 + $0x74] sm:$0x8] %v5770
        %5772 = vst.msk [vmem:[#allocation3 + $0x7c] sm:$0xf] %vm2616, 0
        %5773 = vst [vmem:[#allocation3 + $0x8] sm:$0xf] 0
        %5774 = vst [vmem:[#allocation3 + $0x18] sm:$0xf] 0
        %5775 = vst [vmem:[#allocation3 + $0x28] sm:$0xf] 0
        %5776 = vst [vmem:[#allocation3 + $0x38] sm:$0xf] 0
        %5777 = vst [vmem:[#allocation3 + $0x48] sm:$0xf] 0
        %5778 = vst [vmem:[#allocation3 + $0x58] sm:$0xf] 0
        %5779 = vst [vmem:[#allocation3 + $0x68] sm:$0xf] 0
        %5780 = vst [vmem:[#allocation3 + $0x78] sm:$0xf] 0
        %v5837 = vunpack.c.l.b16 %v5653
        %v5838 = vunpack.c.l.b16 %v5654
        %v5839 = vunpack.c.l.b16 %v5655
        %v5840 = vunpack.c.l.b16 %v5656
        %v5841 = vunpack.c.l.b16 %v5657
        %v5842 = vunpack.c.l.b16 %v5658
        %v5843 = vunpack.c.l.b16 %v5659
        %v5844 = vunpack.c.l.b16 %v5661
        %v5845 = vunpack.c.l.b16 %v5662
        %v5846 = vunpack.c.l.b16 %v5663
        %v5847 = vunpack.c.l.b16 %v5664
        %v5848 = vunpack.c.l.b16 %v5665
        %v5849 = vunpack.c.l.b16 %v5666
        %v5850 = vunpack.c.l.b16 %v5667
        %v5851 = vunpack.c.l.b16 %v5669
        %v5852 = vunpack.c.l.b16 %v5670
        %v5853 = vunpack.c.l.b16 %v5671
        %v5854 = vunpack.c.l.b16 %v5672
        %v5855 = vunpack.c.l.b16 %v5673
        %v5856 = vunpack.c.l.b16 %v5674
        %v5857 = vunpack.c.l.b16 %v5675
        %v5858 = vunpack.c.l.b16 %v5677
        %v5859 = vunpack.c.l.b16 %v5678
        %v5860 = vunpack.c.l.b16 %v5679
        %v5861 = vunpack.c.l.b16 %v5680
        %v5862 = vunpack.c.l.b16 %v5681
        %v5863 = vunpack.c.l.b16 %v5682
        %v5864 = vunpack.c.l.b16 %v5683
        %v5865 = vunpack.c.l.b16 %v5685
        %v5866 = vunpack.c.l.b16 %v5686
        %v5867 = vunpack.c.l.b16 %v5687
        %v5868 = vunpack.c.l.b16 %v5688
        %v5869 = vunpack.c.l.b16 %v5689
        %v5870 = vunpack.c.l.b16 %v5690
        %v5871 = vunpack.c.l.b16 %v5691
        %v5872 = vunpack.c.l.b16 %v5693
        %v5873 = vunpack.c.l.b16 %v5694
        %v5874 = vunpack.c.l.b16 %v5695
        %v5875 = vunpack.c.l.b16 %v5696
        %v5876 = vunpack.c.l.b16 %v5697
        %v5877 = vunpack.c.l.b16 %v5698
        %v5878 = vunpack.c.l.b16 %v5699
        %v5879 = vunpack.c.l.b16 %v5701
        %v5880 = vunpack.c.l.b16 %v5702
        %v5881 = vunpack.c.l.b16 %v5703
        %v5882 = vunpack.c.l.b16 %v5704
        %v5883 = vunpack.c.l.b16 %v5705
        %v5884 = vunpack.c.l.b16 %v5706
        %v5885 = vunpack.c.l.b16 %v5707
        %v5886 = vunpack.c.l.b16 %v5709
        %v5887 = vunpack.c.l.b16 %v5710
        %v5888 = vunpack.c.l.b16 %v5711
        %v5889 = vunpack.c.l.b16 %v5712
        %v5890 = vunpack.c.l.b16 %v5713
        %v5891 = vunpack.c.l.b16 %v5714
        %v5892 = vunpack.c.l.b16 %v5715
        %v5893 = vrot.slane %v5837, 7
        %v5894 = vrot.slane %v5838, 6
        %vm5895 = vcmask 1042434
        %v5896 = vsel %vm5895, %v5894, %v5893
        %v5897 = vrot.slane %v5839, 5
        %vm5898 = vcmask 1043459
        %v5899 = vsel %vm5898, %v5897, %v5896
        %v5900 = vrot.slane %v5840, 4
        %vm5901 = vcmask 1044484
        %v5902 = vsel %vm5901, %v5900, %v5899
        %v5903 = vrot.slane %v5841, 3
        %vm5904 = vcmask 1045509
        %v5905 = vsel %vm5904, %v5903, %v5902
        %v5906 = vrot.slane %v5842, 2
        %vm5907 = vcmask 1046534
        %v5908 = vsel %vm5907, %v5906, %v5905
        %v5909 = vrot.slane %v5843, 1
        %vm5910 = vcmask 1047559
        %v5911 = vsel %vm5910, %v5909, %v5908
        %v5912 = vrot.slane %v5844, 7
        %v5913 = vrot.slane %v5845, 6
        %v5914 = vsel %vm5895, %v5913, %v5912
        %v5915 = vrot.slane %v5846, 5
        %v5916 = vsel %vm5898, %v5915, %v5914
        %v5917 = vrot.slane %v5847, 4
        %v5918 = vsel %vm5901, %v5917, %v5916
        %v5919 = vrot.slane %v5848, 3
        %v5920 = vsel %vm5904, %v5919, %v5918
        %v5921 = vrot.slane %v5849, 2
        %v5922 = vsel %vm5907, %v5921, %v5920
        %v5923 = vrot.slane %v5850, 1
        %v5924 = vsel %vm5910, %v5923, %v5922
        %v5925 = vrot.slane %v5851, 7
        %v5926 = vrot.slane %v5852, 6
        %v5927 = vsel %vm5895, %v5926, %v5925
        %v5928 = vrot.slane %v5853, 5
        %v5929 = vsel %vm5898, %v5928, %v5927
        %v5930 = vrot.slane %v5854, 4
        %v5931 = vsel %vm5901, %v5930, %v5929
        %v5932 = vrot.slane %v5855, 3
        %v5933 = vsel %vm5904, %v5932, %v5931
        %v5934 = vrot.slane %v5856, 2
        %v5935 = vsel %vm5907, %v5934, %v5933
        %v5936 = vrot.slane %v5857, 1
        %v5937 = vsel %vm5910, %v5936, %v5935
        %v5938 = vrot.slane %v5858, 7
        %v5939 = vrot.slane %v5859, 6
        %v5940 = vsel %vm5895, %v5939, %v5938
        %v5941 = vrot.slane %v5860, 5
        %v5942 = vsel %vm5898, %v5941, %v5940
        %v5943 = vrot.slane %v5861, 4
        %v5944 = vsel %vm5901, %v5943, %v5942
        %v5945 = vrot.slane %v5862, 3
        %v5946 = vsel %vm5904, %v5945, %v5944
        %v5947 = vrot.slane %v5863, 2
        %v5948 = vsel %vm5907, %v5947, %v5946
        %v5949 = vrot.slane %v5864, 1
        %v5950 = vsel %vm5910, %v5949, %v5948
        %v5951 = vrot.slane %v5865, 7
        %v5952 = vrot.slane %v5866, 6
        %v5953 = vsel %vm5895, %v5952, %v5951
        %v5954 = vrot.slane %v5867, 5
        %v5955 = vsel %vm5898, %v5954, %v5953
        %v5956 = vrot.slane %v5868, 4
        %v5957 = vsel %vm5901, %v5956, %v5955
        %v5958 = vrot.slane %v5869, 3
        %v5959 = vsel %vm5904, %v5958, %v5957
        %v5960 = vrot.slane %v5870, 2
        %v5961 = vsel %vm5907, %v5960, %v5959
        %v5962 = vrot.slane %v5871, 1
        %v5963 = vsel %vm5910, %v5962, %v5961
        %v5964 = vrot.slane %v5872, 7
        %v5965 = vrot.slane %v5873, 6
        %v5966 = vsel %vm5895, %v5965, %v5964
        %v5967 = vrot.slane %v5874, 5
        %v5968 = vsel %vm5898, %v5967, %v5966
        %v5969 = vrot.slane %v5875, 4
        %v5970 = vsel %vm5901, %v5969, %v5968
        %v5971 = vrot.slane %v5876, 3
        %v5972 = vsel %vm5904, %v5971, %v5970
        %v5973 = vrot.slane %v5877, 2
        %v5974 = vsel %vm5907, %v5973, %v5972
        %v5975 = vrot.slane %v5878, 1
        %v5976 = vsel %vm5910, %v5975, %v5974
        %v5977 = vrot.slane %v5879, 7
        %v5978 = vrot.slane %v5880, 6
        %v5979 = vsel %vm5895, %v5978, %v5977
        %v5980 = vrot.slane %v5881, 5
        %v5981 = vsel %vm5898, %v5980, %v5979
        %v5982 = vrot.slane %v5882, 4
        %v5983 = vsel %vm5901, %v5982, %v5981
        %v5984 = vrot.slane %v5883, 3
        %v5985 = vsel %vm5904, %v5984, %v5983
        %v5986 = vrot.slane %v5884, 2
        %v5987 = vsel %vm5907, %v5986, %v5985
        %v5988 = vrot.slane %v5885, 1
        %v5989 = vsel %vm5910, %v5988, %v5987
        %v5990 = vrot.slane %v5886, 7
        %v5991 = vrot.slane %v5887, 6
        %v5992 = vsel %vm5895, %v5991, %v5990
        %v5993 = vrot.slane %v5888, 5
        %v5994 = vsel %vm5898, %v5993, %v5992
        %v5995 = vrot.slane %v5889, 4
        %v5996 = vsel %vm5901, %v5995, %v5994
        %v5997 = vrot.slane %v5890, 3
        %v5998 = vsel %vm5904, %v5997, %v5996
        %v5999 = vrot.slane %v5891, 2
        %v6000 = vsel %vm5907, %v5999, %v5998
        %v6001 = vrot.slane %v5892, 1
        %v6002 = vsel %vm5910, %v6001, %v6000
        %v6003 = vpack.c.b16 %v5911, %v5911
        %v6004 = vpack.c.b16 %v5924, %v5924
        %v6005 = vpack.c.b16 %v5937, %v5937
        %v6006 = vpack.c.b16 %v5950, %v5950
        %v6007 = vpack.c.b16 %v5963, %v5963
        %v6008 = vpack.c.b16 %v5976, %v5976
        %v6009 = vpack.c.b16 %v5989, %v5989
        %v6010 = vpack.c.b16 %v6002, %v6002
        %v6019 = vld [vmem:[#allocation3] sm:$0xf]
        %v6020 = vsel %vm2612, %v6003, %v6019
        %6021 = vst [vmem:[#allocation3] sm:$0xf] %v6020
        %v6022 = vld [vmem:[#allocation3 + $0x10] sm:$0xf]
        %v6023 = vsel %vm2612, %v6004, %v6022
        %6024 = vst [vmem:[#allocation3 + $0x10] sm:$0xf] %v6023
        %v6025 = vld [vmem:[#allocation3 + $0x20] sm:$0xf]
        %v6026 = vsel %vm2612, %v6005, %v6025
        %6027 = vst [vmem:[#allocation3 + $0x20] sm:$0xf] %v6026
        %v6028 = vld [vmem:[#allocation3 + $0x30] sm:$0xf]
        %v6029 = vsel %vm2612, %v6006, %v6028
        %6030 = vst [vmem:[#allocation3 + $0x30] sm:$0xf] %v6029
        %v6031 = vld [vmem:[#allocation3 + $0x40] sm:$0xf]
        %v6032 = vsel %vm2612, %v6007, %v6031
        %6033 = vst [vmem:[#allocation3 + $0x40] sm:$0xf] %v6032
        %v6034 = vld [vmem:[#allocation3 + $0x50] sm:$0xf]
        %v6035 = vsel %vm2612, %v6008, %v6034
        %6036 = vst [vmem:[#allocation3 + $0x50] sm:$0xf] %v6035
        %v6037 = vld [vmem:[#allocation3 + $0x60] sm:$0xf]
        %v6038 = vsel %vm2612, %v6009, %v6037
        %6039 = vst [vmem:[#allocation3 + $0x60] sm:$0xf] %v6038
        %v6040 = vld [vmem:[#allocation3 + $0x70] sm:$0xf]
        %v6041 = vsel %vm2612, %v6010, %v6040
        %6042 = vst [vmem:[#allocation3 + $0x70] sm:$0xf] %v6041
        %v6051 = vunpack.c.l.b16 %v5660
        %v6052 = vunpack.c.l.b16 %v5668
        %v6053 = vunpack.c.l.b16 %v5676
        %v6054 = vunpack.c.l.b16 %v5684
        %v6055 = vunpack.c.l.b16 %v5692
        %v6056 = vunpack.c.l.b16 %v5700
        %v6057 = vunpack.c.l.b16 %v5708
        %v6058 = vunpack.c.l.b16 %v5716
        %v6059 = vrot.slane %v5838, 7
        %vm6060 = vcmask 1041409
        %v6061 = vsel %vm6060, %v6059, %v5837
        %v6062 = vrot.slane %v5839, 6
        %v6063 = vsel %vm5895, %v6062, %v6061
        %v6064 = vrot.slane %v5840, 5
        %v6065 = vsel %vm5898, %v6064, %v6063
        %v6066 = vrot.slane %v5841, 4
        %v6067 = vsel %vm5901, %v6066, %v6065
        %v6068 = vrot.slane %v5842, 3
        %v6069 = vsel %vm5904, %v6068, %v6067
        %v6070 = vrot.slane %v5843, 2
        %v6071 = vsel %vm5907, %v6070, %v6069
        %v6072 = vrot.slane %v6051, 1
        %v6073 = vsel %vm5910, %v6072, %v6071
        %v6074 = vrot.slane %v5845, 7
        %v6075 = vsel %vm6060, %v6074, %v5844
        %v6076 = vrot.slane %v5846, 6
        %v6077 = vsel %vm5895, %v6076, %v6075
        %v6078 = vrot.slane %v5847, 5
        %v6079 = vsel %vm5898, %v6078, %v6077
        %v6080 = vrot.slane %v5848, 4
        %v6081 = vsel %vm5901, %v6080, %v6079
        %v6082 = vrot.slane %v5849, 3
        %v6083 = vsel %vm5904, %v6082, %v6081
        %v6084 = vrot.slane %v5850, 2
        %v6085 = vsel %vm5907, %v6084, %v6083
        %v6086 = vrot.slane %v6052, 1
        %v6087 = vsel %vm5910, %v6086, %v6085
        %v6088 = vrot.slane %v5852, 7
        %v6089 = vsel %vm6060, %v6088, %v5851
        %v6090 = vrot.slane %v5853, 6
        %v6091 = vsel %vm5895, %v6090, %v6089
        %v6092 = vrot.slane %v5854, 5
        %v6093 = vsel %vm5898, %v6092, %v6091
        %v6094 = vrot.slane %v5855, 4
        %v6095 = vsel %vm5901, %v6094, %v6093
        %v6096 = vrot.slane %v5856, 3
        %v6097 = vsel %vm5904, %v6096, %v6095
        %v6098 = vrot.slane %v5857, 2
        %v6099 = vsel %vm5907, %v6098, %v6097
        %v6100 = vrot.slane %v6053, 1
        %v6101 = vsel %vm5910, %v6100, %v6099
        %v6102 = vrot.slane %v5859, 7
        %v6103 = vsel %vm6060, %v6102, %v5858
        %v6104 = vrot.slane %v5860, 6
        %v6105 = vsel %vm5895, %v6104, %v6103
        %v6106 = vrot.slane %v5861, 5
        %v6107 = vsel %vm5898, %v6106, %v6105
        %v6108 = vrot.slane %v5862, 4
        %v6109 = vsel %vm5901, %v6108, %v6107
        %v6110 = vrot.slane %v5863, 3
        %v6111 = vsel %vm5904, %v6110, %v6109
        %v6112 = vrot.slane %v5864, 2
        %v6113 = vsel %vm5907, %v6112, %v6111
        %v6114 = vrot.slane %v6054, 1
        %v6115 = vsel %vm5910, %v6114, %v6113
        %v6116 = vrot.slane %v5866, 7
        %v6117 = vsel %vm6060, %v6116, %v5865
        %v6118 = vrot.slane %v5867, 6
        %v6119 = vsel %vm5895, %v6118, %v6117
        %v6120 = vrot.slane %v5868, 5
        %v6121 = vsel %vm5898, %v6120, %v6119
        %v6122 = vrot.slane %v5869, 4
        %v6123 = vsel %vm5901, %v6122, %v6121
        %v6124 = vrot.slane %v5870, 3
        %v6125 = vsel %vm5904, %v6124, %v6123
        %v6126 = vrot.slane %v5871, 2
        %v6127 = vsel %vm5907, %v6126, %v6125
        %v6128 = vrot.slane %v6055, 1
        %v6129 = vsel %vm5910, %v6128, %v6127
        %v6130 = vrot.slane %v5873, 7
        %v6131 = vsel %vm6060, %v6130, %v5872
        %v6132 = vrot.slane %v5874, 6
        %v6133 = vsel %vm5895, %v6132, %v6131
        %v6134 = vrot.slane %v5875, 5
        %v6135 = vsel %vm5898, %v6134, %v6133
        %v6136 = vrot.slane %v5876, 4
        %v6137 = vsel %vm5901, %v6136, %v6135
        %v6138 = vrot.slane %v5877, 3
        %v6139 = vsel %vm5904, %v6138, %v6137
        %v6140 = vrot.slane %v5878, 2
        %v6141 = vsel %vm5907, %v6140, %v6139
        %v6142 = vrot.slane %v6056, 1
        %v6143 = vsel %vm5910, %v6142, %v6141
        %v6144 = vrot.slane %v5880, 7
        %v6145 = vsel %vm6060, %v6144, %v5879
        %v6146 = vrot.slane %v5881, 6
        %v6147 = vsel %vm5895, %v6146, %v6145
        %v6148 = vrot.slane %v5882, 5
        %v6149 = vsel %vm5898, %v6148, %v6147
        %v6150 = vrot.slane %v5883, 4
        %v6151 = vsel %vm5901, %v6150, %v6149
        %v6152 = vrot.slane %v5884, 3
        %v6153 = vsel %vm5904, %v6152, %v6151
        %v6154 = vrot.slane %v5885, 2
        %v6155 = vsel %vm5907, %v6154, %v6153
        %v6156 = vrot.slane %v6057, 1
        %v6157 = vsel %vm5910, %v6156, %v6155
        %v6158 = vrot.slane %v5887, 7
        %v6159 = vsel %vm6060, %v6158, %v5886
        %v6160 = vrot.slane %v5888, 6
        %v6161 = vsel %vm5895, %v6160, %v6159
        %v6162 = vrot.slane %v5889, 5
        %v6163 = vsel %vm5898, %v6162, %v6161
        %v6164 = vrot.slane %v5890, 4
        %v6165 = vsel %vm5901, %v6164, %v6163
        %v6166 = vrot.slane %v5891, 3
        %v6167 = vsel %vm5904, %v6166, %v6165
        %v6168 = vrot.slane %v5892, 2
        %v6169 = vsel %vm5907, %v6168, %v6167
        %v6170 = vrot.slane %v6058, 1
        %v6171 = vsel %vm5910, %v6170, %v6169
        %v6172 = vpack.c.b16 %v6073, %v6073
        %v6173 = vpack.c.b16 %v6087, %v6087
        %v6174 = vpack.c.b16 %v6101, %v6101
        %v6175 = vpack.c.b16 %v6115, %v6115
        %v6176 = vpack.c.b16 %v6129, %v6129
        %v6177 = vpack.c.b16 %v6143, %v6143
        %v6178 = vpack.c.b16 %v6157, %v6157
        %v6179 = vpack.c.b16 %v6171, %v6171
        %6180 = vrot.lane.b32.xlu0 %v6172, 64
        %v6181 = vpop.permute.xlu0 %6180
        %6182 = vrot.lane.b32.xlu0 %v6173, 64
        %v6183 = vpop.permute.xlu0 %6182
        %6184 = vrot.lane.b32.xlu0 %v6174, 64
        %v6185 = vpop.permute.xlu0 %6184
        %6186 = vrot.lane.b32.xlu0 %v6175, 64
        %v6187 = vpop.permute.xlu0 %6186
        %6188 = vrot.lane.b32.xlu0 %v6176, 64
        %v6189 = vpop.permute.xlu0 %6188
        %6190 = vrot.lane.b32.xlu0 %v6177, 64
        %v6191 = vpop.permute.xlu0 %6190
        %6192 = vrot.lane.b32.xlu0 %v6178, 64
        %v6193 = vpop.permute.xlu0 %6192
        %6194 = vrot.lane.b32.xlu0 %v6179, 64
        %v6195 = vpop.permute.xlu0 %6194
        %6204 = vst.msk [vmem:[#allocation3] sm:$0xf] %vm2830, %v6181
        %6205 = vst.msk [vmem:[#allocation3 + $0x10] sm:$0xf] %vm2830, %v6183
        %6206 = vst.msk [vmem:[#allocation3 + $0x20] sm:$0xf] %vm2830, %v6185
        %6207 = vst.msk [vmem:[#allocation3 + $0x30] sm:$0xf] %vm2830, %v6187
        %6208 = vst.msk [vmem:[#allocation3 + $0x40] sm:$0xf] %vm2830, %v6189
        %6209 = vst.msk [vmem:[#allocation3 + $0x50] sm:$0xf] %vm2830, %v6191
        %6210 = vst.msk [vmem:[#allocation3 + $0x60] sm:$0xf] %vm2830, %v6193
        %6211 = vst.msk [vmem:[#allocation3 + $0x70] sm:$0xf] %vm2830, %v6195
        %v6212 = vrot.slane %v5839, 7
        %v6213 = vsel %vm6060, %v6212, %v5838
        %v6214 = vrot.slane %v5840, 6
        %v6215 = vsel %vm5895, %v6214, %v6213
        %v6216 = vrot.slane %v5841, 5
        %v6217 = vsel %vm5898, %v6216, %v6215
        %v6218 = vrot.slane %v5842, 4
        %v6219 = vsel %vm5901, %v6218, %v6217
        %v6220 = vrot.slane %v5843, 3
        %v6221 = vsel %vm5904, %v6220, %v6219
        %v6222 = vrot.slane %v6051, 2
        %v6223 = vsel %vm5907, %v6222, %v6221
        %v6224 = vrot.slane %v5846, 7
        %v6225 = vsel %vm6060, %v6224, %v5845
        %v6226 = vrot.slane %v5847, 6
        %v6227 = vsel %vm5895, %v6226, %v6225
        %v6228 = vrot.slane %v5848, 5
        %v6229 = vsel %vm5898, %v6228, %v6227
        %v6230 = vrot.slane %v5849, 4
        %v6231 = vsel %vm5901, %v6230, %v6229
        %v6232 = vrot.slane %v5850, 3
        %v6233 = vsel %vm5904, %v6232, %v6231
        %v6234 = vrot.slane %v6052, 2
        %v6235 = vsel %vm5907, %v6234, %v6233
        %v6236 = vrot.slane %v5853, 7
        %v6237 = vsel %vm6060, %v6236, %v5852
        %v6238 = vrot.slane %v5854, 6
        %v6239 = vsel %vm5895, %v6238, %v6237
        %v6240 = vrot.slane %v5855, 5
        %v6241 = vsel %vm5898, %v6240, %v6239
        %v6242 = vrot.slane %v5856, 4
        %v6243 = vsel %vm5901, %v6242, %v6241
        %v6244 = vrot.slane %v5857, 3
        %v6245 = vsel %vm5904, %v6244, %v6243
        %v6246 = vrot.slane %v6053, 2
        %v6247 = vsel %vm5907, %v6246, %v6245
        %v6248 = vrot.slane %v5860, 7
        %v6249 = vsel %vm6060, %v6248, %v5859
        %v6250 = vrot.slane %v5861, 6
        %v6251 = vsel %vm5895, %v6250, %v6249
        %v6252 = vrot.slane %v5862, 5
        %v6253 = vsel %vm5898, %v6252, %v6251
        %v6254 = vrot.slane %v5863, 4
        %v6255 = vsel %vm5901, %v6254, %v6253
        %v6256 = vrot.slane %v5864, 3
        %v6257 = vsel %vm5904, %v6256, %v6255
        %v6258 = vrot.slane %v6054, 2
        %v6259 = vsel %vm5907, %v6258, %v6257
        %v6260 = vrot.slane %v5867, 7
        %v6261 = vsel %vm6060, %v6260, %v5866
        %v6262 = vrot.slane %v5868, 6
        %v6263 = vsel %vm5895, %v6262, %v6261
        %v6264 = vrot.slane %v5869, 5
        %v6265 = vsel %vm5898, %v6264, %v6263
        %v6266 = vrot.slane %v5870, 4
        %v6267 = vsel %vm5901, %v6266, %v6265
        %v6268 = vrot.slane %v5871, 3
        %v6269 = vsel %vm5904, %v6268, %v6267
        %v6270 = vrot.slane %v6055, 2
        %v6271 = vsel %vm5907, %v6270, %v6269
        %v6272 = vrot.slane %v5874, 7
        %v6273 = vsel %vm6060, %v6272, %v5873
        %v6274 = vrot.slane %v5875, 6
        %v6275 = vsel %vm5895, %v6274, %v6273
        %v6276 = vrot.slane %v5876, 5
        %v6277 = vsel %vm5898, %v6276, %v6275
        %v6278 = vrot.slane %v5877, 4
        %v6279 = vsel %vm5901, %v6278, %v6277
        %v6280 = vrot.slane %v5878, 3
        %v6281 = vsel %vm5904, %v6280, %v6279
        %v6282 = vrot.slane %v6056, 2
        %v6283 = vsel %vm5907, %v6282, %v6281
        %v6284 = vrot.slane %v5881, 7
        %v6285 = vsel %vm6060, %v6284, %v5880
        %v6286 = vrot.slane %v5882, 6
        %v6287 = vsel %vm5895, %v6286, %v6285
        %v6288 = vrot.slane %v5883, 5
        %v6289 = vsel %vm5898, %v6288, %v6287
        %v6290 = vrot.slane %v5884, 4
        %v6291 = vsel %vm5901, %v6290, %v6289
        %v6292 = vrot.slane %v5885, 3
        %v6293 = vsel %vm5904, %v6292, %v6291
        %v6294 = vrot.slane %v6057, 2
        %v6295 = vsel %vm5907, %v6294, %v6293
        %v6296 = vrot.slane %v5888, 7
        %v6297 = vsel %vm6060, %v6296, %v5887
        %v6298 = vrot.slane %v5889, 6
        %v6299 = vsel %vm5895, %v6298, %v6297
        %v6300 = vrot.slane %v5890, 5
        %v6301 = vsel %vm5898, %v6300, %v6299
        %v6302 = vrot.slane %v5891, 4
        %v6303 = vsel %vm5901, %v6302, %v6301
        %v6304 = vrot.slane %v5892, 3
        %v6305 = vsel %vm5904, %v6304, %v6303
        %v6306 = vrot.slane %v6058, 2
        %v6307 = vsel %vm5907, %v6306, %v6305
        %v6308 = vpack.c.b16 %v6223, %v6223
        %v6309 = vpack.c.b16 %v6235, %v6235
        %v6310 = vpack.c.b16 %v6247, %v6247
        %v6311 = vpack.c.b16 %v6259, %v6259
        %v6312 = vpack.c.b16 %v6271, %v6271
        %v6313 = vpack.c.b16 %v6283, %v6283
        %v6314 = vpack.c.b16 %v6295, %v6295
        %v6315 = vpack.c.b16 %v6307, %v6307
        %v6324 = vld [vmem:[#allocation3 + $0x4] sm:$0xf]
        %v6325 = vsel %vm3069, %v6308, %v6324
        %6326 = vst [vmem:[#allocation3 + $0x4] sm:$0xf] %v6325
        %v6327 = vld [vmem:[#allocation3 + $0x14] sm:$0xf]
        %v6328 = vsel %vm3069, %v6309, %v6327
        %6329 = vst [vmem:[#allocation3 + $0x14] sm:$0xf] %v6328
        %v6330 = vld [vmem:[#allocation3 + $0x24] sm:$0xf]
        %v6331 = vsel %vm3069, %v6310, %v6330
        %6332 = vst [vmem:[#allocation3 + $0x24] sm:$0xf] %v6331
        %v6333 = vld [vmem:[#allocation3 + $0x34] sm:$0xf]
        %v6334 = vsel %vm3069, %v6311, %v6333
        %6335 = vst [vmem:[#allocation3 + $0x34] sm:$0xf] %v6334
        %v6336 = vld [vmem:[#allocation3 + $0x44] sm:$0xf]
        %v6337 = vsel %vm3069, %v6312, %v6336
        %6338 = vst [vmem:[#allocation3 + $0x44] sm:$0xf] %v6337
        %v6339 = vld [vmem:[#allocation3 + $0x54] sm:$0xf]
        %v6340 = vsel %vm3069, %v6313, %v6339
        %6341 = vst [vmem:[#allocation3 + $0x54] sm:$0xf] %v6340
        %v6342 = vld [vmem:[#allocation3 + $0x64] sm:$0xf]
        %v6343 = vsel %vm3069, %v6314, %v6342
        %6344 = vst [vmem:[#allocation3 + $0x64] sm:$0xf] %v6343
        %v6345 = vld [vmem:[#allocation3 + $0x74] sm:$0xf]
        %v6346 = vsel %vm3069, %v6315, %v6345
        %6347 = vst [vmem:[#allocation3 + $0x74] sm:$0xf] %v6346
        %v6348 = vld [vmem:[#allocation3] sm:$0xff]
        %v6349 = vld [vmem:[#allocation3 + $0x8] sm:$0xff]
        %v6350 = vld [vmem:[#allocation3 + $0x10] sm:$0xff]
        %v6351 = vld [vmem:[#allocation3 + $0x18] sm:$0xff]
        %v6352 = vld [vmem:[#allocation3 + $0x20] sm:$0xff]
        %v6353 = vld [vmem:[#allocation3 + $0x28] sm:$0xff]
        %v6354 = vld [vmem:[#allocation3 + $0x30] sm:$0xff]
        %v6355 = vld [vmem:[#allocation3 + $0x38] sm:$0xff]
        %v6356 = vld [vmem:[#allocation3 + $0x40] sm:$0xff]
        %v6357 = vld [vmem:[#allocation3 + $0x48] sm:$0xff]
        %v6358 = vld [vmem:[#allocation3 + $0x50] sm:$0xff]
        %v6359 = vld [vmem:[#allocation3 + $0x58] sm:$0xff]
        %v6360 = vld [vmem:[%s5] sm:$0xf]
        %v6361 = vld [vmem:[%s5 + $0x4] sm:$0xf]
        %v6362 = vld [vmem:[%s5 + $0x8] sm:$0xf]
        %v6363 = vld [vmem:[%s5 + $0xc] sm:$0xf]
        %v6364 = vld [vmem:[%s5 + $0x10] sm:$0xf]
        %v6365 = vld [vmem:[%s5 + $0x14] sm:$0xf]
        %v6366 = vld [vmem:[%s5 + $0x18] sm:$0xf]
        %v6367 = vld [vmem:[%s5 + $0x1c] sm:$0xf]
        %v6368 = vld [vmem:[%s5 + $0x20] sm:$0xf]
        %v6369 = vld [vmem:[%s5 + $0x24] sm:$0xf]
        %v6370 = vld [vmem:[%s5 + $0x28] sm:$0xf]
        %v6371 = vld [vmem:[%s5 + $0x2c] sm:$0xf]
        %v6372 = vld [vmem:[%s5 + $0x30] sm:$0xf]
        %v6373 = vld [vmem:[%s5 + $0x34] sm:$0xf]
        %v6374 = vld [vmem:[%s5 + $0x38] sm:$0xf]
        %v6375 = vld [vmem:[%s5 + $0x3c] sm:$0xf]
        %v6376 = vld [vmem:[%s5 + $0x40] sm:$0xf]
        %v6377 = vld [vmem:[%s5 + $0x44] sm:$0xf]
        %v6378 = vld [vmem:[%s5 + $0x48] sm:$0xf]
        %v6379 = vld [vmem:[%s5 + $0x4c] sm:$0xf]
        %v6380 = vld [vmem:[%s5 + $0x50] sm:$0xf]
        %v6381 = vld [vmem:[%s5 + $0x54] sm:$0xf]
        %v6382 = vld [vmem:[%s5 + $0x58] sm:$0xf]
        %v6383 = vld [vmem:[%s5 + $0x5c] sm:$0xf]
        %s6384 = scalar_lea.vmem [#allocation3], 16
        %v6385 = vld [vmem:[%s6384] sm:$0xff]
        %v6386 = vld [vmem:[%s6384 + $0x8] sm:$0xff]
        %v6387 = vld [vmem:[%s6384 + $0x10] sm:$0xff]
        %v6388 = vld [vmem:[%s6384 + $0x18] sm:$0xff]
        %v6389 = vld [vmem:[%s6384 + $0x20] sm:$0xff]
        %v6390 = vld [vmem:[%s6384 + $0x28] sm:$0xff]
        %v6391 = vld [vmem:[%s6384 + $0x30] sm:$0xff]
        %v6392 = vld [vmem:[%s6384 + $0x38] sm:$0xff]
        %v6393 = vld [vmem:[%s6384 + $0x40] sm:$0xff]
        %v6394 = vld [vmem:[%s6384 + $0x48] sm:$0xff]
        %v6395 = vld [vmem:[%s6384 + $0x50] sm:$0xff]
        %v6396 = vld [vmem:[%s6384 + $0x58] sm:$0xff]
        %s6397 = scalar_lea.vmem %s5, 96
        %v6398 = vld [vmem:[%s6397] sm:$0xf]
        %v6399 = vld [vmem:[%s6397 + $0x4] sm:$0xf]
        %v6400 = vld [vmem:[%s6397 + $0x8] sm:$0xf]
        %v6401 = vld [vmem:[%s6397 + $0xc] sm:$0xf]
        %v6402 = vld [vmem:[%s6397 + $0x10] sm:$0xf]
        %v6403 = vld [vmem:[%s6397 + $0x14] sm:$0xf]
        %v6404 = vld [vmem:[%s6397 + $0x18] sm:$0xf]
        %v6405 = vld [vmem:[%s6397 + $0x1c] sm:$0xf]
        %v6406 = vld [vmem:[%s6397 + $0x20] sm:$0xf]
        %v6407 = vld [vmem:[%s6397 + $0x24] sm:$0xf]
        %v6408 = vld [vmem:[%s6397 + $0x28] sm:$0xf]
        %v6409 = vld [vmem:[%s6397 + $0x2c] sm:$0xf]
        %v6410 = vld [vmem:[%s6397 + $0x30] sm:$0xf]
        %v6411 = vld [vmem:[%s6397 + $0x34] sm:$0xf]
        %v6412 = vld [vmem:[%s6397 + $0x38] sm:$0xf]
        %v6413 = vld [vmem:[%s6397 + $0x3c] sm:$0xf]
        %v6414 = vld [vmem:[%s6397 + $0x40] sm:$0xf]
        %v6415 = vld [vmem:[%s6397 + $0x44] sm:$0xf]
        %v6416 = vld [vmem:[%s6397 + $0x48] sm:$0xf]
        %v6417 = vld [vmem:[%s6397 + $0x4c] sm:$0xf]
        %v6418 = vld [vmem:[%s6397 + $0x50] sm:$0xf]
        %v6419 = vld [vmem:[%s6397 + $0x54] sm:$0xf]
        %v6420 = vld [vmem:[%s6397 + $0x58] sm:$0xf]
        %v6421 = vld [vmem:[%s6397 + $0x5c] sm:$0xf]
        %v6434 = vunpack.c.l.b16 %v6385
        %v6435 = vunpack.c.h.b16 %v6385
        %v6436 = vunpack.c.l.b16 %v6386
        %v6437 = vunpack.c.h.b16 %v6386
        %v6438 = vunpack.c.l.b16 %v6387
        %v6439 = vunpack.c.h.b16 %v6387
        %v6440 = vunpack.c.l.b16 %v6388
        %v6441 = vunpack.c.h.b16 %v6388
        %v6442 = vunpack.c.l.b16 %v6389
        %v6443 = vunpack.c.h.b16 %v6389
        %v6444 = vunpack.c.l.b16 %v6390
        %v6445 = vunpack.c.h.b16 %v6390
        %v6446 = vunpack.c.l.b16 %v6391
        %v6447 = vunpack.c.h.b16 %v6391
        %v6448 = vunpack.c.l.b16 %v6392
        %v6449 = vunpack.c.h.b16 %v6392
        %v6450 = vunpack.c.l.b16 %v6393
        %v6451 = vunpack.c.h.b16 %v6393
        %v6452 = vunpack.c.l.b16 %v6394
        %v6453 = vunpack.c.h.b16 %v6394
        %v6454 = vunpack.c.l.b16 %v6395
        %v6455 = vunpack.c.h.b16 %v6395
        %v6456 = vunpack.c.l.b16 %v6396
        %v6457 = vunpack.c.h.b16 %v6396
        %v6458 = vpack.c.b16 %v6436, %v6434
        %v6459 = vpack.c.b16 %v6437, %v6435
        %v6460 = vpack.c.b16 %v6440, %v6438
        %v6461 = vpack.c.b16 %v6441, %v6439
        %v6462 = vpack.c.b16 %v6444, %v6442
        %v6463 = vpack.c.b16 %v6445, %v6443
        %v6464 = vpack.c.b16 %v6448, %v6446
        %v6465 = vpack.c.b16 %v6449, %v6447
        %v6466 = vpack.c.b16 %v6452, %v6450
        %v6467 = vpack.c.b16 %v6453, %v6451
        %v6468 = vpack.c.b16 %v6456, %v6454
        %v6469 = vpack.c.b16 %v6457, %v6455
        %v6500 = vunpack.c.l.b16 %v6398
        %v6501 = vunpack.c.l.b16 %v6399
        %v6502 = vunpack.c.l.b16 %v6400
        %v6503 = vunpack.c.l.b16 %v6401
        %v6504 = vunpack.c.l.b16 %v6402
        %v6505 = vunpack.c.l.b16 %v6403
        %v6506 = vunpack.c.l.b16 %v6404
        %v6507 = vunpack.c.l.b16 %v6405
        %v6508 = vunpack.c.l.b16 %v6406
        %v6509 = vunpack.c.l.b16 %v6407
        %v6510 = vunpack.c.l.b16 %v6408
        %v6511 = vunpack.c.l.b16 %v6409
        %v6512 = vunpack.c.l.b16 %v6410
        %v6513 = vunpack.c.l.b16 %v6411
        %v6514 = vunpack.c.l.b16 %v6412
        %v6515 = vunpack.c.l.b16 %v6413
        %v6516 = vunpack.c.l.b16 %v6414
        %v6517 = vunpack.c.l.b16 %v6415
        %v6518 = vunpack.c.l.b16 %v6416
        %v6519 = vunpack.c.l.b16 %v6417
        %v6520 = vunpack.c.l.b16 %v6418
        %v6521 = vunpack.c.l.b16 %v6419
        %v6522 = vunpack.c.l.b16 %v6420
        %v6523 = vunpack.c.l.b16 %v6421
        %v6524 = vpack.c.b16 %v6501, %v6500
        %v6525 = vpack.c.b16 %v6503, %v6502
        %v6526 = vpack.c.b16 %v6505, %v6504
        %v6527 = vpack.c.b16 %v6507, %v6506
        %v6528 = vpack.c.b16 %v6509, %v6508
        %v6529 = vpack.c.b16 %v6511, %v6510
        %v6530 = vpack.c.b16 %v6513, %v6512
        %v6531 = vpack.c.b16 %v6515, %v6514
        %v6532 = vpack.c.b16 %v6517, %v6516
        %v6533 = vpack.c.b16 %v6519, %v6518
        %v6534 = vpack.c.b16 %v6521, %v6520
        %v6535 = vpack.c.b16 %v6523, %v6522
        %v6549 = vsel %vm3471, %v6459, 0
        %v6552 = vsel %vm3471, %v6461, 0
        %v6555 = vsel %vm3471, %v6463, 0
        %v6558 = vsel %vm3471, %v6465, 0
        %v6561 = vsel %vm3471, %v6467, 0
        %v6564 = vsel %vm3471, %v6469, 0
        %6566 = vmatpush.bf16.msra.mxu0 %v6531
        %6567 = vmatpush.bf16.msra.mxu0 %v6530
        %6568 = vmatpush.bf16.msra.mxu0 %v6529
        %6569 = vmatpush.bf16.msra.mxu0 %v6528
        %6570 = vmatpush.bf16.msra.mxu0 %v6527
        %6571 = vmatpush.bf16.msra.mxu0 %v6526
        %6572 = vmatpush.bf16.msra.mxu0 %v6525
        %6573 = vmatpush.bf16.msra.mxu0 %v6524
        %6574 = vmatmul.bf16.gmra.mxu0 %v6458
        %v6575 = vpop.f32.mrf.mxu0
        %v6576 = vadd.f32 0.0, %v6575
        %v6577 = vpop.f32.mrf.mxu0
        %6578 = vmatmul.bf16.gmra.mxu0 %v6460
        %v6579 = vpop.f32.mrf.mxu0
        %v6580 = vadd.f32 0.0, %v6579
        %v6581 = vpop.f32.mrf.mxu0
        %6582 = vmatmul.bf16.gmra.mxu0 %v6462
        %v6583 = vpop.f32.mrf.mxu0
        %v6584 = vadd.f32 0.0, %v6583
        %v6585 = vpop.f32.mrf.mxu0
        %6586 = vmatmul.bf16.gmra.mxu0 %v6464
        %v6587 = vpop.f32.mrf.mxu0
        %v6588 = vadd.f32 0.0, %v6587
        %v6589 = vpop.f32.mrf.mxu0
        %6590 = vmatmul.bf16.gmra.mxu0 %v6466
        %v6591 = vpop.f32.mrf.mxu0
        %v6592 = vadd.f32 0.0, %v6591
        %v6593 = vpop.f32.mrf.mxu0
        %6594 = vmatmul.bf16.gmra.mxu0 %v6468
        %v6595 = vpop.f32.mrf.mxu0
        %v6596 = vadd.f32 0.0, %v6595
        %v6597 = vpop.f32.mrf.mxu0
        %6598 = vdwg.mxu0
        %6599 = vmatpush.bf16.msra.mxu0 0
        %6600 = vmatpush.bf16.msra.mxu0 0
        %6601 = vmatpush.bf16.msra.mxu0 0
        %6602 = vmatpush.bf16.msra.mxu0 0
        %6603 = vmatpush.bf16.msra.mxu0 %v6535
        %6604 = vmatpush.bf16.msra.mxu0 %v6534
        %6605 = vmatpush.bf16.msra.mxu0 %v6533
        %6606 = vmatpush.bf16.msra.mxu0 %v6532
        %6607 = vmatmul.bf16.gmra.mxu0 %v6549
        %v6608 = vpop.f32.mrf.mxu0
        %v6609 = vadd.f32 %v6576, %v6608
        %v6610 = vpop.f32.mrf.mxu0
        %6611 = vmatmul.bf16.gmra.mxu0 %v6552
        %v6612 = vpop.f32.mrf.mxu0
        %v6613 = vadd.f32 %v6580, %v6612
        %v6614 = vpop.f32.mrf.mxu0
        %6615 = vmatmul.bf16.gmra.mxu0 %v6555
        %v6616 = vpop.f32.mrf.mxu0
        %v6617 = vadd.f32 %v6584, %v6616
        %v6618 = vpop.f32.mrf.mxu0
        %6619 = vmatmul.bf16.gmra.mxu0 %v6558
        %v6620 = vpop.f32.mrf.mxu0
        %v6621 = vadd.f32 %v6588, %v6620
        %v6622 = vpop.f32.mrf.mxu0
        %6623 = vmatmul.bf16.gmra.mxu0 %v6561
        %v6624 = vpop.f32.mrf.mxu0
        %v6625 = vadd.f32 %v6592, %v6624
        %v6626 = vpop.f32.mrf.mxu0
        %6627 = vmatmul.bf16.gmra.mxu0 %v6564
        %v6628 = vpop.f32.mrf.mxu0
        %v6629 = vadd.f32 %v6596, %v6628
        %v6630 = vpop.f32.mrf.mxu0
        %6631 = vdwg.mxu0
        %v6644 = vunpack.c.l.b16 %v6348
        %v6645 = vunpack.c.h.b16 %v6348
        %v6646 = vunpack.c.l.b16 %v6349
        %v6647 = vunpack.c.h.b16 %v6349
        %v6648 = vunpack.c.l.b16 %v6350
        %v6649 = vunpack.c.h.b16 %v6350
        %v6650 = vunpack.c.l.b16 %v6351
        %v6651 = vunpack.c.h.b16 %v6351
        %v6652 = vunpack.c.l.b16 %v6352
        %v6653 = vunpack.c.h.b16 %v6352
        %v6654 = vunpack.c.l.b16 %v6353
        %v6655 = vunpack.c.h.b16 %v6353
        %v6656 = vunpack.c.l.b16 %v6354
        %v6657 = vunpack.c.h.b16 %v6354
        %v6658 = vunpack.c.l.b16 %v6355
        %v6659 = vunpack.c.h.b16 %v6355
        %v6660 = vunpack.c.l.b16 %v6356
        %v6661 = vunpack.c.h.b16 %v6356
        %v6662 = vunpack.c.l.b16 %v6357
        %v6663 = vunpack.c.h.b16 %v6357
        %v6664 = vunpack.c.l.b16 %v6358
        %v6665 = vunpack.c.h.b16 %v6358
        %v6666 = vunpack.c.l.b16 %v6359
        %v6667 = vunpack.c.h.b16 %v6359
        %v6668 = vpack.c.b16 %v6646, %v6644
        %v6669 = vpack.c.b16 %v6647, %v6645
        %v6670 = vpack.c.b16 %v6650, %v6648
        %v6671 = vpack.c.b16 %v6651, %v6649
        %v6672 = vpack.c.b16 %v6654, %v6652
        %v6673 = vpack.c.b16 %v6655, %v6653
        %v6674 = vpack.c.b16 %v6658, %v6656
        %v6675 = vpack.c.b16 %v6659, %v6657
        %v6676 = vpack.c.b16 %v6662, %v6660
        %v6677 = vpack.c.b16 %v6663, %v6661
        %v6678 = vpack.c.b16 %v6666, %v6664
        %v6679 = vpack.c.b16 %v6667, %v6665
        %v6710 = vunpack.c.l.b16 %v6360
        %v6711 = vunpack.c.l.b16 %v6361
        %v6712 = vunpack.c.l.b16 %v6362
        %v6713 = vunpack.c.l.b16 %v6363
        %v6714 = vunpack.c.l.b16 %v6364
        %v6715 = vunpack.c.l.b16 %v6365
        %v6716 = vunpack.c.l.b16 %v6366
        %v6717 = vunpack.c.l.b16 %v6367
        %v6718 = vunpack.c.l.b16 %v6368
        %v6719 = vunpack.c.l.b16 %v6369
        %v6720 = vunpack.c.l.b16 %v6370
        %v6721 = vunpack.c.l.b16 %v6371
        %v6722 = vunpack.c.l.b16 %v6372
        %v6723 = vunpack.c.l.b16 %v6373
        %v6724 = vunpack.c.l.b16 %v6374
        %v6725 = vunpack.c.l.b16 %v6375
        %v6726 = vunpack.c.l.b16 %v6376
        %v6727 = vunpack.c.l.b16 %v6377
        %v6728 = vunpack.c.l.b16 %v6378
        %v6729 = vunpack.c.l.b16 %v6379
        %v6730 = vunpack.c.l.b16 %v6380
        %v6731 = vunpack.c.l.b16 %v6381
        %v6732 = vunpack.c.l.b16 %v6382
        %v6733 = vunpack.c.l.b16 %v6383
        %v6734 = vpack.c.b16 %v6711, %v6710
        %v6735 = vpack.c.b16 %v6713, %v6712
        %v6736 = vpack.c.b16 %v6715, %v6714
        %v6737 = vpack.c.b16 %v6717, %v6716
        %v6738 = vpack.c.b16 %v6719, %v6718
        %v6739 = vpack.c.b16 %v6721, %v6720
        %v6740 = vpack.c.b16 %v6723, %v6722
        %v6741 = vpack.c.b16 %v6725, %v6724
        %v6742 = vpack.c.b16 %v6727, %v6726
        %v6743 = vpack.c.b16 %v6729, %v6728
        %v6744 = vpack.c.b16 %v6731, %v6730
        %v6745 = vpack.c.b16 %v6733, %v6732
        %v6759 = vsel %vm3471, %v6669, 0
        %v6762 = vsel %vm3471, %v6671, 0
        %v6765 = vsel %vm3471, %v6673, 0
        %v6768 = vsel %vm3471, %v6675, 0
        %v6771 = vsel %vm3471, %v6677, 0
        %v6774 = vsel %vm3471, %v6679, 0
        %6776 = vmatpush.bf16.msra.mxu0 %v6741
        %6777 = vmatpush.bf16.msra.mxu0 %v6740
        %6778 = vmatpush.bf16.msra.mxu0 %v6739
        %6779 = vmatpush.bf16.msra.mxu0 %v6738
        %6780 = vmatpush.bf16.msra.mxu0 %v6737
        %6781 = vmatpush.bf16.msra.mxu0 %v6736
        %6782 = vmatpush.bf16.msra.mxu0 %v6735
        %6783 = vmatpush.bf16.msra.mxu0 %v6734
        %6784 = vmatmul.bf16.gmra.mxu0 %v6668
        %v6785 = vpop.f32.mrf.mxu0
        %v6786 = vadd.f32 %v6609, %v6785
        %v6787 = vpop.f32.mrf.mxu0
        %6788 = vmatmul.bf16.gmra.mxu0 %v6670
        %v6789 = vpop.f32.mrf.mxu0
        %v6790 = vadd.f32 %v6613, %v6789
        %v6791 = vpop.f32.mrf.mxu0
        %6792 = vmatmul.bf16.gmra.mxu0 %v6672
        %v6793 = vpop.f32.mrf.mxu0
        %v6794 = vadd.f32 %v6617, %v6793
        %v6795 = vpop.f32.mrf.mxu0
        %6796 = vmatmul.bf16.gmra.mxu0 %v6674
        %v6797 = vpop.f32.mrf.mxu0
        %v6798 = vadd.f32 %v6621, %v6797
        %v6799 = vpop.f32.mrf.mxu0
        %6800 = vmatmul.bf16.gmra.mxu0 %v6676
        %v6801 = vpop.f32.mrf.mxu0
        %v6802 = vadd.f32 %v6625, %v6801
        %v6803 = vpop.f32.mrf.mxu0
        %6804 = vmatmul.bf16.gmra.mxu0 %v6678
        %v6805 = vpop.f32.mrf.mxu0
        %v6806 = vadd.f32 %v6629, %v6805
        %v6807 = vpop.f32.mrf.mxu0
        %6808 = vdwg.mxu0
        %6809 = vmatpush.bf16.msra.mxu0 0
        %6810 = vmatpush.bf16.msra.mxu0 0
        %6811 = vmatpush.bf16.msra.mxu0 0
        %6812 = vmatpush.bf16.msra.mxu0 0
        %6813 = vmatpush.bf16.msra.mxu0 %v6745
        %6814 = vmatpush.bf16.msra.mxu0 %v6744
        %6815 = vmatpush.bf16.msra.mxu0 %v6743
        %6816 = vmatpush.bf16.msra.mxu0 %v6742
        %6817 = vmatmul.bf16.gmra.mxu0 %v6759
        %v6818 = vpop.f32.mrf.mxu0
        %v6819 = vadd.f32 %v6786, %v6818
        %v6820 = vpop.f32.mrf.mxu0
        %6821 = vmatmul.bf16.gmra.mxu0 %v6762
        %v6822 = vpop.f32.mrf.mxu0
        %v6823 = vadd.f32 %v6790, %v6822
        %v6824 = vpop.f32.mrf.mxu0
        %6825 = vmatmul.bf16.gmra.mxu0 %v6765
        %v6826 = vpop.f32.mrf.mxu0
        %v6827 = vadd.f32 %v6794, %v6826
        %v6828 = vpop.f32.mrf.mxu0
        %6829 = vmatmul.bf16.gmra.mxu0 %v6768
        %v6830 = vpop.f32.mrf.mxu0
        %v6831 = vadd.f32 %v6798, %v6830
        %v6832 = vpop.f32.mrf.mxu0
        %6833 = vmatmul.bf16.gmra.mxu0 %v6771
        %v6834 = vpop.f32.mrf.mxu0
        %v6835 = vadd.f32 %v6802, %v6834
        %v6836 = vpop.f32.mrf.mxu0
        %6837 = vmatmul.bf16.gmra.mxu0 %v6774
        %v6838 = vpop.f32.mrf.mxu0
        %v6839 = vadd.f32 %v6806, %v6838
        %v6840 = vpop.f32.mrf.mxu0
        %6841 = vdwg.mxu0
        %s6842 = scalar_lea.vmem [#allocation3], 32
        %v6843 = vld [vmem:[%s6842] sm:$0xff]
        %v6844 = vld [vmem:[%s6842 + $0x8] sm:$0xff]
        %v6845 = vld [vmem:[%s6842 + $0x10] sm:$0xff]
        %v6846 = vld [vmem:[%s6842 + $0x18] sm:$0xff]
        %v6847 = vld [vmem:[%s6842 + $0x20] sm:$0xff]
        %v6848 = vld [vmem:[%s6842 + $0x28] sm:$0xff]
        %v6849 = vld [vmem:[%s6842 + $0x30] sm:$0xff]
        %v6850 = vld [vmem:[%s6842 + $0x38] sm:$0xff]
        %v6851 = vld [vmem:[%s6842 + $0x40] sm:$0xff]
        %v6852 = vld [vmem:[%s6842 + $0x48] sm:$0xff]
        %v6853 = vld [vmem:[%s6842 + $0x50] sm:$0xff]
        %v6854 = vld [vmem:[%s6842 + $0x58] sm:$0xff]
        %s6855 = scalar_lea.vmem %s5, 192
        %v6856 = vld [vmem:[%s6855] sm:$0xf]
        %v6857 = vld [vmem:[%s6855 + $0x4] sm:$0xf]
        %v6858 = vld [vmem:[%s6855 + $0x8] sm:$0xf]
        %v6859 = vld [vmem:[%s6855 + $0xc] sm:$0xf]
        %v6860 = vld [vmem:[%s6855 + $0x10] sm:$0xf]
        %v6861 = vld [vmem:[%s6855 + $0x14] sm:$0xf]
        %v6862 = vld [vmem:[%s6855 + $0x18] sm:$0xf]
        %v6863 = vld [vmem:[%s6855 + $0x1c] sm:$0xf]
        %v6864 = vld [vmem:[%s6855 + $0x20] sm:$0xf]
        %v6865 = vld [vmem:[%s6855 + $0x24] sm:$0xf]
        %v6866 = vld [vmem:[%s6855 + $0x28] sm:$0xf]
        %v6867 = vld [vmem:[%s6855 + $0x2c] sm:$0xf]
        %v6868 = vld [vmem:[%s6855 + $0x30] sm:$0xf]
        %v6869 = vld [vmem:[%s6855 + $0x34] sm:$0xf]
        %v6870 = vld [vmem:[%s6855 + $0x38] sm:$0xf]
        %v6871 = vld [vmem:[%s6855 + $0x3c] sm:$0xf]
        %v6872 = vld [vmem:[%s6855 + $0x40] sm:$0xf]
        %v6873 = vld [vmem:[%s6855 + $0x44] sm:$0xf]
        %v6874 = vld [vmem:[%s6855 + $0x48] sm:$0xf]
        %v6875 = vld [vmem:[%s6855 + $0x4c] sm:$0xf]
        %v6876 = vld [vmem:[%s6855 + $0x50] sm:$0xf]
        %v6877 = vld [vmem:[%s6855 + $0x54] sm:$0xf]
        %v6878 = vld [vmem:[%s6855 + $0x58] sm:$0xf]
        %v6879 = vld [vmem:[%s6855 + $0x5c] sm:$0xf]
        %v6892 = vunpack.c.l.b16 %v6843
        %v6893 = vunpack.c.h.b16 %v6843
        %v6894 = vunpack.c.l.b16 %v6844
        %v6895 = vunpack.c.h.b16 %v6844
        %v6896 = vunpack.c.l.b16 %v6845
        %v6897 = vunpack.c.h.b16 %v6845
        %v6898 = vunpack.c.l.b16 %v6846
        %v6899 = vunpack.c.h.b16 %v6846
        %v6900 = vunpack.c.l.b16 %v6847
        %v6901 = vunpack.c.h.b16 %v6847
        %v6902 = vunpack.c.l.b16 %v6848
        %v6903 = vunpack.c.h.b16 %v6848
        %v6904 = vunpack.c.l.b16 %v6849
        %v6905 = vunpack.c.h.b16 %v6849
        %v6906 = vunpack.c.l.b16 %v6850
        %v6907 = vunpack.c.h.b16 %v6850
        %v6908 = vunpack.c.l.b16 %v6851
        %v6909 = vunpack.c.h.b16 %v6851
        %v6910 = vunpack.c.l.b16 %v6852
        %v6911 = vunpack.c.h.b16 %v6852
        %v6912 = vunpack.c.l.b16 %v6853
        %v6913 = vunpack.c.h.b16 %v6853
        %v6914 = vunpack.c.l.b16 %v6854
        %v6915 = vunpack.c.h.b16 %v6854
        %v6916 = vpack.c.b16 %v6894, %v6892
        %v6917 = vpack.c.b16 %v6895, %v6893
        %v6918 = vpack.c.b16 %v6898, %v6896
        %v6919 = vpack.c.b16 %v6899, %v6897
        %v6920 = vpack.c.b16 %v6902, %v6900
        %v6921 = vpack.c.b16 %v6903, %v6901
        %v6922 = vpack.c.b16 %v6906, %v6904
        %v6923 = vpack.c.b16 %v6907, %v6905
        %v6924 = vpack.c.b16 %v6910, %v6908
        %v6925 = vpack.c.b16 %v6911, %v6909
        %v6926 = vpack.c.b16 %v6914, %v6912
        %v6927 = vpack.c.b16 %v6915, %v6913
        %v6958 = vunpack.c.l.b16 %v6856
        %v6959 = vunpack.c.l.b16 %v6857
        %v6960 = vunpack.c.l.b16 %v6858
        %v6961 = vunpack.c.l.b16 %v6859
        %v6962 = vunpack.c.l.b16 %v6860
        %v6963 = vunpack.c.l.b16 %v6861
        %v6964 = vunpack.c.l.b16 %v6862
        %v6965 = vunpack.c.l.b16 %v6863
        %v6966 = vunpack.c.l.b16 %v6864
        %v6967 = vunpack.c.l.b16 %v6865
        %v6968 = vunpack.c.l.b16 %v6866
        %v6969 = vunpack.c.l.b16 %v6867
        %v6970 = vunpack.c.l.b16 %v6868
        %v6971 = vunpack.c.l.b16 %v6869
        %v6972 = vunpack.c.l.b16 %v6870
        %v6973 = vunpack.c.l.b16 %v6871
        %v6974 = vunpack.c.l.b16 %v6872
        %v6975 = vunpack.c.l.b16 %v6873
        %v6976 = vunpack.c.l.b16 %v6874
        %v6977 = vunpack.c.l.b16 %v6875
        %v6978 = vunpack.c.l.b16 %v6876
        %v6979 = vunpack.c.l.b16 %v6877
        %v6980 = vunpack.c.l.b16 %v6878
        %v6981 = vunpack.c.l.b16 %v6879
        %v6982 = vpack.c.b16 %v6959, %v6958
        %v6983 = vpack.c.b16 %v6961, %v6960
        %v6984 = vpack.c.b16 %v6963, %v6962
        %v6985 = vpack.c.b16 %v6965, %v6964
        %v6986 = vpack.c.b16 %v6967, %v6966
        %v6987 = vpack.c.b16 %v6969, %v6968
        %v6988 = vpack.c.b16 %v6971, %v6970
        %v6989 = vpack.c.b16 %v6973, %v6972
        %v6990 = vpack.c.b16 %v6975, %v6974
        %v6991 = vpack.c.b16 %v6977, %v6976
        %v6992 = vpack.c.b16 %v6979, %v6978
        %v6993 = vpack.c.b16 %v6981, %v6980
        %v7007 = vsel %vm3471, %v6917, 0
        %v7010 = vsel %vm3471, %v6919, 0
        %v7013 = vsel %vm3471, %v6921, 0
        %v7016 = vsel %vm3471, %v6923, 0
        %v7019 = vsel %vm3471, %v6925, 0
        %v7022 = vsel %vm3471, %v6927, 0
        %7024 = vmatpush.bf16.msra.mxu0 %v6989
        %7025 = vmatpush.bf16.msra.mxu0 %v6988
        %7026 = vmatpush.bf16.msra.mxu0 %v6987
        %7027 = vmatpush.bf16.msra.mxu0 %v6986
        %7028 = vmatpush.bf16.msra.mxu0 %v6985
        %7029 = vmatpush.bf16.msra.mxu0 %v6984
        %7030 = vmatpush.bf16.msra.mxu0 %v6983
        %7031 = vmatpush.bf16.msra.mxu0 %v6982
        %7032 = vmatmul.bf16.gmra.mxu0 %v6916
        %v7033 = vpop.f32.mrf.mxu0
        %v7034 = vadd.f32 0.0, %v7033
        %v7035 = vpop.f32.mrf.mxu0
        %7036 = vmatmul.bf16.gmra.mxu0 %v6918
        %v7037 = vpop.f32.mrf.mxu0
        %v7038 = vadd.f32 0.0, %v7037
        %v7039 = vpop.f32.mrf.mxu0
        %7040 = vmatmul.bf16.gmra.mxu0 %v6920
        %v7041 = vpop.f32.mrf.mxu0
        %v7042 = vadd.f32 0.0, %v7041
        %v7043 = vpop.f32.mrf.mxu0
        %7044 = vmatmul.bf16.gmra.mxu0 %v6922
        %v7045 = vpop.f32.mrf.mxu0
        %v7046 = vadd.f32 0.0, %v7045
        %v7047 = vpop.f32.mrf.mxu0
        %7048 = vmatmul.bf16.gmra.mxu0 %v6924
        %v7049 = vpop.f32.mrf.mxu0
        %v7050 = vadd.f32 0.0, %v7049
        %v7051 = vpop.f32.mrf.mxu0
        %7052 = vmatmul.bf16.gmra.mxu0 %v6926
        %v7053 = vpop.f32.mrf.mxu0
        %v7054 = vadd.f32 0.0, %v7053
        %v7055 = vpop.f32.mrf.mxu0
        %7056 = vdwg.mxu0
        %7057 = vmatpush.bf16.msra.mxu0 0
        %7058 = vmatpush.bf16.msra.mxu0 0
        %7059 = vmatpush.bf16.msra.mxu0 0
        %7060 = vmatpush.bf16.msra.mxu0 0
        %7061 = vmatpush.bf16.msra.mxu0 %v6993
        %7062 = vmatpush.bf16.msra.mxu0 %v6992
        %7063 = vmatpush.bf16.msra.mxu0 %v6991
        %7064 = vmatpush.bf16.msra.mxu0 %v6990
        %7065 = vmatmul.bf16.gmra.mxu0 %v7007
        %v7066 = vpop.f32.mrf.mxu0
        %v7067 = vadd.f32 %v7034, %v7066
        %v7068 = vpop.f32.mrf.mxu0
        %7069 = vmatmul.bf16.gmra.mxu0 %v7010
        %v7070 = vpop.f32.mrf.mxu0
        %v7071 = vadd.f32 %v7038, %v7070
        %v7072 = vpop.f32.mrf.mxu0
        %7073 = vmatmul.bf16.gmra.mxu0 %v7013
        %v7074 = vpop.f32.mrf.mxu0
        %v7075 = vadd.f32 %v7042, %v7074
        %v7076 = vpop.f32.mrf.mxu0
        %7077 = vmatmul.bf16.gmra.mxu0 %v7016
        %v7078 = vpop.f32.mrf.mxu0
        %v7079 = vadd.f32 %v7046, %v7078
        %v7080 = vpop.f32.mrf.mxu0
        %7081 = vmatmul.bf16.gmra.mxu0 %v7019
        %v7082 = vpop.f32.mrf.mxu0
        %v7083 = vadd.f32 %v7050, %v7082
        %v7084 = vpop.f32.mrf.mxu0
        %7085 = vmatmul.bf16.gmra.mxu0 %v7022
        %v7086 = vpop.f32.mrf.mxu0
        %v7087 = vadd.f32 %v7054, %v7086
        %v7088 = vpop.f32.mrf.mxu0
        %7089 = vdwg.mxu0
        %v7090 = vadd.f32 %v6819, %v7067
        %v7091 = vadd.f32 %v6823, %v7071
        %v7092 = vadd.f32 %v6827, %v7075
        %v7093 = vadd.f32 %v6831, %v7079
        %v7094 = vadd.f32 %v6835, %v7083
        %v7095 = vadd.f32 %v6839, %v7087
        %v7096 = vld [vmem:[%s6] sm:$0x1]
        %v7098 = vperm.slane %v7096, 0
        %v7100 = vadd.f32 %v7090, %v7098
        %v7101 = vadd.f32 %v7091, %v7098
        %v7102 = vadd.f32 %v7092, %v7098
        %v7103 = vadd.f32 %v7093, %v7098
        %v7104 = vadd.f32 %v7094, %v7098
        %v7105 = vadd.f32 %v7095, %v7098
        %v7106 = vmax.f32 %v7100, 0.0
        %v7107 = vmax.f32 %v7101, 0.0
        %v7108 = vmax.f32 %v7102, 0.0
        %v7109 = vmax.f32 %v7103, 0.0
        %v7110 = vmax.f32 %v7104, 0.0
        %v7111 = vmax.f32 %v7105, 0.0
        %s7112 = ssub.s32 %s361, 1
        %v7113 = vstv %s7112
        %v7114 = vadd.s32 %v7113, 1
        %v7115 = vadd.s32 %v7113, 2
        %v7116 = vadd.s32 %v7113, 3
        %v7117 = vadd.s32 %v7113, 4
        %v7118 = vadd.s32 %v7113, 5
        %vm7119 = vcmp.ge.s32.totalorder %v7113, 0
        %vm7120 = vcmp.ge.s32.totalorder %v7114, 0
        %vm7121 = vcmp.ge.s32.totalorder %v7115, 0
        %vm7122 = vcmp.ge.s32.totalorder %v7116, 0
        %vm7123 = vcmp.ge.s32.totalorder %v7117, 0
        %vm7124 = vcmp.ge.s32.totalorder %v7118, 0
        %vm7125 = vcmp.lt.s32.totalorder %v7113, 8
        %vm7126 = vcmp.lt.s32.totalorder %v7114, 8
        %vm7127 = vcmp.lt.s32.totalorder %v7115, 8
        %vm7128 = vcmp.lt.s32.totalorder %v7116, 8
        %vm7129 = vcmp.lt.s32.totalorder %v7117, 8
        %vm7130 = vcmp.lt.s32.totalorder %v7118, 8
        %vm7131 = vmand %vm7119, %vm7125
        %vm7132 = vmand %vm7120, %vm7126
        %vm7133 = vmand %vm7121, %vm7127
        %vm7134 = vmand %vm7122, %vm7128
        %vm7135 = vmand %vm7123, %vm7129
        %vm7136 = vmand %vm7124, %vm7130
        %v7137 = vsel %vm7131, 1, 0
        %v7138 = vsel %vm7132, 1, 0
        %v7139 = vsel %vm7133, 1, 0
        %v7140 = vsel %vm7134, 1, 0
        %v7141 = vsel %vm7135, 1, 0
        %v7142 = vsel %vm7136, 1, 0
        %v7143 = vcvt.s32.f32 %v7137
        %v7144 = vcvt.s32.f32 %v7138
        %v7145 = vcvt.s32.f32 %v7139
        %v7146 = vcvt.s32.f32 %v7140
        %v7147 = vcvt.s32.f32 %v7141
        %v7148 = vcvt.s32.f32 %v7142
        %v7149 = vmul.f32 %v7106, %v7143
        %v7150 = vmul.f32 %v7107, %v7144
        %v7151 = vmul.f32 %v7108, %v7145
        %v7152 = vmul.f32 %v7109, %v7146
        %v7153 = vmul.f32 %v7110, %v7147
        %v7154 = vmul.f32 %v7111, %v7148
        %v7155 = vpack.c.bf16 %v7149, %v7149
        %v7156 = vpack.c.bf16 %v7150, %v7150
        %v7157 = vpack.c.bf16 %v7151, %v7151
        %v7158 = vpack.c.bf16 %v7152, %v7152
        %v7159 = vpack.c.bf16 %v7153, %v7153
        %v7160 = vpack.c.bf16 %v7154, %v7154
        %vm7161 = vcmask 1040384
        %vm7162 = vmand %vm7161, %vm2171
        %v7163 = vld [vmem:[#allocation4] sm:$0x1]
        %v7164 = vsel %vm7162, 0, %v7163
        %7165 = vst [vmem:[#allocation4] sm:$0x1] %v7164
        %v7166 = vld [vmem:[#allocation4 + $0x18] sm:$0x1]
        %v7167 = vsel %vm7162, 0, %v7166
        %7168 = vst [vmem:[#allocation4 + $0x18] sm:$0x1] %v7167
        %v7169 = vld [vmem:[#allocation4 + $0x30] sm:$0x1]
        %v7170 = vsel %vm7162, 0, %v7169
        %7171 = vst [vmem:[#allocation4 + $0x30] sm:$0x1] %v7170
        %v7172 = vld [vmem:[#allocation4 + $0x48] sm:$0x1]
        %v7173 = vsel %vm7162, 0, %v7172
        %7174 = vst [vmem:[#allocation4 + $0x48] sm:$0x1] %v7173
        %v7175 = vld [vmem:[#allocation4 + $0x60] sm:$0x1]
        %v7176 = vsel %vm7162, 0, %v7175
        %7177 = vst [vmem:[#allocation4 + $0x60] sm:$0x1] %v7176
        %v7178 = vld [vmem:[#allocation4 + $0x78] sm:$0x1]
        %v7179 = vsel %vm7162, 0, %v7178
        %7180 = vst [vmem:[#allocation4 + $0x78] sm:$0x1] %v7179
        %vm7181 = vcmask 1043459
        %vm7182 = vmand %vm7181, %vm2228
        %v7183 = vld [vmem:[#allocation4 + $0x8] sm:$0x8]
        %v7184 = vsel %vm7182, 0, %v7183
        %7185 = vst [vmem:[#allocation4 + $0x8] sm:$0x8] %v7184
        %7186 = vst [vmem:[#allocation4 + $0x14] sm:$0xf] 0
        %v7187 = vld [vmem:[#allocation4 + $0x20] sm:$0x8]
        %v7188 = vsel %vm7182, 0, %v7187
        %7189 = vst [vmem:[#allocation4 + $0x20] sm:$0x8] %v7188
        %7190 = vst [vmem:[#allocation4 + $0x2c] sm:$0xf] 0
        %v7191 = vld [vmem:[#allocation4 + $0x38] sm:$0x8]
        %v7192 = vsel %vm7182, 0, %v7191
        %7193 = vst [vmem:[#allocation4 + $0x38] sm:$0x8] %v7192
        %7194 = vst [vmem:[#allocation4 + $0x44] sm:$0xf] 0
        %v7195 = vld [vmem:[#allocation4 + $0x50] sm:$0x8]
        %v7196 = vsel %vm7182, 0, %v7195
        %7197 = vst [vmem:[#allocation4 + $0x50] sm:$0x8] %v7196
        %7198 = vst [vmem:[#allocation4 + $0x5c] sm:$0xf] 0
        %v7199 = vld [vmem:[#allocation4 + $0x68] sm:$0x8]
        %v7200 = vsel %vm7182, 0, %v7199
        %7201 = vst [vmem:[#allocation4 + $0x68] sm:$0x8] %v7200
        %7202 = vst [vmem:[#allocation4 + $0x74] sm:$0xf] 0
        %v7203 = vld [vmem:[#allocation4 + $0x80] sm:$0x8]
        %v7204 = vsel %vm7182, 0, %v7203
        %7205 = vst [vmem:[#allocation4 + $0x80] sm:$0x8] %v7204
        %7206 = vst [vmem:[#allocation4 + $0x8c] sm:$0xf] 0
        %7207 = vst [vmem:[#allocation4 + $0xc] sm:$0xff] 0
        %7208 = vst [vmem:[#allocation4 + $0x24] sm:$0xff] 0
        %7209 = vst [vmem:[#allocation4 + $0x3c] sm:$0xff] 0
        %7210 = vst [vmem:[#allocation4 + $0x54] sm:$0xff] 0
        %7211 = vst [vmem:[#allocation4 + $0x6c] sm:$0xff] 0
        %7212 = vst [vmem:[#allocation4 + $0x84] sm:$0xff] 0
        %v7214 = vshrl.u32 %v7155, 16
        %v7216 = vrot.slane %v7214, 7
        %v7217 = vshll.u32 %v7155, 16
        %v7219 = vor.u32 %v7216, %v7217
        %v7221 = vshrl.u32 %v7156, 16
        %v7223 = vrot.slane %v7221, 7
        %v7224 = vshll.u32 %v7156, 16
        %v7226 = vor.u32 %v7223, %v7224
        %v7228 = vshrl.u32 %v7157, 16
        %v7230 = vrot.slane %v7228, 7
        %v7231 = vshll.u32 %v7157, 16
        %v7233 = vor.u32 %v7230, %v7231
        %v7235 = vshrl.u32 %v7158, 16
        %v7237 = vrot.slane %v7235, 7
        %v7238 = vshll.u32 %v7158, 16
        %v7240 = vor.u32 %v7237, %v7238
        %v7242 = vshrl.u32 %v7159, 16
        %v7244 = vrot.slane %v7242, 7
        %v7245 = vshll.u32 %v7159, 16
        %v7247 = vor.u32 %v7244, %v7245
        %v7249 = vshrl.u32 %v7160, 16
        %v7251 = vrot.slane %v7249, 7
        %v7252 = vshll.u32 %v7160, 16
        %v7254 = vor.u32 %v7251, %v7252
        %vm7261 = vcmask 1043456
        %vm7262 = vmand %vm7261, %vm2611
        %v7263 = vld [vmem:[#allocation4] sm:$0xf]
        %v7264 = vsel %vm7262, %v7219, %v7263
        %7265 = vst [vmem:[#allocation4] sm:$0xf] %v7264
        %v7266 = vld [vmem:[#allocation4 + $0x18] sm:$0xf]
        %v7267 = vsel %vm7262, %v7226, %v7266
        %7268 = vst [vmem:[#allocation4 + $0x18] sm:$0xf] %v7267
        %v7269 = vld [vmem:[#allocation4 + $0x30] sm:$0xf]
        %v7270 = vsel %vm7262, %v7233, %v7269
        %7271 = vst [vmem:[#allocation4 + $0x30] sm:$0xf] %v7270
        %v7272 = vld [vmem:[#allocation4 + $0x48] sm:$0xf]
        %v7273 = vsel %vm7262, %v7240, %v7272
        %7274 = vst [vmem:[#allocation4 + $0x48] sm:$0xf] %v7273
        %v7275 = vld [vmem:[#allocation4 + $0x60] sm:$0xf]
        %v7276 = vsel %vm7262, %v7247, %v7275
        %7277 = vst [vmem:[#allocation4 + $0x60] sm:$0xf] %v7276
        %v7278 = vld [vmem:[#allocation4 + $0x78] sm:$0xf]
        %v7279 = vsel %vm7262, %v7254, %v7278
        %7280 = vst [vmem:[#allocation4 + $0x78] sm:$0xf] %v7279
        %7281 = vst [vmem:[#allocation4 + $0x4] sm:$0xf] %v7155
        %7282 = vst [vmem:[#allocation4 + $0x1c] sm:$0xf] %v7156
        %7283 = vst [vmem:[#allocation4 + $0x34] sm:$0xf] %v7157
        %7284 = vst [vmem:[#allocation4 + $0x4c] sm:$0xf] %v7158
        %7285 = vst [vmem:[#allocation4 + $0x64] sm:$0xf] %v7159
        %7286 = vst [vmem:[#allocation4 + $0x7c] sm:$0xf] %v7160
        %v7287 = vrot.slane %v7214, 4
        %v7288 = vrot.slane %v7217, 5
        %v7289 = vor.u32 %v7287, %v7288
        %v7290 = vrot.slane %v7289, 4
        %v7291 = vrot.slane %v7221, 4
        %v7292 = vrot.slane %v7224, 5
        %v7293 = vor.u32 %v7291, %v7292
        %v7294 = vrot.slane %v7293, 4
        %v7295 = vrot.slane %v7228, 4
        %v7296 = vrot.slane %v7231, 5
        %v7297 = vor.u32 %v7295, %v7296
        %v7298 = vrot.slane %v7297, 4
        %v7299 = vrot.slane %v7235, 4
        %v7300 = vrot.slane %v7238, 5
        %v7301 = vor.u32 %v7299, %v7300
        %v7302 = vrot.slane %v7301, 4
        %v7303 = vrot.slane %v7242, 4
        %v7304 = vrot.slane %v7245, 5
        %v7305 = vor.u32 %v7303, %v7304
        %v7306 = vrot.slane %v7305, 4
        %v7307 = vrot.slane %v7249, 4
        %v7308 = vrot.slane %v7252, 5
        %v7309 = vor.u32 %v7307, %v7308
        %v7310 = vrot.slane %v7309, 4
        %vm7317 = vmand %vm7261, %vm2867
        %v7318 = vld [vmem:[#allocation4 + $0x8] sm:$0xf]
        %v7319 = vsel %vm7317, %v7290, %v7318
        %7320 = vst [vmem:[#allocation4 + $0x8] sm:$0xf] %v7319
        %v7321 = vld [vmem:[#allocation4 + $0x20] sm:$0xf]
        %v7322 = vsel %vm7317, %v7294, %v7321
        %7323 = vst [vmem:[#allocation4 + $0x20] sm:$0xf] %v7322
        %v7324 = vld [vmem:[#allocation4 + $0x38] sm:$0xf]
        %v7325 = vsel %vm7317, %v7298, %v7324
        %7326 = vst [vmem:[#allocation4 + $0x38] sm:$0xf] %v7325
        %v7327 = vld [vmem:[#allocation4 + $0x50] sm:$0xf]
        %v7328 = vsel %vm7317, %v7302, %v7327
        %7329 = vst [vmem:[#allocation4 + $0x50] sm:$0xf] %v7328
        %v7330 = vld [vmem:[#allocation4 + $0x68] sm:$0xf]
        %v7331 = vsel %vm7317, %v7306, %v7330
        %7332 = vst [vmem:[#allocation4 + $0x68] sm:$0xf] %v7331
        %v7333 = vld [vmem:[#allocation4 + $0x80] sm:$0xf]
        %v7334 = vsel %vm7317, %v7310, %v7333
        %7335 = vst [vmem:[#allocation4 + $0x80] sm:$0xf] %v7334
        %v7336 = vld [vmem:[#allocation4] sm:$0xff]
        %v7337 = vld [vmem:[#allocation4 + $0x8] sm:$0xf]
        %v7338 = vld [vmem:[#allocation4 + $0xc] sm:$0xff]
        %v7339 = vld [vmem:[#allocation4 + $0x14] sm:$0xf]
        %v7340 = vld [vmem:[#allocation4 + $0x18] sm:$0xff]
        %v7341 = vld [vmem:[#allocation4 + $0x20] sm:$0xf]
        %v7342 = vld [vmem:[#allocation4 + $0x24] sm:$0xff]
        %v7343 = vld [vmem:[#allocation4 + $0x2c] sm:$0xf]
        %v7344 = vld [vmem:[#allocation4 + $0x30] sm:$0xff]
        %v7345 = vld [vmem:[#allocation4 + $0x38] sm:$0xf]
        %v7346 = vld [vmem:[#allocation4 + $0x3c] sm:$0xff]
        %v7347 = vld [vmem:[#allocation4 + $0x44] sm:$0xf]
        %v7348 = vld [vmem:[#allocation4 + $0x48] sm:$0xff]
        %v7349 = vld [vmem:[#allocation4 + $0x50] sm:$0xf]
        %v7350 = vld [vmem:[#allocation4 + $0x54] sm:$0xff]
        %v7351 = vld [vmem:[#allocation4 + $0x5c] sm:$0xf]
        %v7352 = vld [vmem:[%s7] sm:$0xf]
        %v7353 = vld [vmem:[%s7 + $0x4] sm:$0xf]
        %v7354 = vld [vmem:[%s7 + $0x8] sm:$0xf]
        %v7355 = vld [vmem:[%s7 + $0xc] sm:$0xf]
        %v7356 = vld [vmem:[%s7 + $0x10] sm:$0xf]
        %v7357 = vld [vmem:[%s7 + $0x14] sm:$0xf]
        %v7358 = vld [vmem:[%s7 + $0x18] sm:$0xf]
        %v7359 = vld [vmem:[%s7 + $0x1c] sm:$0xf]
        %v7360 = vld [vmem:[%s7 + $0x20] sm:$0xf]
        %v7361 = vld [vmem:[%s7 + $0x24] sm:$0xf]
        %v7362 = vld [vmem:[%s7 + $0x28] sm:$0xf]
        %v7363 = vld [vmem:[%s7 + $0x2c] sm:$0xf]
        %v7364 = vld [vmem:[%s7 + $0x30] sm:$0xf]
        %v7365 = vld [vmem:[%s7 + $0x34] sm:$0xf]
        %v7366 = vld [vmem:[%s7 + $0x38] sm:$0xf]
        %v7367 = vld [vmem:[%s7 + $0x3c] sm:$0xf]
        %v7368 = vld [vmem:[%s7 + $0x40] sm:$0xf]
        %v7369 = vld [vmem:[%s7 + $0x44] sm:$0xf]
        %v7370 = vld [vmem:[%s7 + $0x48] sm:$0xf]
        %v7371 = vld [vmem:[%s7 + $0x4c] sm:$0xf]
        %v7372 = vld [vmem:[%s7 + $0x50] sm:$0xf]
        %v7373 = vld [vmem:[%s7 + $0x54] sm:$0xf]
        %v7374 = vld [vmem:[%s7 + $0x58] sm:$0xf]
        %v7375 = vld [vmem:[%s7 + $0x5c] sm:$0xf]
        %v7376 = vld [vmem:[%s7 + $0x60] sm:$0xf]
        %v7377 = vld [vmem:[%s7 + $0x64] sm:$0xf]
        %v7378 = vld [vmem:[%s7 + $0x68] sm:$0xf]
        %v7379 = vld [vmem:[%s7 + $0x6c] sm:$0xf]
        %v7380 = vld [vmem:[%s7 + $0x70] sm:$0xf]
        %v7381 = vld [vmem:[%s7 + $0x74] sm:$0xf]
        %v7382 = vld [vmem:[%s7 + $0x78] sm:$0xf]
        %v7383 = vld [vmem:[%s7 + $0x7c] sm:$0xf]
        %v7384 = vld [vmem:[%s7 + $0x80] sm:$0xf]
        %v7385 = vld [vmem:[%s7 + $0x84] sm:$0xf]
        %v7386 = vld [vmem:[%s7 + $0x88] sm:$0xf]
        %v7387 = vld [vmem:[%s7 + $0x8c] sm:$0xf]
        %v7388 = vld [vmem:[%s7 + $0x90] sm:$0xf]
        %v7389 = vld [vmem:[%s7 + $0x94] sm:$0xf]
        %v7390 = vld [vmem:[%s7 + $0x98] sm:$0xf]
        %v7391 = vld [vmem:[%s7 + $0x9c] sm:$0xf]
        %v7392 = vld [vmem:[%s7 + $0xa0] sm:$0xf]
        %v7393 = vld [vmem:[%s7 + $0xa4] sm:$0xf]
        %v7394 = vld [vmem:[%s7 + $0xa8] sm:$0xf]
        %v7395 = vld [vmem:[%s7 + $0xac] sm:$0xf]
        %v7396 = vld [vmem:[%s7 + $0xb0] sm:$0xf]
        %v7397 = vld [vmem:[%s7 + $0xb4] sm:$0xf]
        %v7398 = vld [vmem:[%s7 + $0xb8] sm:$0xf]
        %v7399 = vld [vmem:[%s7 + $0xbc] sm:$0xf]
        %s7400 = scalar_lea.vmem [#allocation4], 24
        %v7401 = vld [vmem:[%s7400] sm:$0xff]
        %v7402 = vld [vmem:[%s7400 + $0x8] sm:$0xf]
        %v7403 = vld [vmem:[%s7400 + $0xc] sm:$0xff]
        %v7404 = vld [vmem:[%s7400 + $0x14] sm:$0xf]
        %v7405 = vld [vmem:[%s7400 + $0x18] sm:$0xff]
        %v7406 = vld [vmem:[%s7400 + $0x20] sm:$0xf]
        %v7407 = vld [vmem:[%s7400 + $0x24] sm:$0xff]
        %v7408 = vld [vmem:[%s7400 + $0x2c] sm:$0xf]
        %v7409 = vld [vmem:[%s7400 + $0x30] sm:$0xff]
        %v7410 = vld [vmem:[%s7400 + $0x38] sm:$0xf]
        %v7411 = vld [vmem:[%s7400 + $0x3c] sm:$0xff]
        %v7412 = vld [vmem:[%s7400 + $0x44] sm:$0xf]
        %v7413 = vld [vmem:[%s7400 + $0x48] sm:$0xff]
        %v7414 = vld [vmem:[%s7400 + $0x50] sm:$0xf]
        %v7415 = vld [vmem:[%s7400 + $0x54] sm:$0xff]
        %v7416 = vld [vmem:[%s7400 + $0x5c] sm:$0xf]
        %s7417 = scalar_lea.vmem %s7, 192
        %v7418 = vld [vmem:[%s7417] sm:$0xf]
        %v7419 = vld [vmem:[%s7417 + $0x4] sm:$0xf]
        %v7420 = vld [vmem:[%s7417 + $0x8] sm:$0xf]
        %v7421 = vld [vmem:[%s7417 + $0xc] sm:$0xf]
        %v7422 = vld [vmem:[%s7417 + $0x10] sm:$0xf]
        %v7423 = vld [vmem:[%s7417 + $0x14] sm:$0xf]
        %v7424 = vld [vmem:[%s7417 + $0x18] sm:$0xf]
        %v7425 = vld [vmem:[%s7417 + $0x1c] sm:$0xf]
        %v7426 = vld [vmem:[%s7417 + $0x20] sm:$0xf]
        %v7427 = vld [vmem:[%s7417 + $0x24] sm:$0xf]
        %v7428 = vld [vmem:[%s7417 + $0x28] sm:$0xf]
        %v7429 = vld [vmem:[%s7417 + $0x2c] sm:$0xf]
        %v7430 = vld [vmem:[%s7417 + $0x30] sm:$0xf]
        %v7431 = vld [vmem:[%s7417 + $0x34] sm:$0xf]
        %v7432 = vld [vmem:[%s7417 + $0x38] sm:$0xf]
        %v7433 = vld [vmem:[%s7417 + $0x3c] sm:$0xf]
        %v7434 = vld [vmem:[%s7417 + $0x40] sm:$0xf]
        %v7435 = vld [vmem:[%s7417 + $0x44] sm:$0xf]
        %v7436 = vld [vmem:[%s7417 + $0x48] sm:$0xf]
        %v7437 = vld [vmem:[%s7417 + $0x4c] sm:$0xf]
        %v7438 = vld [vmem:[%s7417 + $0x50] sm:$0xf]
        %v7439 = vld [vmem:[%s7417 + $0x54] sm:$0xf]
        %v7440 = vld [vmem:[%s7417 + $0x58] sm:$0xf]
        %v7441 = vld [vmem:[%s7417 + $0x5c] sm:$0xf]
        %v7442 = vld [vmem:[%s7417 + $0x60] sm:$0xf]
        %v7443 = vld [vmem:[%s7417 + $0x64] sm:$0xf]
        %v7444 = vld [vmem:[%s7417 + $0x68] sm:$0xf]
        %v7445 = vld [vmem:[%s7417 + $0x6c] sm:$0xf]
        %v7446 = vld [vmem:[%s7417 + $0x70] sm:$0xf]
        %v7447 = vld [vmem:[%s7417 + $0x74] sm:$0xf]
        %v7448 = vld [vmem:[%s7417 + $0x78] sm:$0xf]
        %v7449 = vld [vmem:[%s7417 + $0x7c] sm:$0xf]
        %v7450 = vld [vmem:[%s7417 + $0x80] sm:$0xf]
        %v7451 = vld [vmem:[%s7417 + $0x84] sm:$0xf]
        %v7452 = vld [vmem:[%s7417 + $0x88] sm:$0xf]
        %v7453 = vld [vmem:[%s7417 + $0x8c] sm:$0xf]
        %v7454 = vld [vmem:[%s7417 + $0x90] sm:$0xf]
        %v7455 = vld [vmem:[%s7417 + $0x94] sm:$0xf]
        %v7456 = vld [vmem:[%s7417 + $0x98] sm:$0xf]
        %v7457 = vld [vmem:[%s7417 + $0x9c] sm:$0xf]
        %v7458 = vld [vmem:[%s7417 + $0xa0] sm:$0xf]
        %v7459 = vld [vmem:[%s7417 + $0xa4] sm:$0xf]
        %v7460 = vld [vmem:[%s7417 + $0xa8] sm:$0xf]
        %v7461 = vld [vmem:[%s7417 + $0xac] sm:$0xf]
        %v7462 = vld [vmem:[%s7417 + $0xb0] sm:$0xf]
        %v7463 = vld [vmem:[%s7417 + $0xb4] sm:$0xf]
        %v7464 = vld [vmem:[%s7417 + $0xb8] sm:$0xf]
        %v7465 = vld [vmem:[%s7417 + $0xbc] sm:$0xf]
        %v7482 = vunpack.c.l.b16 %v7401
        %v7483 = vunpack.c.h.b16 %v7401
        %v7484 = vunpack.c.l.b16 %v7402
        %v7485 = vunpack.c.l.b16 %v7403
        %v7486 = vunpack.c.h.b16 %v7403
        %v7487 = vunpack.c.l.b16 %v7404
        %v7488 = vunpack.c.l.b16 %v7405
        %v7489 = vunpack.c.h.b16 %v7405
        %v7490 = vunpack.c.l.b16 %v7406
        %v7491 = vunpack.c.l.b16 %v7407
        %v7492 = vunpack.c.h.b16 %v7407
        %v7493 = vunpack.c.l.b16 %v7408
        %v7494 = vunpack.c.l.b16 %v7409
        %v7495 = vunpack.c.h.b16 %v7409
        %v7496 = vunpack.c.l.b16 %v7410
        %v7497 = vunpack.c.l.b16 %v7411
        %v7498 = vunpack.c.h.b16 %v7411
        %v7499 = vunpack.c.l.b16 %v7412
        %v7500 = vunpack.c.l.b16 %v7413
        %v7501 = vunpack.c.h.b16 %v7413
        %v7502 = vunpack.c.l.b16 %v7414
        %v7503 = vunpack.c.l.b16 %v7415
        %v7504 = vunpack.c.h.b16 %v7415
        %v7505 = vunpack.c.l.b16 %v7416
        %v7506 = vpack.c.b16 %v7485, %v7482
        %v7507 = vpack.c.b16 %v7486, %v7483
        %v7508 = vpack.c.b16 %v7487, %v7484
        %v7509 = vpack.c.b16 %v7491, %v7488
        %v7510 = vpack.c.b16 %v7492, %v7489
        %v7511 = vpack.c.b16 %v7493, %v7490
        %v7512 = vpack.c.b16 %v7497, %v7494
        %v7513 = vpack.c.b16 %v7498, %v7495
        %v7514 = vpack.c.b16 %v7499, %v7496
        %v7515 = vpack.c.b16 %v7503, %v7500
        %v7516 = vpack.c.b16 %v7504, %v7501
        %v7517 = vpack.c.b16 %v7505, %v7502
        %v7578 = vunpack.c.l.b16 %v7418
        %v7579 = vunpack.c.l.b16 %v7419
        %v7580 = vunpack.c.l.b16 %v7420
        %v7581 = vunpack.c.l.b16 %v7421
        %v7582 = vunpack.c.l.b16 %v7422
        %v7583 = vunpack.c.l.b16 %v7423
        %v7584 = vunpack.c.l.b16 %v7424
        %v7585 = vunpack.c.l.b16 %v7425
        %v7586 = vunpack.c.l.b16 %v7426
        %v7587 = vunpack.c.l.b16 %v7427
        %v7588 = vunpack.c.l.b16 %v7428
        %v7589 = vunpack.c.l.b16 %v7429
        %v7590 = vunpack.c.l.b16 %v7430
        %v7591 = vunpack.c.l.b16 %v7431
        %v7592 = vunpack.c.l.b16 %v7432
        %v7593 = vunpack.c.l.b16 %v7433
        %v7594 = vunpack.c.l.b16 %v7434
        %v7595 = vunpack.c.l.b16 %v7435
        %v7596 = vunpack.c.l.b16 %v7436
        %v7597 = vunpack.c.l.b16 %v7437
        %v7598 = vunpack.c.l.b16 %v7438
        %v7599 = vunpack.c.l.b16 %v7439
        %v7600 = vunpack.c.l.b16 %v7440
        %v7601 = vunpack.c.l.b16 %v7441
        %v7602 = vunpack.c.l.b16 %v7442
        %v7603 = vunpack.c.l.b16 %v7443
        %v7604 = vunpack.c.l.b16 %v7444
        %v7605 = vunpack.c.l.b16 %v7445
        %v7606 = vunpack.c.l.b16 %v7446
        %v7607 = vunpack.c.l.b16 %v7447
        %v7608 = vunpack.c.l.b16 %v7448
        %v7609 = vunpack.c.l.b16 %v7449
        %v7610 = vunpack.c.l.b16 %v7450
        %v7611 = vunpack.c.l.b16 %v7451
        %v7612 = vunpack.c.l.b16 %v7452
        %v7613 = vunpack.c.l.b16 %v7453
        %v7614 = vunpack.c.l.b16 %v7454
        %v7615 = vunpack.c.l.b16 %v7455
        %v7616 = vunpack.c.l.b16 %v7456
        %v7617 = vunpack.c.l.b16 %v7457
        %v7618 = vunpack.c.l.b16 %v7458
        %v7619 = vunpack.c.l.b16 %v7459
        %v7620 = vunpack.c.l.b16 %v7460
        %v7621 = vunpack.c.l.b16 %v7461
        %v7622 = vunpack.c.l.b16 %v7462
        %v7623 = vunpack.c.l.b16 %v7463
        %v7624 = vunpack.c.l.b16 %v7464
        %v7625 = vunpack.c.l.b16 %v7465
        %v7626 = vpack.c.b16 %v7579, %v7578
        %v7627 = vpack.c.b16 %v7581, %v7580
        %v7628 = vpack.c.b16 %v7583, %v7582
        %v7629 = vpack.c.b16 %v7585, %v7584
        %v7630 = vpack.c.b16 %v7587, %v7586
        %v7631 = vpack.c.b16 %v7589, %v7588
        %v7632 = vpack.c.b16 %v7591, %v7590
        %v7633 = vpack.c.b16 %v7593, %v7592
        %v7634 = vpack.c.b16 %v7595, %v7594
        %v7635 = vpack.c.b16 %v7597, %v7596
        %v7636 = vpack.c.b16 %v7599, %v7598
        %v7637 = vpack.c.b16 %v7601, %v7600
        %v7638 = vpack.c.b16 %v7603, %v7602
        %v7639 = vpack.c.b16 %v7605, %v7604
        %v7640 = vpack.c.b16 %v7607, %v7606
        %v7641 = vpack.c.b16 %v7609, %v7608
        %v7642 = vpack.c.b16 %v7611, %v7610
        %v7643 = vpack.c.b16 %v7613, %v7612
        %v7644 = vpack.c.b16 %v7615, %v7614
        %v7645 = vpack.c.b16 %v7617, %v7616
        %v7646 = vpack.c.b16 %v7619, %v7618
        %v7647 = vpack.c.b16 %v7621, %v7620
        %v7648 = vpack.c.b16 %v7623, %v7622
        %v7649 = vpack.c.b16 %v7625, %v7624
        %7674 = vmatpush.bf16.msra.mxu0 %v7633
        %7675 = vmatpush.bf16.msra.mxu0 %v7632
        %7676 = vmatpush.bf16.msra.mxu0 %v7631
        %7677 = vmatpush.bf16.msra.mxu0 %v7630
        %7678 = vmatpush.bf16.msra.mxu0 %v7629
        %7679 = vmatpush.bf16.msra.mxu0 %v7628
        %7680 = vmatpush.bf16.msra.mxu0 %v7627
        %7681 = vmatpush.bf16.msra.mxu0 %v7626
        %7682 = vmatmul.bf16.gmra.mxu0 %v7506
        %v7683 = vpop.f32.mrf.mxu0
        %v7684 = vadd.f32 0.0, %v7683
        %v7685 = vpop.f32.mrf.mxu0
        %7686 = vmatmul.bf16.gmra.mxu0 %v7509
        %v7687 = vpop.f32.mrf.mxu0
        %v7688 = vadd.f32 0.0, %v7687
        %v7689 = vpop.f32.mrf.mxu0
        %7690 = vmatmul.bf16.gmra.mxu0 %v7512
        %v7691 = vpop.f32.mrf.mxu0
        %v7692 = vadd.f32 0.0, %v7691
        %v7693 = vpop.f32.mrf.mxu0
        %7694 = vmatmul.bf16.gmra.mxu0 %v7515
        %v7695 = vpop.f32.mrf.mxu0
        %v7696 = vadd.f32 0.0, %v7695
        %v7697 = vpop.f32.mrf.mxu0
        %7698 = vdwg.mxu0
        %7699 = vmatpush.bf16.msra.mxu0 %v7641
        %7700 = vmatpush.bf16.msra.mxu0 %v7640
        %7701 = vmatpush.bf16.msra.mxu0 %v7639
        %7702 = vmatpush.bf16.msra.mxu0 %v7638
        %7703 = vmatpush.bf16.msra.mxu0 %v7637
        %7704 = vmatpush.bf16.msra.mxu0 %v7636
        %7705 = vmatpush.bf16.msra.mxu0 %v7635
        %7706 = vmatpush.bf16.msra.mxu0 %v7634
        %7707 = vmatmul.bf16.gmra.mxu0 %v7507
        %v7708 = vpop.f32.mrf.mxu0
        %v7709 = vadd.f32 %v7684, %v7708
        %v7710 = vpop.f32.mrf.mxu0
        %7711 = vmatmul.bf16.gmra.mxu0 %v7510
        %v7712 = vpop.f32.mrf.mxu0
        %v7713 = vadd.f32 %v7688, %v7712
        %v7714 = vpop.f32.mrf.mxu0
        %7715 = vmatmul.bf16.gmra.mxu0 %v7513
        %v7716 = vpop.f32.mrf.mxu0
        %v7717 = vadd.f32 %v7692, %v7716
        %v7718 = vpop.f32.mrf.mxu0
        %7719 = vmatmul.bf16.gmra.mxu0 %v7516
        %v7720 = vpop.f32.mrf.mxu0
        %v7721 = vadd.f32 %v7696, %v7720
        %v7722 = vpop.f32.mrf.mxu0
        %7723 = vdwg.mxu0
        %7724 = vmatpush.bf16.msra.mxu0 %v7649
        %7725 = vmatpush.bf16.msra.mxu0 %v7648
        %7726 = vmatpush.bf16.msra.mxu0 %v7647
        %7727 = vmatpush.bf16.msra.mxu0 %v7646
        %7728 = vmatpush.bf16.msra.mxu0 %v7645
        %7729 = vmatpush.bf16.msra.mxu0 %v7644
        %7730 = vmatpush.bf16.msra.mxu0 %v7643
        %7731 = vmatpush.bf16.msra.mxu0 %v7642
        %7732 = vmatmul.bf16.gmra.mxu0 %v7508
        %v7733 = vpop.f32.mrf.mxu0
        %v7734 = vadd.f32 %v7709, %v7733
        %v7735 = vpop.f32.mrf.mxu0
        %7736 = vmatmul.bf16.gmra.mxu0 %v7511
        %v7737 = vpop.f32.mrf.mxu0
        %v7738 = vadd.f32 %v7713, %v7737
        %v7739 = vpop.f32.mrf.mxu0
        %7740 = vmatmul.bf16.gmra.mxu0 %v7514
        %v7741 = vpop.f32.mrf.mxu0
        %v7742 = vadd.f32 %v7717, %v7741
        %v7743 = vpop.f32.mrf.mxu0
        %7744 = vmatmul.bf16.gmra.mxu0 %v7517
        %v7745 = vpop.f32.mrf.mxu0
        %v7746 = vadd.f32 %v7721, %v7745
        %v7747 = vpop.f32.mrf.mxu0
        %7748 = vdwg.mxu0
        %v7765 = vunpack.c.l.b16 %v7336
        %v7766 = vunpack.c.h.b16 %v7336
        %v7767 = vunpack.c.l.b16 %v7337
        %v7768 = vunpack.c.l.b16 %v7338
        %v7769 = vunpack.c.h.b16 %v7338
        %v7770 = vunpack.c.l.b16 %v7339
        %v7771 = vunpack.c.l.b16 %v7340
        %v7772 = vunpack.c.h.b16 %v7340
        %v7773 = vunpack.c.l.b16 %v7341
        %v7774 = vunpack.c.l.b16 %v7342
        %v7775 = vunpack.c.h.b16 %v7342
        %v7776 = vunpack.c.l.b16 %v7343
        %v7777 = vunpack.c.l.b16 %v7344
        %v7778 = vunpack.c.h.b16 %v7344
        %v7779 = vunpack.c.l.b16 %v7345
        %v7780 = vunpack.c.l.b16 %v7346
        %v7781 = vunpack.c.h.b16 %v7346
        %v7782 = vunpack.c.l.b16 %v7347
        %v7783 = vunpack.c.l.b16 %v7348
        %v7784 = vunpack.c.h.b16 %v7348
        %v7785 = vunpack.c.l.b16 %v7349
        %v7786 = vunpack.c.l.b16 %v7350
        %v7787 = vunpack.c.h.b16 %v7350
        %v7788 = vunpack.c.l.b16 %v7351
        %v7789 = vpack.c.b16 %v7768, %v7765
        %v7790 = vpack.c.b16 %v7769, %v7766
        %v7791 = vpack.c.b16 %v7770, %v7767
        %v7792 = vpack.c.b16 %v7774, %v7771
        %v7793 = vpack.c.b16 %v7775, %v7772
        %v7794 = vpack.c.b16 %v7776, %v7773
        %v7795 = vpack.c.b16 %v7780, %v7777
        %v7796 = vpack.c.b16 %v7781, %v7778
        %v7797 = vpack.c.b16 %v7782, %v7779
        %v7798 = vpack.c.b16 %v7786, %v7783
        %v7799 = vpack.c.b16 %v7787, %v7784
        %v7800 = vpack.c.b16 %v7788, %v7785
        %v7861 = vunpack.c.l.b16 %v7352
        %v7862 = vunpack.c.l.b16 %v7353
        %v7863 = vunpack.c.l.b16 %v7354
        %v7864 = vunpack.c.l.b16 %v7355
        %v7865 = vunpack.c.l.b16 %v7356
        %v7866 = vunpack.c.l.b16 %v7357
        %v7867 = vunpack.c.l.b16 %v7358
        %v7868 = vunpack.c.l.b16 %v7359
        %v7869 = vunpack.c.l.b16 %v7360
        %v7870 = vunpack.c.l.b16 %v7361
        %v7871 = vunpack.c.l.b16 %v7362
        %v7872 = vunpack.c.l.b16 %v7363
        %v7873 = vunpack.c.l.b16 %v7364
        %v7874 = vunpack.c.l.b16 %v7365
        %v7875 = vunpack.c.l.b16 %v7366
        %v7876 = vunpack.c.l.b16 %v7367
        %v7877 = vunpack.c.l.b16 %v7368
        %v7878 = vunpack.c.l.b16 %v7369
        %v7879 = vunpack.c.l.b16 %v7370
        %v7880 = vunpack.c.l.b16 %v7371
        %v7881 = vunpack.c.l.b16 %v7372
        %v7882 = vunpack.c.l.b16 %v7373
        %v7883 = vunpack.c.l.b16 %v7374
        %v7884 = vunpack.c.l.b16 %v7375
        %v7885 = vunpack.c.l.b16 %v7376
        %v7886 = vunpack.c.l.b16 %v7377
        %v7887 = vunpack.c.l.b16 %v7378
        %v7888 = vunpack.c.l.b16 %v7379
        %v7889 = vunpack.c.l.b16 %v7380
        %v7890 = vunpack.c.l.b16 %v7381
        %v7891 = vunpack.c.l.b16 %v7382
        %v7892 = vunpack.c.l.b16 %v7383
        %v7893 = vunpack.c.l.b16 %v7384
        %v7894 = vunpack.c.l.b16 %v7385
        %v7895 = vunpack.c.l.b16 %v7386
        %v7896 = vunpack.c.l.b16 %v7387
        %v7897 = vunpack.c.l.b16 %v7388
        %v7898 = vunpack.c.l.b16 %v7389
        %v7899 = vunpack.c.l.b16 %v7390
        %v7900 = vunpack.c.l.b16 %v7391
        %v7901 = vunpack.c.l.b16 %v7392
        %v7902 = vunpack.c.l.b16 %v7393
        %v7903 = vunpack.c.l.b16 %v7394
        %v7904 = vunpack.c.l.b16 %v7395
        %v7905 = vunpack.c.l.b16 %v7396
        %v7906 = vunpack.c.l.b16 %v7397
        %v7907 = vunpack.c.l.b16 %v7398
        %v7908 = vunpack.c.l.b16 %v7399
        %v7909 = vpack.c.b16 %v7862, %v7861
        %v7910 = vpack.c.b16 %v7864, %v7863
        %v7911 = vpack.c.b16 %v7866, %v7865
        %v7912 = vpack.c.b16 %v7868, %v7867
        %v7913 = vpack.c.b16 %v7870, %v7869
        %v7914 = vpack.c.b16 %v7872, %v7871
        %v7915 = vpack.c.b16 %v7874, %v7873
        %v7916 = vpack.c.b16 %v7876, %v7875
        %v7917 = vpack.c.b16 %v7878, %v7877
        %v7918 = vpack.c.b16 %v7880, %v7879
        %v7919 = vpack.c.b16 %v7882, %v7881
        %v7920 = vpack.c.b16 %v7884, %v7883
        %v7921 = vpack.c.b16 %v7886, %v7885
        %v7922 = vpack.c.b16 %v7888, %v7887
        %v7923 = vpack.c.b16 %v7890, %v7889
        %v7924 = vpack.c.b16 %v7892, %v7891
        %v7925 = vpack.c.b16 %v7894, %v7893
        %v7926 = vpack.c.b16 %v7896, %v7895
        %v7927 = vpack.c.b16 %v7898, %v7897
        %v7928 = vpack.c.b16 %v7900, %v7899
        %v7929 = vpack.c.b16 %v7902, %v7901
        %v7930 = vpack.c.b16 %v7904, %v7903
        %v7931 = vpack.c.b16 %v7906, %v7905
        %v7932 = vpack.c.b16 %v7908, %v7907
        %7957 = vmatpush.bf16.msra.mxu0 %v7916
        %7958 = vmatpush.bf16.msra.mxu0 %v7915
        %7959 = vmatpush.bf16.msra.mxu0 %v7914
        %7960 = vmatpush.bf16.msra.mxu0 %v7913
        %7961 = vmatpush.bf16.msra.mxu0 %v7912
        %7962 = vmatpush.bf16.msra.mxu0 %v7911
        %7963 = vmatpush.bf16.msra.mxu0 %v7910
        %7964 = vmatpush.bf16.msra.mxu0 %v7909
        %7965 = vmatmul.bf16.gmra.mxu0 %v7789
        %v7966 = vpop.f32.mrf.mxu0
        %v7967 = vadd.f32 %v7734, %v7966
        %v7968 = vpop.f32.mrf.mxu0
        %7969 = vmatmul.bf16.gmra.mxu0 %v7792
        %v7970 = vpop.f32.mrf.mxu0
        %v7971 = vadd.f32 %v7738, %v7970
        %v7972 = vpop.f32.mrf.mxu0
        %7973 = vmatmul.bf16.gmra.mxu0 %v7795
        %v7974 = vpop.f32.mrf.mxu0
        %v7975 = vadd.f32 %v7742, %v7974
        %v7976 = vpop.f32.mrf.mxu0
        %7977 = vmatmul.bf16.gmra.mxu0 %v7798
        %v7978 = vpop.f32.mrf.mxu0
        %v7979 = vadd.f32 %v7746, %v7978
        %v7980 = vpop.f32.mrf.mxu0
        %7981 = vdwg.mxu0
        %7982 = vmatpush.bf16.msra.mxu0 %v7924
        %7983 = vmatpush.bf16.msra.mxu0 %v7923
        %7984 = vmatpush.bf16.msra.mxu0 %v7922
        %7985 = vmatpush.bf16.msra.mxu0 %v7921
        %7986 = vmatpush.bf16.msra.mxu0 %v7920
        %7987 = vmatpush.bf16.msra.mxu0 %v7919
        %7988 = vmatpush.bf16.msra.mxu0 %v7918
        %7989 = vmatpush.bf16.msra.mxu0 %v7917
        %7990 = vmatmul.bf16.gmra.mxu0 %v7790
        %v7991 = vpop.f32.mrf.mxu0
        %v7992 = vadd.f32 %v7967, %v7991
        %v7993 = vpop.f32.mrf.mxu0
        %7994 = vmatmul.bf16.gmra.mxu0 %v7793
        %v7995 = vpop.f32.mrf.mxu0
        %v7996 = vadd.f32 %v7971, %v7995
        %v7997 = vpop.f32.mrf.mxu0
        %7998 = vmatmul.bf16.gmra.mxu0 %v7796
        %v7999 = vpop.f32.mrf.mxu0
        %v8000 = vadd.f32 %v7975, %v7999
        %v8001 = vpop.f32.mrf.mxu0
        %8002 = vmatmul.bf16.gmra.mxu0 %v7799
        %v8003 = vpop.f32.mrf.mxu0
        %v8004 = vadd.f32 %v7979, %v8003
        %v8005 = vpop.f32.mrf.mxu0
        %8006 = vdwg.mxu0
        %8007 = vmatpush.bf16.msra.mxu0 %v7932
        %8008 = vmatpush.bf16.msra.mxu0 %v7931
        %8009 = vmatpush.bf16.msra.mxu0 %v7930
        %8010 = vmatpush.bf16.msra.mxu0 %v7929
        %8011 = vmatpush.bf16.msra.mxu0 %v7928
        %8012 = vmatpush.bf16.msra.mxu0 %v7927
        %8013 = vmatpush.bf16.msra.mxu0 %v7926
        %8014 = vmatpush.bf16.msra.mxu0 %v7925
        %8015 = vmatmul.bf16.gmra.mxu0 %v7791
        %v8016 = vpop.f32.mrf.mxu0
        %v8017 = vadd.f32 %v7992, %v8016
        %v8018 = vpop.f32.mrf.mxu0
        %8019 = vmatmul.bf16.gmra.mxu0 %v7794
        %v8020 = vpop.f32.mrf.mxu0
        %v8021 = vadd.f32 %v7996, %v8020
        %v8022 = vpop.f32.mrf.mxu0
        %8023 = vmatmul.bf16.gmra.mxu0 %v7797
        %v8024 = vpop.f32.mrf.mxu0
        %v8025 = vadd.f32 %v8000, %v8024
        %v8026 = vpop.f32.mrf.mxu0
        %8027 = vmatmul.bf16.gmra.mxu0 %v7800
        %v8028 = vpop.f32.mrf.mxu0
        %v8029 = vadd.f32 %v8004, %v8028
        %v8030 = vpop.f32.mrf.mxu0
        %8031 = vdwg.mxu0
        %s8032 = scalar_lea.vmem [#allocation4], 48
        %v8033 = vld [vmem:[%s8032] sm:$0xff]
        %v8034 = vld [vmem:[%s8032 + $0x8] sm:$0xf]
        %v8035 = vld [vmem:[%s8032 + $0xc] sm:$0xff]
        %v8036 = vld [vmem:[%s8032 + $0x14] sm:$0xf]
        %v8037 = vld [vmem:[%s8032 + $0x18] sm:$0xff]
        %v8038 = vld [vmem:[%s8032 + $0x20] sm:$0xf]
        %v8039 = vld [vmem:[%s8032 + $0x24] sm:$0xff]
        %v8040 = vld [vmem:[%s8032 + $0x2c] sm:$0xf]
        %v8041 = vld [vmem:[%s8032 + $0x30] sm:$0xff]
        %v8042 = vld [vmem:[%s8032 + $0x38] sm:$0xf]
        %v8043 = vld [vmem:[%s8032 + $0x3c] sm:$0xff]
        %v8044 = vld [vmem:[%s8032 + $0x44] sm:$0xf]
        %v8045 = vld [vmem:[%s8032 + $0x48] sm:$0xff]
        %v8046 = vld [vmem:[%s8032 + $0x50] sm:$0xf]
        %v8047 = vld [vmem:[%s8032 + $0x54] sm:$0xff]
        %v8048 = vld [vmem:[%s8032 + $0x5c] sm:$0xf]
        %s8049 = scalar_lea.vmem %s7, 384
        %v8050 = vld [vmem:[%s8049] sm:$0xf]
        %v8051 = vld [vmem:[%s8049 + $0x4] sm:$0xf]
        %v8052 = vld [vmem:[%s8049 + $0x8] sm:$0xf]
        %v8053 = vld [vmem:[%s8049 + $0xc] sm:$0xf]
        %v8054 = vld [vmem:[%s8049 + $0x10] sm:$0xf]
        %v8055 = vld [vmem:[%s8049 + $0x14] sm:$0xf]
        %v8056 = vld [vmem:[%s8049 + $0x18] sm:$0xf]
        %v8057 = vld [vmem:[%s8049 + $0x1c] sm:$0xf]
        %v8058 = vld [vmem:[%s8049 + $0x20] sm:$0xf]
        %v8059 = vld [vmem:[%s8049 + $0x24] sm:$0xf]
        %v8060 = vld [vmem:[%s8049 + $0x28] sm:$0xf]
        %v8061 = vld [vmem:[%s8049 + $0x2c] sm:$0xf]
        %v8062 = vld [vmem:[%s8049 + $0x30] sm:$0xf]
        %v8063 = vld [vmem:[%s8049 + $0x34] sm:$0xf]
        %v8064 = vld [vmem:[%s8049 + $0x38] sm:$0xf]
        %v8065 = vld [vmem:[%s8049 + $0x3c] sm:$0xf]
        %v8066 = vld [vmem:[%s8049 + $0x40] sm:$0xf]
        %v8067 = vld [vmem:[%s8049 + $0x44] sm:$0xf]
        %v8068 = vld [vmem:[%s8049 + $0x48] sm:$0xf]
        %v8069 = vld [vmem:[%s8049 + $0x4c] sm:$0xf]
        %v8070 = vld [vmem:[%s8049 + $0x50] sm:$0xf]
        %v8071 = vld [vmem:[%s8049 + $0x54] sm:$0xf]
        %v8072 = vld [vmem:[%s8049 + $0x58] sm:$0xf]
        %v8073 = vld [vmem:[%s8049 + $0x5c] sm:$0xf]
        %v8074 = vld [vmem:[%s8049 + $0x60] sm:$0xf]
        %v8075 = vld [vmem:[%s8049 + $0x64] sm:$0xf]
        %v8076 = vld [vmem:[%s8049 + $0x68] sm:$0xf]
        %v8077 = vld [vmem:[%s8049 + $0x6c] sm:$0xf]
        %v8078 = vld [vmem:[%s8049 + $0x70] sm:$0xf]
        %v8079 = vld [vmem:[%s8049 + $0x74] sm:$0xf]
        %v8080 = vld [vmem:[%s8049 + $0x78] sm:$0xf]
        %v8081 = vld [vmem:[%s8049 + $0x7c] sm:$0xf]
        %v8082 = vld [vmem:[%s8049 + $0x80] sm:$0xf]
        %v8083 = vld [vmem:[%s8049 + $0x84] sm:$0xf]
        %v8084 = vld [vmem:[%s8049 + $0x88] sm:$0xf]
        %v8085 = vld [vmem:[%s8049 + $0x8c] sm:$0xf]
        %v8086 = vld [vmem:[%s8049 + $0x90] sm:$0xf]
        %v8087 = vld [vmem:[%s8049 + $0x94] sm:$0xf]
        %v8088 = vld [vmem:[%s8049 + $0x98] sm:$0xf]
        %v8089 = vld [vmem:[%s8049 + $0x9c] sm:$0xf]
        %v8090 = vld [vmem:[%s8049 + $0xa0] sm:$0xf]
        %v8091 = vld [vmem:[%s8049 + $0xa4] sm:$0xf]
        %v8092 = vld [vmem:[%s8049 + $0xa8] sm:$0xf]
        %v8093 = vld [vmem:[%s8049 + $0xac] sm:$0xf]
        %v8094 = vld [vmem:[%s8049 + $0xb0] sm:$0xf]
        %v8095 = vld [vmem:[%s8049 + $0xb4] sm:$0xf]
        %v8096 = vld [vmem:[%s8049 + $0xb8] sm:$0xf]
        %v8097 = vld [vmem:[%s8049 + $0xbc] sm:$0xf]
        %v8114 = vunpack.c.l.b16 %v8033
        %v8115 = vunpack.c.h.b16 %v8033
        %v8116 = vunpack.c.l.b16 %v8034
        %v8117 = vunpack.c.l.b16 %v8035
        %v8118 = vunpack.c.h.b16 %v8035
        %v8119 = vunpack.c.l.b16 %v8036
        %v8120 = vunpack.c.l.b16 %v8037
        %v8121 = vunpack.c.h.b16 %v8037
        %v8122 = vunpack.c.l.b16 %v8038
        %v8123 = vunpack.c.l.b16 %v8039
        %v8124 = vunpack.c.h.b16 %v8039
        %v8125 = vunpack.c.l.b16 %v8040
        %v8126 = vunpack.c.l.b16 %v8041
        %v8127 = vunpack.c.h.b16 %v8041
        %v8128 = vunpack.c.l.b16 %v8042
        %v8129 = vunpack.c.l.b16 %v8043
        %v8130 = vunpack.c.h.b16 %v8043
        %v8131 = vunpack.c.l.b16 %v8044
        %v8132 = vunpack.c.l.b16 %v8045
        %v8133 = vunpack.c.h.b16 %v8045
        %v8134 = vunpack.c.l.b16 %v8046
        %v8135 = vunpack.c.l.b16 %v8047
        %v8136 = vunpack.c.h.b16 %v8047
        %v8137 = vunpack.c.l.b16 %v8048
        %v8138 = vpack.c.b16 %v8117, %v8114
        %v8139 = vpack.c.b16 %v8118, %v8115
        %v8140 = vpack.c.b16 %v8119, %v8116
        %v8141 = vpack.c.b16 %v8123, %v8120
        %v8142 = vpack.c.b16 %v8124, %v8121
        %v8143 = vpack.c.b16 %v8125, %v8122
        %v8144 = vpack.c.b16 %v8129, %v8126
        %v8145 = vpack.c.b16 %v8130, %v8127
        %v8146 = vpack.c.b16 %v8131, %v8128
        %v8147 = vpack.c.b16 %v8135, %v8132
        %v8148 = vpack.c.b16 %v8136, %v8133
        %v8149 = vpack.c.b16 %v8137, %v8134
        %v8210 = vunpack.c.l.b16 %v8050
        %v8211 = vunpack.c.l.b16 %v8051
        %v8212 = vunpack.c.l.b16 %v8052
        %v8213 = vunpack.c.l.b16 %v8053
        %v8214 = vunpack.c.l.b16 %v8054
        %v8215 = vunpack.c.l.b16 %v8055
        %v8216 = vunpack.c.l.b16 %v8056
        %v8217 = vunpack.c.l.b16 %v8057
        %v8218 = vunpack.c.l.b16 %v8058
        %v8219 = vunpack.c.l.b16 %v8059
        %v8220 = vunpack.c.l.b16 %v8060
        %v8221 = vunpack.c.l.b16 %v8061
        %v8222 = vunpack.c.l.b16 %v8062
        %v8223 = vunpack.c.l.b16 %v8063
        %v8224 = vunpack.c.l.b16 %v8064
        %v8225 = vunpack.c.l.b16 %v8065
        %v8226 = vunpack.c.l.b16 %v8066
        %v8227 = vunpack.c.l.b16 %v8067
        %v8228 = vunpack.c.l.b16 %v8068
        %v8229 = vunpack.c.l.b16 %v8069
        %v8230 = vunpack.c.l.b16 %v8070
        %v8231 = vunpack.c.l.b16 %v8071
        %v8232 = vunpack.c.l.b16 %v8072
        %v8233 = vunpack.c.l.b16 %v8073
        %v8234 = vunpack.c.l.b16 %v8074
        %v8235 = vunpack.c.l.b16 %v8075
        %v8236 = vunpack.c.l.b16 %v8076
        %v8237 = vunpack.c.l.b16 %v8077
        %v8238 = vunpack.c.l.b16 %v8078
        %v8239 = vunpack.c.l.b16 %v8079
        %v8240 = vunpack.c.l.b16 %v8080
        %v8241 = vunpack.c.l.b16 %v8081
        %v8242 = vunpack.c.l.b16 %v8082
        %v8243 = vunpack.c.l.b16 %v8083
        %v8244 = vunpack.c.l.b16 %v8084
        %v8245 = vunpack.c.l.b16 %v8085
        %v8246 = vunpack.c.l.b16 %v8086
        %v8247 = vunpack.c.l.b16 %v8087
        %v8248 = vunpack.c.l.b16 %v8088
        %v8249 = vunpack.c.l.b16 %v8089
        %v8250 = vunpack.c.l.b16 %v8090
        %v8251 = vunpack.c.l.b16 %v8091
        %v8252 = vunpack.c.l.b16 %v8092
        %v8253 = vunpack.c.l.b16 %v8093
        %v8254 = vunpack.c.l.b16 %v8094
        %v8255 = vunpack.c.l.b16 %v8095
        %v8256 = vunpack.c.l.b16 %v8096
        %v8257 = vunpack.c.l.b16 %v8097
        %v8258 = vpack.c.b16 %v8211, %v8210
        %v8259 = vpack.c.b16 %v8213, %v8212
        %v8260 = vpack.c.b16 %v8215, %v8214
        %v8261 = vpack.c.b16 %v8217, %v8216
        %v8262 = vpack.c.b16 %v8219, %v8218
        %v8263 = vpack.c.b16 %v8221, %v8220
        %v8264 = vpack.c.b16 %v8223, %v8222
        %v8265 = vpack.c.b16 %v8225, %v8224
        %v8266 = vpack.c.b16 %v8227, %v8226
        %v8267 = vpack.c.b16 %v8229, %v8228
        %v8268 = vpack.c.b16 %v8231, %v8230
        %v8269 = vpack.c.b16 %v8233, %v8232
        %v8270 = vpack.c.b16 %v8235, %v8234
        %v8271 = vpack.c.b16 %v8237, %v8236
        %v8272 = vpack.c.b16 %v8239, %v8238
        %v8273 = vpack.c.b16 %v8241, %v8240
        %v8274 = vpack.c.b16 %v8243, %v8242
        %v8275 = vpack.c.b16 %v8245, %v8244
        %v8276 = vpack.c.b16 %v8247, %v8246
        %v8277 = vpack.c.b16 %v8249, %v8248
        %v8278 = vpack.c.b16 %v8251, %v8250
        %v8279 = vpack.c.b16 %v8253, %v8252
        %v8280 = vpack.c.b16 %v8255, %v8254
        %v8281 = vpack.c.b16 %v8257, %v8256
        %8306 = vmatpush.bf16.msra.mxu0 %v8265
        %8307 = vmatpush.bf16.msra.mxu0 %v8264
        %8308 = vmatpush.bf16.msra.mxu0 %v8263
        %8309 = vmatpush.bf16.msra.mxu0 %v8262
        %8310 = vmatpush.bf16.msra.mxu0 %v8261
        %8311 = vmatpush.bf16.msra.mxu0 %v8260
        %8312 = vmatpush.bf16.msra.mxu0 %v8259
        %8313 = vmatpush.bf16.msra.mxu0 %v8258
        %8314 = vmatmul.bf16.gmra.mxu0 %v8138
        %v8315 = vpop.f32.mrf.mxu0
        %v8316 = vadd.f32 0.0, %v8315
        %v8317 = vpop.f32.mrf.mxu0
        %8318 = vmatmul.bf16.gmra.mxu0 %v8141
        %v8319 = vpop.f32.mrf.mxu0
        %v8320 = vadd.f32 0.0, %v8319
        %v8321 = vpop.f32.mrf.mxu0
        %8322 = vmatmul.bf16.gmra.mxu0 %v8144
        %v8323 = vpop.f32.mrf.mxu0
        %v8324 = vadd.f32 0.0, %v8323
        %v8325 = vpop.f32.mrf.mxu0
        %8326 = vmatmul.bf16.gmra.mxu0 %v8147
        %v8327 = vpop.f32.mrf.mxu0
        %v8328 = vadd.f32 0.0, %v8327
        %v8329 = vpop.f32.mrf.mxu0
        %8330 = vdwg.mxu0
        %8331 = vmatpush.bf16.msra.mxu0 %v8273
        %8332 = vmatpush.bf16.msra.mxu0 %v8272
        %8333 = vmatpush.bf16.msra.mxu0 %v8271
        %8334 = vmatpush.bf16.msra.mxu0 %v8270
        %8335 = vmatpush.bf16.msra.mxu0 %v8269
        %8336 = vmatpush.bf16.msra.mxu0 %v8268
        %8337 = vmatpush.bf16.msra.mxu0 %v8267
        %8338 = vmatpush.bf16.msra.mxu0 %v8266
        %8339 = vmatmul.bf16.gmra.mxu0 %v8139
        %v8340 = vpop.f32.mrf.mxu0
        %v8341 = vadd.f32 %v8316, %v8340
        %v8342 = vpop.f32.mrf.mxu0
        %8343 = vmatmul.bf16.gmra.mxu0 %v8142
        %v8344 = vpop.f32.mrf.mxu0
        %v8345 = vadd.f32 %v8320, %v8344
        %v8346 = vpop.f32.mrf.mxu0
        %8347 = vmatmul.bf16.gmra.mxu0 %v8145
        %v8348 = vpop.f32.mrf.mxu0
        %v8349 = vadd.f32 %v8324, %v8348
        %v8350 = vpop.f32.mrf.mxu0
        %8351 = vmatmul.bf16.gmra.mxu0 %v8148
        %v8352 = vpop.f32.mrf.mxu0
        %v8353 = vadd.f32 %v8328, %v8352
        %v8354 = vpop.f32.mrf.mxu0
        %8355 = vdwg.mxu0
        %8356 = vmatpush.bf16.msra.mxu0 %v8281
        %8357 = vmatpush.bf16.msra.mxu0 %v8280
        %8358 = vmatpush.bf16.msra.mxu0 %v8279
        %8359 = vmatpush.bf16.msra.mxu0 %v8278
        %8360 = vmatpush.bf16.msra.mxu0 %v8277
        %8361 = vmatpush.bf16.msra.mxu0 %v8276
        %8362 = vmatpush.bf16.msra.mxu0 %v8275
        %8363 = vmatpush.bf16.msra.mxu0 %v8274
        %8364 = vmatmul.bf16.gmra.mxu0 %v8140
        %v8365 = vpop.f32.mrf.mxu0
        %v8366 = vadd.f32 %v8341, %v8365
        %v8367 = vpop.f32.mrf.mxu0
        %8368 = vmatmul.bf16.gmra.mxu0 %v8143
        %v8369 = vpop.f32.mrf.mxu0
        %v8370 = vadd.f32 %v8345, %v8369
        %v8371 = vpop.f32.mrf.mxu0
        %8372 = vmatmul.bf16.gmra.mxu0 %v8146
        %v8373 = vpop.f32.mrf.mxu0
        %v8374 = vadd.f32 %v8349, %v8373
        %v8375 = vpop.f32.mrf.mxu0
        %8376 = vmatmul.bf16.gmra.mxu0 %v8149
        %v8377 = vpop.f32.mrf.mxu0
        %v8378 = vadd.f32 %v8353, %v8377
        %v8379 = vpop.f32.mrf.mxu0
        %8380 = vdwg.mxu0
        %v8381 = vadd.f32 %v8017, %v8366
        %v8382 = vadd.f32 %v8021, %v8370
        %v8383 = vadd.f32 %v8025, %v8374
        %v8384 = vadd.f32 %v8029, %v8378
        %v8385 = vld [vmem:[%s8] sm:$0x1]
        %v8387 = vperm.slane %v8385, 0
        %v8389 = vadd.f32 %v8381, %v8387
        %v8390 = vadd.f32 %v8382, %v8387
        %v8391 = vadd.f32 %v8383, %v8387
        %v8392 = vadd.f32 %v8384, %v8387
        %v8393 = vmax.f32 %v8389, 0.0
        %v8394 = vmax.f32 %v8390, 0.0
        %v8395 = vmax.f32 %v8391, 0.0
        %v8396 = vmax.f32 %v8392, 0.0
        %8397 = vst [vmem:[%s349] sm:$0xff] %v8393
        %8398 = vst [vmem:[%s349 + $0x8] sm:$0xff] %v8394
        %8399 = vst [vmem:[%s349 + $0x10] sm:$0xff] %v8395
        %8400 = vst [vmem:[%s349 + $0x18] sm:$0xff] %v8396
        %s8401 = sand.u32 %s241, 1
        %s8402 = scalar_lea.sflag [#allocation6], %s8401
        %s8403 = sand.u32 %s241, 1
        %s8404 = smul.addr %s8403, 32
        %s8405 = scalar_lea.vmem [#allocation5], %s8404
        // Predicated region
        $region57: #{shallow_net_forward.1} parent=55 // pred_check
          %p8406 = pneg %p251
        $region58: #{shallow_net_forward.1} parent=55 // pred_check_branch
          %8408 = sbr.rel (%p8406) target = $region60
        $region59: #{shallow_net_forward.1} parent=55 // pred_region
          %s8409 = smul.u32 4, %s28
          %8411 = vsyncadd %s8402, 0
          %s8412 = smul.addr %s27, 8
          %s8413 = sadd.s32 %s8409, %s8412
          %s8414 = smul.addr %s8413, 8
          %s8415 = scalar_lea.hbm %s9, %s8414
          %s8416 = sshll.u32 %s8405, 4
          %s8417 = int_to_ptr.vmem [resolvable:$true] %s8416
          %s8418 = sshll.u32 %s8415, 4
          %s8419 = int_to_ptr.hbm [resolvable:$true] %s8418
          %8424 = dma.vmem_to_hbm [thread:$0]  %s8417, 512, %s8419, %s8402, 128, 128, 8
        $region60: #{shallow_net_forward.1} parent=55 // pred_fallthru
          _
      $region56: #{shallow_net_forward.1} parent=5 // pred_fallthru
        _
      %p8425 = scmp.le.s32.totalorder 2, %s18
      // Predicated region
      $region61: #{shallow_net_forward.1} parent=5 // pred_check
        %p8426 = pneg %p8425
      $region62: #{shallow_net_forward.1} parent=5 // pred_check_branch
        %8428 = sbr.rel (%p8426) target = $region64
      $region63: #{shallow_net_forward.1} parent=5 // pred_region
        %s8429 = ssub.s32 %s18, 2
        // Predicated region
        $region65: #{shallow_net_forward.1} parent=63 // pred_check
          %p8430 = pneg %p257
        $region66: #{shallow_net_forward.1} parent=63 // pred_check_branch
          %8432 = sbr.rel (%p8430) target = $region68
        $region67: #{shallow_net_forward.1} parent=63 // pred_region
          %s8433 = sand.u32 %s242, 1
          %s8434 = scalar_lea.sflag [#allocation6], %s8433
          %s8435 = sand.u32 %s242, 1
          %s8436 = smul.addr %s8435, 32
          %s8437 = scalar_lea.vmem [#allocation5], %s8436
          %8439 = dma.done %s8434, 512
        $region68: #{shallow_net_forward.1} parent=63 // pred_fallthru
          _
      $region64: #{shallow_net_forward.1} parent=5 // pred_fallthru
        _
    $region6: #{shallow_net_forward.1} parent=1 // loop_footer
      %s22 = sadd.s32 1, %s18
    $region7: #{shallow_net_forward.1} parent=1 // loop_footer_branch
      %17 = sbr.rel target = $region3
    $region8: #{shallow_net_forward.1} parent=1 // loop_exit
      _
    %8440 = vsyncpa [#allocation6], 1
    %s8441 = scalar_lea.sflag [#allocation6], 1
    %8442 = vsyncpa %s8441, 1

</llo_original>
